<compile_context>
chip_gen: v7x
topology: tpu7x:2x2x1
jax: 0.10.0
libtpu: 0.0.40
codegen_flags: <defaults>
</compile_context>

<pallas_src>
import math
import numpy as np
import jax
import jax.numpy as jnp
from jax import lax
from jax.experimental import pallas as pl
from jax.experimental.pallas import tpu as pltpu


# ----------------------- architecture geometry (fixed by the module) ---------
CIN, C1, C2 = 3, 6, 16
KH = KW = 6
H_IN, W_IN = 79, 43                  # chosen so fc1's hard-coded 16*16*7 lines up
HO1, WO1 = H_IN - (KH - 1), W_IN - (KW - 1)    # 74, 38
HP1, WP1 = HO1 // 2, WO1 // 2                  # 37, 19
HO2, WO2 = HP1 - (KH - 1), WP1 - (KW - 1)      # 32, 14
HP2, WP2 = HO2 // 2, WO2 // 2                  # 16, 7
LX = W_IN * CIN                      # 129 input lanes per row: (w, cin)
L1 = WP1 * C1                        # 114 real pooled1 lanes: (pw1, c1)
L2 = WP2 * C2                        # 112 real pooled2 lanes: (pw2, c2)
WIN = KH + 1                         # 7 input rows feed one pooled1 output row
N_EVEN = HP1 - HP1 // 2              # 19 even pooled1 rows
N_ODD = HP1 // 2                     # 18 odd pooled1 rows
K1 = WIN * W_IN * CIN                # 903 contraction lanes for conv1
BP = 8                               # batch padded to the sublane tile (8-aligned slices)
LP = 128                             # lane-padded block width


# ----------------------------- fused Pallas kernel ---------------------------

def _actor_kernel(x_ref, m1_ref, b1_ref, b2_ref, fc1b_ref,
                  fc2w_ref, fc2b_ref, fc3w_ref, fc3b_ref, fc4w_ref, fc4b_ref,
                  m2_hbm, fc1w_hbm,
                  o_ref,
                  m2_vmem, fc1w_vmem, sem):
    f32 = jnp.float32

    # Kick off the conv2 / fc1 weight DMAs (~2.75 MB) now; they overlap the
    # conv1 dot instead of sitting in the serial Pallas prologue.
    m2_cp = pltpu.make_async_copy(m2_hbm, m2_vmem, sem.at[0])
    fc1_cp = pltpu.make_async_copy(fc1w_hbm, fc1w_vmem, sem.at[1])
    m2_cp.start()
    fc1_cp.start()

    # ------------------ conv1 + 2x2 max pool : ONE MXU dot -------------------
    # X rows = (window row j, padded batch b); lanes = 7-row input window (rw,w,ci).
    # m1 columns = 4 pooling phases (dh,dw), each a 128-lane block over (pw1,c1).
    r = jnp.dot(x_ref[...], m1_ref[...], preferred_element_type=f32)   # (296, 512)
    p1 = jnp.maximum(jnp.maximum(r[:, 0 * LP:1 * LP], r[:, 1 * LP:2 * LP]),
                     jnp.maximum(r[:, 2 * LP:3 * LP], r[:, 3 * LP:4 * LP]))
    p1 = p1 + b1_ref[...]                                              # (296, 128)
    pe = p1[:N_EVEN * BP]            # pooled1 rows 2q   : (152, 128), rows (q, b)
    po = p1[N_EVEN * BP:]            # pooled1 rows 2q+1 : (144, 128), rows (q, b)

    # ------------------ conv2 + 2x2 max pool : ONE long-K dot ----------------
    # kh contraction  -> lane-concat of 6 aligned row slices (K = 6*128)
    # dh pool phase   -> row-concat of the two LHS halves (max over row halves)
    # dw pool phase   -> the two 128-lane blocks of m2     (max over lane halves)
    RB = HP2 * BP                    # 128 rows = (ph2, b)

    def p1_rows(s):                  # pooled1 rows 2*ph2 + s for ph2 = 0..15
        j = s // 2
        src = pe if s % 2 == 0 else po
        return src[j * BP:j * BP + RB, :]          # 8-aligned (128, 128) view

    lhs = jnp.concatenate(
        [jnp.concatenate([p1_rows(dh + kh) for kh in range(KH)], axis=1)
         for dh in range(2)], axis=0)                                   # (256, 768)
    m2_cp.wait()
    v = jnp.dot(lhs, m2_vmem[...], preferred_element_type=f32)          # (256, 256)
    v = jnp.maximum(v[:RB], v[RB:])                                     # max over dh
    p2 = jnp.maximum(v[:, :LP], v[:, LP:]) + b2_ref[...]                # max over dw -> (128, 128)

    # ------------------------------ fc1 .. fc4 -------------------------------
    # Re-tile rows (ph2, b) -> (b, ph2*128) with 16 aligned one-vreg copies,
    # then a single K=2048 dot against the zero-padded fc1 weight slab.
    p2r = jnp.concatenate([p2[ph * BP:(ph + 1) * BP, :] for ph in range(HP2)],
                          axis=1)                                        # (8, 2048)
    fc1_cp.wait()
    h = jnp.maximum(jnp.dot(p2r, fc1w_vmem[...], preferred_element_type=f32)
                    + fc1b_ref[...], 0.0)
    h = jnp.maximum(jnp.dot(h, fc2w_ref[...], preferred_element_type=f32)
                    + fc2b_ref[...], 0.0)
    h = jnp.maximum(jnp.dot(h, fc3w_ref[...], preferred_element_type=f32)
                    + fc3b_ref[...], 0.0)
    y = jnp.tanh(jnp.dot(h, fc4w_ref[...], preferred_element_type=f32)
                 + fc4b_ref[...])                                        # (8, A)
    o_ref[...] = y[:o_ref.shape[0], :]


def _vmem():
    return pl.BlockSpec(memory_space=pltpu.MemorySpace.VMEM)


# ------------------------------- JAX wrapper ---------------------------------

@jax.jit
def actor_forward(x_nchw, prep):
    if x_nchw.ndim == 3:                          # matches inp.unsqueeze(0)
        x_nchw = x_nchw[None]
    B = x_nchw.shape[0]
    assert B <= BP, f"batch {B} > padded batch {BP}"
    A = prep['fc4_wT'].shape[1]

    # lanes = (w, ci); rows = input image rows; batch zero-padded to 8 so every
    # in-kernel (q, b) row slice is 8-sublane aligned.
    x_l = jnp.transpose(x_nchw, (0, 2, 3, 1)).reshape(B, H_IN, LX)
    x_l = jnp.pad(x_l, ((0, BP - B), (0, 0), (0, 0)))
    # 7-row input windows: even pooled1 rows (base 4q) first, odd (base 4q+2) after.
    base = jnp.concatenate([4 * jnp.arange(N_EVEN), 4 * jnp.arange(N_ODD) + 2])
    win = base[:, None] + jnp.arange(WIN)[None, :]                 # (37, 7)
    X = jnp.transpose(x_l[:, win, :], (1, 0, 2, 3)).reshape((N_EVEN + N_ODD) * BP,
                                                            K1)    # (296, 903)

    return pl.pallas_call(
        _actor_kernel,
        out_shape=jax.ShapeDtypeStruct((B, A), jnp.float32),
        in_specs=[_vmem()] * 11                                # X, m1, biases, fc2..4
                 + [pl.BlockSpec(memory_space=pl.ANY)] * 2,    # m2, fc1 slab (manual DMA)
        out_specs=_vmem(),
        scratch_shapes=[pltpu.VMEM(prep['m2cat'].shape, jnp.float32),
                        pltpu.VMEM(prep['fc1_slab'].shape, jnp.float32),
                        pltpu.SemaphoreType.DMA((2,))],
    )(X, prep['m1cat'], prep['b1pad'], prep['b2pad'],
      prep['fc1_b'], prep['fc2_wT'], prep['fc2_b'],
      prep['fc3_wT'], prep['fc3_b'], prep['fc4_wT'], prep['fc4_b'],
      prep['m2cat'], prep['fc1_slab'])


# ------------------- one-time weight re-layout (host side) -------------------

def prepare_params(p):
    """Re-layout PyTorch-style weights into lane-padded, phase-concatenated
    banded matrices so the fused kernel needs only 6 MXU dots."""
    w1 = np.asarray(p['conv1_w'], np.float32)     # (C1, CIN, 6, 6)
    w2 = np.asarray(p['conv2_w'], np.float32)     # (C2, C1, 6, 6)

    # conv1+pool: m1cat[(rw,w,ci), phase*128 + (pw1,c1)] = W1[c1,ci,rw-dh,w-2pw1-dw] or 0
    rwi = np.arange(WIN)[:, None, None, None, None]
    wi = np.arange(W_IN)[None, :, None, None, None]
    cii = np.arange(CIN)[None, None, :, None, None]
    pwi = np.arange(WP1)[None, None, None, :, None]
    coi = np.arange(C1)[None, None, None, None, :]
    m1 = np.zeros((4, K1, LP), np.float32)
    for dh in range(2):
        for dw in range(2):
            kh = rwi - dh
            kw = wi - 2 * pwi - dw
            ok = (kh >= 0) & (kh < KH) & (kw >= 0) & (kw < KW)
            val = w1[coi, cii, np.clip(kh, 0, KH - 1), np.clip(kw, 0, KW - 1)]
            m1[dh * 2 + dw, :, :L1] = np.where(ok, val, 0.0).reshape(K1, L1)
    m1cat = np.ascontiguousarray(m1.transpose(1, 0, 2).reshape(K1, 4 * LP))

    # conv2+pool: m2cat[kh*128 + (pw1,c1), dw*128 + (pw2,c2)] = W2[c2,c1,kh,pw1-2pw2-dw] or 0
    w1i = np.arange(WP1)[:, None, None, None]
    c1i = np.arange(C1)[None, :, None, None]
    pw2i = np.arange(WP2)[None, None, :, None]
    co2i = np.arange(C2)[None, None, None, :]
    m2cat = np.zeros((KH * LP, 2 * LP), np.float32)
    for kh in range(KH):
        for dw in range(2):
            kw = w1i - 2 * pw2i - dw
            ok = (kw >= 0) & (kw < KW)
            val = w2[co2i, c1i, kh, np.clip(kw, 0, KW - 1)]
            m2cat[kh * LP:kh * LP + L1, dw * LP:dw * LP + L2] = \
                np.where(ok, val, 0.0).reshape(L1, L2)

    # fc1 slab: rows ph2*128 + (pw2,c2) (padded lanes -> zero rows), cols = 256 outs.
    fc1_w = np.asarray(p['fc1_w'], np.float32)                       # (256, 1792)
    wfc1 = fc1_w.reshape(-1, C2, HP2, WP2).transpose(2, 3, 1, 0).reshape(HP2, L2, -1)
    slab = np.zeros((HP2, LP, wfc1.shape[-1]), np.float32)
    slab[:, :L2, :] = wfc1
    fc1_slab = np.ascontiguousarray(slab.reshape(HP2 * LP, -1))      # (2048, 256)

    b1pad = np.zeros((1, LP), np.float32)
    b1pad[0, :L1] = np.tile(np.asarray(p['conv1_b'], np.float32), WP1)
    b2pad = np.zeros((1, LP), np.float32)
    b2pad[0, :L2] = np.tile(np.asarray(p['conv2_b'], np.float32), WP2)

    def row(v):
        return jnp.asarray(np.asarray(v, np.float32)[None, :])

    return {
        'm1cat': jnp.asarray(m1cat),
        'b1pad': jnp.asarray(b1pad),
        'm2cat': jnp.asarray(m2cat),
        'b2pad': jnp.asarray(b2pad),
        'fc1_slab': jnp.asarray(fc1_slab), 'fc1_b': row(p['fc1_b']),
        'fc2_wT': jnp.asarray(np.asarray(p['fc2_w'], np.float32).T), 'fc2_b': row(p['fc2_b']),
        'fc3_wT': jnp.asarray(np.asarray(p['fc3_w'], np.float32).T), 'fc3_b': row(p['fc3_b']),
        'fc4_wT': jnp.asarray(np.asarray(p['fc4_w'], np.float32).T), 'fc4_b': row(p['fc4_b']),
    }


# -------------------------- deterministic weights ----------------------------

def init_params(key, nb_actions):
    ks = jax.random.split(key, 12)

    def u(k, shape, bound):
        return jax.random.uniform(k, shape, jnp.float32, -bound, bound)

    fan_c1 = 3 * 6 * 6
    fan_c2 = 6 * 6 * 6
    return {
        'conv1_w': u(ks[0], (6, 3, 6, 6), 1.0 / math.sqrt(fan_c1)),
        'conv1_b': u(ks[1], (6,), 1.0 / math.sqrt(fan_c1)),
        'conv2_w': u(ks[2], (16, 6, 6, 6), 1.0 / math.sqrt(fan_c2)),
        'conv2_b': u(ks[3], (16,), 1.0 / math.sqrt(fan_c2)),
        'fc1_w': u(ks[4], (256, 16 * 16 * 7), math.sqrt(6.0 / (16 * 16 * 7))),
        'fc1_b': u(ks[5], (256,), 1.0 / math.sqrt(16 * 16 * 7)),
        'fc2_w': u(ks[6], (128, 256), math.sqrt(6.0 / 256)),
        'fc2_b': u(ks[7], (128,), 1.0 / math.sqrt(256)),
        'fc3_w': u(ks[8], (64, 128), math.sqrt(6.0 / 128)),
        'fc3_b': u(ks[9], (64,), 1.0 / math.sqrt(128)),
        'fc4_w': u(ks[10], (nb_actions, 64), 0.3),
        'fc4_b': u(ks[11], (nb_actions,), 1.0 / math.sqrt(64)),
    }


# ---------------------------- pure-JAX reference -----------------------------

def reference_forward(x_nchw, p):
    y = lax.conv_general_dilated(x_nchw, p['conv1_w'], (1, 1), 'VALID',
                                 dimension_numbers=('NCHW', 'OIHW', 'NCHW'))
    y = y + p['conv1_b'][None, :, None, None]
    y = lax.reduce_window(y, -jnp.inf, lax.max, (1, 1, 2, 2), (1, 1, 2, 2), 'VALID')
    y = lax.conv_general_dilated(y, p['conv2_w'], (1, 1), 'VALID',
                                 dimension_numbers=('NCHW', 'OIHW', 'NCHW'))
    y = y + p['conv2_b'][None, :, None, None]
    y = lax.reduce_window(y, -jnp.inf, lax.max, (1, 1, 2, 2), (1, 1, 2, 2), 'VALID')
    y = y.reshape(y.shape[0], -1)
    y = jnp.maximum(y @ p['fc1_w'].T + p['fc1_b'], 0.0)
    y = jnp.maximum(y @ p['fc2_w'].T + p['fc2_b'], 0.0)
    y = jnp.maximum(y @ p['fc3_w'].T + p['fc3_b'], 0.0)
    return jnp.tanh(y @ p['fc4_w'].T + p['fc4_b'])


# ----------------------------------- main -------------------------------------

if __name__ == "__main__":
    nb_actions = 4
    params = init_params(jax.random.PRNGKey(42), nb_actions)
    prep = prepare_params(params)

    # 79x43 -> conv1 -> 74x38 -> pool -> 37x19 -> conv2 -> 32x14 -> pool -> 16x7
    x = jax.random.normal(jax.random.PRNGKey(0), (2, 3, H_IN, W_IN), jnp.float32)

    out = jax.block_until_ready(actor_forward(x, prep))
    assert out.shape == (2, nb_actions), out.shape

    ref = reference_forward(x, params)
    err = float(jnp.max(jnp.abs(out - ref)))
    assert err < 1e-3, f"max abs error vs reference: {err}"

    print("KERNEL_OK")
</pallas_src>

<mosaic_0001>
module attributes {stable_mosaic.version = 11 : i64} {
  func.func @_actor_kernel(%arg0: memref<296x903xf32, #tpu.memory_space<vmem>>, %arg1: memref<903x512xf32, #tpu.memory_space<vmem>>, %arg2: memref<1x128xf32, #tpu.memory_space<vmem>>, %arg3: memref<1x128xf32, #tpu.memory_space<vmem>>, %arg4: memref<1x256xf32, #tpu.memory_space<vmem>>, %arg5: memref<256x128xf32, #tpu.memory_space<vmem>>, %arg6: memref<1x128xf32, #tpu.memory_space<vmem>>, %arg7: memref<128x64xf32, #tpu.memory_space<vmem>>, %arg8: memref<1x64xf32, #tpu.memory_space<vmem>>, %arg9: memref<64x4xf32, #tpu.memory_space<vmem>>, %arg10: memref<1x4xf32, #tpu.memory_space<vmem>>, %arg11: memref<768x256xf32, #tpu.memory_space<any>>, %arg12: memref<2048x256xf32, #tpu.memory_space<any>>, %arg13: memref<2x4xf32, #tpu.memory_space<vmem>>, %arg14: memref<768x256xf32, #tpu.memory_space<vmem>>, %arg15: memref<2048x256xf32, #tpu.memory_space<vmem>>, %arg16: memref<2x!tpu.dma_semaphore, #tpu.memory_space<semaphore_mem>>) attributes {dimension_semantics = [], scalar_prefetch = 0 : i64, scratch_operands = 3 : i64, tpu.core_type = #tpu.core_type<tc>} {
    %c0_i32 = arith.constant 0 : i32
    %0 = tpu.memref_slice %arg16[%c0_i32] : memref<2x!tpu.dma_semaphore, #tpu.memory_space<semaphore_mem>> -> memref<1x!tpu.dma_semaphore, #tpu.memory_space<semaphore_mem>>
    %1 = tpu.memref_squeeze %0 : memref<1x!tpu.dma_semaphore, #tpu.memory_space<semaphore_mem>> -> memref<!tpu.dma_semaphore, #tpu.memory_space<semaphore_mem>>
    tpu.enqueue_dma source(%arg11 : memref<768x256xf32, #tpu.memory_space<any>>) target(%arg14 : memref<768x256xf32, #tpu.memory_space<vmem>>) target_semaphore(%1 : memref<!tpu.dma_semaphore, #tpu.memory_space<semaphore_mem>>)
    %c1_i32 = arith.constant 1 : i32
    %2 = tpu.memref_slice %arg16[%c1_i32] : memref<2x!tpu.dma_semaphore, #tpu.memory_space<semaphore_mem>> -> memref<1x!tpu.dma_semaphore, #tpu.memory_space<semaphore_mem>>
    %3 = tpu.memref_squeeze %2 : memref<1x!tpu.dma_semaphore, #tpu.memory_space<semaphore_mem>> -> memref<!tpu.dma_semaphore, #tpu.memory_space<semaphore_mem>>
    tpu.enqueue_dma source(%arg12 : memref<2048x256xf32, #tpu.memory_space<any>>) target(%arg15 : memref<2048x256xf32, #tpu.memory_space<vmem>>) target_semaphore(%3 : memref<!tpu.dma_semaphore, #tpu.memory_space<semaphore_mem>>)
    %c0 = arith.constant 0 : index
    %c0_0 = arith.constant 0 : index
    %4 = vector.load %arg0[%c0, %c0_0] : memref<296x903xf32, #tpu.memory_space<vmem>>, vector<296x903xf32>
    %c0_1 = arith.constant 0 : index
    %c0_2 = arith.constant 0 : index
    %5 = vector.load %arg1[%c0_1, %c0_2] : memref<903x512xf32, #tpu.memory_space<vmem>>, vector<903x512xf32>
    %cst = arith.constant dense<0.000000e+00> : vector<296x512xf32>
    %6 = tpu.matmul %4, %5, %cst {dimension_numbers = #tpu.dot_dimension_numbers<[1], [0], [0], [1], [0, 0, 1, 1], [], []>} : vector<296x903xf32>, vector<903x512xf32>, vector<296x512xf32> -> vector<296x512xf32>
    %7 = vector.extract_strided_slice %6 {offsets = [0, 0], sizes = [296, 128], strides = [1, 1]} : vector<296x512xf32> to vector<296x128xf32>
    %8 = vector.extract_strided_slice %6 {offsets = [0, 128], sizes = [296, 128], strides = [1, 1]} : vector<296x512xf32> to vector<296x128xf32>
    %9 = arith.maximumf %7, %8 : vector<296x128xf32>
    %10 = vector.extract_strided_slice %6 {offsets = [0, 256], sizes = [296, 128], strides = [1, 1]} : vector<296x512xf32> to vector<296x128xf32>
    %11 = vector.extract_strided_slice %6 {offsets = [0, 384], sizes = [296, 128], strides = [1, 1]} : vector<296x512xf32> to vector<296x128xf32>
    %12 = arith.maximumf %10, %11 : vector<296x128xf32>
    %13 = arith.maximumf %9, %12 : vector<296x128xf32>
    %c0_3 = arith.constant 0 : index
    %c0_4 = arith.constant 0 : index
    %14 = vector.load %arg2[%c0_3, %c0_4] : memref<1x128xf32, #tpu.memory_space<vmem>>, vector<1x128xf32>
    %15 = vector.broadcast %14 : vector<1x128xf32> to vector<296x128xf32>
    %16 = arith.addf %13, %15 : vector<296x128xf32>
    %17 = vector.extract_strided_slice %16 {offsets = [0, 0], sizes = [152, 128], strides = [1, 1]} : vector<296x128xf32> to vector<152x128xf32>
    %18 = vector.extract_strided_slice %16 {offsets = [152, 0], sizes = [144, 128], strides = [1, 1]} : vector<296x128xf32> to vector<144x128xf32>
    %19 = vector.extract_strided_slice %17 {offsets = [0, 0], sizes = [128, 128], strides = [1, 1]} : vector<152x128xf32> to vector<128x128xf32>
    %20 = vector.extract_strided_slice %18 {offsets = [0, 0], sizes = [128, 128], strides = [1, 1]} : vector<144x128xf32> to vector<128x128xf32>
    %21 = vector.extract_strided_slice %17 {offsets = [8, 0], sizes = [128, 128], strides = [1, 1]} : vector<152x128xf32> to vector<128x128xf32>
    %22 = vector.extract_strided_slice %18 {offsets = [8, 0], sizes = [128, 128], strides = [1, 1]} : vector<144x128xf32> to vector<128x128xf32>
    %23 = vector.extract_strided_slice %17 {offsets = [16, 0], sizes = [128, 128], strides = [1, 1]} : vector<152x128xf32> to vector<128x128xf32>
    %24 = vector.extract_strided_slice %18 {offsets = [16, 0], sizes = [128, 128], strides = [1, 1]} : vector<144x128xf32> to vector<128x128xf32>
    %25 = tpu.concatenate %19, %20, %21, %22, %23, %24 in 1 : vector<128x128xf32>, vector<128x128xf32>, vector<128x128xf32>, vector<128x128xf32>, vector<128x128xf32>, vector<128x128xf32> -> vector<128x768xf32>
    %26 = vector.extract_strided_slice %18 {offsets = [0, 0], sizes = [128, 128], strides = [1, 1]} : vector<144x128xf32> to vector<128x128xf32>
    %27 = vector.extract_strided_slice %17 {offsets = [8, 0], sizes = [128, 128], strides = [1, 1]} : vector<152x128xf32> to vector<128x128xf32>
    %28 = vector.extract_strided_slice %18 {offsets = [8, 0], sizes = [128, 128], strides = [1, 1]} : vector<144x128xf32> to vector<128x128xf32>
    %29 = vector.extract_strided_slice %17 {offsets = [16, 0], sizes = [128, 128], strides = [1, 1]} : vector<152x128xf32> to vector<128x128xf32>
    %30 = vector.extract_strided_slice %18 {offsets = [16, 0], sizes = [128, 128], strides = [1, 1]} : vector<144x128xf32> to vector<128x128xf32>
    %31 = vector.extract_strided_slice %17 {offsets = [24, 0], sizes = [128, 128], strides = [1, 1]} : vector<152x128xf32> to vector<128x128xf32>
    %32 = tpu.concatenate %26, %27, %28, %29, %30, %31 in 1 : vector<128x128xf32>, vector<128x128xf32>, vector<128x128xf32>, vector<128x128xf32>, vector<128x128xf32>, vector<128x128xf32> -> vector<128x768xf32>
    %33 = tpu.concatenate %25, %32 in 0 : vector<128x768xf32>, vector<128x768xf32> -> vector<256x768xf32>
    %c0_i32_5 = arith.constant 0 : i32
    %34 = tpu.memref_slice %arg16[%c0_i32_5] : memref<2x!tpu.dma_semaphore, #tpu.memory_space<semaphore_mem>> -> memref<1x!tpu.dma_semaphore, #tpu.memory_space<semaphore_mem>>
    %35 = tpu.memref_squeeze %34 : memref<1x!tpu.dma_semaphore, #tpu.memory_space<semaphore_mem>> -> memref<!tpu.dma_semaphore, #tpu.memory_space<semaphore_mem>>
    tpu.wait_dma2 semaphore(%35 : memref<!tpu.dma_semaphore, #tpu.memory_space<semaphore_mem>>) src(%arg11 : memref<768x256xf32, #tpu.memory_space<any>>) dst(%arg14 : memref<768x256xf32, #tpu.memory_space<vmem>>)
    %c0_6 = arith.constant 0 : index
    %c0_7 = arith.constant 0 : index
    %36 = vector.load %arg14[%c0_6, %c0_7] : memref<768x256xf32, #tpu.memory_space<vmem>>, vector<768x256xf32>
    %cst_8 = arith.constant dense<0.000000e+00> : vector<256x256xf32>
    %37 = tpu.matmul %33, %36, %cst_8 {dimension_numbers = #tpu.dot_dimension_numbers<[1], [0], [0], [1], [0, 0, 1, 1], [], []>} : vector<256x768xf32>, vector<768x256xf32>, vector<256x256xf32> -> vector<256x256xf32>
    %38 = vector.extract_strided_slice %37 {offsets = [0, 0], sizes = [128, 256], strides = [1, 1]} : vector<256x256xf32> to vector<128x256xf32>
    %39 = vector.extract_strided_slice %37 {offsets = [128, 0], sizes = [128, 256], strides = [1, 1]} : vector<256x256xf32> to vector<128x256xf32>
    %40 = arith.maximumf %38, %39 : vector<128x256xf32>
    %41 = vector.extract_strided_slice %40 {offsets = [0, 0], sizes = [128, 128], strides = [1, 1]} : vector<128x256xf32> to vector<128x128xf32>
    %42 = vector.extract_strided_slice %40 {offsets = [0, 128], sizes = [128, 128], strides = [1, 1]} : vector<128x256xf32> to vector<128x128xf32>
    %43 = arith.maximumf %41, %42 : vector<128x128xf32>
    %c0_9 = arith.constant 0 : index
    %c0_10 = arith.constant 0 : index
    %44 = vector.load %arg3[%c0_9, %c0_10] : memref<1x128xf32, #tpu.memory_space<vmem>>, vector<1x128xf32>
    %45 = vector.broadcast %44 : vector<1x128xf32> to vector<128x128xf32>
    %46 = arith.addf %43, %45 : vector<128x128xf32>
    %47 = vector.extract_strided_slice %46 {offsets = [0, 0], sizes = [8, 128], strides = [1, 1]} : vector<128x128xf32> to vector<8x128xf32>
    %48 = vector.extract_strided_slice %46 {offsets = [8, 0], sizes = [8, 128], strides = [1, 1]} : vector<128x128xf32> to vector<8x128xf32>
    %49 = vector.extract_strided_slice %46 {offsets = [16, 0], sizes = [8, 128], strides = [1, 1]} : vector<128x128xf32> to vector<8x128xf32>
    %50 = vector.extract_strided_slice %46 {offsets = [24, 0], sizes = [8, 128], strides = [1, 1]} : vector<128x128xf32> to vector<8x128xf32>
    %51 = vector.extract_strided_slice %46 {offsets = [32, 0], sizes = [8, 128], strides = [1, 1]} : vector<128x128xf32> to vector<8x128xf32>
    %52 = vector.extract_strided_slice %46 {offsets = [40, 0], sizes = [8, 128], strides = [1, 1]} : vector<128x128xf32> to vector<8x128xf32>
    %53 = vector.extract_strided_slice %46 {offsets = [48, 0], sizes = [8, 128], strides = [1, 1]} : vector<128x128xf32> to vector<8x128xf32>
    %54 = vector.extract_strided_slice %46 {offsets = [56, 0], sizes = [8, 128], strides = [1, 1]} : vector<128x128xf32> to vector<8x128xf32>
    %55 = vector.extract_strided_slice %46 {offsets = [64, 0], sizes = [8, 128], strides = [1, 1]} : vector<128x128xf32> to vector<8x128xf32>
    %56 = vector.extract_strided_slice %46 {offsets = [72, 0], sizes = [8, 128], strides = [1, 1]} : vector<128x128xf32> to vector<8x128xf32>
    %57 = vector.extract_strided_slice %46 {offsets = [80, 0], sizes = [8, 128], strides = [1, 1]} : vector<128x128xf32> to vector<8x128xf32>
    %58 = vector.extract_strided_slice %46 {offsets = [88, 0], sizes = [8, 128], strides = [1, 1]} : vector<128x128xf32> to vector<8x128xf32>
    %59 = vector.extract_strided_slice %46 {offsets = [96, 0], sizes = [8, 128], strides = [1, 1]} : vector<128x128xf32> to vector<8x128xf32>
    %60 = vector.extract_strided_slice %46 {offsets = [104, 0], sizes = [8, 128], strides = [1, 1]} : vector<128x128xf32> to vector<8x128xf32>
    %61 = vector.extract_strided_slice %46 {offsets = [112, 0], sizes = [8, 128], strides = [1, 1]} : vector<128x128xf32> to vector<8x128xf32>
    %62 = vector.extract_strided_slice %46 {offsets = [120, 0], sizes = [8, 128], strides = [1, 1]} : vector<128x128xf32> to vector<8x128xf32>
    %63 = tpu.concatenate %47, %48, %49, %50, %51, %52, %53, %54, %55, %56, %57, %58, %59, %60, %61, %62 in 1 : vector<8x128xf32>, vector<8x128xf32>, vector<8x128xf32>, vector<8x128xf32>, vector<8x128xf32>, vector<8x128xf32>, vector<8x128xf32>, vector<8x128xf32>, vector<8x128xf32>, vector<8x128xf32>, vector<8x128xf32>, vector<8x128xf32>, vector<8x128xf32>, vector<8x128xf32>, vector<8x128xf32>, vector<8x128xf32> -> vector<8x2048xf32>
    %c1_i32_11 = arith.constant 1 : i32
    %64 = tpu.memref_slice %arg16[%c1_i32_11] : memref<2x!tpu.dma_semaphore, #tpu.memory_space<semaphore_mem>> -> memref<1x!tpu.dma_semaphore, #tpu.memory_space<semaphore_mem>>
    %65 = tpu.memref_squeeze %64 : memref<1x!tpu.dma_semaphore, #tpu.memory_space<semaphore_mem>> -> memref<!tpu.dma_semaphore, #tpu.memory_space<semaphore_mem>>
    tpu.wait_dma2 semaphore(%65 : memref<!tpu.dma_semaphore, #tpu.memory_space<semaphore_mem>>) src(%arg12 : memref<2048x256xf32, #tpu.memory_space<any>>) dst(%arg15 : memref<2048x256xf32, #tpu.memory_space<vmem>>)
    %c0_12 = arith.constant 0 : index
    %c0_13 = arith.constant 0 : index
    %66 = vector.load %arg15[%c0_12, %c0_13] : memref<2048x256xf32, #tpu.memory_space<vmem>>, vector<2048x256xf32>
    %cst_14 = arith.constant dense<0.000000e+00> : vector<8x256xf32>
    %67 = tpu.matmul %63, %66, %cst_14 {dimension_numbers = #tpu.dot_dimension_numbers<[1], [0], [0], [1], [0, 0, 1, 1], [], []>} : vector<8x2048xf32>, vector<2048x256xf32>, vector<8x256xf32> -> vector<8x256xf32>
    %c0_15 = arith.constant 0 : index
    %c0_16 = arith.constant 0 : index
    %68 = vector.load %arg4[%c0_15, %c0_16] : memref<1x256xf32, #tpu.memory_space<vmem>>, vector<1x256xf32>
    %69 = vector.broadcast %68 : vector<1x256xf32> to vector<8x256xf32>
    %70 = arith.addf %67, %69 : vector<8x256xf32>
    %cst_17 = arith.constant 0.000000e+00 : f32
    %71 = vector.broadcast %cst_17 : f32 to vector<8x256xf32>
    %72 = arith.maximumf %70, %71 : vector<8x256xf32>
    %c0_18 = arith.constant 0 : index
    %c0_19 = arith.constant 0 : index
    %73 = vector.load %arg5[%c0_18, %c0_19] : memref<256x128xf32, #tpu.memory_space<vmem>>, vector<256x128xf32>
    %cst_20 = arith.constant dense<0.000000e+00> : vector<8x128xf32>
    %74 = tpu.matmul %72, %73, %cst_20 {dimension_numbers = #tpu.dot_dimension_numbers<[1], [0], [0], [1], [0, 0, 1, 1], [], []>} : vector<8x256xf32>, vector<256x128xf32>, vector<8x128xf32> -> vector<8x128xf32>
    %c0_21 = arith.constant 0 : index
    %c0_22 = arith.constant 0 : index
    %75 = vector.load %arg6[%c0_21, %c0_22] : memref<1x128xf32, #tpu.memory_space<vmem>>, vector<1x128xf32>
    %76 = vector.broadcast %75 : vector<1x128xf32> to vector<8x128xf32>
    %77 = arith.addf %74, %76 : vector<8x128xf32>
    %cst_23 = arith.constant 0.000000e+00 : f32
    %78 = vector.broadcast %cst_23 : f32 to vector<8x128xf32>
    %79 = arith.maximumf %77, %78 : vector<8x128xf32>
    %c0_24 = arith.constant 0 : index
    %c0_25 = arith.constant 0 : index
    %80 = vector.load %arg7[%c0_24, %c0_25] : memref<128x64xf32, #tpu.memory_space<vmem>>, vector<128x64xf32>
    %cst_26 = arith.constant dense<0.000000e+00> : vector<8x64xf32>
    %81 = tpu.matmul %79, %80, %cst_26 {dimension_numbers = #tpu.dot_dimension_numbers<[1], [0], [0], [1], [0, 0, 1, 1], [], []>} : vector<8x128xf32>, vector<128x64xf32>, vector<8x64xf32> -> vector<8x64xf32>
    %c0_27 = arith.constant 0 : index
    %c0_28 = arith.constant 0 : index
    %82 = vector.load %arg8[%c0_27, %c0_28] : memref<1x64xf32, #tpu.memory_space<vmem>>, vector<1x64xf32>
    %83 = vector.broadcast %82 : vector<1x64xf32> to vector<8x64xf32>
    %84 = arith.addf %81, %83 : vector<8x64xf32>
    %cst_29 = arith.constant 0.000000e+00 : f32
    %85 = vector.broadcast %cst_29 : f32 to vector<8x64xf32>
    %86 = arith.maximumf %84, %85 : vector<8x64xf32>
    %c0_30 = arith.constant 0 : index
    %c0_31 = arith.constant 0 : index
    %87 = vector.load %arg9[%c0_30, %c0_31] : memref<64x4xf32, #tpu.memory_space<vmem>>, vector<64x4xf32>
    %cst_32 = arith.constant dense<0.000000e+00> : vector<8x4xf32>
    %88 = tpu.matmul %86, %87, %cst_32 {dimension_numbers = #tpu.dot_dimension_numbers<[1], [0], [0], [1], [0, 0, 1, 1], [], []>} : vector<8x64xf32>, vector<64x4xf32>, vector<8x4xf32> -> vector<8x4xf32>
    %c0_33 = arith.constant 0 : index
    %c0_34 = arith.constant 0 : index
    %89 = vector.load %arg10[%c0_33, %c0_34] : memref<1x4xf32, #tpu.memory_space<vmem>>, vector<1x4xf32>
    %90 = vector.broadcast %89 : vector<1x4xf32> to vector<8x4xf32>
    %91 = arith.addf %88, %90 : vector<8x4xf32>
    %92 = math.tanh %91 : vector<8x4xf32>
    %93 = vector.extract_strided_slice %92 {offsets = [0, 0], sizes = [2, 4], strides = [1, 1]} : vector<8x4xf32> to vector<2x4xf32>
    %c0_35 = arith.constant 0 : index
    %c0_36 = arith.constant 0 : index
    %94 = vector.load %arg13[%c0_35, %c0_36] : memref<2x4xf32, #tpu.memory_space<vmem>>, vector<2x4xf32>
    tpu.vector_store %arg13[%c0_35, %c0_36], %93 {strides = array<i32>} : memref<2x4xf32, #tpu.memory_space<vmem>>, vector<2x4xf32>,
    return
  }
}

</mosaic_0001>

<llo_original>
// kernel: actor_forward.1
$region0: #{actor_forward.1}
  #allocation0 [shape = 'u32[]', space=smem, size = 0x4, offset = 0x4, fixed_abs, tag = 'smem constant byte address 0x4 - core index']
  #allocation1 [shape = 'u32[144,128]{1,0:T(1,128)}', space=vmem, size = 0x12000, scoped, tag = 'internal scratch']
  #allocation2 [shape = 'f32[768,256]{1,0:T(8,128)}', space=vmem, size = 0xc0000, scoped, tag = 'scratch operand']
  #allocation3 [shape = 'f32[2048,256]{1,0:T(8,128)}', space=vmem, size = 0x200000, scoped, tag = 'scratch operand']
  #allocation4 [shape = 's32[2]{0}', space=sflag, size = 0x8, scoped, tag = 'scratch operand']
  #allocation7 [shape = 's32[]', space=sflag, size = 0x4, offset = 0, fixed_abs, tag = 'sflag constant byte address 0x0 - dummy sync flag']
  #allocation8 [shape = 's32[]', space=sflag, size = 0x4, offset = 0, fixed_abs, tag = 'sflag constant byte address 0x0 - dummy sync flag']
  %s0 = inlined_call_operand.vmem [shape: f32[296,903], index: 0, kind: input, shape index: {}]
  %s1 = inlined_call_operand.vmem [shape: f32[903,512], index: 1, kind: input, shape index: {}]
  %s2 = inlined_call_operand.vmem [shape: f32[1,128], index: 2, kind: input, shape index: {}]
  %s3 = inlined_call_operand.vmem [shape: f32[1,128], index: 3, kind: input, shape index: {}]
  %s4 = inlined_call_operand.vmem [shape: f32[1,256], index: 4, kind: input, shape index: {}]
  %s5 = inlined_call_operand.vmem [shape: f32[256,128], index: 5, kind: input, shape index: {}]
  %s6 = inlined_call_operand.vmem [shape: f32[1,128], index: 6, kind: input, shape index: {}]
  %s7 = inlined_call_operand.vmem [shape: f32[128,64], index: 7, kind: input, shape index: {}]
  %s8 = inlined_call_operand.vmem [shape: f32[1,64], index: 8, kind: input, shape index: {}]
  %s9 = inlined_call_operand.vmem [shape: f32[64,4], index: 9, kind: input, shape index: {}]
  %s10 = inlined_call_operand.vmem [shape: f32[1,4], index: 10, kind: input, shape index: {}]
  %s11 = inlined_call_operand.vmem [shape: f32[768,256], index: 11, kind: input, shape index: {}]
  %s12 = inlined_call_operand.vmem [shape: f32[2048,256], index: 12, kind: input, shape index: {}]
  %s13 = inlined_call_operand.hbm [shape: f32[2,4], index: 13, kind: output, shape index: {}]
  %s14 = sld [smem:[#allocation0]]
  $region122: #{actor_forward.1} parent=0
    _
  %s16 = ssub.s32 1, %s14
  %s17 = scalar_select 0, %s16, %s14
  $region1: #{actor_forward.1} parent=0
    #allocation5 [shape = 'u8[1024]{0}', space=vmem, size = 0x400, scoped, tag = 'output window, operand 0, single buffered']
    #allocation6 [shape = 's32[1]{0}', space=sflag, size = 0x4, scoped, tag = 'scoped memory for actor_forward.1']
    %18 = vsyncpa [#allocation6], 0
    // Predicated region
    $region2: #{actor_forward.1} parent=1 // pred_check
      _
    $region3: #{actor_forward.1} parent=1 // pred_check_branch
      %20 = sbr.rel (0) target = $region5
    $region4: #{actor_forward.1} parent=1 // pred_region
      _
    $region5: #{actor_forward.1} parent=1 // pred_fallthru
      _
    // Predicated region
    $region6: #{actor_forward.1} parent=1 // pred_check
      _
    $region7: #{actor_forward.1} parent=1 // pred_check_branch
      %22 = sbr.rel (0) target = $region9
    $region8: #{actor_forward.1} parent=1 // pred_region
      _
    $region9: #{actor_forward.1} parent=1 // pred_fallthru
      _
    // Predicated region
    $region10: #{actor_forward.1} parent=1 // pred_check
      _
    $region11: #{actor_forward.1} parent=1 // pred_check_branch
      %24 = sbr.rel (0) target = $region13
    $region12: #{actor_forward.1} parent=1 // pred_region
      _
    $region13: #{actor_forward.1} parent=1 // pred_fallthru
      _
    // Predicated region
    $region14: #{actor_forward.1} parent=1 // pred_check
      _
    $region15: #{actor_forward.1} parent=1 // pred_check_branch
      %26 = sbr.rel (0) target = $region17
    $region16: #{actor_forward.1} parent=1 // pred_region
      _
    $region17: #{actor_forward.1} parent=1 // pred_fallthru
      _
    // Predicated region
    $region18: #{actor_forward.1} parent=1 // pred_check
      _
    $region19: #{actor_forward.1} parent=1 // pred_check_branch
      %28 = sbr.rel (0) target = $region21
    $region20: #{actor_forward.1} parent=1 // pred_region
      _
    $region21: #{actor_forward.1} parent=1 // pred_fallthru
      _
    // Predicated region
    $region22: #{actor_forward.1} parent=1 // pred_check
      _
    $region23: #{actor_forward.1} parent=1 // pred_check_branch
      %30 = sbr.rel (0) target = $region25
    $region24: #{actor_forward.1} parent=1 // pred_region
      _
    $region25: #{actor_forward.1} parent=1 // pred_fallthru
      _
    // Predicated region
    $region26: #{actor_forward.1} parent=1 // pred_check
      _
    $region27: #{actor_forward.1} parent=1 // pred_check_branch
      %32 = sbr.rel (0) target = $region29
    $region28: #{actor_forward.1} parent=1 // pred_region
      _
    $region29: #{actor_forward.1} parent=1 // pred_fallthru
      _
    // Predicated region
    $region30: #{actor_forward.1} parent=1 // pred_check
      _
    $region31: #{actor_forward.1} parent=1 // pred_check_branch
      %34 = sbr.rel (0) target = $region33
    $region32: #{actor_forward.1} parent=1 // pred_region
      _
    $region33: #{actor_forward.1} parent=1 // pred_fallthru
      _
    // Predicated region
    $region34: #{actor_forward.1} parent=1 // pred_check
      _
    $region35: #{actor_forward.1} parent=1 // pred_check_branch
      %36 = sbr.rel (0) target = $region37
    $region36: #{actor_forward.1} parent=1 // pred_region
      _
    $region37: #{actor_forward.1} parent=1 // pred_fallthru
      _
    // Predicated region
    $region38: #{actor_forward.1} parent=1 // pred_check
      _
    $region39: #{actor_forward.1} parent=1 // pred_check_branch
      %38 = sbr.rel (0) target = $region41
    $region40: #{actor_forward.1} parent=1 // pred_region
      _
    $region41: #{actor_forward.1} parent=1 // pred_fallthru
      _
    // Predicated region
    $region42: #{actor_forward.1} parent=1 // pred_check
      _
    $region43: #{actor_forward.1} parent=1 // pred_check_branch
      %40 = sbr.rel (0) target = $region45
    $region44: #{actor_forward.1} parent=1 // pred_region
      _
    $region45: #{actor_forward.1} parent=1 // pred_fallthru
      _
    %p42 = scmp.lt.u32.totalorder 1536, 8
    %p43 = pneg %p42
    // Predicated region
    $region46: #{actor_forward.1} parent=1 // pred_check
      _
    $region47: #{actor_forward.1} parent=1 // pred_check_branch
      %45 = sbr.rel (%p42) target = $region49
    $region48: #{actor_forward.1} parent=1 // pred_region
      %s60 = sand.u32 1536, 7
      %p61 = scmp.eq.s32.totalorder %s60, 0
      // Predicated region
      $region61: #{actor_forward.1} parent=48 // pred_check
        %p62 = pneg %p61
      $region62: #{actor_forward.1} parent=48 // pred_check_branch
        %64 = sbr.rel (%p62) target = $region64
      $region63: #{actor_forward.1} parent=48 // pred_region
        loop: start=0, step=1, limit=1
        $region65: #{actor_forward.1} parent=63 // loop_pre_header
          _
        $region66: #{actor_forward.1} parent=63 // loop_header
          %s66 = sphi 0, %s70
          %p67 = scmp.ge.s32.totalorder %s66, 1
          %s71 = sphi %s11, %s11
          %s72 = sphi [#allocation2], [#allocation2]
        $region67: #{actor_forward.1} parent=63 // loop_header_branch
          %69 = sbr.rel (%p67) target = $region71
        $region68: #{actor_forward.1} parent=63 // loop_body
          %v73 = vld [vmem:[%s71] sm:$0xff]
          %74 = vst [vmem:[%s72] sm:$0xff] %v73
          %v75 = vld [vmem:[%s71 + $0x8] sm:$0xff]
          %76 = vst [vmem:[%s72 + $0x8] sm:$0xff] %v75
          %v77 = vld [vmem:[%s71 + $0x10] sm:$0xff]
          %78 = vst [vmem:[%s72 + $0x10] sm:$0xff] %v77
          %v79 = vld [vmem:[%s71 + $0x18] sm:$0xff]
          %80 = vst [vmem:[%s72 + $0x18] sm:$0xff] %v79
          %v81 = vld [vmem:[%s71 + $0x20] sm:$0xff]
          %82 = vst [vmem:[%s72 + $0x20] sm:$0xff] %v81
          %v83 = vld [vmem:[%s71 + $0x28] sm:$0xff]
          %84 = vst [vmem:[%s72 + $0x28] sm:$0xff] %v83
          %v85 = vld [vmem:[%s71 + $0x30] sm:$0xff]
          %86 = vst [vmem:[%s72 + $0x30] sm:$0xff] %v85
          %v87 = vld [vmem:[%s71 + $0x38] sm:$0xff]
          %88 = vst [vmem:[%s72 + $0x38] sm:$0xff] %v87
          %v89 = vld [vmem:[%s71 + $0x40] sm:$0xff]
          %90 = vst [vmem:[%s72 + $0x40] sm:$0xff] %v89
          %v91 = vld [vmem:[%s71 + $0x48] sm:$0xff]
          %92 = vst [vmem:[%s72 + $0x48] sm:$0xff] %v91
          %v93 = vld [vmem:[%s71 + $0x50] sm:$0xff]
          %94 = vst [vmem:[%s72 + $0x50] sm:$0xff] %v93
          %v95 = vld [vmem:[%s71 + $0x58] sm:$0xff]
          %96 = vst [vmem:[%s72 + $0x58] sm:$0xff] %v95
          %v97 = vld [vmem:[%s71 + $0x60] sm:$0xff]
          %98 = vst [vmem:[%s72 + $0x60] sm:$0xff] %v97
          %v99 = vld [vmem:[%s71 + $0x68] sm:$0xff]
          %100 = vst [vmem:[%s72 + $0x68] sm:$0xff] %v99
          %v101 = vld [vmem:[%s71 + $0x70] sm:$0xff]
          %102 = vst [vmem:[%s72 + $0x70] sm:$0xff] %v101
          %v103 = vld [vmem:[%s71 + $0x78] sm:$0xff]
          %104 = vst [vmem:[%s72 + $0x78] sm:$0xff] %v103
          %v105 = vld [vmem:[%s71 + $0x80] sm:$0xff]
          %106 = vst [vmem:[%s72 + $0x80] sm:$0xff] %v105
          %v107 = vld [vmem:[%s71 + $0x88] sm:$0xff]
          %108 = vst [vmem:[%s72 + $0x88] sm:$0xff] %v107
          %v109 = vld [vmem:[%s71 + $0x90] sm:$0xff]
          %110 = vst [vmem:[%s72 + $0x90] sm:$0xff] %v109
          %v111 = vld [vmem:[%s71 + $0x98] sm:$0xff]
          %112 = vst [vmem:[%s72 + $0x98] sm:$0xff] %v111
          %v113 = vld [vmem:[%s71 + $0xa0] sm:$0xff]
          %114 = vst [vmem:[%s72 + $0xa0] sm:$0xff] %v113
          %v115 = vld [vmem:[%s71 + $0xa8] sm:$0xff]
          %116 = vst [vmem:[%s72 + $0xa8] sm:$0xff] %v115
          %v117 = vld [vmem:[%s71 + $0xb0] sm:$0xff]
          %118 = vst [vmem:[%s72 + $0xb0] sm:$0xff] %v117
          %v119 = vld [vmem:[%s71 + $0xb8] sm:$0xff]
          %120 = vst [vmem:[%s72 + $0xb8] sm:$0xff] %v119
          %v121 = vld [vmem:[%s71 + $0xc0] sm:$0xff]
          %122 = vst [vmem:[%s72 + $0xc0] sm:$0xff] %v121
          %v123 = vld [vmem:[%s71 + $0xc8] sm:$0xff]
          %124 = vst [vmem:[%s72 + $0xc8] sm:$0xff] %v123
          %v125 = vld [vmem:[%s71 + $0xd0] sm:$0xff]
          %126 = vst [vmem:[%s72 + $0xd0] sm:$0xff] %v125
          %v127 = vld [vmem:[%s71 + $0xd8] sm:$0xff]
          %128 = vst [vmem:[%s72 + $0xd8] sm:$0xff] %v127
          %v129 = vld [vmem:[%s71 + $0xe0] sm:$0xff]
          %130 = vst [vmem:[%s72 + $0xe0] sm:$0xff] %v129
          %v131 = vld [vmem:[%s71 + $0xe8] sm:$0xff]
          %132 = vst [vmem:[%s72 + $0xe8] sm:$0xff] %v131
          %v133 = vld [vmem:[%s71 + $0xf0] sm:$0xff]
          %134 = vst [vmem:[%s72 + $0xf0] sm:$0xff] %v133
          %v135 = vld [vmem:[%s71 + $0xf8] sm:$0xff]
          %136 = vst [vmem:[%s72 + $0xf8] sm:$0xff] %v135
          %v137 = vld [vmem:[%s71 + $0x100] sm:$0xff]
          %138 = vst [vmem:[%s72 + $0x100] sm:$0xff] %v137
          %v139 = vld [vmem:[%s71 + $0x108] sm:$0xff]
          %140 = vst [vmem:[%s72 + $0x108] sm:$0xff] %v139
          %v141 = vld [vmem:[%s71 + $0x110] sm:$0xff]
          %142 = vst [vmem:[%s72 + $0x110] sm:$0xff] %v141
          %v143 = vld [vmem:[%s71 + $0x118] sm:$0xff]
          %144 = vst [vmem:[%s72 + $0x118] sm:$0xff] %v143
          %v145 = vld [vmem:[%s71 + $0x120] sm:$0xff]
          %146 = vst [vmem:[%s72 + $0x120] sm:$0xff] %v145
          %v147 = vld [vmem:[%s71 + $0x128] sm:$0xff]
          %148 = vst [vmem:[%s72 + $0x128] sm:$0xff] %v147
          %v149 = vld [vmem:[%s71 + $0x130] sm:$0xff]
          %150 = vst [vmem:[%s72 + $0x130] sm:$0xff] %v149
          %v151 = vld [vmem:[%s71 + $0x138] sm:$0xff]
          %152 = vst [vmem:[%s72 + $0x138] sm:$0xff] %v151
          %v153 = vld [vmem:[%s71 + $0x140] sm:$0xff]
          %154 = vst [vmem:[%s72 + $0x140] sm:$0xff] %v153
          %v155 = vld [vmem:[%s71 + $0x148] sm:$0xff]
          %156 = vst [vmem:[%s72 + $0x148] sm:$0xff] %v155
          %v157 = vld [vmem:[%s71 + $0x150] sm:$0xff]
          %158 = vst [vmem:[%s72 + $0x150] sm:$0xff] %v157
          %v159 = vld [vmem:[%s71 + $0x158] sm:$0xff]
          %160 = vst [vmem:[%s72 + $0x158] sm:$0xff] %v159
          %v161 = vld [vmem:[%s71 + $0x160] sm:$0xff]
          %162 = vst [vmem:[%s72 + $0x160] sm:$0xff] %v161
          %v163 = vld [vmem:[%s71 + $0x168] sm:$0xff]
          %164 = vst [vmem:[%s72 + $0x168] sm:$0xff] %v163
          %v165 = vld [vmem:[%s71 + $0x170] sm:$0xff]
          %166 = vst [vmem:[%s72 + $0x170] sm:$0xff] %v165
          %v167 = vld [vmem:[%s71 + $0x178] sm:$0xff]
          %168 = vst [vmem:[%s72 + $0x178] sm:$0xff] %v167
          %v169 = vld [vmem:[%s71 + $0x180] sm:$0xff]
          %170 = vst [vmem:[%s72 + $0x180] sm:$0xff] %v169
          %v171 = vld [vmem:[%s71 + $0x188] sm:$0xff]
          %172 = vst [vmem:[%s72 + $0x188] sm:$0xff] %v171
          %v173 = vld [vmem:[%s71 + $0x190] sm:$0xff]
          %174 = vst [vmem:[%s72 + $0x190] sm:$0xff] %v173
          %v175 = vld [vmem:[%s71 + $0x198] sm:$0xff]
          %176 = vst [vmem:[%s72 + $0x198] sm:$0xff] %v175
          %v177 = vld [vmem:[%s71 + $0x1a0] sm:$0xff]
          %178 = vst [vmem:[%s72 + $0x1a0] sm:$0xff] %v177
          %v179 = vld [vmem:[%s71 + $0x1a8] sm:$0xff]
          %180 = vst [vmem:[%s72 + $0x1a8] sm:$0xff] %v179
          %v181 = vld [vmem:[%s71 + $0x1b0] sm:$0xff]
          %182 = vst [vmem:[%s72 + $0x1b0] sm:$0xff] %v181
          %v183 = vld [vmem:[%s71 + $0x1b8] sm:$0xff]
          %184 = vst [vmem:[%s72 + $0x1b8] sm:$0xff] %v183
          %v185 = vld [vmem:[%s71 + $0x1c0] sm:$0xff]
          %186 = vst [vmem:[%s72 + $0x1c0] sm:$0xff] %v185
          %v187 = vld [vmem:[%s71 + $0x1c8] sm:$0xff]
          %188 = vst [vmem:[%s72 + $0x1c8] sm:$0xff] %v187
          %v189 = vld [vmem:[%s71 + $0x1d0] sm:$0xff]
          %190 = vst [vmem:[%s72 + $0x1d0] sm:$0xff] %v189
          %v191 = vld [vmem:[%s71 + $0x1d8] sm:$0xff]
          %192 = vst [vmem:[%s72 + $0x1d8] sm:$0xff] %v191
          %v193 = vld [vmem:[%s71 + $0x1e0] sm:$0xff]
          %194 = vst [vmem:[%s72 + $0x1e0] sm:$0xff] %v193
          %v195 = vld [vmem:[%s71 + $0x1e8] sm:$0xff]
          %196 = vst [vmem:[%s72 + $0x1e8] sm:$0xff] %v195
          %v197 = vld [vmem:[%s71 + $0x1f0] sm:$0xff]
          %198 = vst [vmem:[%s72 + $0x1f0] sm:$0xff] %v197
          %v199 = vld [vmem:[%s71 + $0x1f8] sm:$0xff]
          %200 = vst [vmem:[%s72 + $0x1f8] sm:$0xff] %v199
          %v201 = vld [vmem:[%s71 + $0x200] sm:$0xff]
          %202 = vst [vmem:[%s72 + $0x200] sm:$0xff] %v201
          %v203 = vld [vmem:[%s71 + $0x208] sm:$0xff]
          %204 = vst [vmem:[%s72 + $0x208] sm:$0xff] %v203
          %v205 = vld [vmem:[%s71 + $0x210] sm:$0xff]
          %206 = vst [vmem:[%s72 + $0x210] sm:$0xff] %v205
          %v207 = vld [vmem:[%s71 + $0x218] sm:$0xff]
          %208 = vst [vmem:[%s72 + $0x218] sm:$0xff] %v207
          %v209 = vld [vmem:[%s71 + $0x220] sm:$0xff]
          %210 = vst [vmem:[%s72 + $0x220] sm:$0xff] %v209
          %v211 = vld [vmem:[%s71 + $0x228] sm:$0xff]
          %212 = vst [vmem:[%s72 + $0x228] sm:$0xff] %v211
          %v213 = vld [vmem:[%s71 + $0x230] sm:$0xff]
          %214 = vst [vmem:[%s72 + $0x230] sm:$0xff] %v213
          %v215 = vld [vmem:[%s71 + $0x238] sm:$0xff]
          %216 = vst [vmem:[%s72 + $0x238] sm:$0xff] %v215
          %v217 = vld [vmem:[%s71 + $0x240] sm:$0xff]
          %218 = vst [vmem:[%s72 + $0x240] sm:$0xff] %v217
          %v219 = vld [vmem:[%s71 + $0x248] sm:$0xff]
          %220 = vst [vmem:[%s72 + $0x248] sm:$0xff] %v219
          %v221 = vld [vmem:[%s71 + $0x250] sm:$0xff]
          %222 = vst [vmem:[%s72 + $0x250] sm:$0xff] %v221
          %v223 = vld [vmem:[%s71 + $0x258] sm:$0xff]
          %224 = vst [vmem:[%s72 + $0x258] sm:$0xff] %v223
          %v225 = vld [vmem:[%s71 + $0x260] sm:$0xff]
          %226 = vst [vmem:[%s72 + $0x260] sm:$0xff] %v225
          %v227 = vld [vmem:[%s71 + $0x268] sm:$0xff]
          %228 = vst [vmem:[%s72 + $0x268] sm:$0xff] %v227
          %v229 = vld [vmem:[%s71 + $0x270] sm:$0xff]
          %230 = vst [vmem:[%s72 + $0x270] sm:$0xff] %v229
          %v231 = vld [vmem:[%s71 + $0x278] sm:$0xff]
          %232 = vst [vmem:[%s72 + $0x278] sm:$0xff] %v231
          %v233 = vld [vmem:[%s71 + $0x280] sm:$0xff]
          %234 = vst [vmem:[%s72 + $0x280] sm:$0xff] %v233
          %v235 = vld [vmem:[%s71 + $0x288] sm:$0xff]
          %236 = vst [vmem:[%s72 + $0x288] sm:$0xff] %v235
          %v237 = vld [vmem:[%s71 + $0x290] sm:$0xff]
          %238 = vst [vmem:[%s72 + $0x290] sm:$0xff] %v237
          %v239 = vld [vmem:[%s71 + $0x298] sm:$0xff]
          %240 = vst [vmem:[%s72 + $0x298] sm:$0xff] %v239
          %v241 = vld [vmem:[%s71 + $0x2a0] sm:$0xff]
          %242 = vst [vmem:[%s72 + $0x2a0] sm:$0xff] %v241
          %v243 = vld [vmem:[%s71 + $0x2a8] sm:$0xff]
          %244 = vst [vmem:[%s72 + $0x2a8] sm:$0xff] %v243
          %v245 = vld [vmem:[%s71 + $0x2b0] sm:$0xff]
          %246 = vst [vmem:[%s72 + $0x2b0] sm:$0xff] %v245
          %v247 = vld [vmem:[%s71 + $0x2b8] sm:$0xff]
          %248 = vst [vmem:[%s72 + $0x2b8] sm:$0xff] %v247
          %v249 = vld [vmem:[%s71 + $0x2c0] sm:$0xff]
          %250 = vst [vmem:[%s72 + $0x2c0] sm:$0xff] %v249
          %v251 = vld [vmem:[%s71 + $0x2c8] sm:$0xff]
          %252 = vst [vmem:[%s72 + $0x2c8] sm:$0xff] %v251
          %v253 = vld [vmem:[%s71 + $0x2d0] sm:$0xff]
          %254 = vst [vmem:[%s72 + $0x2d0] sm:$0xff] %v253
          %v255 = vld [vmem:[%s71 + $0x2d8] sm:$0xff]
          %256 = vst [vmem:[%s72 + $0x2d8] sm:$0xff] %v255
          %v257 = vld [vmem:[%s71 + $0x2e0] sm:$0xff]
          %258 = vst [vmem:[%s72 + $0x2e0] sm:$0xff] %v257
          %v259 = vld [vmem:[%s71 + $0x2e8] sm:$0xff]
          %260 = vst [vmem:[%s72 + $0x2e8] sm:$0xff] %v259
          %v261 = vld [vmem:[%s71 + $0x2f0] sm:$0xff]
          %262 = vst [vmem:[%s72 + $0x2f0] sm:$0xff] %v261
          %v263 = vld [vmem:[%s71 + $0x2f8] sm:$0xff]
          %264 = vst [vmem:[%s72 + $0x2f8] sm:$0xff] %v263
          %v265 = vld [vmem:[%s71 + $0x300] sm:$0xff]
          %266 = vst [vmem:[%s72 + $0x300] sm:$0xff] %v265
          %v267 = vld [vmem:[%s71 + $0x308] sm:$0xff]
          %268 = vst [vmem:[%s72 + $0x308] sm:$0xff] %v267
          %v269 = vld [vmem:[%s71 + $0x310] sm:$0xff]
          %270 = vst [vmem:[%s72 + $0x310] sm:$0xff] %v269
          %v271 = vld [vmem:[%s71 + $0x318] sm:$0xff]
          %272 = vst [vmem:[%s72 + $0x318] sm:$0xff] %v271
          %v273 = vld [vmem:[%s71 + $0x320] sm:$0xff]
          %274 = vst [vmem:[%s72 + $0x320] sm:$0xff] %v273
          %v275 = vld [vmem:[%s71 + $0x328] sm:$0xff]
          %276 = vst [vmem:[%s72 + $0x328] sm:$0xff] %v275
          %v277 = vld [vmem:[%s71 + $0x330] sm:$0xff]
          %278 = vst [vmem:[%s72 + $0x330] sm:$0xff] %v277
          %v279 = vld [vmem:[%s71 + $0x338] sm:$0xff]
          %280 = vst [vmem:[%s72 + $0x338] sm:$0xff] %v279
          %v281 = vld [vmem:[%s71 + $0x340] sm:$0xff]
          %282 = vst [vmem:[%s72 + $0x340] sm:$0xff] %v281
          %v283 = vld [vmem:[%s71 + $0x348] sm:$0xff]
          %284 = vst [vmem:[%s72 + $0x348] sm:$0xff] %v283
          %v285 = vld [vmem:[%s71 + $0x350] sm:$0xff]
          %286 = vst [vmem:[%s72 + $0x350] sm:$0xff] %v285
          %v287 = vld [vmem:[%s71 + $0x358] sm:$0xff]
          %288 = vst [vmem:[%s72 + $0x358] sm:$0xff] %v287
          %v289 = vld [vmem:[%s71 + $0x360] sm:$0xff]
          %290 = vst [vmem:[%s72 + $0x360] sm:$0xff] %v289
          %v291 = vld [vmem:[%s71 + $0x368] sm:$0xff]
          %292 = vst [vmem:[%s72 + $0x368] sm:$0xff] %v291
          %v293 = vld [vmem:[%s71 + $0x370] sm:$0xff]
          %294 = vst [vmem:[%s72 + $0x370] sm:$0xff] %v293
          %v295 = vld [vmem:[%s71 + $0x378] sm:$0xff]
          %296 = vst [vmem:[%s72 + $0x378] sm:$0xff] %v295
          %v297 = vld [vmem:[%s71 + $0x380] sm:$0xff]
          %298 = vst [vmem:[%s72 + $0x380] sm:$0xff] %v297
          %v299 = vld [vmem:[%s71 + $0x388] sm:$0xff]
          %300 = vst [vmem:[%s72 + $0x388] sm:$0xff] %v299
          %v301 = vld [vmem:[%s71 + $0x390] sm:$0xff]
          %302 = vst [vmem:[%s72 + $0x390] sm:$0xff] %v301
          %v303 = vld [vmem:[%s71 + $0x398] sm:$0xff]
          %304 = vst [vmem:[%s72 + $0x398] sm:$0xff] %v303
          %v305 = vld [vmem:[%s71 + $0x3a0] sm:$0xff]
          %306 = vst [vmem:[%s72 + $0x3a0] sm:$0xff] %v305
          %v307 = vld [vmem:[%s71 + $0x3a8] sm:$0xff]
          %308 = vst [vmem:[%s72 + $0x3a8] sm:$0xff] %v307
          %v309 = vld [vmem:[%s71 + $0x3b0] sm:$0xff]
          %310 = vst [vmem:[%s72 + $0x3b0] sm:$0xff] %v309
          %v311 = vld [vmem:[%s71 + $0x3b8] sm:$0xff]
          %312 = vst [vmem:[%s72 + $0x3b8] sm:$0xff] %v311
          %v313 = vld [vmem:[%s71 + $0x3c0] sm:$0xff]
          %314 = vst [vmem:[%s72 + $0x3c0] sm:$0xff] %v313
          %v315 = vld [vmem:[%s71 + $0x3c8] sm:$0xff]
          %316 = vst [vmem:[%s72 + $0x3c8] sm:$0xff] %v315
          %v317 = vld [vmem:[%s71 + $0x3d0] sm:$0xff]
          %318 = vst [vmem:[%s72 + $0x3d0] sm:$0xff] %v317
          %v319 = vld [vmem:[%s71 + $0x3d8] sm:$0xff]
          %320 = vst [vmem:[%s72 + $0x3d8] sm:$0xff] %v319
          %v321 = vld [vmem:[%s71 + $0x3e0] sm:$0xff]
          %322 = vst [vmem:[%s72 + $0x3e0] sm:$0xff] %v321
          %v323 = vld [vmem:[%s71 + $0x3e8] sm:$0xff]
          %324 = vst [vmem:[%s72 + $0x3e8] sm:$0xff] %v323
          %v325 = vld [vmem:[%s71 + $0x3f0] sm:$0xff]
          %326 = vst [vmem:[%s72 + $0x3f0] sm:$0xff] %v325
          %v327 = vld [vmem:[%s71 + $0x3f8] sm:$0xff]
          %328 = vst [vmem:[%s72 + $0x3f8] sm:$0xff] %v327
          %v329 = vld [vmem:[%s71 + $0x400] sm:$0xff]
          %330 = vst [vmem:[%s72 + $0x400] sm:$0xff] %v329
          %v331 = vld [vmem:[%s71 + $0x408] sm:$0xff]
          %332 = vst [vmem:[%s72 + $0x408] sm:$0xff] %v331
          %v333 = vld [vmem:[%s71 + $0x410] sm:$0xff]
          %334 = vst [vmem:[%s72 + $0x410] sm:$0xff] %v333
          %v335 = vld [vmem:[%s71 + $0x418] sm:$0xff]
          %336 = vst [vmem:[%s72 + $0x418] sm:$0xff] %v335
          %v337 = vld [vmem:[%s71 + $0x420] sm:$0xff]
          %338 = vst [vmem:[%s72 + $0x420] sm:$0xff] %v337
          %v339 = vld [vmem:[%s71 + $0x428] sm:$0xff]
          %340 = vst [vmem:[%s72 + $0x428] sm:$0xff] %v339
          %v341 = vld [vmem:[%s71 + $0x430] sm:$0xff]
          %342 = vst [vmem:[%s72 + $0x430] sm:$0xff] %v341
          %v343 = vld [vmem:[%s71 + $0x438] sm:$0xff]
          %344 = vst [vmem:[%s72 + $0x438] sm:$0xff] %v343
          %v345 = vld [vmem:[%s71 + $0x440] sm:$0xff]
          %346 = vst [vmem:[%s72 + $0x440] sm:$0xff] %v345
          %v347 = vld [vmem:[%s71 + $0x448] sm:$0xff]
          %348 = vst [vmem:[%s72 + $0x448] sm:$0xff] %v347
          %v349 = vld [vmem:[%s71 + $0x450] sm:$0xff]
          %350 = vst [vmem:[%s72 + $0x450] sm:$0xff] %v349
          %v351 = vld [vmem:[%s71 + $0x458] sm:$0xff]
          %352 = vst [vmem:[%s72 + $0x458] sm:$0xff] %v351
          %v353 = vld [vmem:[%s71 + $0x460] sm:$0xff]
          %354 = vst [vmem:[%s72 + $0x460] sm:$0xff] %v353
          %v355 = vld [vmem:[%s71 + $0x468] sm:$0xff]
          %356 = vst [vmem:[%s72 + $0x468] sm:$0xff] %v355
          %v357 = vld [vmem:[%s71 + $0x470] sm:$0xff]
          %358 = vst [vmem:[%s72 + $0x470] sm:$0xff] %v357
          %v359 = vld [vmem:[%s71 + $0x478] sm:$0xff]
          %360 = vst [vmem:[%s72 + $0x478] sm:$0xff] %v359
          %v361 = vld [vmem:[%s71 + $0x480] sm:$0xff]
          %362 = vst [vmem:[%s72 + $0x480] sm:$0xff] %v361
          %v363 = vld [vmem:[%s71 + $0x488] sm:$0xff]
          %364 = vst [vmem:[%s72 + $0x488] sm:$0xff] %v363
          %v365 = vld [vmem:[%s71 + $0x490] sm:$0xff]
          %366 = vst [vmem:[%s72 + $0x490] sm:$0xff] %v365
          %v367 = vld [vmem:[%s71 + $0x498] sm:$0xff]
          %368 = vst [vmem:[%s72 + $0x498] sm:$0xff] %v367
          %v369 = vld [vmem:[%s71 + $0x4a0] sm:$0xff]
          %370 = vst [vmem:[%s72 + $0x4a0] sm:$0xff] %v369
          %v371 = vld [vmem:[%s71 + $0x4a8] sm:$0xff]
          %372 = vst [vmem:[%s72 + $0x4a8] sm:$0xff] %v371
          %v373 = vld [vmem:[%s71 + $0x4b0] sm:$0xff]
          %374 = vst [vmem:[%s72 + $0x4b0] sm:$0xff] %v373
          %v375 = vld [vmem:[%s71 + $0x4b8] sm:$0xff]
          %376 = vst [vmem:[%s72 + $0x4b8] sm:$0xff] %v375
          %v377 = vld [vmem:[%s71 + $0x4c0] sm:$0xff]
          %378 = vst [vmem:[%s72 + $0x4c0] sm:$0xff] %v377
          %v379 = vld [vmem:[%s71 + $0x4c8] sm:$0xff]
          %380 = vst [vmem:[%s72 + $0x4c8] sm:$0xff] %v379
          %v381 = vld [vmem:[%s71 + $0x4d0] sm:$0xff]
          %382 = vst [vmem:[%s72 + $0x4d0] sm:$0xff] %v381
          %v383 = vld [vmem:[%s71 + $0x4d8] sm:$0xff]
          %384 = vst [vmem:[%s72 + $0x4d8] sm:$0xff] %v383
          %v385 = vld [vmem:[%s71 + $0x4e0] sm:$0xff]
          %386 = vst [vmem:[%s72 + $0x4e0] sm:$0xff] %v385
          %v387 = vld [vmem:[%s71 + $0x4e8] sm:$0xff]
          %388 = vst [vmem:[%s72 + $0x4e8] sm:$0xff] %v387
          %v389 = vld [vmem:[%s71 + $0x4f0] sm:$0xff]
          %390 = vst [vmem:[%s72 + $0x4f0] sm:$0xff] %v389
          %v391 = vld [vmem:[%s71 + $0x4f8] sm:$0xff]
          %392 = vst [vmem:[%s72 + $0x4f8] sm:$0xff] %v391
          %v393 = vld [vmem:[%s71 + $0x500] sm:$0xff]
          %394 = vst [vmem:[%s72 + $0x500] sm:$0xff] %v393
          %v395 = vld [vmem:[%s71 + $0x508] sm:$0xff]
          %396 = vst [vmem:[%s72 + $0x508] sm:$0xff] %v395
          %v397 = vld [vmem:[%s71 + $0x510] sm:$0xff]
          %398 = vst [vmem:[%s72 + $0x510] sm:$0xff] %v397
          %v399 = vld [vmem:[%s71 + $0x518] sm:$0xff]
          %400 = vst [vmem:[%s72 + $0x518] sm:$0xff] %v399
          %v401 = vld [vmem:[%s71 + $0x520] sm:$0xff]
          %402 = vst [vmem:[%s72 + $0x520] sm:$0xff] %v401
          %v403 = vld [vmem:[%s71 + $0x528] sm:$0xff]
          %404 = vst [vmem:[%s72 + $0x528] sm:$0xff] %v403
          %v405 = vld [vmem:[%s71 + $0x530] sm:$0xff]
          %406 = vst [vmem:[%s72 + $0x530] sm:$0xff] %v405
          %v407 = vld [vmem:[%s71 + $0x538] sm:$0xff]
          %408 = vst [vmem:[%s72 + $0x538] sm:$0xff] %v407
          %v409 = vld [vmem:[%s71 + $0x540] sm:$0xff]
          %410 = vst [vmem:[%s72 + $0x540] sm:$0xff] %v409
          %v411 = vld [vmem:[%s71 + $0x548] sm:$0xff]
          %412 = vst [vmem:[%s72 + $0x548] sm:$0xff] %v411
          %v413 = vld [vmem:[%s71 + $0x550] sm:$0xff]
          %414 = vst [vmem:[%s72 + $0x550] sm:$0xff] %v413
          %v415 = vld [vmem:[%s71 + $0x558] sm:$0xff]
          %416 = vst [vmem:[%s72 + $0x558] sm:$0xff] %v415
          %v417 = vld [vmem:[%s71 + $0x560] sm:$0xff]
          %418 = vst [vmem:[%s72 + $0x560] sm:$0xff] %v417
          %v419 = vld [vmem:[%s71 + $0x568] sm:$0xff]
          %420 = vst [vmem:[%s72 + $0x568] sm:$0xff] %v419
          %v421 = vld [vmem:[%s71 + $0x570] sm:$0xff]
          %422 = vst [vmem:[%s72 + $0x570] sm:$0xff] %v421
          %v423 = vld [vmem:[%s71 + $0x578] sm:$0xff]
          %424 = vst [vmem:[%s72 + $0x578] sm:$0xff] %v423
          %v425 = vld [vmem:[%s71 + $0x580] sm:$0xff]
          %426 = vst [vmem:[%s72 + $0x580] sm:$0xff] %v425
          %v427 = vld [vmem:[%s71 + $0x588] sm:$0xff]
          %428 = vst [vmem:[%s72 + $0x588] sm:$0xff] %v427
          %v429 = vld [vmem:[%s71 + $0x590] sm:$0xff]
          %430 = vst [vmem:[%s72 + $0x590] sm:$0xff] %v429
          %v431 = vld [vmem:[%s71 + $0x598] sm:$0xff]
          %432 = vst [vmem:[%s72 + $0x598] sm:$0xff] %v431
          %v433 = vld [vmem:[%s71 + $0x5a0] sm:$0xff]
          %434 = vst [vmem:[%s72 + $0x5a0] sm:$0xff] %v433
          %v435 = vld [vmem:[%s71 + $0x5a8] sm:$0xff]
          %436 = vst [vmem:[%s72 + $0x5a8] sm:$0xff] %v435
          %v437 = vld [vmem:[%s71 + $0x5b0] sm:$0xff]
          %438 = vst [vmem:[%s72 + $0x5b0] sm:$0xff] %v437
          %v439 = vld [vmem:[%s71 + $0x5b8] sm:$0xff]
          %440 = vst [vmem:[%s72 + $0x5b8] sm:$0xff] %v439
          %v441 = vld [vmem:[%s71 + $0x5c0] sm:$0xff]
          %442 = vst [vmem:[%s72 + $0x5c0] sm:$0xff] %v441
          %v443 = vld [vmem:[%s71 + $0x5c8] sm:$0xff]
          %444 = vst [vmem:[%s72 + $0x5c8] sm:$0xff] %v443
          %v445 = vld [vmem:[%s71 + $0x5d0] sm:$0xff]
          %446 = vst [vmem:[%s72 + $0x5d0] sm:$0xff] %v445
          %v447 = vld [vmem:[%s71 + $0x5d8] sm:$0xff]
          %448 = vst [vmem:[%s72 + $0x5d8] sm:$0xff] %v447
          %v449 = vld [vmem:[%s71 + $0x5e0] sm:$0xff]
          %450 = vst [vmem:[%s72 + $0x5e0] sm:$0xff] %v449
          %v451 = vld [vmem:[%s71 + $0x5e8] sm:$0xff]
          %452 = vst [vmem:[%s72 + $0x5e8] sm:$0xff] %v451
          %v453 = vld [vmem:[%s71 + $0x5f0] sm:$0xff]
          %454 = vst [vmem:[%s72 + $0x5f0] sm:$0xff] %v453
          %v455 = vld [vmem:[%s71 + $0x5f8] sm:$0xff]
          %456 = vst [vmem:[%s72 + $0x5f8] sm:$0xff] %v455
        $region69: #{actor_forward.1} parent=63 // loop_footer
          %s70 = sadd.s32 1, %s66
        $region70: #{actor_forward.1} parent=63 // loop_footer_branch
          %65 = sbr.rel target = $region66
        $region71: #{actor_forward.1} parent=63 // loop_exit
          _
      $region64: #{actor_forward.1} parent=48 // pred_fallthru
        _
      %p457 = pneg %p61
      // Predicated region
      $region72: #{actor_forward.1} parent=48 // pred_check
        _
      $region73: #{actor_forward.1} parent=48 // pred_check_branch
        %459 = sbr.rel (%p61) target = $region75
      $region74: #{actor_forward.1} parent=48 // pred_region
        %s460 = sand.u32 1536, 7
      $region75: #{actor_forward.1} parent=48 // pred_fallthru
        _
    $region49: #{actor_forward.1} parent=1 // pred_fallthru
      _
    // Predicated region
    $region50: #{actor_forward.1} parent=1 // pred_check
      %p46 = pneg %p42
    $region51: #{actor_forward.1} parent=1 // pred_check_branch
      %48 = sbr.rel (%p46) target = $region53
    $region52: #{actor_forward.1} parent=1 // pred_region
      %s49 = sshllo.u32 0, 1536
      loop: start=0, step=1, limit=1
      $region54: #{actor_forward.1} parent=52 // loop_pre_header
        _
      $region55: #{actor_forward.1} parent=52 // loop_header
        %s51 = sphi 0, %s55
        %p52 = scmp.ge.s32.totalorder %s51, 1
        %s56 = sphi %s11, %s11
        %s57 = sphi [#allocation2], [#allocation2]
      $region56: #{actor_forward.1} parent=52 // loop_header_branch
        %54 = sbr.rel (%p52) target = $region60
      $region57: #{actor_forward.1} parent=52 // loop_body
        %v58 = vld [vmem:[%s56] sm:%s49]
        %59 = vst [vmem:[%s57] sm:%s49] %v58
      $region58: #{actor_forward.1} parent=52 // loop_footer
        %s55 = sadd.s32 1, %s51
      $region59: #{actor_forward.1} parent=52 // loop_footer_branch
        %50 = sbr.rel target = $region55
      $region60: #{actor_forward.1} parent=52 // loop_exit
        _
    $region53: #{actor_forward.1} parent=1 // pred_fallthru
      _
    // Predicated region
    $region76: #{actor_forward.1} parent=1 // pred_check
      _
    $region77: #{actor_forward.1} parent=1 // pred_check_branch
      %463 = sbr.rel (0) target = $region79
    $region78: #{actor_forward.1} parent=1 // pred_region
      %464 = vsyncadd [#allocation4], 24576
    $region79: #{actor_forward.1} parent=1 // pred_fallthru
      _
    %s465 = scalar_lea.sflag [#allocation4], 1
    %p467 = scmp.lt.u32.totalorder 4096, 8
    %p468 = pneg %p467
    // Predicated region
    $region80: #{actor_forward.1} parent=1 // pred_check
      _
    $region81: #{actor_forward.1} parent=1 // pred_check_branch
      %470 = sbr.rel (%p467) target = $region83
    $region82: #{actor_forward.1} parent=1 // pred_region
      %s485 = sand.u32 4096, 7
      %p486 = scmp.eq.s32.totalorder %s485, 0
      // Predicated region
      $region95: #{actor_forward.1} parent=82 // pred_check
        %p487 = pneg %p486
      $region96: #{actor_forward.1} parent=82 // pred_check_branch
        %489 = sbr.rel (%p487) target = $region98
      $region97: #{actor_forward.1} parent=82 // pred_region
        loop: start=0, step=1, limit=1
        $region99: #{actor_forward.1} parent=97 // loop_pre_header
          _
        $region100: #{actor_forward.1} parent=97 // loop_header
          %s491 = sphi 0, %s495
          %p492 = scmp.ge.s32.totalorder %s491, 1
          %s496 = sphi %s12, %s12
          %s497 = sphi [#allocation3], [#allocation3]
        $region101: #{actor_forward.1} parent=97 // loop_header_branch
          %494 = sbr.rel (%p492) target = $region105
        $region102: #{actor_forward.1} parent=97 // loop_body
          %v498 = vld [vmem:[%s496] sm:$0xff]
          %499 = vst [vmem:[%s497] sm:$0xff] %v498
          %v500 = vld [vmem:[%s496 + $0x8] sm:$0xff]
          %501 = vst [vmem:[%s497 + $0x8] sm:$0xff] %v500
          %v502 = vld [vmem:[%s496 + $0x10] sm:$0xff]
          %503 = vst [vmem:[%s497 + $0x10] sm:$0xff] %v502
          %v504 = vld [vmem:[%s496 + $0x18] sm:$0xff]
          %505 = vst [vmem:[%s497 + $0x18] sm:$0xff] %v504
          %v506 = vld [vmem:[%s496 + $0x20] sm:$0xff]
          %507 = vst [vmem:[%s497 + $0x20] sm:$0xff] %v506
          %v508 = vld [vmem:[%s496 + $0x28] sm:$0xff]
          %509 = vst [vmem:[%s497 + $0x28] sm:$0xff] %v508
          %v510 = vld [vmem:[%s496 + $0x30] sm:$0xff]
          %511 = vst [vmem:[%s497 + $0x30] sm:$0xff] %v510
          %v512 = vld [vmem:[%s496 + $0x38] sm:$0xff]
          %513 = vst [vmem:[%s497 + $0x38] sm:$0xff] %v512
          %v514 = vld [vmem:[%s496 + $0x40] sm:$0xff]
          %515 = vst [vmem:[%s497 + $0x40] sm:$0xff] %v514
          %v516 = vld [vmem:[%s496 + $0x48] sm:$0xff]
          %517 = vst [vmem:[%s497 + $0x48] sm:$0xff] %v516
          %v518 = vld [vmem:[%s496 + $0x50] sm:$0xff]
          %519 = vst [vmem:[%s497 + $0x50] sm:$0xff] %v518
          %v520 = vld [vmem:[%s496 + $0x58] sm:$0xff]
          %521 = vst [vmem:[%s497 + $0x58] sm:$0xff] %v520
          %v522 = vld [vmem:[%s496 + $0x60] sm:$0xff]
          %523 = vst [vmem:[%s497 + $0x60] sm:$0xff] %v522
          %v524 = vld [vmem:[%s496 + $0x68] sm:$0xff]
          %525 = vst [vmem:[%s497 + $0x68] sm:$0xff] %v524
          %v526 = vld [vmem:[%s496 + $0x70] sm:$0xff]
          %527 = vst [vmem:[%s497 + $0x70] sm:$0xff] %v526
          %v528 = vld [vmem:[%s496 + $0x78] sm:$0xff]
          %529 = vst [vmem:[%s497 + $0x78] sm:$0xff] %v528
          %v530 = vld [vmem:[%s496 + $0x80] sm:$0xff]
          %531 = vst [vmem:[%s497 + $0x80] sm:$0xff] %v530
          %v532 = vld [vmem:[%s496 + $0x88] sm:$0xff]
          %533 = vst [vmem:[%s497 + $0x88] sm:$0xff] %v532
          %v534 = vld [vmem:[%s496 + $0x90] sm:$0xff]
          %535 = vst [vmem:[%s497 + $0x90] sm:$0xff] %v534
          %v536 = vld [vmem:[%s496 + $0x98] sm:$0xff]
          %537 = vst [vmem:[%s497 + $0x98] sm:$0xff] %v536
          %v538 = vld [vmem:[%s496 + $0xa0] sm:$0xff]
          %539 = vst [vmem:[%s497 + $0xa0] sm:$0xff] %v538
          %v540 = vld [vmem:[%s496 + $0xa8] sm:$0xff]
          %541 = vst [vmem:[%s497 + $0xa8] sm:$0xff] %v540
          %v542 = vld [vmem:[%s496 + $0xb0] sm:$0xff]
          %543 = vst [vmem:[%s497 + $0xb0] sm:$0xff] %v542
          %v544 = vld [vmem:[%s496 + $0xb8] sm:$0xff]
          %545 = vst [vmem:[%s497 + $0xb8] sm:$0xff] %v544
          %v546 = vld [vmem:[%s496 + $0xc0] sm:$0xff]
          %547 = vst [vmem:[%s497 + $0xc0] sm:$0xff] %v546
          %v548 = vld [vmem:[%s496 + $0xc8] sm:$0xff]
          %549 = vst [vmem:[%s497 + $0xc8] sm:$0xff] %v548
          %v550 = vld [vmem:[%s496 + $0xd0] sm:$0xff]
          %551 = vst [vmem:[%s497 + $0xd0] sm:$0xff] %v550
          %v552 = vld [vmem:[%s496 + $0xd8] sm:$0xff]
          %553 = vst [vmem:[%s497 + $0xd8] sm:$0xff] %v552
          %v554 = vld [vmem:[%s496 + $0xe0] sm:$0xff]
          %555 = vst [vmem:[%s497 + $0xe0] sm:$0xff] %v554
          %v556 = vld [vmem:[%s496 + $0xe8] sm:$0xff]
          %557 = vst [vmem:[%s497 + $0xe8] sm:$0xff] %v556
          %v558 = vld [vmem:[%s496 + $0xf0] sm:$0xff]
          %559 = vst [vmem:[%s497 + $0xf0] sm:$0xff] %v558
          %v560 = vld [vmem:[%s496 + $0xf8] sm:$0xff]
          %561 = vst [vmem:[%s497 + $0xf8] sm:$0xff] %v560
          %v562 = vld [vmem:[%s496 + $0x100] sm:$0xff]
          %563 = vst [vmem:[%s497 + $0x100] sm:$0xff] %v562
          %v564 = vld [vmem:[%s496 + $0x108] sm:$0xff]
          %565 = vst [vmem:[%s497 + $0x108] sm:$0xff] %v564
          %v566 = vld [vmem:[%s496 + $0x110] sm:$0xff]
          %567 = vst [vmem:[%s497 + $0x110] sm:$0xff] %v566
          %v568 = vld [vmem:[%s496 + $0x118] sm:$0xff]
          %569 = vst [vmem:[%s497 + $0x118] sm:$0xff] %v568
          %v570 = vld [vmem:[%s496 + $0x120] sm:$0xff]
          %571 = vst [vmem:[%s497 + $0x120] sm:$0xff] %v570
          %v572 = vld [vmem:[%s496 + $0x128] sm:$0xff]
          %573 = vst [vmem:[%s497 + $0x128] sm:$0xff] %v572
          %v574 = vld [vmem:[%s496 + $0x130] sm:$0xff]
          %575 = vst [vmem:[%s497 + $0x130] sm:$0xff] %v574
          %v576 = vld [vmem:[%s496 + $0x138] sm:$0xff]
          %577 = vst [vmem:[%s497 + $0x138] sm:$0xff] %v576
          %v578 = vld [vmem:[%s496 + $0x140] sm:$0xff]
          %579 = vst [vmem:[%s497 + $0x140] sm:$0xff] %v578
          %v580 = vld [vmem:[%s496 + $0x148] sm:$0xff]
          %581 = vst [vmem:[%s497 + $0x148] sm:$0xff] %v580
          %v582 = vld [vmem:[%s496 + $0x150] sm:$0xff]
          %583 = vst [vmem:[%s497 + $0x150] sm:$0xff] %v582
          %v584 = vld [vmem:[%s496 + $0x158] sm:$0xff]
          %585 = vst [vmem:[%s497 + $0x158] sm:$0xff] %v584
          %v586 = vld [vmem:[%s496 + $0x160] sm:$0xff]
          %587 = vst [vmem:[%s497 + $0x160] sm:$0xff] %v586
          %v588 = vld [vmem:[%s496 + $0x168] sm:$0xff]
          %589 = vst [vmem:[%s497 + $0x168] sm:$0xff] %v588
          %v590 = vld [vmem:[%s496 + $0x170] sm:$0xff]
          %591 = vst [vmem:[%s497 + $0x170] sm:$0xff] %v590
          %v592 = vld [vmem:[%s496 + $0x178] sm:$0xff]
          %593 = vst [vmem:[%s497 + $0x178] sm:$0xff] %v592
          %v594 = vld [vmem:[%s496 + $0x180] sm:$0xff]
          %595 = vst [vmem:[%s497 + $0x180] sm:$0xff] %v594
          %v596 = vld [vmem:[%s496 + $0x188] sm:$0xff]
          %597 = vst [vmem:[%s497 + $0x188] sm:$0xff] %v596
          %v598 = vld [vmem:[%s496 + $0x190] sm:$0xff]
          %599 = vst [vmem:[%s497 + $0x190] sm:$0xff] %v598
          %v600 = vld [vmem:[%s496 + $0x198] sm:$0xff]
          %601 = vst [vmem:[%s497 + $0x198] sm:$0xff] %v600
          %v602 = vld [vmem:[%s496 + $0x1a0] sm:$0xff]
          %603 = vst [vmem:[%s497 + $0x1a0] sm:$0xff] %v602
          %v604 = vld [vmem:[%s496 + $0x1a8] sm:$0xff]
          %605 = vst [vmem:[%s497 + $0x1a8] sm:$0xff] %v604
          %v606 = vld [vmem:[%s496 + $0x1b0] sm:$0xff]
          %607 = vst [vmem:[%s497 + $0x1b0] sm:$0xff] %v606
          %v608 = vld [vmem:[%s496 + $0x1b8] sm:$0xff]
          %609 = vst [vmem:[%s497 + $0x1b8] sm:$0xff] %v608
          %v610 = vld [vmem:[%s496 + $0x1c0] sm:$0xff]
          %611 = vst [vmem:[%s497 + $0x1c0] sm:$0xff] %v610
          %v612 = vld [vmem:[%s496 + $0x1c8] sm:$0xff]
          %613 = vst [vmem:[%s497 + $0x1c8] sm:$0xff] %v612
          %v614 = vld [vmem:[%s496 + $0x1d0] sm:$0xff]
          %615 = vst [vmem:[%s497 + $0x1d0] sm:$0xff] %v614
          %v616 = vld [vmem:[%s496 + $0x1d8] sm:$0xff]
          %617 = vst [vmem:[%s497 + $0x1d8] sm:$0xff] %v616
          %v618 = vld [vmem:[%s496 + $0x1e0] sm:$0xff]
          %619 = vst [vmem:[%s497 + $0x1e0] sm:$0xff] %v618
          %v620 = vld [vmem:[%s496 + $0x1e8] sm:$0xff]
          %621 = vst [vmem:[%s497 + $0x1e8] sm:$0xff] %v620
          %v622 = vld [vmem:[%s496 + $0x1f0] sm:$0xff]
          %623 = vst [vmem:[%s497 + $0x1f0] sm:$0xff] %v622
          %v624 = vld [vmem:[%s496 + $0x1f8] sm:$0xff]
          %625 = vst [vmem:[%s497 + $0x1f8] sm:$0xff] %v624
          %v626 = vld [vmem:[%s496 + $0x200] sm:$0xff]
          %627 = vst [vmem:[%s497 + $0x200] sm:$0xff] %v626
          %v628 = vld [vmem:[%s496 + $0x208] sm:$0xff]
          %629 = vst [vmem:[%s497 + $0x208] sm:$0xff] %v628
          %v630 = vld [vmem:[%s496 + $0x210] sm:$0xff]
          %631 = vst [vmem:[%s497 + $0x210] sm:$0xff] %v630
          %v632 = vld [vmem:[%s496 + $0x218] sm:$0xff]
          %633 = vst [vmem:[%s497 + $0x218] sm:$0xff] %v632
          %v634 = vld [vmem:[%s496 + $0x220] sm:$0xff]
          %635 = vst [vmem:[%s497 + $0x220] sm:$0xff] %v634
          %v636 = vld [vmem:[%s496 + $0x228] sm:$0xff]
          %637 = vst [vmem:[%s497 + $0x228] sm:$0xff] %v636
          %v638 = vld [vmem:[%s496 + $0x230] sm:$0xff]
          %639 = vst [vmem:[%s497 + $0x230] sm:$0xff] %v638
          %v640 = vld [vmem:[%s496 + $0x238] sm:$0xff]
          %641 = vst [vmem:[%s497 + $0x238] sm:$0xff] %v640
          %v642 = vld [vmem:[%s496 + $0x240] sm:$0xff]
          %643 = vst [vmem:[%s497 + $0x240] sm:$0xff] %v642
          %v644 = vld [vmem:[%s496 + $0x248] sm:$0xff]
          %645 = vst [vmem:[%s497 + $0x248] sm:$0xff] %v644
          %v646 = vld [vmem:[%s496 + $0x250] sm:$0xff]
          %647 = vst [vmem:[%s497 + $0x250] sm:$0xff] %v646
          %v648 = vld [vmem:[%s496 + $0x258] sm:$0xff]
          %649 = vst [vmem:[%s497 + $0x258] sm:$0xff] %v648
          %v650 = vld [vmem:[%s496 + $0x260] sm:$0xff]
          %651 = vst [vmem:[%s497 + $0x260] sm:$0xff] %v650
          %v652 = vld [vmem:[%s496 + $0x268] sm:$0xff]
          %653 = vst [vmem:[%s497 + $0x268] sm:$0xff] %v652
          %v654 = vld [vmem:[%s496 + $0x270] sm:$0xff]
          %655 = vst [vmem:[%s497 + $0x270] sm:$0xff] %v654
          %v656 = vld [vmem:[%s496 + $0x278] sm:$0xff]
          %657 = vst [vmem:[%s497 + $0x278] sm:$0xff] %v656
          %v658 = vld [vmem:[%s496 + $0x280] sm:$0xff]
          %659 = vst [vmem:[%s497 + $0x280] sm:$0xff] %v658
          %v660 = vld [vmem:[%s496 + $0x288] sm:$0xff]
          %661 = vst [vmem:[%s497 + $0x288] sm:$0xff] %v660
          %v662 = vld [vmem:[%s496 + $0x290] sm:$0xff]
          %663 = vst [vmem:[%s497 + $0x290] sm:$0xff] %v662
          %v664 = vld [vmem:[%s496 + $0x298] sm:$0xff]
          %665 = vst [vmem:[%s497 + $0x298] sm:$0xff] %v664
          %v666 = vld [vmem:[%s496 + $0x2a0] sm:$0xff]
          %667 = vst [vmem:[%s497 + $0x2a0] sm:$0xff] %v666
          %v668 = vld [vmem:[%s496 + $0x2a8] sm:$0xff]
          %669 = vst [vmem:[%s497 + $0x2a8] sm:$0xff] %v668
          %v670 = vld [vmem:[%s496 + $0x2b0] sm:$0xff]
          %671 = vst [vmem:[%s497 + $0x2b0] sm:$0xff] %v670
          %v672 = vld [vmem:[%s496 + $0x2b8] sm:$0xff]
          %673 = vst [vmem:[%s497 + $0x2b8] sm:$0xff] %v672
          %v674 = vld [vmem:[%s496 + $0x2c0] sm:$0xff]
          %675 = vst [vmem:[%s497 + $0x2c0] sm:$0xff] %v674
          %v676 = vld [vmem:[%s496 + $0x2c8] sm:$0xff]
          %677 = vst [vmem:[%s497 + $0x2c8] sm:$0xff] %v676
          %v678 = vld [vmem:[%s496 + $0x2d0] sm:$0xff]
          %679 = vst [vmem:[%s497 + $0x2d0] sm:$0xff] %v678
          %v680 = vld [vmem:[%s496 + $0x2d8] sm:$0xff]
          %681 = vst [vmem:[%s497 + $0x2d8] sm:$0xff] %v680
          %v682 = vld [vmem:[%s496 + $0x2e0] sm:$0xff]
          %683 = vst [vmem:[%s497 + $0x2e0] sm:$0xff] %v682
          %v684 = vld [vmem:[%s496 + $0x2e8] sm:$0xff]
          %685 = vst [vmem:[%s497 + $0x2e8] sm:$0xff] %v684
          %v686 = vld [vmem:[%s496 + $0x2f0] sm:$0xff]
          %687 = vst [vmem:[%s497 + $0x2f0] sm:$0xff] %v686
          %v688 = vld [vmem:[%s496 + $0x2f8] sm:$0xff]
          %689 = vst [vmem:[%s497 + $0x2f8] sm:$0xff] %v688
          %v690 = vld [vmem:[%s496 + $0x300] sm:$0xff]
          %691 = vst [vmem:[%s497 + $0x300] sm:$0xff] %v690
          %v692 = vld [vmem:[%s496 + $0x308] sm:$0xff]
          %693 = vst [vmem:[%s497 + $0x308] sm:$0xff] %v692
          %v694 = vld [vmem:[%s496 + $0x310] sm:$0xff]
          %695 = vst [vmem:[%s497 + $0x310] sm:$0xff] %v694
          %v696 = vld [vmem:[%s496 + $0x318] sm:$0xff]
          %697 = vst [vmem:[%s497 + $0x318] sm:$0xff] %v696
          %v698 = vld [vmem:[%s496 + $0x320] sm:$0xff]
          %699 = vst [vmem:[%s497 + $0x320] sm:$0xff] %v698
          %v700 = vld [vmem:[%s496 + $0x328] sm:$0xff]
          %701 = vst [vmem:[%s497 + $0x328] sm:$0xff] %v700
          %v702 = vld [vmem:[%s496 + $0x330] sm:$0xff]
          %703 = vst [vmem:[%s497 + $0x330] sm:$0xff] %v702
          %v704 = vld [vmem:[%s496 + $0x338] sm:$0xff]
          %705 = vst [vmem:[%s497 + $0x338] sm:$0xff] %v704
          %v706 = vld [vmem:[%s496 + $0x340] sm:$0xff]
          %707 = vst [vmem:[%s497 + $0x340] sm:$0xff] %v706
          %v708 = vld [vmem:[%s496 + $0x348] sm:$0xff]
          %709 = vst [vmem:[%s497 + $0x348] sm:$0xff] %v708
          %v710 = vld [vmem:[%s496 + $0x350] sm:$0xff]
          %711 = vst [vmem:[%s497 + $0x350] sm:$0xff] %v710
          %v712 = vld [vmem:[%s496 + $0x358] sm:$0xff]
          %713 = vst [vmem:[%s497 + $0x358] sm:$0xff] %v712
          %v714 = vld [vmem:[%s496 + $0x360] sm:$0xff]
          %715 = vst [vmem:[%s497 + $0x360] sm:$0xff] %v714
          %v716 = vld [vmem:[%s496 + $0x368] sm:$0xff]
          %717 = vst [vmem:[%s497 + $0x368] sm:$0xff] %v716
          %v718 = vld [vmem:[%s496 + $0x370] sm:$0xff]
          %719 = vst [vmem:[%s497 + $0x370] sm:$0xff] %v718
          %v720 = vld [vmem:[%s496 + $0x378] sm:$0xff]
          %721 = vst [vmem:[%s497 + $0x378] sm:$0xff] %v720
          %v722 = vld [vmem:[%s496 + $0x380] sm:$0xff]
          %723 = vst [vmem:[%s497 + $0x380] sm:$0xff] %v722
          %v724 = vld [vmem:[%s496 + $0x388] sm:$0xff]
          %725 = vst [vmem:[%s497 + $0x388] sm:$0xff] %v724
          %v726 = vld [vmem:[%s496 + $0x390] sm:$0xff]
          %727 = vst [vmem:[%s497 + $0x390] sm:$0xff] %v726
          %v728 = vld [vmem:[%s496 + $0x398] sm:$0xff]
          %729 = vst [vmem:[%s497 + $0x398] sm:$0xff] %v728
          %v730 = vld [vmem:[%s496 + $0x3a0] sm:$0xff]
          %731 = vst [vmem:[%s497 + $0x3a0] sm:$0xff] %v730
          %v732 = vld [vmem:[%s496 + $0x3a8] sm:$0xff]
          %733 = vst [vmem:[%s497 + $0x3a8] sm:$0xff] %v732
          %v734 = vld [vmem:[%s496 + $0x3b0] sm:$0xff]
          %735 = vst [vmem:[%s497 + $0x3b0] sm:$0xff] %v734
          %v736 = vld [vmem:[%s496 + $0x3b8] sm:$0xff]
          %737 = vst [vmem:[%s497 + $0x3b8] sm:$0xff] %v736
          %v738 = vld [vmem:[%s496 + $0x3c0] sm:$0xff]
          %739 = vst [vmem:[%s497 + $0x3c0] sm:$0xff] %v738
          %v740 = vld [vmem:[%s496 + $0x3c8] sm:$0xff]
          %741 = vst [vmem:[%s497 + $0x3c8] sm:$0xff] %v740
          %v742 = vld [vmem:[%s496 + $0x3d0] sm:$0xff]
          %743 = vst [vmem:[%s497 + $0x3d0] sm:$0xff] %v742
          %v744 = vld [vmem:[%s496 + $0x3d8] sm:$0xff]
          %745 = vst [vmem:[%s497 + $0x3d8] sm:$0xff] %v744
          %v746 = vld [vmem:[%s496 + $0x3e0] sm:$0xff]
          %747 = vst [vmem:[%s497 + $0x3e0] sm:$0xff] %v746
          %v748 = vld [vmem:[%s496 + $0x3e8] sm:$0xff]
          %749 = vst [vmem:[%s497 + $0x3e8] sm:$0xff] %v748
          %v750 = vld [vmem:[%s496 + $0x3f0] sm:$0xff]
          %751 = vst [vmem:[%s497 + $0x3f0] sm:$0xff] %v750
          %v752 = vld [vmem:[%s496 + $0x3f8] sm:$0xff]
          %753 = vst [vmem:[%s497 + $0x3f8] sm:$0xff] %v752
          %v754 = vld [vmem:[%s496 + $0x400] sm:$0xff]
          %755 = vst [vmem:[%s497 + $0x400] sm:$0xff] %v754
          %v756 = vld [vmem:[%s496 + $0x408] sm:$0xff]
          %757 = vst [vmem:[%s497 + $0x408] sm:$0xff] %v756
          %v758 = vld [vmem:[%s496 + $0x410] sm:$0xff]
          %759 = vst [vmem:[%s497 + $0x410] sm:$0xff] %v758
          %v760 = vld [vmem:[%s496 + $0x418] sm:$0xff]
          %761 = vst [vmem:[%s497 + $0x418] sm:$0xff] %v760
          %v762 = vld [vmem:[%s496 + $0x420] sm:$0xff]
          %763 = vst [vmem:[%s497 + $0x420] sm:$0xff] %v762
          %v764 = vld [vmem:[%s496 + $0x428] sm:$0xff]
          %765 = vst [vmem:[%s497 + $0x428] sm:$0xff] %v764
          %v766 = vld [vmem:[%s496 + $0x430] sm:$0xff]
          %767 = vst [vmem:[%s497 + $0x430] sm:$0xff] %v766
          %v768 = vld [vmem:[%s496 + $0x438] sm:$0xff]
          %769 = vst [vmem:[%s497 + $0x438] sm:$0xff] %v768
          %v770 = vld [vmem:[%s496 + $0x440] sm:$0xff]
          %771 = vst [vmem:[%s497 + $0x440] sm:$0xff] %v770
          %v772 = vld [vmem:[%s496 + $0x448] sm:$0xff]
          %773 = vst [vmem:[%s497 + $0x448] sm:$0xff] %v772
          %v774 = vld [vmem:[%s496 + $0x450] sm:$0xff]
          %775 = vst [vmem:[%s497 + $0x450] sm:$0xff] %v774
          %v776 = vld [vmem:[%s496 + $0x458] sm:$0xff]
          %777 = vst [vmem:[%s497 + $0x458] sm:$0xff] %v776
          %v778 = vld [vmem:[%s496 + $0x460] sm:$0xff]
          %779 = vst [vmem:[%s497 + $0x460] sm:$0xff] %v778
          %v780 = vld [vmem:[%s496 + $0x468] sm:$0xff]
          %781 = vst [vmem:[%s497 + $0x468] sm:$0xff] %v780
          %v782 = vld [vmem:[%s496 + $0x470] sm:$0xff]
          %783 = vst [vmem:[%s497 + $0x470] sm:$0xff] %v782
          %v784 = vld [vmem:[%s496 + $0x478] sm:$0xff]
          %785 = vst [vmem:[%s497 + $0x478] sm:$0xff] %v784
          %v786 = vld [vmem:[%s496 + $0x480] sm:$0xff]
          %787 = vst [vmem:[%s497 + $0x480] sm:$0xff] %v786
          %v788 = vld [vmem:[%s496 + $0x488] sm:$0xff]
          %789 = vst [vmem:[%s497 + $0x488] sm:$0xff] %v788
          %v790 = vld [vmem:[%s496 + $0x490] sm:$0xff]
          %791 = vst [vmem:[%s497 + $0x490] sm:$0xff] %v790
          %v792 = vld [vmem:[%s496 + $0x498] sm:$0xff]
          %793 = vst [vmem:[%s497 + $0x498] sm:$0xff] %v792
          %v794 = vld [vmem:[%s496 + $0x4a0] sm:$0xff]
          %795 = vst [vmem:[%s497 + $0x4a0] sm:$0xff] %v794
          %v796 = vld [vmem:[%s496 + $0x4a8] sm:$0xff]
          %797 = vst [vmem:[%s497 + $0x4a8] sm:$0xff] %v796
          %v798 = vld [vmem:[%s496 + $0x4b0] sm:$0xff]
          %799 = vst [vmem:[%s497 + $0x4b0] sm:$0xff] %v798
          %v800 = vld [vmem:[%s496 + $0x4b8] sm:$0xff]
          %801 = vst [vmem:[%s497 + $0x4b8] sm:$0xff] %v800
          %v802 = vld [vmem:[%s496 + $0x4c0] sm:$0xff]
          %803 = vst [vmem:[%s497 + $0x4c0] sm:$0xff] %v802
          %v804 = vld [vmem:[%s496 + $0x4c8] sm:$0xff]
          %805 = vst [vmem:[%s497 + $0x4c8] sm:$0xff] %v804
          %v806 = vld [vmem:[%s496 + $0x4d0] sm:$0xff]
          %807 = vst [vmem:[%s497 + $0x4d0] sm:$0xff] %v806
          %v808 = vld [vmem:[%s496 + $0x4d8] sm:$0xff]
          %809 = vst [vmem:[%s497 + $0x4d8] sm:$0xff] %v808
          %v810 = vld [vmem:[%s496 + $0x4e0] sm:$0xff]
          %811 = vst [vmem:[%s497 + $0x4e0] sm:$0xff] %v810
          %v812 = vld [vmem:[%s496 + $0x4e8] sm:$0xff]
          %813 = vst [vmem:[%s497 + $0x4e8] sm:$0xff] %v812
          %v814 = vld [vmem:[%s496 + $0x4f0] sm:$0xff]
          %815 = vst [vmem:[%s497 + $0x4f0] sm:$0xff] %v814
          %v816 = vld [vmem:[%s496 + $0x4f8] sm:$0xff]
          %817 = vst [vmem:[%s497 + $0x4f8] sm:$0xff] %v816
          %v818 = vld [vmem:[%s496 + $0x500] sm:$0xff]
          %819 = vst [vmem:[%s497 + $0x500] sm:$0xff] %v818
          %v820 = vld [vmem:[%s496 + $0x508] sm:$0xff]
          %821 = vst [vmem:[%s497 + $0x508] sm:$0xff] %v820
          %v822 = vld [vmem:[%s496 + $0x510] sm:$0xff]
          %823 = vst [vmem:[%s497 + $0x510] sm:$0xff] %v822
          %v824 = vld [vmem:[%s496 + $0x518] sm:$0xff]
          %825 = vst [vmem:[%s497 + $0x518] sm:$0xff] %v824
          %v826 = vld [vmem:[%s496 + $0x520] sm:$0xff]
          %827 = vst [vmem:[%s497 + $0x520] sm:$0xff] %v826
          %v828 = vld [vmem:[%s496 + $0x528] sm:$0xff]
          %829 = vst [vmem:[%s497 + $0x528] sm:$0xff] %v828
          %v830 = vld [vmem:[%s496 + $0x530] sm:$0xff]
          %831 = vst [vmem:[%s497 + $0x530] sm:$0xff] %v830
          %v832 = vld [vmem:[%s496 + $0x538] sm:$0xff]
          %833 = vst [vmem:[%s497 + $0x538] sm:$0xff] %v832
          %v834 = vld [vmem:[%s496 + $0x540] sm:$0xff]
          %835 = vst [vmem:[%s497 + $0x540] sm:$0xff] %v834
          %v836 = vld [vmem:[%s496 + $0x548] sm:$0xff]
          %837 = vst [vmem:[%s497 + $0x548] sm:$0xff] %v836
          %v838 = vld [vmem:[%s496 + $0x550] sm:$0xff]
          %839 = vst [vmem:[%s497 + $0x550] sm:$0xff] %v838
          %v840 = vld [vmem:[%s496 + $0x558] sm:$0xff]
          %841 = vst [vmem:[%s497 + $0x558] sm:$0xff] %v840
          %v842 = vld [vmem:[%s496 + $0x560] sm:$0xff]
          %843 = vst [vmem:[%s497 + $0x560] sm:$0xff] %v842
          %v844 = vld [vmem:[%s496 + $0x568] sm:$0xff]
          %845 = vst [vmem:[%s497 + $0x568] sm:$0xff] %v844
          %v846 = vld [vmem:[%s496 + $0x570] sm:$0xff]
          %847 = vst [vmem:[%s497 + $0x570] sm:$0xff] %v846
          %v848 = vld [vmem:[%s496 + $0x578] sm:$0xff]
          %849 = vst [vmem:[%s497 + $0x578] sm:$0xff] %v848
          %v850 = vld [vmem:[%s496 + $0x580] sm:$0xff]
          %851 = vst [vmem:[%s497 + $0x580] sm:$0xff] %v850
          %v852 = vld [vmem:[%s496 + $0x588] sm:$0xff]
          %853 = vst [vmem:[%s497 + $0x588] sm:$0xff] %v852
          %v854 = vld [vmem:[%s496 + $0x590] sm:$0xff]
          %855 = vst [vmem:[%s497 + $0x590] sm:$0xff] %v854
          %v856 = vld [vmem:[%s496 + $0x598] sm:$0xff]
          %857 = vst [vmem:[%s497 + $0x598] sm:$0xff] %v856
          %v858 = vld [vmem:[%s496 + $0x5a0] sm:$0xff]
          %859 = vst [vmem:[%s497 + $0x5a0] sm:$0xff] %v858
          %v860 = vld [vmem:[%s496 + $0x5a8] sm:$0xff]
          %861 = vst [vmem:[%s497 + $0x5a8] sm:$0xff] %v860
          %v862 = vld [vmem:[%s496 + $0x5b0] sm:$0xff]
          %863 = vst [vmem:[%s497 + $0x5b0] sm:$0xff] %v862
          %v864 = vld [vmem:[%s496 + $0x5b8] sm:$0xff]
          %865 = vst [vmem:[%s497 + $0x5b8] sm:$0xff] %v864
          %v866 = vld [vmem:[%s496 + $0x5c0] sm:$0xff]
          %867 = vst [vmem:[%s497 + $0x5c0] sm:$0xff] %v866
          %v868 = vld [vmem:[%s496 + $0x5c8] sm:$0xff]
          %869 = vst [vmem:[%s497 + $0x5c8] sm:$0xff] %v868
          %v870 = vld [vmem:[%s496 + $0x5d0] sm:$0xff]
          %871 = vst [vmem:[%s497 + $0x5d0] sm:$0xff] %v870
          %v872 = vld [vmem:[%s496 + $0x5d8] sm:$0xff]
          %873 = vst [vmem:[%s497 + $0x5d8] sm:$0xff] %v872
          %v874 = vld [vmem:[%s496 + $0x5e0] sm:$0xff]
          %875 = vst [vmem:[%s497 + $0x5e0] sm:$0xff] %v874
          %v876 = vld [vmem:[%s496 + $0x5e8] sm:$0xff]
          %877 = vst [vmem:[%s497 + $0x5e8] sm:$0xff] %v876
          %v878 = vld [vmem:[%s496 + $0x5f0] sm:$0xff]
          %879 = vst [vmem:[%s497 + $0x5f0] sm:$0xff] %v878
          %v880 = vld [vmem:[%s496 + $0x5f8] sm:$0xff]
          %881 = vst [vmem:[%s497 + $0x5f8] sm:$0xff] %v880
          %v882 = vld [vmem:[%s496 + $0x600] sm:$0xff]
          %883 = vst [vmem:[%s497 + $0x600] sm:$0xff] %v882
          %v884 = vld [vmem:[%s496 + $0x608] sm:$0xff]
          %885 = vst [vmem:[%s497 + $0x608] sm:$0xff] %v884
          %v886 = vld [vmem:[%s496 + $0x610] sm:$0xff]
          %887 = vst [vmem:[%s497 + $0x610] sm:$0xff] %v886
          %v888 = vld [vmem:[%s496 + $0x618] sm:$0xff]
          %889 = vst [vmem:[%s497 + $0x618] sm:$0xff] %v888
          %v890 = vld [vmem:[%s496 + $0x620] sm:$0xff]
          %891 = vst [vmem:[%s497 + $0x620] sm:$0xff] %v890
          %v892 = vld [vmem:[%s496 + $0x628] sm:$0xff]
          %893 = vst [vmem:[%s497 + $0x628] sm:$0xff] %v892
          %v894 = vld [vmem:[%s496 + $0x630] sm:$0xff]
          %895 = vst [vmem:[%s497 + $0x630] sm:$0xff] %v894
          %v896 = vld [vmem:[%s496 + $0x638] sm:$0xff]
          %897 = vst [vmem:[%s497 + $0x638] sm:$0xff] %v896
          %v898 = vld [vmem:[%s496 + $0x640] sm:$0xff]
          %899 = vst [vmem:[%s497 + $0x640] sm:$0xff] %v898
          %v900 = vld [vmem:[%s496 + $0x648] sm:$0xff]
          %901 = vst [vmem:[%s497 + $0x648] sm:$0xff] %v900
          %v902 = vld [vmem:[%s496 + $0x650] sm:$0xff]
          %903 = vst [vmem:[%s497 + $0x650] sm:$0xff] %v902
          %v904 = vld [vmem:[%s496 + $0x658] sm:$0xff]
          %905 = vst [vmem:[%s497 + $0x658] sm:$0xff] %v904
          %v906 = vld [vmem:[%s496 + $0x660] sm:$0xff]
          %907 = vst [vmem:[%s497 + $0x660] sm:$0xff] %v906
          %v908 = vld [vmem:[%s496 + $0x668] sm:$0xff]
          %909 = vst [vmem:[%s497 + $0x668] sm:$0xff] %v908
          %v910 = vld [vmem:[%s496 + $0x670] sm:$0xff]
          %911 = vst [vmem:[%s497 + $0x670] sm:$0xff] %v910
          %v912 = vld [vmem:[%s496 + $0x678] sm:$0xff]
          %913 = vst [vmem:[%s497 + $0x678] sm:$0xff] %v912
          %v914 = vld [vmem:[%s496 + $0x680] sm:$0xff]
          %915 = vst [vmem:[%s497 + $0x680] sm:$0xff] %v914
          %v916 = vld [vmem:[%s496 + $0x688] sm:$0xff]
          %917 = vst [vmem:[%s497 + $0x688] sm:$0xff] %v916
          %v918 = vld [vmem:[%s496 + $0x690] sm:$0xff]
          %919 = vst [vmem:[%s497 + $0x690] sm:$0xff] %v918
          %v920 = vld [vmem:[%s496 + $0x698] sm:$0xff]
          %921 = vst [vmem:[%s497 + $0x698] sm:$0xff] %v920
          %v922 = vld [vmem:[%s496 + $0x6a0] sm:$0xff]
          %923 = vst [vmem:[%s497 + $0x6a0] sm:$0xff] %v922
          %v924 = vld [vmem:[%s496 + $0x6a8] sm:$0xff]
          %925 = vst [vmem:[%s497 + $0x6a8] sm:$0xff] %v924
          %v926 = vld [vmem:[%s496 + $0x6b0] sm:$0xff]
          %927 = vst [vmem:[%s497 + $0x6b0] sm:$0xff] %v926
          %v928 = vld [vmem:[%s496 + $0x6b8] sm:$0xff]
          %929 = vst [vmem:[%s497 + $0x6b8] sm:$0xff] %v928
          %v930 = vld [vmem:[%s496 + $0x6c0] sm:$0xff]
          %931 = vst [vmem:[%s497 + $0x6c0] sm:$0xff] %v930
          %v932 = vld [vmem:[%s496 + $0x6c8] sm:$0xff]
          %933 = vst [vmem:[%s497 + $0x6c8] sm:$0xff] %v932
          %v934 = vld [vmem:[%s496 + $0x6d0] sm:$0xff]
          %935 = vst [vmem:[%s497 + $0x6d0] sm:$0xff] %v934
          %v936 = vld [vmem:[%s496 + $0x6d8] sm:$0xff]
          %937 = vst [vmem:[%s497 + $0x6d8] sm:$0xff] %v936
          %v938 = vld [vmem:[%s496 + $0x6e0] sm:$0xff]
          %939 = vst [vmem:[%s497 + $0x6e0] sm:$0xff] %v938
          %v940 = vld [vmem:[%s496 + $0x6e8] sm:$0xff]
          %941 = vst [vmem:[%s497 + $0x6e8] sm:$0xff] %v940
          %v942 = vld [vmem:[%s496 + $0x6f0] sm:$0xff]
          %943 = vst [vmem:[%s497 + $0x6f0] sm:$0xff] %v942
          %v944 = vld [vmem:[%s496 + $0x6f8] sm:$0xff]
          %945 = vst [vmem:[%s497 + $0x6f8] sm:$0xff] %v944
          %v946 = vld [vmem:[%s496 + $0x700] sm:$0xff]
          %947 = vst [vmem:[%s497 + $0x700] sm:$0xff] %v946
          %v948 = vld [vmem:[%s496 + $0x708] sm:$0xff]
          %949 = vst [vmem:[%s497 + $0x708] sm:$0xff] %v948
          %v950 = vld [vmem:[%s496 + $0x710] sm:$0xff]
          %951 = vst [vmem:[%s497 + $0x710] sm:$0xff] %v950
          %v952 = vld [vmem:[%s496 + $0x718] sm:$0xff]
          %953 = vst [vmem:[%s497 + $0x718] sm:$0xff] %v952
          %v954 = vld [vmem:[%s496 + $0x720] sm:$0xff]
          %955 = vst [vmem:[%s497 + $0x720] sm:$0xff] %v954
          %v956 = vld [vmem:[%s496 + $0x728] sm:$0xff]
          %957 = vst [vmem:[%s497 + $0x728] sm:$0xff] %v956
          %v958 = vld [vmem:[%s496 + $0x730] sm:$0xff]
          %959 = vst [vmem:[%s497 + $0x730] sm:$0xff] %v958
          %v960 = vld [vmem:[%s496 + $0x738] sm:$0xff]
          %961 = vst [vmem:[%s497 + $0x738] sm:$0xff] %v960
          %v962 = vld [vmem:[%s496 + $0x740] sm:$0xff]
          %963 = vst [vmem:[%s497 + $0x740] sm:$0xff] %v962
          %v964 = vld [vmem:[%s496 + $0x748] sm:$0xff]
          %965 = vst [vmem:[%s497 + $0x748] sm:$0xff] %v964
          %v966 = vld [vmem:[%s496 + $0x750] sm:$0xff]
          %967 = vst [vmem:[%s497 + $0x750] sm:$0xff] %v966
          %v968 = vld [vmem:[%s496 + $0x758] sm:$0xff]
          %969 = vst [vmem:[%s497 + $0x758] sm:$0xff] %v968
          %v970 = vld [vmem:[%s496 + $0x760] sm:$0xff]
          %971 = vst [vmem:[%s497 + $0x760] sm:$0xff] %v970
          %v972 = vld [vmem:[%s496 + $0x768] sm:$0xff]
          %973 = vst [vmem:[%s497 + $0x768] sm:$0xff] %v972
          %v974 = vld [vmem:[%s496 + $0x770] sm:$0xff]
          %975 = vst [vmem:[%s497 + $0x770] sm:$0xff] %v974
          %v976 = vld [vmem:[%s496 + $0x778] sm:$0xff]
          %977 = vst [vmem:[%s497 + $0x778] sm:$0xff] %v976
          %v978 = vld [vmem:[%s496 + $0x780] sm:$0xff]
          %979 = vst [vmem:[%s497 + $0x780] sm:$0xff] %v978
          %v980 = vld [vmem:[%s496 + $0x788] sm:$0xff]
          %981 = vst [vmem:[%s497 + $0x788] sm:$0xff] %v980
          %v982 = vld [vmem:[%s496 + $0x790] sm:$0xff]
          %983 = vst [vmem:[%s497 + $0x790] sm:$0xff] %v982
          %v984 = vld [vmem:[%s496 + $0x798] sm:$0xff]
          %985 = vst [vmem:[%s497 + $0x798] sm:$0xff] %v984
          %v986 = vld [vmem:[%s496 + $0x7a0] sm:$0xff]
          %987 = vst [vmem:[%s497 + $0x7a0] sm:$0xff] %v986
          %v988 = vld [vmem:[%s496 + $0x7a8] sm:$0xff]
          %989 = vst [vmem:[%s497 + $0x7a8] sm:$0xff] %v988
          %v990 = vld [vmem:[%s496 + $0x7b0] sm:$0xff]
          %991 = vst [vmem:[%s497 + $0x7b0] sm:$0xff] %v990
          %v992 = vld [vmem:[%s496 + $0x7b8] sm:$0xff]
          %993 = vst [vmem:[%s497 + $0x7b8] sm:$0xff] %v992
          %v994 = vld [vmem:[%s496 + $0x7c0] sm:$0xff]
          %995 = vst [vmem:[%s497 + $0x7c0] sm:$0xff] %v994
          %v996 = vld [vmem:[%s496 + $0x7c8] sm:$0xff]
          %997 = vst [vmem:[%s497 + $0x7c8] sm:$0xff] %v996
          %v998 = vld [vmem:[%s496 + $0x7d0] sm:$0xff]
          %999 = vst [vmem:[%s497 + $0x7d0] sm:$0xff] %v998
          %v1000 = vld [vmem:[%s496 + $0x7d8] sm:$0xff]
          %1001 = vst [vmem:[%s497 + $0x7d8] sm:$0xff] %v1000
          %v1002 = vld [vmem:[%s496 + $0x7e0] sm:$0xff]
          %1003 = vst [vmem:[%s497 + $0x7e0] sm:$0xff] %v1002
          %v1004 = vld [vmem:[%s496 + $0x7e8] sm:$0xff]
          %1005 = vst [vmem:[%s497 + $0x7e8] sm:$0xff] %v1004
          %v1006 = vld [vmem:[%s496 + $0x7f0] sm:$0xff]
          %1007 = vst [vmem:[%s497 + $0x7f0] sm:$0xff] %v1006
          %v1008 = vld [vmem:[%s496 + $0x7f8] sm:$0xff]
          %1009 = vst [vmem:[%s497 + $0x7f8] sm:$0xff] %v1008
          %v1010 = vld [vmem:[%s496 + $0x800] sm:$0xff]
          %1011 = vst [vmem:[%s497 + $0x800] sm:$0xff] %v1010
          %v1012 = vld [vmem:[%s496 + $0x808] sm:$0xff]
          %1013 = vst [vmem:[%s497 + $0x808] sm:$0xff] %v1012
          %v1014 = vld [vmem:[%s496 + $0x810] sm:$0xff]
          %1015 = vst [vmem:[%s497 + $0x810] sm:$0xff] %v1014
          %v1016 = vld [vmem:[%s496 + $0x818] sm:$0xff]
          %1017 = vst [vmem:[%s497 + $0x818] sm:$0xff] %v1016
          %v1018 = vld [vmem:[%s496 + $0x820] sm:$0xff]
          %1019 = vst [vmem:[%s497 + $0x820] sm:$0xff] %v1018
          %v1020 = vld [vmem:[%s496 + $0x828] sm:$0xff]
          %1021 = vst [vmem:[%s497 + $0x828] sm:$0xff] %v1020
          %v1022 = vld [vmem:[%s496 + $0x830] sm:$0xff]
          %1023 = vst [vmem:[%s497 + $0x830] sm:$0xff] %v1022
          %v1024 = vld [vmem:[%s496 + $0x838] sm:$0xff]
          %1025 = vst [vmem:[%s497 + $0x838] sm:$0xff] %v1024
          %v1026 = vld [vmem:[%s496 + $0x840] sm:$0xff]
          %1027 = vst [vmem:[%s497 + $0x840] sm:$0xff] %v1026
          %v1028 = vld [vmem:[%s496 + $0x848] sm:$0xff]
          %1029 = vst [vmem:[%s497 + $0x848] sm:$0xff] %v1028
          %v1030 = vld [vmem:[%s496 + $0x850] sm:$0xff]
          %1031 = vst [vmem:[%s497 + $0x850] sm:$0xff] %v1030
          %v1032 = vld [vmem:[%s496 + $0x858] sm:$0xff]
          %1033 = vst [vmem:[%s497 + $0x858] sm:$0xff] %v1032
          %v1034 = vld [vmem:[%s496 + $0x860] sm:$0xff]
          %1035 = vst [vmem:[%s497 + $0x860] sm:$0xff] %v1034
          %v1036 = vld [vmem:[%s496 + $0x868] sm:$0xff]
          %1037 = vst [vmem:[%s497 + $0x868] sm:$0xff] %v1036
          %v1038 = vld [vmem:[%s496 + $0x870] sm:$0xff]
          %1039 = vst [vmem:[%s497 + $0x870] sm:$0xff] %v1038
          %v1040 = vld [vmem:[%s496 + $0x878] sm:$0xff]
          %1041 = vst [vmem:[%s497 + $0x878] sm:$0xff] %v1040
          %v1042 = vld [vmem:[%s496 + $0x880] sm:$0xff]
          %1043 = vst [vmem:[%s497 + $0x880] sm:$0xff] %v1042
          %v1044 = vld [vmem:[%s496 + $0x888] sm:$0xff]
          %1045 = vst [vmem:[%s497 + $0x888] sm:$0xff] %v1044
          %v1046 = vld [vmem:[%s496 + $0x890] sm:$0xff]
          %1047 = vst [vmem:[%s497 + $0x890] sm:$0xff] %v1046
          %v1048 = vld [vmem:[%s496 + $0x898] sm:$0xff]
          %1049 = vst [vmem:[%s497 + $0x898] sm:$0xff] %v1048
          %v1050 = vld [vmem:[%s496 + $0x8a0] sm:$0xff]
          %1051 = vst [vmem:[%s497 + $0x8a0] sm:$0xff] %v1050
          %v1052 = vld [vmem:[%s496 + $0x8a8] sm:$0xff]
          %1053 = vst [vmem:[%s497 + $0x8a8] sm:$0xff] %v1052
          %v1054 = vld [vmem:[%s496 + $0x8b0] sm:$0xff]
          %1055 = vst [vmem:[%s497 + $0x8b0] sm:$0xff] %v1054
          %v1056 = vld [vmem:[%s496 + $0x8b8] sm:$0xff]
          %1057 = vst [vmem:[%s497 + $0x8b8] sm:$0xff] %v1056
          %v1058 = vld [vmem:[%s496 + $0x8c0] sm:$0xff]
          %1059 = vst [vmem:[%s497 + $0x8c0] sm:$0xff] %v1058
          %v1060 = vld [vmem:[%s496 + $0x8c8] sm:$0xff]
          %1061 = vst [vmem:[%s497 + $0x8c8] sm:$0xff] %v1060
          %v1062 = vld [vmem:[%s496 + $0x8d0] sm:$0xff]
          %1063 = vst [vmem:[%s497 + $0x8d0] sm:$0xff] %v1062
          %v1064 = vld [vmem:[%s496 + $0x8d8] sm:$0xff]
          %1065 = vst [vmem:[%s497 + $0x8d8] sm:$0xff] %v1064
          %v1066 = vld [vmem:[%s496 + $0x8e0] sm:$0xff]
          %1067 = vst [vmem:[%s497 + $0x8e0] sm:$0xff] %v1066
          %v1068 = vld [vmem:[%s496 + $0x8e8] sm:$0xff]
          %1069 = vst [vmem:[%s497 + $0x8e8] sm:$0xff] %v1068
          %v1070 = vld [vmem:[%s496 + $0x8f0] sm:$0xff]
          %1071 = vst [vmem:[%s497 + $0x8f0] sm:$0xff] %v1070
          %v1072 = vld [vmem:[%s496 + $0x8f8] sm:$0xff]
          %1073 = vst [vmem:[%s497 + $0x8f8] sm:$0xff] %v1072
          %v1074 = vld [vmem:[%s496 + $0x900] sm:$0xff]
          %1075 = vst [vmem:[%s497 + $0x900] sm:$0xff] %v1074
          %v1076 = vld [vmem:[%s496 + $0x908] sm:$0xff]
          %1077 = vst [vmem:[%s497 + $0x908] sm:$0xff] %v1076
          %v1078 = vld [vmem:[%s496 + $0x910] sm:$0xff]
          %1079 = vst [vmem:[%s497 + $0x910] sm:$0xff] %v1078
          %v1080 = vld [vmem:[%s496 + $0x918] sm:$0xff]
          %1081 = vst [vmem:[%s497 + $0x918] sm:$0xff] %v1080
          %v1082 = vld [vmem:[%s496 + $0x920] sm:$0xff]
          %1083 = vst [vmem:[%s497 + $0x920] sm:$0xff] %v1082
          %v1084 = vld [vmem:[%s496 + $0x928] sm:$0xff]
          %1085 = vst [vmem:[%s497 + $0x928] sm:$0xff] %v1084
          %v1086 = vld [vmem:[%s496 + $0x930] sm:$0xff]
          %1087 = vst [vmem:[%s497 + $0x930] sm:$0xff] %v1086
          %v1088 = vld [vmem:[%s496 + $0x938] sm:$0xff]
          %1089 = vst [vmem:[%s497 + $0x938] sm:$0xff] %v1088
          %v1090 = vld [vmem:[%s496 + $0x940] sm:$0xff]
          %1091 = vst [vmem:[%s497 + $0x940] sm:$0xff] %v1090
          %v1092 = vld [vmem:[%s496 + $0x948] sm:$0xff]
          %1093 = vst [vmem:[%s497 + $0x948] sm:$0xff] %v1092
          %v1094 = vld [vmem:[%s496 + $0x950] sm:$0xff]
          %1095 = vst [vmem:[%s497 + $0x950] sm:$0xff] %v1094
          %v1096 = vld [vmem:[%s496 + $0x958] sm:$0xff]
          %1097 = vst [vmem:[%s497 + $0x958] sm:$0xff] %v1096
          %v1098 = vld [vmem:[%s496 + $0x960] sm:$0xff]
          %1099 = vst [vmem:[%s497 + $0x960] sm:$0xff] %v1098
          %v1100 = vld [vmem:[%s496 + $0x968] sm:$0xff]
          %1101 = vst [vmem:[%s497 + $0x968] sm:$0xff] %v1100
          %v1102 = vld [vmem:[%s496 + $0x970] sm:$0xff]
          %1103 = vst [vmem:[%s497 + $0x970] sm:$0xff] %v1102
          %v1104 = vld [vmem:[%s496 + $0x978] sm:$0xff]
          %1105 = vst [vmem:[%s497 + $0x978] sm:$0xff] %v1104
          %v1106 = vld [vmem:[%s496 + $0x980] sm:$0xff]
          %1107 = vst [vmem:[%s497 + $0x980] sm:$0xff] %v1106
          %v1108 = vld [vmem:[%s496 + $0x988] sm:$0xff]
          %1109 = vst [vmem:[%s497 + $0x988] sm:$0xff] %v1108
          %v1110 = vld [vmem:[%s496 + $0x990] sm:$0xff]
          %1111 = vst [vmem:[%s497 + $0x990] sm:$0xff] %v1110
          %v1112 = vld [vmem:[%s496 + $0x998] sm:$0xff]
          %1113 = vst [vmem:[%s497 + $0x998] sm:$0xff] %v1112
          %v1114 = vld [vmem:[%s496 + $0x9a0] sm:$0xff]
          %1115 = vst [vmem:[%s497 + $0x9a0] sm:$0xff] %v1114
          %v1116 = vld [vmem:[%s496 + $0x9a8] sm:$0xff]
          %1117 = vst [vmem:[%s497 + $0x9a8] sm:$0xff] %v1116
          %v1118 = vld [vmem:[%s496 + $0x9b0] sm:$0xff]
          %1119 = vst [vmem:[%s497 + $0x9b0] sm:$0xff] %v1118
          %v1120 = vld [vmem:[%s496 + $0x9b8] sm:$0xff]
          %1121 = vst [vmem:[%s497 + $0x9b8] sm:$0xff] %v1120
          %v1122 = vld [vmem:[%s496 + $0x9c0] sm:$0xff]
          %1123 = vst [vmem:[%s497 + $0x9c0] sm:$0xff] %v1122
          %v1124 = vld [vmem:[%s496 + $0x9c8] sm:$0xff]
          %1125 = vst [vmem:[%s497 + $0x9c8] sm:$0xff] %v1124
          %v1126 = vld [vmem:[%s496 + $0x9d0] sm:$0xff]
          %1127 = vst [vmem:[%s497 + $0x9d0] sm:$0xff] %v1126
          %v1128 = vld [vmem:[%s496 + $0x9d8] sm:$0xff]
          %1129 = vst [vmem:[%s497 + $0x9d8] sm:$0xff] %v1128
          %v1130 = vld [vmem:[%s496 + $0x9e0] sm:$0xff]
          %1131 = vst [vmem:[%s497 + $0x9e0] sm:$0xff] %v1130
          %v1132 = vld [vmem:[%s496 + $0x9e8] sm:$0xff]
          %1133 = vst [vmem:[%s497 + $0x9e8] sm:$0xff] %v1132
          %v1134 = vld [vmem:[%s496 + $0x9f0] sm:$0xff]
          %1135 = vst [vmem:[%s497 + $0x9f0] sm:$0xff] %v1134
          %v1136 = vld [vmem:[%s496 + $0x9f8] sm:$0xff]
          %1137 = vst [vmem:[%s497 + $0x9f8] sm:$0xff] %v1136
          %v1138 = vld [vmem:[%s496 + $0xa00] sm:$0xff]
          %1139 = vst [vmem:[%s497 + $0xa00] sm:$0xff] %v1138
          %v1140 = vld [vmem:[%s496 + $0xa08] sm:$0xff]
          %1141 = vst [vmem:[%s497 + $0xa08] sm:$0xff] %v1140
          %v1142 = vld [vmem:[%s496 + $0xa10] sm:$0xff]
          %1143 = vst [vmem:[%s497 + $0xa10] sm:$0xff] %v1142
          %v1144 = vld [vmem:[%s496 + $0xa18] sm:$0xff]
          %1145 = vst [vmem:[%s497 + $0xa18] sm:$0xff] %v1144
          %v1146 = vld [vmem:[%s496 + $0xa20] sm:$0xff]
          %1147 = vst [vmem:[%s497 + $0xa20] sm:$0xff] %v1146
          %v1148 = vld [vmem:[%s496 + $0xa28] sm:$0xff]
          %1149 = vst [vmem:[%s497 + $0xa28] sm:$0xff] %v1148
          %v1150 = vld [vmem:[%s496 + $0xa30] sm:$0xff]
          %1151 = vst [vmem:[%s497 + $0xa30] sm:$0xff] %v1150
          %v1152 = vld [vmem:[%s496 + $0xa38] sm:$0xff]
          %1153 = vst [vmem:[%s497 + $0xa38] sm:$0xff] %v1152
          %v1154 = vld [vmem:[%s496 + $0xa40] sm:$0xff]
          %1155 = vst [vmem:[%s497 + $0xa40] sm:$0xff] %v1154
          %v1156 = vld [vmem:[%s496 + $0xa48] sm:$0xff]
          %1157 = vst [vmem:[%s497 + $0xa48] sm:$0xff] %v1156
          %v1158 = vld [vmem:[%s496 + $0xa50] sm:$0xff]
          %1159 = vst [vmem:[%s497 + $0xa50] sm:$0xff] %v1158
          %v1160 = vld [vmem:[%s496 + $0xa58] sm:$0xff]
          %1161 = vst [vmem:[%s497 + $0xa58] sm:$0xff] %v1160
          %v1162 = vld [vmem:[%s496 + $0xa60] sm:$0xff]
          %1163 = vst [vmem:[%s497 + $0xa60] sm:$0xff] %v1162
          %v1164 = vld [vmem:[%s496 + $0xa68] sm:$0xff]
          %1165 = vst [vmem:[%s497 + $0xa68] sm:$0xff] %v1164
          %v1166 = vld [vmem:[%s496 + $0xa70] sm:$0xff]
          %1167 = vst [vmem:[%s497 + $0xa70] sm:$0xff] %v1166
          %v1168 = vld [vmem:[%s496 + $0xa78] sm:$0xff]
          %1169 = vst [vmem:[%s497 + $0xa78] sm:$0xff] %v1168
          %v1170 = vld [vmem:[%s496 + $0xa80] sm:$0xff]
          %1171 = vst [vmem:[%s497 + $0xa80] sm:$0xff] %v1170
          %v1172 = vld [vmem:[%s496 + $0xa88] sm:$0xff]
          %1173 = vst [vmem:[%s497 + $0xa88] sm:$0xff] %v1172
          %v1174 = vld [vmem:[%s496 + $0xa90] sm:$0xff]
          %1175 = vst [vmem:[%s497 + $0xa90] sm:$0xff] %v1174
          %v1176 = vld [vmem:[%s496 + $0xa98] sm:$0xff]
          %1177 = vst [vmem:[%s497 + $0xa98] sm:$0xff] %v1176
          %v1178 = vld [vmem:[%s496 + $0xaa0] sm:$0xff]
          %1179 = vst [vmem:[%s497 + $0xaa0] sm:$0xff] %v1178
          %v1180 = vld [vmem:[%s496 + $0xaa8] sm:$0xff]
          %1181 = vst [vmem:[%s497 + $0xaa8] sm:$0xff] %v1180
          %v1182 = vld [vmem:[%s496 + $0xab0] sm:$0xff]
          %1183 = vst [vmem:[%s497 + $0xab0] sm:$0xff] %v1182
          %v1184 = vld [vmem:[%s496 + $0xab8] sm:$0xff]
          %1185 = vst [vmem:[%s497 + $0xab8] sm:$0xff] %v1184
          %v1186 = vld [vmem:[%s496 + $0xac0] sm:$0xff]
          %1187 = vst [vmem:[%s497 + $0xac0] sm:$0xff] %v1186
          %v1188 = vld [vmem:[%s496 + $0xac8] sm:$0xff]
          %1189 = vst [vmem:[%s497 + $0xac8] sm:$0xff] %v1188
          %v1190 = vld [vmem:[%s496 + $0xad0] sm:$0xff]
          %1191 = vst [vmem:[%s497 + $0xad0] sm:$0xff] %v1190
          %v1192 = vld [vmem:[%s496 + $0xad8] sm:$0xff]
          %1193 = vst [vmem:[%s497 + $0xad8] sm:$0xff] %v1192
          %v1194 = vld [vmem:[%s496 + $0xae0] sm:$0xff]
          %1195 = vst [vmem:[%s497 + $0xae0] sm:$0xff] %v1194
          %v1196 = vld [vmem:[%s496 + $0xae8] sm:$0xff]
          %1197 = vst [vmem:[%s497 + $0xae8] sm:$0xff] %v1196
          %v1198 = vld [vmem:[%s496 + $0xaf0] sm:$0xff]
          %1199 = vst [vmem:[%s497 + $0xaf0] sm:$0xff] %v1198
          %v1200 = vld [vmem:[%s496 + $0xaf8] sm:$0xff]
          %1201 = vst [vmem:[%s497 + $0xaf8] sm:$0xff] %v1200
          %v1202 = vld [vmem:[%s496 + $0xb00] sm:$0xff]
          %1203 = vst [vmem:[%s497 + $0xb00] sm:$0xff] %v1202
          %v1204 = vld [vmem:[%s496 + $0xb08] sm:$0xff]
          %1205 = vst [vmem:[%s497 + $0xb08] sm:$0xff] %v1204
          %v1206 = vld [vmem:[%s496 + $0xb10] sm:$0xff]
          %1207 = vst [vmem:[%s497 + $0xb10] sm:$0xff] %v1206
          %v1208 = vld [vmem:[%s496 + $0xb18] sm:$0xff]
          %1209 = vst [vmem:[%s497 + $0xb18] sm:$0xff] %v1208
          %v1210 = vld [vmem:[%s496 + $0xb20] sm:$0xff]
          %1211 = vst [vmem:[%s497 + $0xb20] sm:$0xff] %v1210
          %v1212 = vld [vmem:[%s496 + $0xb28] sm:$0xff]
          %1213 = vst [vmem:[%s497 + $0xb28] sm:$0xff] %v1212
          %v1214 = vld [vmem:[%s496 + $0xb30] sm:$0xff]
          %1215 = vst [vmem:[%s497 + $0xb30] sm:$0xff] %v1214
          %v1216 = vld [vmem:[%s496 + $0xb38] sm:$0xff]
          %1217 = vst [vmem:[%s497 + $0xb38] sm:$0xff] %v1216
          %v1218 = vld [vmem:[%s496 + $0xb40] sm:$0xff]
          %1219 = vst [vmem:[%s497 + $0xb40] sm:$0xff] %v1218
          %v1220 = vld [vmem:[%s496 + $0xb48] sm:$0xff]
          %1221 = vst [vmem:[%s497 + $0xb48] sm:$0xff] %v1220
          %v1222 = vld [vmem:[%s496 + $0xb50] sm:$0xff]
          %1223 = vst [vmem:[%s497 + $0xb50] sm:$0xff] %v1222
          %v1224 = vld [vmem:[%s496 + $0xb58] sm:$0xff]
          %1225 = vst [vmem:[%s497 + $0xb58] sm:$0xff] %v1224
          %v1226 = vld [vmem:[%s496 + $0xb60] sm:$0xff]
          %1227 = vst [vmem:[%s497 + $0xb60] sm:$0xff] %v1226
          %v1228 = vld [vmem:[%s496 + $0xb68] sm:$0xff]
          %1229 = vst [vmem:[%s497 + $0xb68] sm:$0xff] %v1228
          %v1230 = vld [vmem:[%s496 + $0xb70] sm:$0xff]
          %1231 = vst [vmem:[%s497 + $0xb70] sm:$0xff] %v1230
          %v1232 = vld [vmem:[%s496 + $0xb78] sm:$0xff]
          %1233 = vst [vmem:[%s497 + $0xb78] sm:$0xff] %v1232
          %v1234 = vld [vmem:[%s496 + $0xb80] sm:$0xff]
          %1235 = vst [vmem:[%s497 + $0xb80] sm:$0xff] %v1234
          %v1236 = vld [vmem:[%s496 + $0xb88] sm:$0xff]
          %1237 = vst [vmem:[%s497 + $0xb88] sm:$0xff] %v1236
          %v1238 = vld [vmem:[%s496 + $0xb90] sm:$0xff]
          %1239 = vst [vmem:[%s497 + $0xb90] sm:$0xff] %v1238
          %v1240 = vld [vmem:[%s496 + $0xb98] sm:$0xff]
          %1241 = vst [vmem:[%s497 + $0xb98] sm:$0xff] %v1240
          %v1242 = vld [vmem:[%s496 + $0xba0] sm:$0xff]
          %1243 = vst [vmem:[%s497 + $0xba0] sm:$0xff] %v1242
          %v1244 = vld [vmem:[%s496 + $0xba8] sm:$0xff]
          %1245 = vst [vmem:[%s497 + $0xba8] sm:$0xff] %v1244
          %v1246 = vld [vmem:[%s496 + $0xbb0] sm:$0xff]
          %1247 = vst [vmem:[%s497 + $0xbb0] sm:$0xff] %v1246
          %v1248 = vld [vmem:[%s496 + $0xbb8] sm:$0xff]
          %1249 = vst [vmem:[%s497 + $0xbb8] sm:$0xff] %v1248
          %v1250 = vld [vmem:[%s496 + $0xbc0] sm:$0xff]
          %1251 = vst [vmem:[%s497 + $0xbc0] sm:$0xff] %v1250
          %v1252 = vld [vmem:[%s496 + $0xbc8] sm:$0xff]
          %1253 = vst [vmem:[%s497 + $0xbc8] sm:$0xff] %v1252
          %v1254 = vld [vmem:[%s496 + $0xbd0] sm:$0xff]
          %1255 = vst [vmem:[%s497 + $0xbd0] sm:$0xff] %v1254
          %v1256 = vld [vmem:[%s496 + $0xbd8] sm:$0xff]
          %1257 = vst [vmem:[%s497 + $0xbd8] sm:$0xff] %v1256
          %v1258 = vld [vmem:[%s496 + $0xbe0] sm:$0xff]
          %1259 = vst [vmem:[%s497 + $0xbe0] sm:$0xff] %v1258
          %v1260 = vld [vmem:[%s496 + $0xbe8] sm:$0xff]
          %1261 = vst [vmem:[%s497 + $0xbe8] sm:$0xff] %v1260
          %v1262 = vld [vmem:[%s496 + $0xbf0] sm:$0xff]
          %1263 = vst [vmem:[%s497 + $0xbf0] sm:$0xff] %v1262
          %v1264 = vld [vmem:[%s496 + $0xbf8] sm:$0xff]
          %1265 = vst [vmem:[%s497 + $0xbf8] sm:$0xff] %v1264
          %v1266 = vld [vmem:[%s496 + $0xc00] sm:$0xff]
          %1267 = vst [vmem:[%s497 + $0xc00] sm:$0xff] %v1266
          %v1268 = vld [vmem:[%s496 + $0xc08] sm:$0xff]
          %1269 = vst [vmem:[%s497 + $0xc08] sm:$0xff] %v1268
          %v1270 = vld [vmem:[%s496 + $0xc10] sm:$0xff]
          %1271 = vst [vmem:[%s497 + $0xc10] sm:$0xff] %v1270
          %v1272 = vld [vmem:[%s496 + $0xc18] sm:$0xff]
          %1273 = vst [vmem:[%s497 + $0xc18] sm:$0xff] %v1272
          %v1274 = vld [vmem:[%s496 + $0xc20] sm:$0xff]
          %1275 = vst [vmem:[%s497 + $0xc20] sm:$0xff] %v1274
          %v1276 = vld [vmem:[%s496 + $0xc28] sm:$0xff]
          %1277 = vst [vmem:[%s497 + $0xc28] sm:$0xff] %v1276
          %v1278 = vld [vmem:[%s496 + $0xc30] sm:$0xff]
          %1279 = vst [vmem:[%s497 + $0xc30] sm:$0xff] %v1278
          %v1280 = vld [vmem:[%s496 + $0xc38] sm:$0xff]
          %1281 = vst [vmem:[%s497 + $0xc38] sm:$0xff] %v1280
          %v1282 = vld [vmem:[%s496 + $0xc40] sm:$0xff]
          %1283 = vst [vmem:[%s497 + $0xc40] sm:$0xff] %v1282
          %v1284 = vld [vmem:[%s496 + $0xc48] sm:$0xff]
          %1285 = vst [vmem:[%s497 + $0xc48] sm:$0xff] %v1284
          %v1286 = vld [vmem:[%s496 + $0xc50] sm:$0xff]
          %1287 = vst [vmem:[%s497 + $0xc50] sm:$0xff] %v1286
          %v1288 = vld [vmem:[%s496 + $0xc58] sm:$0xff]
          %1289 = vst [vmem:[%s497 + $0xc58] sm:$0xff] %v1288
          %v1290 = vld [vmem:[%s496 + $0xc60] sm:$0xff]
          %1291 = vst [vmem:[%s497 + $0xc60] sm:$0xff] %v1290
          %v1292 = vld [vmem:[%s496 + $0xc68] sm:$0xff]
          %1293 = vst [vmem:[%s497 + $0xc68] sm:$0xff] %v1292
          %v1294 = vld [vmem:[%s496 + $0xc70] sm:$0xff]
          %1295 = vst [vmem:[%s497 + $0xc70] sm:$0xff] %v1294
          %v1296 = vld [vmem:[%s496 + $0xc78] sm:$0xff]
          %1297 = vst [vmem:[%s497 + $0xc78] sm:$0xff] %v1296
          %v1298 = vld [vmem:[%s496 + $0xc80] sm:$0xff]
          %1299 = vst [vmem:[%s497 + $0xc80] sm:$0xff] %v1298
          %v1300 = vld [vmem:[%s496 + $0xc88] sm:$0xff]
          %1301 = vst [vmem:[%s497 + $0xc88] sm:$0xff] %v1300
          %v1302 = vld [vmem:[%s496 + $0xc90] sm:$0xff]
          %1303 = vst [vmem:[%s497 + $0xc90] sm:$0xff] %v1302
          %v1304 = vld [vmem:[%s496 + $0xc98] sm:$0xff]
          %1305 = vst [vmem:[%s497 + $0xc98] sm:$0xff] %v1304
          %v1306 = vld [vmem:[%s496 + $0xca0] sm:$0xff]
          %1307 = vst [vmem:[%s497 + $0xca0] sm:$0xff] %v1306
          %v1308 = vld [vmem:[%s496 + $0xca8] sm:$0xff]
          %1309 = vst [vmem:[%s497 + $0xca8] sm:$0xff] %v1308
          %v1310 = vld [vmem:[%s496 + $0xcb0] sm:$0xff]
          %1311 = vst [vmem:[%s497 + $0xcb0] sm:$0xff] %v1310
          %v1312 = vld [vmem:[%s496 + $0xcb8] sm:$0xff]
          %1313 = vst [vmem:[%s497 + $0xcb8] sm:$0xff] %v1312
          %v1314 = vld [vmem:[%s496 + $0xcc0] sm:$0xff]
          %1315 = vst [vmem:[%s497 + $0xcc0] sm:$0xff] %v1314
          %v1316 = vld [vmem:[%s496 + $0xcc8] sm:$0xff]
          %1317 = vst [vmem:[%s497 + $0xcc8] sm:$0xff] %v1316
          %v1318 = vld [vmem:[%s496 + $0xcd0] sm:$0xff]
          %1319 = vst [vmem:[%s497 + $0xcd0] sm:$0xff] %v1318
          %v1320 = vld [vmem:[%s496 + $0xcd8] sm:$0xff]
          %1321 = vst [vmem:[%s497 + $0xcd8] sm:$0xff] %v1320
          %v1322 = vld [vmem:[%s496 + $0xce0] sm:$0xff]
          %1323 = vst [vmem:[%s497 + $0xce0] sm:$0xff] %v1322
          %v1324 = vld [vmem:[%s496 + $0xce8] sm:$0xff]
          %1325 = vst [vmem:[%s497 + $0xce8] sm:$0xff] %v1324
          %v1326 = vld [vmem:[%s496 + $0xcf0] sm:$0xff]
          %1327 = vst [vmem:[%s497 + $0xcf0] sm:$0xff] %v1326
          %v1328 = vld [vmem:[%s496 + $0xcf8] sm:$0xff]
          %1329 = vst [vmem:[%s497 + $0xcf8] sm:$0xff] %v1328
          %v1330 = vld [vmem:[%s496 + $0xd00] sm:$0xff]
          %1331 = vst [vmem:[%s497 + $0xd00] sm:$0xff] %v1330
          %v1332 = vld [vmem:[%s496 + $0xd08] sm:$0xff]
          %1333 = vst [vmem:[%s497 + $0xd08] sm:$0xff] %v1332
          %v1334 = vld [vmem:[%s496 + $0xd10] sm:$0xff]
          %1335 = vst [vmem:[%s497 + $0xd10] sm:$0xff] %v1334
          %v1336 = vld [vmem:[%s496 + $0xd18] sm:$0xff]
          %1337 = vst [vmem:[%s497 + $0xd18] sm:$0xff] %v1336
          %v1338 = vld [vmem:[%s496 + $0xd20] sm:$0xff]
          %1339 = vst [vmem:[%s497 + $0xd20] sm:$0xff] %v1338
          %v1340 = vld [vmem:[%s496 + $0xd28] sm:$0xff]
          %1341 = vst [vmem:[%s497 + $0xd28] sm:$0xff] %v1340
          %v1342 = vld [vmem:[%s496 + $0xd30] sm:$0xff]
          %1343 = vst [vmem:[%s497 + $0xd30] sm:$0xff] %v1342
          %v1344 = vld [vmem:[%s496 + $0xd38] sm:$0xff]
          %1345 = vst [vmem:[%s497 + $0xd38] sm:$0xff] %v1344
          %v1346 = vld [vmem:[%s496 + $0xd40] sm:$0xff]
          %1347 = vst [vmem:[%s497 + $0xd40] sm:$0xff] %v1346
          %v1348 = vld [vmem:[%s496 + $0xd48] sm:$0xff]
          %1349 = vst [vmem:[%s497 + $0xd48] sm:$0xff] %v1348
          %v1350 = vld [vmem:[%s496 + $0xd50] sm:$0xff]
          %1351 = vst [vmem:[%s497 + $0xd50] sm:$0xff] %v1350
          %v1352 = vld [vmem:[%s496 + $0xd58] sm:$0xff]
          %1353 = vst [vmem:[%s497 + $0xd58] sm:$0xff] %v1352
          %v1354 = vld [vmem:[%s496 + $0xd60] sm:$0xff]
          %1355 = vst [vmem:[%s497 + $0xd60] sm:$0xff] %v1354
          %v1356 = vld [vmem:[%s496 + $0xd68] sm:$0xff]
          %1357 = vst [vmem:[%s497 + $0xd68] sm:$0xff] %v1356
          %v1358 = vld [vmem:[%s496 + $0xd70] sm:$0xff]
          %1359 = vst [vmem:[%s497 + $0xd70] sm:$0xff] %v1358
          %v1360 = vld [vmem:[%s496 + $0xd78] sm:$0xff]
          %1361 = vst [vmem:[%s497 + $0xd78] sm:$0xff] %v1360
          %v1362 = vld [vmem:[%s496 + $0xd80] sm:$0xff]
          %1363 = vst [vmem:[%s497 + $0xd80] sm:$0xff] %v1362
          %v1364 = vld [vmem:[%s496 + $0xd88] sm:$0xff]
          %1365 = vst [vmem:[%s497 + $0xd88] sm:$0xff] %v1364
          %v1366 = vld [vmem:[%s496 + $0xd90] sm:$0xff]
          %1367 = vst [vmem:[%s497 + $0xd90] sm:$0xff] %v1366
          %v1368 = vld [vmem:[%s496 + $0xd98] sm:$0xff]
          %1369 = vst [vmem:[%s497 + $0xd98] sm:$0xff] %v1368
          %v1370 = vld [vmem:[%s496 + $0xda0] sm:$0xff]
          %1371 = vst [vmem:[%s497 + $0xda0] sm:$0xff] %v1370
          %v1372 = vld [vmem:[%s496 + $0xda8] sm:$0xff]
          %1373 = vst [vmem:[%s497 + $0xda8] sm:$0xff] %v1372
          %v1374 = vld [vmem:[%s496 + $0xdb0] sm:$0xff]
          %1375 = vst [vmem:[%s497 + $0xdb0] sm:$0xff] %v1374
          %v1376 = vld [vmem:[%s496 + $0xdb8] sm:$0xff]
          %1377 = vst [vmem:[%s497 + $0xdb8] sm:$0xff] %v1376
          %v1378 = vld [vmem:[%s496 + $0xdc0] sm:$0xff]
          %1379 = vst [vmem:[%s497 + $0xdc0] sm:$0xff] %v1378
          %v1380 = vld [vmem:[%s496 + $0xdc8] sm:$0xff]
          %1381 = vst [vmem:[%s497 + $0xdc8] sm:$0xff] %v1380
          %v1382 = vld [vmem:[%s496 + $0xdd0] sm:$0xff]
          %1383 = vst [vmem:[%s497 + $0xdd0] sm:$0xff] %v1382
          %v1384 = vld [vmem:[%s496 + $0xdd8] sm:$0xff]
          %1385 = vst [vmem:[%s497 + $0xdd8] sm:$0xff] %v1384
          %v1386 = vld [vmem:[%s496 + $0xde0] sm:$0xff]
          %1387 = vst [vmem:[%s497 + $0xde0] sm:$0xff] %v1386
          %v1388 = vld [vmem:[%s496 + $0xde8] sm:$0xff]
          %1389 = vst [vmem:[%s497 + $0xde8] sm:$0xff] %v1388
          %v1390 = vld [vmem:[%s496 + $0xdf0] sm:$0xff]
          %1391 = vst [vmem:[%s497 + $0xdf0] sm:$0xff] %v1390
          %v1392 = vld [vmem:[%s496 + $0xdf8] sm:$0xff]
          %1393 = vst [vmem:[%s497 + $0xdf8] sm:$0xff] %v1392
          %v1394 = vld [vmem:[%s496 + $0xe00] sm:$0xff]
          %1395 = vst [vmem:[%s497 + $0xe00] sm:$0xff] %v1394
          %v1396 = vld [vmem:[%s496 + $0xe08] sm:$0xff]
          %1397 = vst [vmem:[%s497 + $0xe08] sm:$0xff] %v1396
          %v1398 = vld [vmem:[%s496 + $0xe10] sm:$0xff]
          %1399 = vst [vmem:[%s497 + $0xe10] sm:$0xff] %v1398
          %v1400 = vld [vmem:[%s496 + $0xe18] sm:$0xff]
          %1401 = vst [vmem:[%s497 + $0xe18] sm:$0xff] %v1400
          %v1402 = vld [vmem:[%s496 + $0xe20] sm:$0xff]
          %1403 = vst [vmem:[%s497 + $0xe20] sm:$0xff] %v1402
          %v1404 = vld [vmem:[%s496 + $0xe28] sm:$0xff]
          %1405 = vst [vmem:[%s497 + $0xe28] sm:$0xff] %v1404
          %v1406 = vld [vmem:[%s496 + $0xe30] sm:$0xff]
          %1407 = vst [vmem:[%s497 + $0xe30] sm:$0xff] %v1406
          %v1408 = vld [vmem:[%s496 + $0xe38] sm:$0xff]
          %1409 = vst [vmem:[%s497 + $0xe38] sm:$0xff] %v1408
          %v1410 = vld [vmem:[%s496 + $0xe40] sm:$0xff]
          %1411 = vst [vmem:[%s497 + $0xe40] sm:$0xff] %v1410
          %v1412 = vld [vmem:[%s496 + $0xe48] sm:$0xff]
          %1413 = vst [vmem:[%s497 + $0xe48] sm:$0xff] %v1412
          %v1414 = vld [vmem:[%s496 + $0xe50] sm:$0xff]
          %1415 = vst [vmem:[%s497 + $0xe50] sm:$0xff] %v1414
          %v1416 = vld [vmem:[%s496 + $0xe58] sm:$0xff]
          %1417 = vst [vmem:[%s497 + $0xe58] sm:$0xff] %v1416
          %v1418 = vld [vmem:[%s496 + $0xe60] sm:$0xff]
          %1419 = vst [vmem:[%s497 + $0xe60] sm:$0xff] %v1418
          %v1420 = vld [vmem:[%s496 + $0xe68] sm:$0xff]
          %1421 = vst [vmem:[%s497 + $0xe68] sm:$0xff] %v1420
          %v1422 = vld [vmem:[%s496 + $0xe70] sm:$0xff]
          %1423 = vst [vmem:[%s497 + $0xe70] sm:$0xff] %v1422
          %v1424 = vld [vmem:[%s496 + $0xe78] sm:$0xff]
          %1425 = vst [vmem:[%s497 + $0xe78] sm:$0xff] %v1424
          %v1426 = vld [vmem:[%s496 + $0xe80] sm:$0xff]
          %1427 = vst [vmem:[%s497 + $0xe80] sm:$0xff] %v1426
          %v1428 = vld [vmem:[%s496 + $0xe88] sm:$0xff]
          %1429 = vst [vmem:[%s497 + $0xe88] sm:$0xff] %v1428
          %v1430 = vld [vmem:[%s496 + $0xe90] sm:$0xff]
          %1431 = vst [vmem:[%s497 + $0xe90] sm:$0xff] %v1430
          %v1432 = vld [vmem:[%s496 + $0xe98] sm:$0xff]
          %1433 = vst [vmem:[%s497 + $0xe98] sm:$0xff] %v1432
          %v1434 = vld [vmem:[%s496 + $0xea0] sm:$0xff]
          %1435 = vst [vmem:[%s497 + $0xea0] sm:$0xff] %v1434
          %v1436 = vld [vmem:[%s496 + $0xea8] sm:$0xff]
          %1437 = vst [vmem:[%s497 + $0xea8] sm:$0xff] %v1436
          %v1438 = vld [vmem:[%s496 + $0xeb0] sm:$0xff]
          %1439 = vst [vmem:[%s497 + $0xeb0] sm:$0xff] %v1438
          %v1440 = vld [vmem:[%s496 + $0xeb8] sm:$0xff]
          %1441 = vst [vmem:[%s497 + $0xeb8] sm:$0xff] %v1440
          %v1442 = vld [vmem:[%s496 + $0xec0] sm:$0xff]
          %1443 = vst [vmem:[%s497 + $0xec0] sm:$0xff] %v1442
          %v1444 = vld [vmem:[%s496 + $0xec8] sm:$0xff]
          %1445 = vst [vmem:[%s497 + $0xec8] sm:$0xff] %v1444
          %v1446 = vld [vmem:[%s496 + $0xed0] sm:$0xff]
          %1447 = vst [vmem:[%s497 + $0xed0] sm:$0xff] %v1446
          %v1448 = vld [vmem:[%s496 + $0xed8] sm:$0xff]
          %1449 = vst [vmem:[%s497 + $0xed8] sm:$0xff] %v1448
          %v1450 = vld [vmem:[%s496 + $0xee0] sm:$0xff]
          %1451 = vst [vmem:[%s497 + $0xee0] sm:$0xff] %v1450
          %v1452 = vld [vmem:[%s496 + $0xee8] sm:$0xff]
          %1453 = vst [vmem:[%s497 + $0xee8] sm:$0xff] %v1452
          %v1454 = vld [vmem:[%s496 + $0xef0] sm:$0xff]
          %1455 = vst [vmem:[%s497 + $0xef0] sm:$0xff] %v1454
          %v1456 = vld [vmem:[%s496 + $0xef8] sm:$0xff]
          %1457 = vst [vmem:[%s497 + $0xef8] sm:$0xff] %v1456
          %v1458 = vld [vmem:[%s496 + $0xf00] sm:$0xff]
          %1459 = vst [vmem:[%s497 + $0xf00] sm:$0xff] %v1458
          %v1460 = vld [vmem:[%s496 + $0xf08] sm:$0xff]
          %1461 = vst [vmem:[%s497 + $0xf08] sm:$0xff] %v1460
          %v1462 = vld [vmem:[%s496 + $0xf10] sm:$0xff]
          %1463 = vst [vmem:[%s497 + $0xf10] sm:$0xff] %v1462
          %v1464 = vld [vmem:[%s496 + $0xf18] sm:$0xff]
          %1465 = vst [vmem:[%s497 + $0xf18] sm:$0xff] %v1464
          %v1466 = vld [vmem:[%s496 + $0xf20] sm:$0xff]
          %1467 = vst [vmem:[%s497 + $0xf20] sm:$0xff] %v1466
          %v1468 = vld [vmem:[%s496 + $0xf28] sm:$0xff]
          %1469 = vst [vmem:[%s497 + $0xf28] sm:$0xff] %v1468
          %v1470 = vld [vmem:[%s496 + $0xf30] sm:$0xff]
          %1471 = vst [vmem:[%s497 + $0xf30] sm:$0xff] %v1470
          %v1472 = vld [vmem:[%s496 + $0xf38] sm:$0xff]
          %1473 = vst [vmem:[%s497 + $0xf38] sm:$0xff] %v1472
          %v1474 = vld [vmem:[%s496 + $0xf40] sm:$0xff]
          %1475 = vst [vmem:[%s497 + $0xf40] sm:$0xff] %v1474
          %v1476 = vld [vmem:[%s496 + $0xf48] sm:$0xff]
          %1477 = vst [vmem:[%s497 + $0xf48] sm:$0xff] %v1476
          %v1478 = vld [vmem:[%s496 + $0xf50] sm:$0xff]
          %1479 = vst [vmem:[%s497 + $0xf50] sm:$0xff] %v1478
          %v1480 = vld [vmem:[%s496 + $0xf58] sm:$0xff]
          %1481 = vst [vmem:[%s497 + $0xf58] sm:$0xff] %v1480
          %v1482 = vld [vmem:[%s496 + $0xf60] sm:$0xff]
          %1483 = vst [vmem:[%s497 + $0xf60] sm:$0xff] %v1482
          %v1484 = vld [vmem:[%s496 + $0xf68] sm:$0xff]
          %1485 = vst [vmem:[%s497 + $0xf68] sm:$0xff] %v1484
          %v1486 = vld [vmem:[%s496 + $0xf70] sm:$0xff]
          %1487 = vst [vmem:[%s497 + $0xf70] sm:$0xff] %v1486
          %v1488 = vld [vmem:[%s496 + $0xf78] sm:$0xff]
          %1489 = vst [vmem:[%s497 + $0xf78] sm:$0xff] %v1488
          %v1490 = vld [vmem:[%s496 + $0xf80] sm:$0xff]
          %1491 = vst [vmem:[%s497 + $0xf80] sm:$0xff] %v1490
          %v1492 = vld [vmem:[%s496 + $0xf88] sm:$0xff]
          %1493 = vst [vmem:[%s497 + $0xf88] sm:$0xff] %v1492
          %v1494 = vld [vmem:[%s496 + $0xf90] sm:$0xff]
          %1495 = vst [vmem:[%s497 + $0xf90] sm:$0xff] %v1494
          %v1496 = vld [vmem:[%s496 + $0xf98] sm:$0xff]
          %1497 = vst [vmem:[%s497 + $0xf98] sm:$0xff] %v1496
          %v1498 = vld [vmem:[%s496 + $0xfa0] sm:$0xff]
          %1499 = vst [vmem:[%s497 + $0xfa0] sm:$0xff] %v1498
          %v1500 = vld [vmem:[%s496 + $0xfa8] sm:$0xff]
          %1501 = vst [vmem:[%s497 + $0xfa8] sm:$0xff] %v1500
          %v1502 = vld [vmem:[%s496 + $0xfb0] sm:$0xff]
          %1503 = vst [vmem:[%s497 + $0xfb0] sm:$0xff] %v1502
          %v1504 = vld [vmem:[%s496 + $0xfb8] sm:$0xff]
          %1505 = vst [vmem:[%s497 + $0xfb8] sm:$0xff] %v1504
          %v1506 = vld [vmem:[%s496 + $0xfc0] sm:$0xff]
          %1507 = vst [vmem:[%s497 + $0xfc0] sm:$0xff] %v1506
          %v1508 = vld [vmem:[%s496 + $0xfc8] sm:$0xff]
          %1509 = vst [vmem:[%s497 + $0xfc8] sm:$0xff] %v1508
          %v1510 = vld [vmem:[%s496 + $0xfd0] sm:$0xff]
          %1511 = vst [vmem:[%s497 + $0xfd0] sm:$0xff] %v1510
          %v1512 = vld [vmem:[%s496 + $0xfd8] sm:$0xff]
          %1513 = vst [vmem:[%s497 + $0xfd8] sm:$0xff] %v1512
          %v1514 = vld [vmem:[%s496 + $0xfe0] sm:$0xff]
          %1515 = vst [vmem:[%s497 + $0xfe0] sm:$0xff] %v1514
          %v1516 = vld [vmem:[%s496 + $0xfe8] sm:$0xff]
          %1517 = vst [vmem:[%s497 + $0xfe8] sm:$0xff] %v1516
          %v1518 = vld [vmem:[%s496 + $0xff0] sm:$0xff]
          %1519 = vst [vmem:[%s497 + $0xff0] sm:$0xff] %v1518
          %v1520 = vld [vmem:[%s496 + $0xff8] sm:$0xff]
          %1521 = vst [vmem:[%s497 + $0xff8] sm:$0xff] %v1520
        $region103: #{actor_forward.1} parent=97 // loop_footer
          %s495 = sadd.s32 1, %s491
        $region104: #{actor_forward.1} parent=97 // loop_footer_branch
          %490 = sbr.rel target = $region100
        $region105: #{actor_forward.1} parent=97 // loop_exit
          _
      $region98: #{actor_forward.1} parent=82 // pred_fallthru
        _
      %p1522 = pneg %p486
      // Predicated region
      $region106: #{actor_forward.1} parent=82 // pred_check
        _
      $region107: #{actor_forward.1} parent=82 // pred_check_branch
        %1524 = sbr.rel (%p486) target = $region109
      $region108: #{actor_forward.1} parent=82 // pred_region
        %s1525 = sand.u32 4096, 7
      $region109: #{actor_forward.1} parent=82 // pred_fallthru
        _
    $region83: #{actor_forward.1} parent=1 // pred_fallthru
      _
    // Predicated region
    $region84: #{actor_forward.1} parent=1 // pred_check
      %p471 = pneg %p467
    $region85: #{actor_forward.1} parent=1 // pred_check_branch
      %473 = sbr.rel (%p471) target = $region87
    $region86: #{actor_forward.1} parent=1 // pred_region
      %s474 = sshllo.u32 0, 4096
      loop: start=0, step=1, limit=1
      $region88: #{actor_forward.1} parent=86 // loop_pre_header
        _
      $region89: #{actor_forward.1} parent=86 // loop_header
        %s476 = sphi 0, %s480
        %p477 = scmp.ge.s32.totalorder %s476, 1
        %s481 = sphi %s12, %s12
        %s482 = sphi [#allocation3], [#allocation3]
      $region90: #{actor_forward.1} parent=86 // loop_header_branch
        %479 = sbr.rel (%p477) target = $region94
      $region91: #{actor_forward.1} parent=86 // loop_body
        %v483 = vld [vmem:[%s481] sm:%s474]
        %484 = vst [vmem:[%s482] sm:%s474] %v483
      $region92: #{actor_forward.1} parent=86 // loop_footer
        %s480 = sadd.s32 1, %s476
      $region93: #{actor_forward.1} parent=86 // loop_footer_branch
        %475 = sbr.rel target = $region89
      $region94: #{actor_forward.1} parent=86 // loop_exit
        _
    $region87: #{actor_forward.1} parent=1 // pred_fallthru
      _
    // Predicated region
    $region110: #{actor_forward.1} parent=1 // pred_check
      _
    $region111: #{actor_forward.1} parent=1 // pred_check_branch
      %1528 = sbr.rel (0) target = $region113
    $region112: #{actor_forward.1} parent=1 // pred_region
      %1529 = vsyncadd %s465, 65536
    $region113: #{actor_forward.1} parent=1 // pred_fallthru
      _
    %v1530 = vld [vmem:[%s0] sm:$0xff]
    %v1531 = vld [vmem:[%s0 + $0x8] sm:$0xff]
    %v1532 = vld [vmem:[%s0 + $0x10] sm:$0xff]
    %v1533 = vld [vmem:[%s0 + $0x18] sm:$0xff]
    %v1534 = vld [vmem:[%s0 + $0x20] sm:$0xff]
    %v1535 = vld [vmem:[%s0 + $0x28] sm:$0xff]
    %v1536 = vld [vmem:[%s0 + $0x30] sm:$0xff]
    %v1537 = vld [vmem:[%s0 + $0x38] sm:$0xff]
    %v1538 = vld [vmem:[%s0 + $0x40] sm:$0xff]
    %v1539 = vld [vmem:[%s0 + $0x48] sm:$0xff]
    %v1540 = vld [vmem:[%s0 + $0x50] sm:$0xff]
    %v1541 = vld [vmem:[%s0 + $0x58] sm:$0xff]
    %v1542 = vld [vmem:[%s0 + $0x60] sm:$0xff]
    %v1543 = vld [vmem:[%s0 + $0x68] sm:$0xff]
    %v1544 = vld [vmem:[%s0 + $0x70] sm:$0xff]
    %v1545 = vld [vmem:[%s0 + $0x78] sm:$0xff]
    %v1546 = vld [vmem:[%s0 + $0x80] sm:$0xff]
    %v1547 = vld [vmem:[%s0 + $0x88] sm:$0xff]
    %v1548 = vld [vmem:[%s0 + $0x90] sm:$0xff]
    %v1549 = vld [vmem:[%s0 + $0x98] sm:$0xff]
    %v1550 = vld [vmem:[%s0 + $0xa0] sm:$0xff]
    %v1551 = vld [vmem:[%s0 + $0xa8] sm:$0xff]
    %v1552 = vld [vmem:[%s0 + $0xb0] sm:$0xff]
    %v1553 = vld [vmem:[%s0 + $0xb8] sm:$0xff]
    %v1554 = vld [vmem:[%s0 + $0xc0] sm:$0xff]
    %v1555 = vld [vmem:[%s0 + $0xc8] sm:$0xff]
    %v1556 = vld [vmem:[%s0 + $0xd0] sm:$0xff]
    %v1557 = vld [vmem:[%s0 + $0xd8] sm:$0xff]
    %v1558 = vld [vmem:[%s0 + $0xe0] sm:$0xff]
    %v1559 = vld [vmem:[%s0 + $0xe8] sm:$0xff]
    %v1560 = vld [vmem:[%s0 + $0xf0] sm:$0xff]
    %v1561 = vld [vmem:[%s0 + $0xf8] sm:$0xff]
    %v1562 = vld [vmem:[%s0 + $0x100] sm:$0xff]
    %v1563 = vld [vmem:[%s0 + $0x108] sm:$0xff]
    %v1564 = vld [vmem:[%s0 + $0x110] sm:$0xff]
    %v1565 = vld [vmem:[%s0 + $0x118] sm:$0xff]
    %v1566 = vld [vmem:[%s0 + $0x120] sm:$0xff]
    %v1567 = vld [vmem:[%s0 + $0x128] sm:$0xff]
    %v1568 = vld [vmem:[%s0 + $0x130] sm:$0xff]
    %v1569 = vld [vmem:[%s0 + $0x138] sm:$0xff]
    %v1570 = vld [vmem:[%s0 + $0x140] sm:$0xff]
    %v1571 = vld [vmem:[%s0 + $0x148] sm:$0xff]
    %v1572 = vld [vmem:[%s0 + $0x150] sm:$0xff]
    %v1573 = vld [vmem:[%s0 + $0x158] sm:$0xff]
    %v1574 = vld [vmem:[%s0 + $0x160] sm:$0xff]
    %v1575 = vld [vmem:[%s0 + $0x168] sm:$0xff]
    %v1576 = vld [vmem:[%s0 + $0x170] sm:$0xff]
    %v1577 = vld [vmem:[%s0 + $0x178] sm:$0xff]
    %v1578 = vld [vmem:[%s0 + $0x180] sm:$0xff]
    %v1579 = vld [vmem:[%s0 + $0x188] sm:$0xff]
    %v1580 = vld [vmem:[%s0 + $0x190] sm:$0xff]
    %v1581 = vld [vmem:[%s0 + $0x198] sm:$0xff]
    %v1582 = vld [vmem:[%s0 + $0x1a0] sm:$0xff]
    %v1583 = vld [vmem:[%s0 + $0x1a8] sm:$0xff]
    %v1584 = vld [vmem:[%s0 + $0x1b0] sm:$0xff]
    %v1585 = vld [vmem:[%s0 + $0x1b8] sm:$0xff]
    %v1586 = vld [vmem:[%s0 + $0x1c0] sm:$0xff]
    %v1587 = vld [vmem:[%s0 + $0x1c8] sm:$0xff]
    %v1588 = vld [vmem:[%s0 + $0x1d0] sm:$0xff]
    %v1589 = vld [vmem:[%s0 + $0x1d8] sm:$0xff]
    %v1590 = vld [vmem:[%s0 + $0x1e0] sm:$0xff]
    %v1591 = vld [vmem:[%s0 + $0x1e8] sm:$0xff]
    %v1592 = vld [vmem:[%s0 + $0x1f0] sm:$0xff]
    %v1593 = vld [vmem:[%s0 + $0x1f8] sm:$0xff]
    %v1594 = vld [vmem:[%s0 + $0x200] sm:$0xff]
    %v1595 = vld [vmem:[%s0 + $0x208] sm:$0xff]
    %v1596 = vld [vmem:[%s0 + $0x210] sm:$0xff]
    %v1597 = vld [vmem:[%s0 + $0x218] sm:$0xff]
    %v1598 = vld [vmem:[%s0 + $0x220] sm:$0xff]
    %v1599 = vld [vmem:[%s0 + $0x228] sm:$0xff]
    %v1600 = vld [vmem:[%s0 + $0x230] sm:$0xff]
    %v1601 = vld [vmem:[%s0 + $0x238] sm:$0xff]
    %v1602 = vld [vmem:[%s0 + $0x240] sm:$0xff]
    %v1603 = vld [vmem:[%s0 + $0x248] sm:$0xff]
    %v1604 = vld [vmem:[%s0 + $0x250] sm:$0xff]
    %v1605 = vld [vmem:[%s0 + $0x258] sm:$0xff]
    %v1606 = vld [vmem:[%s0 + $0x260] sm:$0xff]
    %v1607 = vld [vmem:[%s0 + $0x268] sm:$0xff]
    %v1608 = vld [vmem:[%s0 + $0x270] sm:$0xff]
    %v1609 = vld [vmem:[%s0 + $0x278] sm:$0xff]
    %v1610 = vld [vmem:[%s0 + $0x280] sm:$0xff]
    %v1611 = vld [vmem:[%s0 + $0x288] sm:$0xff]
    %v1612 = vld [vmem:[%s0 + $0x290] sm:$0xff]
    %v1613 = vld [vmem:[%s0 + $0x298] sm:$0xff]
    %v1614 = vld [vmem:[%s0 + $0x2a0] sm:$0xff]
    %v1615 = vld [vmem:[%s0 + $0x2a8] sm:$0xff]
    %v1616 = vld [vmem:[%s0 + $0x2b0] sm:$0xff]
    %v1617 = vld [vmem:[%s0 + $0x2b8] sm:$0xff]
    %v1618 = vld [vmem:[%s0 + $0x2c0] sm:$0xff]
    %v1619 = vld [vmem:[%s0 + $0x2c8] sm:$0xff]
    %v1620 = vld [vmem:[%s0 + $0x2d0] sm:$0xff]
    %v1621 = vld [vmem:[%s0 + $0x2d8] sm:$0xff]
    %v1622 = vld [vmem:[%s0 + $0x2e0] sm:$0xff]
    %v1623 = vld [vmem:[%s0 + $0x2e8] sm:$0xff]
    %v1624 = vld [vmem:[%s0 + $0x2f0] sm:$0xff]
    %v1625 = vld [vmem:[%s0 + $0x2f8] sm:$0xff]
    %v1626 = vld [vmem:[%s0 + $0x300] sm:$0xff]
    %v1627 = vld [vmem:[%s0 + $0x308] sm:$0xff]
    %v1628 = vld [vmem:[%s0 + $0x310] sm:$0xff]
    %v1629 = vld [vmem:[%s0 + $0x318] sm:$0xff]
    %v1630 = vld [vmem:[%s0 + $0x320] sm:$0xff]
    %v1631 = vld [vmem:[%s0 + $0x328] sm:$0xff]
    %v1632 = vld [vmem:[%s0 + $0x330] sm:$0xff]
    %v1633 = vld [vmem:[%s0 + $0x338] sm:$0xff]
    %v1634 = vld [vmem:[%s0 + $0x340] sm:$0xff]
    %v1635 = vld [vmem:[%s0 + $0x348] sm:$0xff]
    %v1636 = vld [vmem:[%s0 + $0x350] sm:$0xff]
    %v1637 = vld [vmem:[%s0 + $0x358] sm:$0xff]
    %v1638 = vld [vmem:[%s0 + $0x360] sm:$0xff]
    %v1639 = vld [vmem:[%s0 + $0x368] sm:$0xff]
    %v1640 = vld [vmem:[%s0 + $0x370] sm:$0xff]
    %v1641 = vld [vmem:[%s0 + $0x378] sm:$0xff]
    %v1642 = vld [vmem:[%s0 + $0x380] sm:$0xff]
    %v1643 = vld [vmem:[%s0 + $0x388] sm:$0xff]
    %v1644 = vld [vmem:[%s0 + $0x390] sm:$0xff]
    %v1645 = vld [vmem:[%s0 + $0x398] sm:$0xff]
    %v1646 = vld [vmem:[%s0 + $0x3a0] sm:$0xff]
    %v1647 = vld [vmem:[%s0 + $0x3a8] sm:$0xff]
    %v1648 = vld [vmem:[%s0 + $0x3b0] sm:$0xff]
    %v1649 = vld [vmem:[%s0 + $0x3b8] sm:$0xff]
    %v1650 = vld [vmem:[%s0 + $0x3c0] sm:$0xff]
    %v1651 = vld [vmem:[%s0 + $0x3c8] sm:$0xff]
    %v1652 = vld [vmem:[%s0 + $0x3d0] sm:$0xff]
    %v1653 = vld [vmem:[%s0 + $0x3d8] sm:$0xff]
    %v1654 = vld [vmem:[%s0 + $0x3e0] sm:$0xff]
    %v1655 = vld [vmem:[%s0 + $0x3e8] sm:$0xff]
    %v1656 = vld [vmem:[%s0 + $0x3f0] sm:$0xff]
    %v1657 = vld [vmem:[%s0 + $0x3f8] sm:$0xff]
    %v1658 = vld [vmem:[%s0 + $0x400] sm:$0xff]
    %v1659 = vld [vmem:[%s0 + $0x408] sm:$0xff]
    %v1660 = vld [vmem:[%s0 + $0x410] sm:$0xff]
    %v1661 = vld [vmem:[%s0 + $0x418] sm:$0xff]
    %v1662 = vld [vmem:[%s0 + $0x420] sm:$0xff]
    %v1663 = vld [vmem:[%s0 + $0x428] sm:$0xff]
    %v1664 = vld [vmem:[%s0 + $0x430] sm:$0xff]
    %v1665 = vld [vmem:[%s0 + $0x438] sm:$0xff]
    %v1666 = vld [vmem:[%s0 + $0x440] sm:$0xff]
    %v1667 = vld [vmem:[%s0 + $0x448] sm:$0xff]
    %v1668 = vld [vmem:[%s0 + $0x450] sm:$0xff]
    %v1669 = vld [vmem:[%s0 + $0x458] sm:$0xff]
    %v1670 = vld [vmem:[%s0 + $0x460] sm:$0xff]
    %v1671 = vld [vmem:[%s0 + $0x468] sm:$0xff]
    %v1672 = vld [vmem:[%s0 + $0x470] sm:$0xff]
    %v1673 = vld [vmem:[%s0 + $0x478] sm:$0xff]
    %v1674 = vld [vmem:[%s0 + $0x480] sm:$0xff]
    %v1675 = vld [vmem:[%s0 + $0x488] sm:$0xff]
    %v1676 = vld [vmem:[%s0 + $0x490] sm:$0xff]
    %v1677 = vld [vmem:[%s0 + $0x498] sm:$0xff]
    %v1678 = vld [vmem:[%s0 + $0x4a0] sm:$0xff]
    %v1679 = vld [vmem:[%s0 + $0x4a8] sm:$0xff]
    %v1680 = vld [vmem:[%s0 + $0x4b0] sm:$0xff]
    %v1681 = vld [vmem:[%s0 + $0x4b8] sm:$0xff]
    %v1682 = vld [vmem:[%s0 + $0x4c0] sm:$0xff]
    %v1683 = vld [vmem:[%s0 + $0x4c8] sm:$0xff]
    %v1684 = vld [vmem:[%s0 + $0x4d0] sm:$0xff]
    %v1685 = vld [vmem:[%s0 + $0x4d8] sm:$0xff]
    %v1686 = vld [vmem:[%s0 + $0x4e0] sm:$0xff]
    %v1687 = vld [vmem:[%s0 + $0x4e8] sm:$0xff]
    %v1688 = vld [vmem:[%s0 + $0x4f0] sm:$0xff]
    %v1689 = vld [vmem:[%s0 + $0x4f8] sm:$0xff]
    %v1690 = vld [vmem:[%s0 + $0x500] sm:$0xff]
    %v1691 = vld [vmem:[%s0 + $0x508] sm:$0xff]
    %v1692 = vld [vmem:[%s0 + $0x510] sm:$0xff]
    %v1693 = vld [vmem:[%s0 + $0x518] sm:$0xff]
    %v1694 = vld [vmem:[%s0 + $0x520] sm:$0xff]
    %v1695 = vld [vmem:[%s0 + $0x528] sm:$0xff]
    %v1696 = vld [vmem:[%s0 + $0x530] sm:$0xff]
    %v1697 = vld [vmem:[%s0 + $0x538] sm:$0xff]
    %v1698 = vld [vmem:[%s0 + $0x540] sm:$0xff]
    %v1699 = vld [vmem:[%s0 + $0x548] sm:$0xff]
    %v1700 = vld [vmem:[%s0 + $0x550] sm:$0xff]
    %v1701 = vld [vmem:[%s0 + $0x558] sm:$0xff]
    %v1702 = vld [vmem:[%s0 + $0x560] sm:$0xff]
    %v1703 = vld [vmem:[%s0 + $0x568] sm:$0xff]
    %v1704 = vld [vmem:[%s0 + $0x570] sm:$0xff]
    %v1705 = vld [vmem:[%s0 + $0x578] sm:$0xff]
    %v1706 = vld [vmem:[%s0 + $0x580] sm:$0xff]
    %v1707 = vld [vmem:[%s0 + $0x588] sm:$0xff]
    %v1708 = vld [vmem:[%s0 + $0x590] sm:$0xff]
    %v1709 = vld [vmem:[%s0 + $0x598] sm:$0xff]
    %v1710 = vld [vmem:[%s0 + $0x5a0] sm:$0xff]
    %v1711 = vld [vmem:[%s0 + $0x5a8] sm:$0xff]
    %v1712 = vld [vmem:[%s0 + $0x5b0] sm:$0xff]
    %v1713 = vld [vmem:[%s0 + $0x5b8] sm:$0xff]
    %v1714 = vld [vmem:[%s0 + $0x5c0] sm:$0xff]
    %v1715 = vld [vmem:[%s0 + $0x5c8] sm:$0xff]
    %v1716 = vld [vmem:[%s0 + $0x5d0] sm:$0xff]
    %v1717 = vld [vmem:[%s0 + $0x5d8] sm:$0xff]
    %v1718 = vld [vmem:[%s0 + $0x5e0] sm:$0xff]
    %v1719 = vld [vmem:[%s0 + $0x5e8] sm:$0xff]
    %v1720 = vld [vmem:[%s0 + $0x5f0] sm:$0xff]
    %v1721 = vld [vmem:[%s0 + $0x5f8] sm:$0xff]
    %v1722 = vld [vmem:[%s0 + $0x600] sm:$0xff]
    %v1723 = vld [vmem:[%s0 + $0x608] sm:$0xff]
    %v1724 = vld [vmem:[%s0 + $0x610] sm:$0xff]
    %v1725 = vld [vmem:[%s0 + $0x618] sm:$0xff]
    %v1726 = vld [vmem:[%s0 + $0x620] sm:$0xff]
    %v1727 = vld [vmem:[%s0 + $0x628] sm:$0xff]
    %v1728 = vld [vmem:[%s0 + $0x630] sm:$0xff]
    %v1729 = vld [vmem:[%s0 + $0x638] sm:$0xff]
    %v1730 = vld [vmem:[%s0 + $0x640] sm:$0xff]
    %v1731 = vld [vmem:[%s0 + $0x648] sm:$0xff]
    %v1732 = vld [vmem:[%s0 + $0x650] sm:$0xff]
    %v1733 = vld [vmem:[%s0 + $0x658] sm:$0xff]
    %v1734 = vld [vmem:[%s0 + $0x660] sm:$0xff]
    %v1735 = vld [vmem:[%s0 + $0x668] sm:$0xff]
    %v1736 = vld [vmem:[%s0 + $0x670] sm:$0xff]
    %v1737 = vld [vmem:[%s0 + $0x678] sm:$0xff]
    %v1738 = vld [vmem:[%s0 + $0x680] sm:$0xff]
    %v1739 = vld [vmem:[%s0 + $0x688] sm:$0xff]
    %v1740 = vld [vmem:[%s0 + $0x690] sm:$0xff]
    %v1741 = vld [vmem:[%s0 + $0x698] sm:$0xff]
    %v1742 = vld [vmem:[%s0 + $0x6a0] sm:$0xff]
    %v1743 = vld [vmem:[%s0 + $0x6a8] sm:$0xff]
    %v1744 = vld [vmem:[%s0 + $0x6b0] sm:$0xff]
    %v1745 = vld [vmem:[%s0 + $0x6b8] sm:$0xff]
    %v1746 = vld [vmem:[%s0 + $0x6c0] sm:$0xff]
    %v1747 = vld [vmem:[%s0 + $0x6c8] sm:$0xff]
    %v1748 = vld [vmem:[%s0 + $0x6d0] sm:$0xff]
    %v1749 = vld [vmem:[%s0 + $0x6d8] sm:$0xff]
    %v1750 = vld [vmem:[%s0 + $0x6e0] sm:$0xff]
    %v1751 = vld [vmem:[%s0 + $0x6e8] sm:$0xff]
    %v1752 = vld [vmem:[%s0 + $0x6f0] sm:$0xff]
    %v1753 = vld [vmem:[%s0 + $0x6f8] sm:$0xff]
    %v1754 = vld [vmem:[%s0 + $0x700] sm:$0xff]
    %v1755 = vld [vmem:[%s0 + $0x708] sm:$0xff]
    %v1756 = vld [vmem:[%s0 + $0x710] sm:$0xff]
    %v1757 = vld [vmem:[%s0 + $0x718] sm:$0xff]
    %v1758 = vld [vmem:[%s0 + $0x720] sm:$0xff]
    %v1759 = vld [vmem:[%s0 + $0x728] sm:$0xff]
    %v1760 = vld [vmem:[%s0 + $0x730] sm:$0xff]
    %v1761 = vld [vmem:[%s0 + $0x738] sm:$0xff]
    %v1762 = vld [vmem:[%s0 + $0x740] sm:$0xff]
    %v1763 = vld [vmem:[%s0 + $0x748] sm:$0xff]
    %v1764 = vld [vmem:[%s0 + $0x750] sm:$0xff]
    %v1765 = vld [vmem:[%s0 + $0x758] sm:$0xff]
    %v1766 = vld [vmem:[%s0 + $0x760] sm:$0xff]
    %v1767 = vld [vmem:[%s0 + $0x768] sm:$0xff]
    %v1768 = vld [vmem:[%s0 + $0x770] sm:$0xff]
    %v1769 = vld [vmem:[%s0 + $0x778] sm:$0xff]
    %v1770 = vld [vmem:[%s0 + $0x780] sm:$0xff]
    %v1771 = vld [vmem:[%s0 + $0x788] sm:$0xff]
    %v1772 = vld [vmem:[%s0 + $0x790] sm:$0xff]
    %v1773 = vld [vmem:[%s0 + $0x798] sm:$0xff]
    %v1774 = vld [vmem:[%s0 + $0x7a0] sm:$0xff]
    %v1775 = vld [vmem:[%s0 + $0x7a8] sm:$0xff]
    %v1776 = vld [vmem:[%s0 + $0x7b0] sm:$0xff]
    %v1777 = vld [vmem:[%s0 + $0x7b8] sm:$0xff]
    %v1778 = vld [vmem:[%s0 + $0x7c0] sm:$0xff]
    %v1779 = vld [vmem:[%s0 + $0x7c8] sm:$0xff]
    %v1780 = vld [vmem:[%s0 + $0x7d0] sm:$0xff]
    %v1781 = vld [vmem:[%s0 + $0x7d8] sm:$0xff]
    %v1782 = vld [vmem:[%s0 + $0x7e0] sm:$0xff]
    %v1783 = vld [vmem:[%s0 + $0x7e8] sm:$0xff]
    %v1784 = vld [vmem:[%s0 + $0x7f0] sm:$0xff]
    %v1785 = vld [vmem:[%s0 + $0x7f8] sm:$0xff]
    %v1786 = vld [vmem:[%s0 + $0x800] sm:$0xff]
    %v1787 = vld [vmem:[%s0 + $0x808] sm:$0xff]
    %v1788 = vld [vmem:[%s0 + $0x810] sm:$0xff]
    %v1789 = vld [vmem:[%s0 + $0x818] sm:$0xff]
    %v1790 = vld [vmem:[%s0 + $0x820] sm:$0xff]
    %v1791 = vld [vmem:[%s0 + $0x828] sm:$0xff]
    %v1792 = vld [vmem:[%s0 + $0x830] sm:$0xff]
    %v1793 = vld [vmem:[%s0 + $0x838] sm:$0xff]
    %v1794 = vld [vmem:[%s0 + $0x840] sm:$0xff]
    %v1795 = vld [vmem:[%s0 + $0x848] sm:$0xff]
    %v1796 = vld [vmem:[%s0 + $0x850] sm:$0xff]
    %v1797 = vld [vmem:[%s0 + $0x858] sm:$0xff]
    %v1798 = vld [vmem:[%s0 + $0x860] sm:$0xff]
    %v1799 = vld [vmem:[%s0 + $0x868] sm:$0xff]
    %v1800 = vld [vmem:[%s0 + $0x870] sm:$0xff]
    %v1801 = vld [vmem:[%s0 + $0x878] sm:$0xff]
    %v1802 = vld [vmem:[%s0 + $0x880] sm:$0xff]
    %v1803 = vld [vmem:[%s0 + $0x888] sm:$0xff]
    %v1804 = vld [vmem:[%s0 + $0x890] sm:$0xff]
    %v1805 = vld [vmem:[%s0 + $0x898] sm:$0xff]
    %v1806 = vld [vmem:[%s0 + $0x8a0] sm:$0xff]
    %v1807 = vld [vmem:[%s0 + $0x8a8] sm:$0xff]
    %v1808 = vld [vmem:[%s0 + $0x8b0] sm:$0xff]
    %v1809 = vld [vmem:[%s0 + $0x8b8] sm:$0xff]
    %v1810 = vld [vmem:[%s0 + $0x8c0] sm:$0xff]
    %v1811 = vld [vmem:[%s0 + $0x8c8] sm:$0xff]
    %v1812 = vld [vmem:[%s0 + $0x8d0] sm:$0xff]
    %v1813 = vld [vmem:[%s0 + $0x8d8] sm:$0xff]
    %v1814 = vld [vmem:[%s0 + $0x8e0] sm:$0xff]
    %v1815 = vld [vmem:[%s0 + $0x8e8] sm:$0xff]
    %v1816 = vld [vmem:[%s0 + $0x8f0] sm:$0xff]
    %v1817 = vld [vmem:[%s0 + $0x8f8] sm:$0xff]
    %v1818 = vld [vmem:[%s0 + $0x900] sm:$0xff]
    %v1819 = vld [vmem:[%s0 + $0x908] sm:$0xff]
    %v1820 = vld [vmem:[%s0 + $0x910] sm:$0xff]
    %v1821 = vld [vmem:[%s0 + $0x918] sm:$0xff]
    %v1822 = vld [vmem:[%s0 + $0x920] sm:$0xff]
    %v1823 = vld [vmem:[%s0 + $0x928] sm:$0xff]
    %v1824 = vld [vmem:[%s0 + $0x930] sm:$0xff]
    %v1825 = vld [vmem:[%s0 + $0x938] sm:$0xff]
    %v1826 = vld [vmem:[%s1] sm:$0xff]
    %v1827 = vld [vmem:[%s1 + $0x8] sm:$0xff]
    %v1828 = vld [vmem:[%s1 + $0x10] sm:$0xff]
    %v1829 = vld [vmem:[%s1 + $0x18] sm:$0xff]
    %v1830 = vld [vmem:[%s1 + $0x20] sm:$0xff]
    %v1831 = vld [vmem:[%s1 + $0x28] sm:$0xff]
    %v1832 = vld [vmem:[%s1 + $0x30] sm:$0xff]
    %v1833 = vld [vmem:[%s1 + $0x38] sm:$0xff]
    %v1834 = vld [vmem:[%s1 + $0x40] sm:$0xff]
    %v1835 = vld [vmem:[%s1 + $0x48] sm:$0xff]
    %v1836 = vld [vmem:[%s1 + $0x50] sm:$0xff]
    %v1837 = vld [vmem:[%s1 + $0x58] sm:$0xff]
    %v1838 = vld [vmem:[%s1 + $0x60] sm:$0xff]
    %v1839 = vld [vmem:[%s1 + $0x68] sm:$0xff]
    %v1840 = vld [vmem:[%s1 + $0x70] sm:$0xff]
    %v1841 = vld [vmem:[%s1 + $0x78] sm:$0xff]
    %v1842 = vld [vmem:[%s1 + $0x80] sm:$0xff]
    %v1843 = vld [vmem:[%s1 + $0x88] sm:$0xff]
    %v1844 = vld [vmem:[%s1 + $0x90] sm:$0xff]
    %v1845 = vld [vmem:[%s1 + $0x98] sm:$0xff]
    %v1846 = vld [vmem:[%s1 + $0xa0] sm:$0xff]
    %v1847 = vld [vmem:[%s1 + $0xa8] sm:$0xff]
    %v1848 = vld [vmem:[%s1 + $0xb0] sm:$0xff]
    %v1849 = vld [vmem:[%s1 + $0xb8] sm:$0xff]
    %v1850 = vld [vmem:[%s1 + $0xc0] sm:$0xff]
    %v1851 = vld [vmem:[%s1 + $0xc8] sm:$0xff]
    %v1852 = vld [vmem:[%s1 + $0xd0] sm:$0xff]
    %v1853 = vld [vmem:[%s1 + $0xd8] sm:$0xff]
    %v1854 = vld [vmem:[%s1 + $0xe0] sm:$0xff]
    %v1855 = vld [vmem:[%s1 + $0xe8] sm:$0xff]
    %v1856 = vld [vmem:[%s1 + $0xf0] sm:$0xff]
    %v1857 = vld [vmem:[%s1 + $0xf8] sm:$0xff]
    %v1858 = vld [vmem:[%s1 + $0x100] sm:$0xff]
    %v1859 = vld [vmem:[%s1 + $0x108] sm:$0xff]
    %v1860 = vld [vmem:[%s1 + $0x110] sm:$0xff]
    %v1861 = vld [vmem:[%s1 + $0x118] sm:$0xff]
    %v1862 = vld [vmem:[%s1 + $0x120] sm:$0xff]
    %v1863 = vld [vmem:[%s1 + $0x128] sm:$0xff]
    %v1864 = vld [vmem:[%s1 + $0x130] sm:$0xff]
    %v1865 = vld [vmem:[%s1 + $0x138] sm:$0xff]
    %v1866 = vld [vmem:[%s1 + $0x140] sm:$0xff]
    %v1867 = vld [vmem:[%s1 + $0x148] sm:$0xff]
    %v1868 = vld [vmem:[%s1 + $0x150] sm:$0xff]
    %v1869 = vld [vmem:[%s1 + $0x158] sm:$0xff]
    %v1870 = vld [vmem:[%s1 + $0x160] sm:$0xff]
    %v1871 = vld [vmem:[%s1 + $0x168] sm:$0xff]
    %v1872 = vld [vmem:[%s1 + $0x170] sm:$0xff]
    %v1873 = vld [vmem:[%s1 + $0x178] sm:$0xff]
    %v1874 = vld [vmem:[%s1 + $0x180] sm:$0xff]
    %v1875 = vld [vmem:[%s1 + $0x188] sm:$0xff]
    %v1876 = vld [vmem:[%s1 + $0x190] sm:$0xff]
    %v1877 = vld [vmem:[%s1 + $0x198] sm:$0xff]
    %v1878 = vld [vmem:[%s1 + $0x1a0] sm:$0xff]
    %v1879 = vld [vmem:[%s1 + $0x1a8] sm:$0xff]
    %v1880 = vld [vmem:[%s1 + $0x1b0] sm:$0xff]
    %v1881 = vld [vmem:[%s1 + $0x1b8] sm:$0xff]
    %v1882 = vld [vmem:[%s1 + $0x1c0] sm:$0xff]
    %v1883 = vld [vmem:[%s1 + $0x1c8] sm:$0xff]
    %v1884 = vld [vmem:[%s1 + $0x1d0] sm:$0xff]
    %v1885 = vld [vmem:[%s1 + $0x1d8] sm:$0xff]
    %v1886 = vld [vmem:[%s1 + $0x1e0] sm:$0xff]
    %v1887 = vld [vmem:[%s1 + $0x1e8] sm:$0xff]
    %v1888 = vld [vmem:[%s1 + $0x1f0] sm:$0xff]
    %v1889 = vld [vmem:[%s1 + $0x1f8] sm:$0xff]
    %v1890 = vld [vmem:[%s1 + $0x200] sm:$0xff]
    %v1891 = vld [vmem:[%s1 + $0x208] sm:$0xff]
    %v1892 = vld [vmem:[%s1 + $0x210] sm:$0xff]
    %v1893 = vld [vmem:[%s1 + $0x218] sm:$0xff]
    %v1894 = vld [vmem:[%s1 + $0x220] sm:$0xff]
    %v1895 = vld [vmem:[%s1 + $0x228] sm:$0xff]
    %v1896 = vld [vmem:[%s1 + $0x230] sm:$0xff]
    %v1897 = vld [vmem:[%s1 + $0x238] sm:$0xff]
    %v1898 = vld [vmem:[%s1 + $0x240] sm:$0xff]
    %v1899 = vld [vmem:[%s1 + $0x248] sm:$0xff]
    %v1900 = vld [vmem:[%s1 + $0x250] sm:$0xff]
    %v1901 = vld [vmem:[%s1 + $0x258] sm:$0xff]
    %v1902 = vld [vmem:[%s1 + $0x260] sm:$0xff]
    %v1903 = vld [vmem:[%s1 + $0x268] sm:$0xff]
    %v1904 = vld [vmem:[%s1 + $0x270] sm:$0xff]
    %v1905 = vld [vmem:[%s1 + $0x278] sm:$0xff]
    %v1906 = vld [vmem:[%s1 + $0x280] sm:$0xff]
    %v1907 = vld [vmem:[%s1 + $0x288] sm:$0xff]
    %v1908 = vld [vmem:[%s1 + $0x290] sm:$0xff]
    %v1909 = vld [vmem:[%s1 + $0x298] sm:$0xff]
    %v1910 = vld [vmem:[%s1 + $0x2a0] sm:$0xff]
    %v1911 = vld [vmem:[%s1 + $0x2a8] sm:$0xff]
    %v1912 = vld [vmem:[%s1 + $0x2b0] sm:$0xff]
    %v1913 = vld [vmem:[%s1 + $0x2b8] sm:$0xff]
    %v1914 = vld [vmem:[%s1 + $0x2c0] sm:$0xff]
    %v1915 = vld [vmem:[%s1 + $0x2c8] sm:$0xff]
    %v1916 = vld [vmem:[%s1 + $0x2d0] sm:$0xff]
    %v1917 = vld [vmem:[%s1 + $0x2d8] sm:$0xff]
    %v1918 = vld [vmem:[%s1 + $0x2e0] sm:$0xff]
    %v1919 = vld [vmem:[%s1 + $0x2e8] sm:$0xff]
    %v1920 = vld [vmem:[%s1 + $0x2f0] sm:$0xff]
    %v1921 = vld [vmem:[%s1 + $0x2f8] sm:$0xff]
    %v1922 = vld [vmem:[%s1 + $0x300] sm:$0xff]
    %v1923 = vld [vmem:[%s1 + $0x308] sm:$0xff]
    %v1924 = vld [vmem:[%s1 + $0x310] sm:$0xff]
    %v1925 = vld [vmem:[%s1 + $0x318] sm:$0xff]
    %v1926 = vld [vmem:[%s1 + $0x320] sm:$0xff]
    %v1927 = vld [vmem:[%s1 + $0x328] sm:$0xff]
    %v1928 = vld [vmem:[%s1 + $0x330] sm:$0xff]
    %v1929 = vld [vmem:[%s1 + $0x338] sm:$0xff]
    %v1930 = vld [vmem:[%s1 + $0x340] sm:$0xff]
    %v1931 = vld [vmem:[%s1 + $0x348] sm:$0xff]
    %v1932 = vld [vmem:[%s1 + $0x350] sm:$0xff]
    %v1933 = vld [vmem:[%s1 + $0x358] sm:$0xff]
    %v1934 = vld [vmem:[%s1 + $0x360] sm:$0xff]
    %v1935 = vld [vmem:[%s1 + $0x368] sm:$0xff]
    %v1936 = vld [vmem:[%s1 + $0x370] sm:$0xff]
    %v1937 = vld [vmem:[%s1 + $0x378] sm:$0xff]
    %v1938 = vld [vmem:[%s1 + $0x380] sm:$0xff]
    %v1939 = vld [vmem:[%s1 + $0x388] sm:$0xff]
    %v1940 = vld [vmem:[%s1 + $0x390] sm:$0xff]
    %v1941 = vld [vmem:[%s1 + $0x398] sm:$0xff]
    %v1942 = vld [vmem:[%s1 + $0x3a0] sm:$0xff]
    %v1943 = vld [vmem:[%s1 + $0x3a8] sm:$0xff]
    %v1944 = vld [vmem:[%s1 + $0x3b0] sm:$0xff]
    %v1945 = vld [vmem:[%s1 + $0x3b8] sm:$0xff]
    %v1946 = vld [vmem:[%s1 + $0x3c0] sm:$0xff]
    %v1947 = vld [vmem:[%s1 + $0x3c8] sm:$0xff]
    %v1948 = vld [vmem:[%s1 + $0x3d0] sm:$0xff]
    %v1949 = vld [vmem:[%s1 + $0x3d8] sm:$0xff]
    %v1950 = vld [vmem:[%s1 + $0x3e0] sm:$0xff]
    %v1951 = vld [vmem:[%s1 + $0x3e8] sm:$0xff]
    %v1952 = vld [vmem:[%s1 + $0x3f0] sm:$0xff]
    %v1953 = vld [vmem:[%s1 + $0x3f8] sm:$0xff]
    %v1954 = vld [vmem:[%s1 + $0x400] sm:$0xff]
    %v1955 = vld [vmem:[%s1 + $0x408] sm:$0xff]
    %v1956 = vld [vmem:[%s1 + $0x410] sm:$0xff]
    %v1957 = vld [vmem:[%s1 + $0x418] sm:$0xff]
    %v1958 = vld [vmem:[%s1 + $0x420] sm:$0xff]
    %v1959 = vld [vmem:[%s1 + $0x428] sm:$0xff]
    %v1960 = vld [vmem:[%s1 + $0x430] sm:$0xff]
    %v1961 = vld [vmem:[%s1 + $0x438] sm:$0xff]
    %v1962 = vld [vmem:[%s1 + $0x440] sm:$0xff]
    %v1963 = vld [vmem:[%s1 + $0x448] sm:$0xff]
    %v1964 = vld [vmem:[%s1 + $0x450] sm:$0xff]
    %v1965 = vld [vmem:[%s1 + $0x458] sm:$0xff]
    %v1966 = vld [vmem:[%s1 + $0x460] sm:$0xff]
    %v1967 = vld [vmem:[%s1 + $0x468] sm:$0xff]
    %v1968 = vld [vmem:[%s1 + $0x470] sm:$0xff]
    %v1969 = vld [vmem:[%s1 + $0x478] sm:$0xff]
    %v1970 = vld [vmem:[%s1 + $0x480] sm:$0xff]
    %v1971 = vld [vmem:[%s1 + $0x488] sm:$0xff]
    %v1972 = vld [vmem:[%s1 + $0x490] sm:$0xff]
    %v1973 = vld [vmem:[%s1 + $0x498] sm:$0xff]
    %v1974 = vld [vmem:[%s1 + $0x4a0] sm:$0xff]
    %v1975 = vld [vmem:[%s1 + $0x4a8] sm:$0xff]
    %v1976 = vld [vmem:[%s1 + $0x4b0] sm:$0xff]
    %v1977 = vld [vmem:[%s1 + $0x4b8] sm:$0xff]
    %v1978 = vld [vmem:[%s1 + $0x4c0] sm:$0xff]
    %v1979 = vld [vmem:[%s1 + $0x4c8] sm:$0xff]
    %v1980 = vld [vmem:[%s1 + $0x4d0] sm:$0xff]
    %v1981 = vld [vmem:[%s1 + $0x4d8] sm:$0xff]
    %v1982 = vld [vmem:[%s1 + $0x4e0] sm:$0xff]
    %v1983 = vld [vmem:[%s1 + $0x4e8] sm:$0xff]
    %v1984 = vld [vmem:[%s1 + $0x4f0] sm:$0xff]
    %v1985 = vld [vmem:[%s1 + $0x4f8] sm:$0xff]
    %v1986 = vld [vmem:[%s1 + $0x500] sm:$0xff]
    %v1987 = vld [vmem:[%s1 + $0x508] sm:$0xff]
    %v1988 = vld [vmem:[%s1 + $0x510] sm:$0xff]
    %v1989 = vld [vmem:[%s1 + $0x518] sm:$0xff]
    %v1990 = vld [vmem:[%s1 + $0x520] sm:$0xff]
    %v1991 = vld [vmem:[%s1 + $0x528] sm:$0xff]
    %v1992 = vld [vmem:[%s1 + $0x530] sm:$0xff]
    %v1993 = vld [vmem:[%s1 + $0x538] sm:$0xff]
    %v1994 = vld [vmem:[%s1 + $0x540] sm:$0xff]
    %v1995 = vld [vmem:[%s1 + $0x548] sm:$0xff]
    %v1996 = vld [vmem:[%s1 + $0x550] sm:$0xff]
    %v1997 = vld [vmem:[%s1 + $0x558] sm:$0xff]
    %v1998 = vld [vmem:[%s1 + $0x560] sm:$0xff]
    %v1999 = vld [vmem:[%s1 + $0x568] sm:$0xff]
    %v2000 = vld [vmem:[%s1 + $0x570] sm:$0xff]
    %v2001 = vld [vmem:[%s1 + $0x578] sm:$0xff]
    %v2002 = vld [vmem:[%s1 + $0x580] sm:$0xff]
    %v2003 = vld [vmem:[%s1 + $0x588] sm:$0xff]
    %v2004 = vld [vmem:[%s1 + $0x590] sm:$0xff]
    %v2005 = vld [vmem:[%s1 + $0x598] sm:$0xff]
    %v2006 = vld [vmem:[%s1 + $0x5a0] sm:$0xff]
    %v2007 = vld [vmem:[%s1 + $0x5a8] sm:$0xff]
    %v2008 = vld [vmem:[%s1 + $0x5b0] sm:$0xff]
    %v2009 = vld [vmem:[%s1 + $0x5b8] sm:$0xff]
    %v2010 = vld [vmem:[%s1 + $0x5c0] sm:$0xff]
    %v2011 = vld [vmem:[%s1 + $0x5c8] sm:$0xff]
    %v2012 = vld [vmem:[%s1 + $0x5d0] sm:$0xff]
    %v2013 = vld [vmem:[%s1 + $0x5d8] sm:$0xff]
    %v2014 = vld [vmem:[%s1 + $0x5e0] sm:$0xff]
    %v2015 = vld [vmem:[%s1 + $0x5e8] sm:$0xff]
    %v2016 = vld [vmem:[%s1 + $0x5f0] sm:$0xff]
    %v2017 = vld [vmem:[%s1 + $0x5f8] sm:$0xff]
    %v2018 = vld [vmem:[%s1 + $0x600] sm:$0xff]
    %v2019 = vld [vmem:[%s1 + $0x608] sm:$0xff]
    %v2020 = vld [vmem:[%s1 + $0x610] sm:$0xff]
    %v2021 = vld [vmem:[%s1 + $0x618] sm:$0xff]
    %v2022 = vld [vmem:[%s1 + $0x620] sm:$0xff]
    %v2023 = vld [vmem:[%s1 + $0x628] sm:$0xff]
    %v2024 = vld [vmem:[%s1 + $0x630] sm:$0xff]
    %v2025 = vld [vmem:[%s1 + $0x638] sm:$0xff]
    %v2026 = vld [vmem:[%s1 + $0x640] sm:$0xff]
    %v2027 = vld [vmem:[%s1 + $0x648] sm:$0xff]
    %v2028 = vld [vmem:[%s1 + $0x650] sm:$0xff]
    %v2029 = vld [vmem:[%s1 + $0x658] sm:$0xff]
    %v2030 = vld [vmem:[%s1 + $0x660] sm:$0xff]
    %v2031 = vld [vmem:[%s1 + $0x668] sm:$0xff]
    %v2032 = vld [vmem:[%s1 + $0x670] sm:$0xff]
    %v2033 = vld [vmem:[%s1 + $0x678] sm:$0xff]
    %v2034 = vld [vmem:[%s1 + $0x680] sm:$0xff]
    %v2035 = vld [vmem:[%s1 + $0x688] sm:$0xff]
    %v2036 = vld [vmem:[%s1 + $0x690] sm:$0xff]
    %v2037 = vld [vmem:[%s1 + $0x698] sm:$0xff]
    %v2038 = vld [vmem:[%s1 + $0x6a0] sm:$0xff]
    %v2039 = vld [vmem:[%s1 + $0x6a8] sm:$0xff]
    %v2040 = vld [vmem:[%s1 + $0x6b0] sm:$0xff]
    %v2041 = vld [vmem:[%s1 + $0x6b8] sm:$0xff]
    %v2042 = vld [vmem:[%s1 + $0x6c0] sm:$0xff]
    %v2043 = vld [vmem:[%s1 + $0x6c8] sm:$0xff]
    %v2044 = vld [vmem:[%s1 + $0x6d0] sm:$0xff]
    %v2045 = vld [vmem:[%s1 + $0x6d8] sm:$0xff]
    %v2046 = vld [vmem:[%s1 + $0x6e0] sm:$0xff]
    %v2047 = vld [vmem:[%s1 + $0x6e8] sm:$0xff]
    %v2048 = vld [vmem:[%s1 + $0x6f0] sm:$0xff]
    %v2049 = vld [vmem:[%s1 + $0x6f8] sm:$0xff]
    %v2050 = vld [vmem:[%s1 + $0x700] sm:$0xff]
    %v2051 = vld [vmem:[%s1 + $0x708] sm:$0xff]
    %v2052 = vld [vmem:[%s1 + $0x710] sm:$0xff]
    %v2053 = vld [vmem:[%s1 + $0x718] sm:$0xff]
    %v2054 = vld [vmem:[%s1 + $0x720] sm:$0xff]
    %v2055 = vld [vmem:[%s1 + $0x728] sm:$0xff]
    %v2056 = vld [vmem:[%s1 + $0x730] sm:$0xff]
    %v2057 = vld [vmem:[%s1 + $0x738] sm:$0xff]
    %v2058 = vld [vmem:[%s1 + $0x740] sm:$0xff]
    %v2059 = vld [vmem:[%s1 + $0x748] sm:$0xff]
    %v2060 = vld [vmem:[%s1 + $0x750] sm:$0xff]
    %v2061 = vld [vmem:[%s1 + $0x758] sm:$0xff]
    %v2062 = vld [vmem:[%s1 + $0x760] sm:$0xff]
    %v2063 = vld [vmem:[%s1 + $0x768] sm:$0xff]
    %v2064 = vld [vmem:[%s1 + $0x770] sm:$0xff]
    %v2065 = vld [vmem:[%s1 + $0x778] sm:$0xff]
    %v2066 = vld [vmem:[%s1 + $0x780] sm:$0xff]
    %v2067 = vld [vmem:[%s1 + $0x788] sm:$0xff]
    %v2068 = vld [vmem:[%s1 + $0x790] sm:$0xff]
    %v2069 = vld [vmem:[%s1 + $0x798] sm:$0xff]
    %v2070 = vld [vmem:[%s1 + $0x7a0] sm:$0xff]
    %v2071 = vld [vmem:[%s1 + $0x7a8] sm:$0xff]
    %v2072 = vld [vmem:[%s1 + $0x7b0] sm:$0xff]
    %v2073 = vld [vmem:[%s1 + $0x7b8] sm:$0xff]
    %v2074 = vld [vmem:[%s1 + $0x7c0] sm:$0xff]
    %v2075 = vld [vmem:[%s1 + $0x7c8] sm:$0xff]
    %v2076 = vld [vmem:[%s1 + $0x7d0] sm:$0xff]
    %v2077 = vld [vmem:[%s1 + $0x7d8] sm:$0xff]
    %v2078 = vld [vmem:[%s1 + $0x7e0] sm:$0xff]
    %v2079 = vld [vmem:[%s1 + $0x7e8] sm:$0xff]
    %v2080 = vld [vmem:[%s1 + $0x7f0] sm:$0xff]
    %v2081 = vld [vmem:[%s1 + $0x7f8] sm:$0xff]
    %v2082 = vld [vmem:[%s1 + $0x800] sm:$0xff]
    %v2083 = vld [vmem:[%s1 + $0x808] sm:$0xff]
    %v2084 = vld [vmem:[%s1 + $0x810] sm:$0xff]
    %v2085 = vld [vmem:[%s1 + $0x818] sm:$0xff]
    %v2086 = vld [vmem:[%s1 + $0x820] sm:$0xff]
    %v2087 = vld [vmem:[%s1 + $0x828] sm:$0xff]
    %v2088 = vld [vmem:[%s1 + $0x830] sm:$0xff]
    %v2089 = vld [vmem:[%s1 + $0x838] sm:$0xff]
    %v2090 = vld [vmem:[%s1 + $0x840] sm:$0xff]
    %v2091 = vld [vmem:[%s1 + $0x848] sm:$0xff]
    %v2092 = vld [vmem:[%s1 + $0x850] sm:$0xff]
    %v2093 = vld [vmem:[%s1 + $0x858] sm:$0xff]
    %v2094 = vld [vmem:[%s1 + $0x860] sm:$0xff]
    %v2095 = vld [vmem:[%s1 + $0x868] sm:$0xff]
    %v2096 = vld [vmem:[%s1 + $0x870] sm:$0xff]
    %v2097 = vld [vmem:[%s1 + $0x878] sm:$0xff]
    %v2098 = vld [vmem:[%s1 + $0x880] sm:$0xff]
    %v2099 = vld [vmem:[%s1 + $0x888] sm:$0xff]
    %v2100 = vld [vmem:[%s1 + $0x890] sm:$0xff]
    %v2101 = vld [vmem:[%s1 + $0x898] sm:$0xff]
    %v2102 = vld [vmem:[%s1 + $0x8a0] sm:$0xff]
    %v2103 = vld [vmem:[%s1 + $0x8a8] sm:$0xff]
    %v2104 = vld [vmem:[%s1 + $0x8b0] sm:$0xff]
    %v2105 = vld [vmem:[%s1 + $0x8b8] sm:$0xff]
    %v2106 = vld [vmem:[%s1 + $0x8c0] sm:$0xff]
    %v2107 = vld [vmem:[%s1 + $0x8c8] sm:$0xff]
    %v2108 = vld [vmem:[%s1 + $0x8d0] sm:$0xff]
    %v2109 = vld [vmem:[%s1 + $0x8d8] sm:$0xff]
    %v2110 = vld [vmem:[%s1 + $0x8e0] sm:$0xff]
    %v2111 = vld [vmem:[%s1 + $0x8e8] sm:$0xff]
    %v2112 = vld [vmem:[%s1 + $0x8f0] sm:$0xff]
    %v2113 = vld [vmem:[%s1 + $0x8f8] sm:$0xff]
    %v2114 = vld [vmem:[%s1 + $0x900] sm:$0xff]
    %v2115 = vld [vmem:[%s1 + $0x908] sm:$0xff]
    %v2116 = vld [vmem:[%s1 + $0x910] sm:$0xff]
    %v2117 = vld [vmem:[%s1 + $0x918] sm:$0xff]
    %v2118 = vld [vmem:[%s1 + $0x920] sm:$0xff]
    %v2119 = vld [vmem:[%s1 + $0x928] sm:$0xff]
    %v2120 = vld [vmem:[%s1 + $0x930] sm:$0xff]
    %v2121 = vld [vmem:[%s1 + $0x938] sm:$0xff]
    %v2122 = vld [vmem:[%s1 + $0x940] sm:$0xff]
    %v2123 = vld [vmem:[%s1 + $0x948] sm:$0xff]
    %v2124 = vld [vmem:[%s1 + $0x950] sm:$0xff]
    %v2125 = vld [vmem:[%s1 + $0x958] sm:$0xff]
    %v2126 = vld [vmem:[%s1 + $0x960] sm:$0xff]
    %v2127 = vld [vmem:[%s1 + $0x968] sm:$0xff]
    %v2128 = vld [vmem:[%s1 + $0x970] sm:$0xff]
    %v2129 = vld [vmem:[%s1 + $0x978] sm:$0xff]
    %v2130 = vld [vmem:[%s1 + $0x980] sm:$0xff]
    %v2131 = vld [vmem:[%s1 + $0x988] sm:$0xff]
    %v2132 = vld [vmem:[%s1 + $0x990] sm:$0xff]
    %v2133 = vld [vmem:[%s1 + $0x998] sm:$0xff]
    %v2134 = vld [vmem:[%s1 + $0x9a0] sm:$0xff]
    %v2135 = vld [vmem:[%s1 + $0x9a8] sm:$0xff]
    %v2136 = vld [vmem:[%s1 + $0x9b0] sm:$0xff]
    %v2137 = vld [vmem:[%s1 + $0x9b8] sm:$0xff]
    %v2138 = vld [vmem:[%s1 + $0x9c0] sm:$0xff]
    %v2139 = vld [vmem:[%s1 + $0x9c8] sm:$0xff]
    %v2140 = vld [vmem:[%s1 + $0x9d0] sm:$0xff]
    %v2141 = vld [vmem:[%s1 + $0x9d8] sm:$0xff]
    %v2142 = vld [vmem:[%s1 + $0x9e0] sm:$0xff]
    %v2143 = vld [vmem:[%s1 + $0x9e8] sm:$0xff]
    %v2144 = vld [vmem:[%s1 + $0x9f0] sm:$0xff]
    %v2145 = vld [vmem:[%s1 + $0x9f8] sm:$0xff]
    %v2146 = vld [vmem:[%s1 + $0xa00] sm:$0xff]
    %v2147 = vld [vmem:[%s1 + $0xa08] sm:$0xff]
    %v2148 = vld [vmem:[%s1 + $0xa10] sm:$0xff]
    %v2149 = vld [vmem:[%s1 + $0xa18] sm:$0xff]
    %v2150 = vld [vmem:[%s1 + $0xa20] sm:$0xff]
    %v2151 = vld [vmem:[%s1 + $0xa28] sm:$0xff]
    %v2152 = vld [vmem:[%s1 + $0xa30] sm:$0xff]
    %v2153 = vld [vmem:[%s1 + $0xa38] sm:$0xff]
    %v2154 = vld [vmem:[%s1 + $0xa40] sm:$0xff]
    %v2155 = vld [vmem:[%s1 + $0xa48] sm:$0xff]
    %v2156 = vld [vmem:[%s1 + $0xa50] sm:$0xff]
    %v2157 = vld [vmem:[%s1 + $0xa58] sm:$0xff]
    %v2158 = vld [vmem:[%s1 + $0xa60] sm:$0xff]
    %v2159 = vld [vmem:[%s1 + $0xa68] sm:$0xff]
    %v2160 = vld [vmem:[%s1 + $0xa70] sm:$0xff]
    %v2161 = vld [vmem:[%s1 + $0xa78] sm:$0xff]
    %v2162 = vld [vmem:[%s1 + $0xa80] sm:$0xff]
    %v2163 = vld [vmem:[%s1 + $0xa88] sm:$0xff]
    %v2164 = vld [vmem:[%s1 + $0xa90] sm:$0xff]
    %v2165 = vld [vmem:[%s1 + $0xa98] sm:$0xff]
    %v2166 = vld [vmem:[%s1 + $0xaa0] sm:$0xff]
    %v2167 = vld [vmem:[%s1 + $0xaa8] sm:$0xff]
    %v2168 = vld [vmem:[%s1 + $0xab0] sm:$0xff]
    %v2169 = vld [vmem:[%s1 + $0xab8] sm:$0xff]
    %v2170 = vld [vmem:[%s1 + $0xac0] sm:$0xff]
    %v2171 = vld [vmem:[%s1 + $0xac8] sm:$0xff]
    %v2172 = vld [vmem:[%s1 + $0xad0] sm:$0xff]
    %v2173 = vld [vmem:[%s1 + $0xad8] sm:$0xff]
    %v2174 = vld [vmem:[%s1 + $0xae0] sm:$0xff]
    %v2175 = vld [vmem:[%s1 + $0xae8] sm:$0xff]
    %v2176 = vld [vmem:[%s1 + $0xaf0] sm:$0xff]
    %v2177 = vld [vmem:[%s1 + $0xaf8] sm:$0xff]
    %v2178 = vld [vmem:[%s1 + $0xb00] sm:$0xff]
    %v2179 = vld [vmem:[%s1 + $0xb08] sm:$0xff]
    %v2180 = vld [vmem:[%s1 + $0xb10] sm:$0xff]
    %v2181 = vld [vmem:[%s1 + $0xb18] sm:$0xff]
    %v2182 = vld [vmem:[%s1 + $0xb20] sm:$0xff]
    %v2183 = vld [vmem:[%s1 + $0xb28] sm:$0xff]
    %v2184 = vld [vmem:[%s1 + $0xb30] sm:$0xff]
    %v2185 = vld [vmem:[%s1 + $0xb38] sm:$0xff]
    %v2186 = vld [vmem:[%s1 + $0xb40] sm:$0xff]
    %v2187 = vld [vmem:[%s1 + $0xb48] sm:$0xff]
    %v2188 = vld [vmem:[%s1 + $0xb50] sm:$0xff]
    %v2189 = vld [vmem:[%s1 + $0xb58] sm:$0xff]
    %v2190 = vld [vmem:[%s1 + $0xb60] sm:$0xff]
    %v2191 = vld [vmem:[%s1 + $0xb68] sm:$0xff]
    %v2192 = vld [vmem:[%s1 + $0xb70] sm:$0xff]
    %v2193 = vld [vmem:[%s1 + $0xb78] sm:$0xff]
    %v2194 = vld [vmem:[%s1 + $0xb80] sm:$0xff]
    %v2195 = vld [vmem:[%s1 + $0xb88] sm:$0xff]
    %v2196 = vld [vmem:[%s1 + $0xb90] sm:$0xff]
    %v2197 = vld [vmem:[%s1 + $0xb98] sm:$0xff]
    %v2198 = vld [vmem:[%s1 + $0xba0] sm:$0xff]
    %v2199 = vld [vmem:[%s1 + $0xba8] sm:$0xff]
    %v2200 = vld [vmem:[%s1 + $0xbb0] sm:$0xff]
    %v2201 = vld [vmem:[%s1 + $0xbb8] sm:$0xff]
    %v2202 = vld [vmem:[%s1 + $0xbc0] sm:$0xff]
    %v2203 = vld [vmem:[%s1 + $0xbc8] sm:$0xff]
    %v2204 = vld [vmem:[%s1 + $0xbd0] sm:$0xff]
    %v2205 = vld [vmem:[%s1 + $0xbd8] sm:$0xff]
    %v2206 = vld [vmem:[%s1 + $0xbe0] sm:$0xff]
    %v2207 = vld [vmem:[%s1 + $0xbe8] sm:$0xff]
    %v2208 = vld [vmem:[%s1 + $0xbf0] sm:$0xff]
    %v2209 = vld [vmem:[%s1 + $0xbf8] sm:$0xff]
    %v2210 = vld [vmem:[%s1 + $0xc00] sm:$0xff]
    %v2211 = vld [vmem:[%s1 + $0xc08] sm:$0xff]
    %v2212 = vld [vmem:[%s1 + $0xc10] sm:$0xff]
    %v2213 = vld [vmem:[%s1 + $0xc18] sm:$0xff]
    %v2214 = vld [vmem:[%s1 + $0xc20] sm:$0xff]
    %v2215 = vld [vmem:[%s1 + $0xc28] sm:$0xff]
    %v2216 = vld [vmem:[%s1 + $0xc30] sm:$0xff]
    %v2217 = vld [vmem:[%s1 + $0xc38] sm:$0xff]
    %v2218 = vld [vmem:[%s1 + $0xc40] sm:$0xff]
    %v2219 = vld [vmem:[%s1 + $0xc48] sm:$0xff]
    %v2220 = vld [vmem:[%s1 + $0xc50] sm:$0xff]
    %v2221 = vld [vmem:[%s1 + $0xc58] sm:$0xff]
    %v2222 = vld [vmem:[%s1 + $0xc60] sm:$0xff]
    %v2223 = vld [vmem:[%s1 + $0xc68] sm:$0xff]
    %v2224 = vld [vmem:[%s1 + $0xc70] sm:$0xff]
    %v2225 = vld [vmem:[%s1 + $0xc78] sm:$0xff]
    %v2226 = vld [vmem:[%s1 + $0xc80] sm:$0xff]
    %v2227 = vld [vmem:[%s1 + $0xc88] sm:$0xff]
    %v2228 = vld [vmem:[%s1 + $0xc90] sm:$0xff]
    %v2229 = vld [vmem:[%s1 + $0xc98] sm:$0xff]
    %v2230 = vld [vmem:[%s1 + $0xca0] sm:$0xff]
    %v2231 = vld [vmem:[%s1 + $0xca8] sm:$0xff]
    %v2232 = vld [vmem:[%s1 + $0xcb0] sm:$0xff]
    %v2233 = vld [vmem:[%s1 + $0xcb8] sm:$0xff]
    %v2234 = vld [vmem:[%s1 + $0xcc0] sm:$0xff]
    %v2235 = vld [vmem:[%s1 + $0xcc8] sm:$0xff]
    %v2236 = vld [vmem:[%s1 + $0xcd0] sm:$0xff]
    %v2237 = vld [vmem:[%s1 + $0xcd8] sm:$0xff]
    %v2238 = vld [vmem:[%s1 + $0xce0] sm:$0xff]
    %v2239 = vld [vmem:[%s1 + $0xce8] sm:$0xff]
    %v2240 = vld [vmem:[%s1 + $0xcf0] sm:$0xff]
    %v2241 = vld [vmem:[%s1 + $0xcf8] sm:$0xff]
    %v2242 = vld [vmem:[%s1 + $0xd00] sm:$0xff]
    %v2243 = vld [vmem:[%s1 + $0xd08] sm:$0xff]
    %v2244 = vld [vmem:[%s1 + $0xd10] sm:$0xff]
    %v2245 = vld [vmem:[%s1 + $0xd18] sm:$0xff]
    %v2246 = vld [vmem:[%s1 + $0xd20] sm:$0xff]
    %v2247 = vld [vmem:[%s1 + $0xd28] sm:$0xff]
    %v2248 = vld [vmem:[%s1 + $0xd30] sm:$0xff]
    %v2249 = vld [vmem:[%s1 + $0xd38] sm:$0xff]
    %v2250 = vld [vmem:[%s1 + $0xd40] sm:$0xff]
    %v2251 = vld [vmem:[%s1 + $0xd48] sm:$0xff]
    %v2252 = vld [vmem:[%s1 + $0xd50] sm:$0xff]
    %v2253 = vld [vmem:[%s1 + $0xd58] sm:$0xff]
    %v2254 = vld [vmem:[%s1 + $0xd60] sm:$0xff]
    %v2255 = vld [vmem:[%s1 + $0xd68] sm:$0xff]
    %v2256 = vld [vmem:[%s1 + $0xd70] sm:$0xff]
    %v2257 = vld [vmem:[%s1 + $0xd78] sm:$0xff]
    %v2258 = vld [vmem:[%s1 + $0xd80] sm:$0xff]
    %v2259 = vld [vmem:[%s1 + $0xd88] sm:$0xff]
    %v2260 = vld [vmem:[%s1 + $0xd90] sm:$0xff]
    %v2261 = vld [vmem:[%s1 + $0xd98] sm:$0xff]
    %v2262 = vld [vmem:[%s1 + $0xda0] sm:$0xff]
    %v2263 = vld [vmem:[%s1 + $0xda8] sm:$0xff]
    %v2264 = vld [vmem:[%s1 + $0xdb0] sm:$0xff]
    %v2265 = vld [vmem:[%s1 + $0xdb8] sm:$0xff]
    %v2266 = vld [vmem:[%s1 + $0xdc0] sm:$0xff]
    %v2267 = vld [vmem:[%s1 + $0xdc8] sm:$0xff]
    %v2268 = vld [vmem:[%s1 + $0xdd0] sm:$0xff]
    %v2269 = vld [vmem:[%s1 + $0xdd8] sm:$0xff]
    %v2270 = vld [vmem:[%s1 + $0xde0] sm:$0xff]
    %v2271 = vld [vmem:[%s1 + $0xde8] sm:$0xff]
    %v2272 = vld [vmem:[%s1 + $0xdf0] sm:$0xff]
    %v2273 = vld [vmem:[%s1 + $0xdf8] sm:$0xff]
    %v2274 = vld [vmem:[%s1 + $0xe00] sm:$0x7f]
    %v2275 = vld [vmem:[%s1 + $0xe08] sm:$0x7f]
    %v2276 = vld [vmem:[%s1 + $0xe10] sm:$0x7f]
    %v2277 = vld [vmem:[%s1 + $0xe18] sm:$0x7f]
    %vm2278 = vcmask 56320
    %v2280 = vsel %vm2278, %v1537, 0
    %v2283 = vsel %vm2278, %v1545, 0
    %v2286 = vsel %vm2278, %v1553, 0
    %v2289 = vsel %vm2278, %v1561, 0
    %v2292 = vsel %vm2278, %v1569, 0
    %v2295 = vsel %vm2278, %v1577, 0
    %v2298 = vsel %vm2278, %v1585, 0
    %v2301 = vsel %vm2278, %v1593, 0
    %v2304 = vsel %vm2278, %v1601, 0
    %v2307 = vsel %vm2278, %v1609, 0
    %v2310 = vsel %vm2278, %v1617, 0
    %v2313 = vsel %vm2278, %v1625, 0
    %v2316 = vsel %vm2278, %v1633, 0
    %v2319 = vsel %vm2278, %v1641, 0
    %v2322 = vsel %vm2278, %v1649, 0
    %v2325 = vsel %vm2278, %v1657, 0
    %v2328 = vsel %vm2278, %v1665, 0
    %v2331 = vsel %vm2278, %v1673, 0
    %v2334 = vsel %vm2278, %v1681, 0
    %v2337 = vsel %vm2278, %v1689, 0
    %v2340 = vsel %vm2278, %v1697, 0
    %v2343 = vsel %vm2278, %v1705, 0
    %v2346 = vsel %vm2278, %v1713, 0
    %v2349 = vsel %vm2278, %v1721, 0
    %v2352 = vsel %vm2278, %v1729, 0
    %v2355 = vsel %vm2278, %v1737, 0
    %v2358 = vsel %vm2278, %v1745, 0
    %v2361 = vsel %vm2278, %v1753, 0
    %v2364 = vsel %vm2278, %v1761, 0
    %v2367 = vsel %vm2278, %v1769, 0
    %v2370 = vsel %vm2278, %v1777, 0
    %v2373 = vsel %vm2278, %v1785, 0
    %v2376 = vsel %vm2278, %v1793, 0
    %v2379 = vsel %vm2278, %v1801, 0
    %v2382 = vsel %vm2278, %v1809, 0
    %v2385 = vsel %vm2278, %v1817, 0
    %v2388 = vsel %vm2278, %v1825, 0
    %vm2390 = vcmask 1046528
    %v2392 = vsel %vm2390, %v2274, 0
    %v2395 = vsel %vm2390, %v2275, 0
    %v2398 = vsel %vm2390, %v2276, 0
    %v2401 = vsel %vm2390, %v2277, 0
    %2403 = vmatprep.subr.mxu0 %v1827
    %2404 = vmatpush1.msra.mxu0 %v1826
    %2405 = vmatprep.subr.mxu0 %v1831
    %2406 = vmatpush1.msra.mxu0 %v1830
    %2407 = vmatprep.subr.mxu0 %v1835
    %2408 = vmatpush1.msra.mxu0 %v1834
    %2409 = vmatprep.subr.mxu0 %v1839
    %2410 = vmatpush1.msra.mxu0 %v1838
    %2411 = vmatprep.subr.mxu0 %v1843
    %2412 = vmatpush1.msra.mxu0 %v1842
    %2413 = vmatprep.subr.mxu0 %v1847
    %2414 = vmatpush1.msra.mxu0 %v1846
    %2415 = vmatprep.subr.mxu0 %v1851
    %2416 = vmatpush1.msra.mxu0 %v1850
    %2417 = vmatprep.subr.mxu0 %v1855
    %2418 = vmatpush1.msra.mxu0 %v1854
    %2419 = vmatprep.subr.mxu0 %v1859
    %2420 = vmatpush1.msra.mxu0 %v1858
    %2421 = vmatprep.subr.mxu0 %v1863
    %2422 = vmatpush1.msra.mxu0 %v1862
    %2423 = vmatprep.subr.mxu0 %v1867
    %2424 = vmatpush1.msra.mxu0 %v1866
    %2425 = vmatprep.subr.mxu0 %v1871
    %2426 = vmatpush1.msra.mxu0 %v1870
    %2427 = vmatprep.subr.mxu0 %v1875
    %2428 = vmatpush1.msra.mxu0 %v1874
    %2429 = vmatprep.subr.mxu0 %v1879
    %2430 = vmatpush1.msra.mxu0 %v1878
    %2431 = vmatprep.subr.mxu0 %v1883
    %2432 = vmatpush1.msra.mxu0 %v1882
    %2433 = vmatprep.subr.mxu0 %v1887
    %2434 = vmatpush1.msra.mxu0 %v1886
    %2435 = vmatprep.subr.mxu0 %v1891
    %2436 = vmatpush1.msra.mxu0 %v1890
    %2437 = vmatprep.subr.mxu0 %v1895
    %2438 = vmatpush1.msra.mxu0 %v1894
    %2439 = vmatprep.subr.mxu0 %v1899
    %2440 = vmatpush1.msra.mxu0 %v1898
    %2441 = vmatprep.subr.mxu0 %v1903
    %2442 = vmatpush1.msra.mxu0 %v1902
    %2443 = vmatprep.subr.mxu0 %v1907
    %2444 = vmatpush1.msra.mxu0 %v1906
    %2445 = vmatprep.subr.mxu0 %v1911
    %2446 = vmatpush1.msra.mxu0 %v1910
    %2447 = vmatprep.subr.mxu0 %v1915
    %2448 = vmatpush1.msra.mxu0 %v1914
    %2449 = vmatprep.subr.mxu0 %v1919
    %2450 = vmatpush1.msra.mxu0 %v1918
    %2451 = vmatprep.subr.mxu0 %v1923
    %2452 = vmatpush1.msra.mxu0 %v1922
    %2453 = vmatprep.subr.mxu0 %v1927
    %2454 = vmatpush1.msra.mxu0 %v1926
    %2455 = vmatprep.subr.mxu0 %v1931
    %2456 = vmatpush1.msra.mxu0 %v1930
    %2457 = vmatprep.subr.mxu0 %v1935
    %2458 = vmatpush1.msra.mxu0 %v1934
    %2459 = vmatprep.subr.mxu0 %v1939
    %2460 = vmatpush1.msra.mxu0 %v1938
    %2461 = vmatprep.subr.mxu0 %v1943
    %2462 = vmatpush1.msra.mxu0 %v1942
    %2463 = vmatprep.subr.mxu0 %v1947
    %2464 = vmatpush1.msra.mxu0 %v1946
    %2465 = vmatprep.subr.mxu0 %v1951
    %2466 = vmatpush1.msra.mxu0 %v1950
    %2467 = vmatprep.mubr.f32.mxu0 %v1531
    %2468 = vmatmul.mubr.f32.gmra.mrb[0].mxu0 %v1530
    %v2469 = vpop.f32.mrb[0].mxu0
    %v2470 = vadd.f32 0.0, %v2469
    %v2471 = vpop.f32.mrb[0].mxu0
    %v2472 = vadd.f32 0.0, %v2471
    %2473 = vmatprep.mubr.f32.mxu0 %v1539
    %2474 = vmatmul.mubr.f32.gmra.mrb[0].mxu0 %v1538
    %v2475 = vpop.f32.mrb[0].mxu0
    %v2476 = vadd.f32 0.0, %v2475
    %v2477 = vpop.f32.mrb[0].mxu0
    %v2478 = vadd.f32 0.0, %v2477
    %2479 = vmatprep.mubr.f32.mxu0 %v1547
    %2480 = vmatmul.mubr.f32.gmra.mrb[0].mxu0 %v1546
    %v2481 = vpop.f32.mrb[0].mxu0
    %v2482 = vadd.f32 0.0, %v2481
    %v2483 = vpop.f32.mrb[0].mxu0
    %v2484 = vadd.f32 0.0, %v2483
    %2485 = vmatprep.mubr.f32.mxu0 %v1555
    %2486 = vmatmul.mubr.f32.gmra.mrb[0].mxu0 %v1554
    %v2487 = vpop.f32.mrb[0].mxu0
    %v2488 = vadd.f32 0.0, %v2487
    %v2489 = vpop.f32.mrb[0].mxu0
    %v2490 = vadd.f32 0.0, %v2489
    %2491 = vmatprep.mubr.f32.mxu0 %v1563
    %2492 = vmatmul.mubr.f32.gmra.mrb[0].mxu0 %v1562
    %v2493 = vpop.f32.mrb[0].mxu0
    %v2494 = vadd.f32 0.0, %v2493
    %v2495 = vpop.f32.mrb[0].mxu0
    %v2496 = vadd.f32 0.0, %v2495
    %2497 = vmatprep.mubr.f32.mxu0 %v1571
    %2498 = vmatmul.mubr.f32.gmra.mrb[0].mxu0 %v1570
    %v2499 = vpop.f32.mrb[0].mxu0
    %v2500 = vadd.f32 0.0, %v2499
    %v2501 = vpop.f32.mrb[0].mxu0
    %v2502 = vadd.f32 0.0, %v2501
    %2503 = vmatprep.mubr.f32.mxu0 %v1579
    %2504 = vmatmul.mubr.f32.gmra.mrb[0].mxu0 %v1578
    %v2505 = vpop.f32.mrb[0].mxu0
    %v2506 = vadd.f32 0.0, %v2505
    %v2507 = vpop.f32.mrb[0].mxu0
    %v2508 = vadd.f32 0.0, %v2507
    %2509 = vmatprep.mubr.f32.mxu0 %v1587
    %2510 = vmatmul.mubr.f32.gmra.mrb[0].mxu0 %v1586
    %v2511 = vpop.f32.mrb[0].mxu0
    %v2512 = vadd.f32 0.0, %v2511
    %v2513 = vpop.f32.mrb[0].mxu0
    %v2514 = vadd.f32 0.0, %v2513
    %2515 = vmatprep.mubr.f32.mxu0 %v1595
    %2516 = vmatmul.mubr.f32.gmra.mrb[0].mxu0 %v1594
    %v2517 = vpop.f32.mrb[0].mxu0
    %v2518 = vadd.f32 0.0, %v2517
    %v2519 = vpop.f32.mrb[0].mxu0
    %v2520 = vadd.f32 0.0, %v2519
    %2521 = vmatprep.mubr.f32.mxu0 %v1603
    %2522 = vmatmul.mubr.f32.gmra.mrb[0].mxu0 %v1602
    %v2523 = vpop.f32.mrb[0].mxu0
    %v2524 = vadd.f32 0.0, %v2523
    %v2525 = vpop.f32.mrb[0].mxu0
    %v2526 = vadd.f32 0.0, %v2525
    %2527 = vmatprep.mubr.f32.mxu0 %v1611
    %2528 = vmatmul.mubr.f32.gmra.mrb[0].mxu0 %v1610
    %v2529 = vpop.f32.mrb[0].mxu0
    %v2530 = vadd.f32 0.0, %v2529
    %v2531 = vpop.f32.mrb[0].mxu0
    %v2532 = vadd.f32 0.0, %v2531
    %2533 = vmatprep.mubr.f32.mxu0 %v1619
    %2534 = vmatmul.mubr.f32.gmra.mrb[0].mxu0 %v1618
    %v2535 = vpop.f32.mrb[0].mxu0
    %v2536 = vadd.f32 0.0, %v2535
    %v2537 = vpop.f32.mrb[0].mxu0
    %v2538 = vadd.f32 0.0, %v2537
    %2539 = vmatprep.mubr.f32.mxu0 %v1627
    %2540 = vmatmul.mubr.f32.gmra.mrb[0].mxu0 %v1626
    %v2541 = vpop.f32.mrb[0].mxu0
    %v2542 = vadd.f32 0.0, %v2541
    %v2543 = vpop.f32.mrb[0].mxu0
    %v2544 = vadd.f32 0.0, %v2543
    %2545 = vmatprep.mubr.f32.mxu0 %v1635
    %2546 = vmatmul.mubr.f32.gmra.mrb[0].mxu0 %v1634
    %v2547 = vpop.f32.mrb[0].mxu0
    %v2548 = vadd.f32 0.0, %v2547
    %v2549 = vpop.f32.mrb[0].mxu0
    %v2550 = vadd.f32 0.0, %v2549
    %2551 = vmatprep.mubr.f32.mxu0 %v1643
    %2552 = vmatmul.mubr.f32.gmra.mrb[0].mxu0 %v1642
    %v2553 = vpop.f32.mrb[0].mxu0
    %v2554 = vadd.f32 0.0, %v2553
    %v2555 = vpop.f32.mrb[0].mxu0
    %v2556 = vadd.f32 0.0, %v2555
    %2557 = vmatprep.mubr.f32.mxu0 %v1651
    %2558 = vmatmul.mubr.f32.gmra.mrb[0].mxu0 %v1650
    %v2559 = vpop.f32.mrb[0].mxu0
    %v2560 = vadd.f32 0.0, %v2559
    %v2561 = vpop.f32.mrb[0].mxu0
    %v2562 = vadd.f32 0.0, %v2561
    %2563 = vmatprep.mubr.f32.mxu0 %v1659
    %2564 = vmatmul.mubr.f32.gmra.mrb[0].mxu0 %v1658
    %v2565 = vpop.f32.mrb[0].mxu0
    %v2566 = vadd.f32 0.0, %v2565
    %v2567 = vpop.f32.mrb[0].mxu0
    %v2568 = vadd.f32 0.0, %v2567
    %2569 = vmatprep.mubr.f32.mxu0 %v1667
    %2570 = vmatmul.mubr.f32.gmra.mrb[0].mxu0 %v1666
    %v2571 = vpop.f32.mrb[0].mxu0
    %v2572 = vadd.f32 0.0, %v2571
    %v2573 = vpop.f32.mrb[0].mxu0
    %v2574 = vadd.f32 0.0, %v2573
    %2575 = vmatprep.mubr.f32.mxu0 %v1675
    %2576 = vmatmul.mubr.f32.gmra.mrb[0].mxu0 %v1674
    %v2577 = vpop.f32.mrb[0].mxu0
    %v2578 = vadd.f32 0.0, %v2577
    %v2579 = vpop.f32.mrb[0].mxu0
    %v2580 = vadd.f32 0.0, %v2579
    %2581 = vmatprep.mubr.f32.mxu0 %v1683
    %2582 = vmatmul.mubr.f32.gmra.mrb[0].mxu0 %v1682
    %v2583 = vpop.f32.mrb[0].mxu0
    %v2584 = vadd.f32 0.0, %v2583
    %v2585 = vpop.f32.mrb[0].mxu0
    %v2586 = vadd.f32 0.0, %v2585
    %2587 = vmatprep.mubr.f32.mxu0 %v1691
    %2588 = vmatmul.mubr.f32.gmra.mrb[0].mxu0 %v1690
    %v2589 = vpop.f32.mrb[0].mxu0
    %v2590 = vadd.f32 0.0, %v2589
    %v2591 = vpop.f32.mrb[0].mxu0
    %v2592 = vadd.f32 0.0, %v2591
    %2593 = vmatprep.mubr.f32.mxu0 %v1699
    %2594 = vmatmul.mubr.f32.gmra.mrb[0].mxu0 %v1698
    %v2595 = vpop.f32.mrb[0].mxu0
    %v2596 = vadd.f32 0.0, %v2595
    %v2597 = vpop.f32.mrb[0].mxu0
    %v2598 = vadd.f32 0.0, %v2597
    %2599 = vmatprep.mubr.f32.mxu0 %v1707
    %2600 = vmatmul.mubr.f32.gmra.mrb[0].mxu0 %v1706
    %v2601 = vpop.f32.mrb[0].mxu0
    %v2602 = vadd.f32 0.0, %v2601
    %v2603 = vpop.f32.mrb[0].mxu0
    %v2604 = vadd.f32 0.0, %v2603
    %2605 = vmatprep.mubr.f32.mxu0 %v1715
    %2606 = vmatmul.mubr.f32.gmra.mrb[0].mxu0 %v1714
    %v2607 = vpop.f32.mrb[0].mxu0
    %v2608 = vadd.f32 0.0, %v2607
    %v2609 = vpop.f32.mrb[0].mxu0
    %v2610 = vadd.f32 0.0, %v2609
    %2611 = vmatprep.mubr.f32.mxu0 %v1723
    %2612 = vmatmul.mubr.f32.gmra.mrb[0].mxu0 %v1722
    %v2613 = vpop.f32.mrb[0].mxu0
    %v2614 = vadd.f32 0.0, %v2613
    %v2615 = vpop.f32.mrb[0].mxu0
    %v2616 = vadd.f32 0.0, %v2615
    %2617 = vmatprep.mubr.f32.mxu0 %v1731
    %2618 = vmatmul.mubr.f32.gmra.mrb[0].mxu0 %v1730
    %v2619 = vpop.f32.mrb[0].mxu0
    %v2620 = vadd.f32 0.0, %v2619
    %v2621 = vpop.f32.mrb[0].mxu0
    %v2622 = vadd.f32 0.0, %v2621
    %2623 = vmatprep.mubr.f32.mxu0 %v1739
    %2624 = vmatmul.mubr.f32.gmra.mrb[0].mxu0 %v1738
    %v2625 = vpop.f32.mrb[0].mxu0
    %v2626 = vadd.f32 0.0, %v2625
    %v2627 = vpop.f32.mrb[0].mxu0
    %v2628 = vadd.f32 0.0, %v2627
    %2629 = vmatprep.mubr.f32.mxu0 %v1747
    %2630 = vmatmul.mubr.f32.gmra.mrb[0].mxu0 %v1746
    %v2631 = vpop.f32.mrb[0].mxu0
    %v2632 = vadd.f32 0.0, %v2631
    %v2633 = vpop.f32.mrb[0].mxu0
    %v2634 = vadd.f32 0.0, %v2633
    %2635 = vmatprep.mubr.f32.mxu0 %v1755
    %2636 = vmatmul.mubr.f32.gmra.mrb[0].mxu0 %v1754
    %v2637 = vpop.f32.mrb[0].mxu0
    %v2638 = vadd.f32 0.0, %v2637
    %v2639 = vpop.f32.mrb[0].mxu0
    %v2640 = vadd.f32 0.0, %v2639
    %2641 = vmatprep.mubr.f32.mxu0 %v1763
    %2642 = vmatmul.mubr.f32.gmra.mrb[0].mxu0 %v1762
    %v2643 = vpop.f32.mrb[0].mxu0
    %v2644 = vadd.f32 0.0, %v2643
    %v2645 = vpop.f32.mrb[0].mxu0
    %v2646 = vadd.f32 0.0, %v2645
    %2647 = vmatprep.mubr.f32.mxu0 %v1771
    %2648 = vmatmul.mubr.f32.gmra.mrb[0].mxu0 %v1770
    %v2649 = vpop.f32.mrb[0].mxu0
    %v2650 = vadd.f32 0.0, %v2649
    %v2651 = vpop.f32.mrb[0].mxu0
    %v2652 = vadd.f32 0.0, %v2651
    %2653 = vmatprep.mubr.f32.mxu0 %v1779
    %2654 = vmatmul.mubr.f32.gmra.mrb[0].mxu0 %v1778
    %v2655 = vpop.f32.mrb[0].mxu0
    %v2656 = vadd.f32 0.0, %v2655
    %v2657 = vpop.f32.mrb[0].mxu0
    %v2658 = vadd.f32 0.0, %v2657
    %2659 = vmatprep.mubr.f32.mxu0 %v1787
    %2660 = vmatmul.mubr.f32.gmra.mrb[0].mxu0 %v1786
    %v2661 = vpop.f32.mrb[0].mxu0
    %v2662 = vadd.f32 0.0, %v2661
    %v2663 = vpop.f32.mrb[0].mxu0
    %v2664 = vadd.f32 0.0, %v2663
    %2665 = vmatprep.mubr.f32.mxu0 %v1795
    %2666 = vmatmul.mubr.f32.gmra.mrb[0].mxu0 %v1794
    %v2667 = vpop.f32.mrb[0].mxu0
    %v2668 = vadd.f32 0.0, %v2667
    %v2669 = vpop.f32.mrb[0].mxu0
    %v2670 = vadd.f32 0.0, %v2669
    %2671 = vmatprep.mubr.f32.mxu0 %v1803
    %2672 = vmatmul.mubr.f32.gmra.mrb[0].mxu0 %v1802
    %v2673 = vpop.f32.mrb[0].mxu0
    %v2674 = vadd.f32 0.0, %v2673
    %v2675 = vpop.f32.mrb[0].mxu0
    %v2676 = vadd.f32 0.0, %v2675
    %2677 = vmatprep.mubr.f32.mxu0 %v1811
    %2678 = vmatmul.mubr.f32.gmra.mrb[0].mxu0 %v1810
    %v2679 = vpop.f32.mrb[0].mxu0
    %v2680 = vadd.f32 0.0, %v2679
    %v2681 = vpop.f32.mrb[0].mxu0
    %v2682 = vadd.f32 0.0, %v2681
    %2683 = vmatprep.mubr.f32.mxu0 %v1819
    %2684 = vmatmul.mubr.f32.gmra.mrb[0].mxu0 %v1818
    %v2685 = vpop.f32.mrb[0].mxu0
    %v2686 = vadd.f32 0.0, %v2685
    %v2687 = vpop.f32.mrb[0].mxu0
    %v2688 = vadd.f32 0.0, %v2687
    %2689 = vdwg.mxu0
    %2690 = vmatprep.subr.mxu0 %v1955
    %2691 = vmatpush1.msra.mxu0 %v1954
    %2692 = vmatprep.subr.mxu0 %v1959
    %2693 = vmatpush1.msra.mxu0 %v1958
    %2694 = vmatprep.subr.mxu0 %v1963
    %2695 = vmatpush1.msra.mxu0 %v1962
    %2696 = vmatprep.subr.mxu0 %v1967
    %2697 = vmatpush1.msra.mxu0 %v1966
    %2698 = vmatprep.subr.mxu0 %v1971
    %2699 = vmatpush1.msra.mxu0 %v1970
    %2700 = vmatprep.subr.mxu0 %v1975
    %2701 = vmatpush1.msra.mxu0 %v1974
    %2702 = vmatprep.subr.mxu0 %v1979
    %2703 = vmatpush1.msra.mxu0 %v1978
    %2704 = vmatprep.subr.mxu0 %v1983
    %2705 = vmatpush1.msra.mxu0 %v1982
    %2706 = vmatprep.subr.mxu0 %v1987
    %2707 = vmatpush1.msra.mxu0 %v1986
    %2708 = vmatprep.subr.mxu0 %v1991
    %2709 = vmatpush1.msra.mxu0 %v1990
    %2710 = vmatprep.subr.mxu0 %v1995
    %2711 = vmatpush1.msra.mxu0 %v1994
    %2712 = vmatprep.subr.mxu0 %v1999
    %2713 = vmatpush1.msra.mxu0 %v1998
    %2714 = vmatprep.subr.mxu0 %v2003
    %2715 = vmatpush1.msra.mxu0 %v2002
    %2716 = vmatprep.subr.mxu0 %v2007
    %2717 = vmatpush1.msra.mxu0 %v2006
    %2718 = vmatprep.subr.mxu0 %v2011
    %2719 = vmatpush1.msra.mxu0 %v2010
    %2720 = vmatprep.subr.mxu0 %v2015
    %2721 = vmatpush1.msra.mxu0 %v2014
    %2722 = vmatprep.subr.mxu0 %v2019
    %2723 = vmatpush1.msra.mxu0 %v2018
    %2724 = vmatprep.subr.mxu0 %v2023
    %2725 = vmatpush1.msra.mxu0 %v2022
    %2726 = vmatprep.subr.mxu0 %v2027
    %2727 = vmatpush1.msra.mxu0 %v2026
    %2728 = vmatprep.subr.mxu0 %v2031
    %2729 = vmatpush1.msra.mxu0 %v2030
    %2730 = vmatprep.subr.mxu0 %v2035
    %2731 = vmatpush1.msra.mxu0 %v2034
    %2732 = vmatprep.subr.mxu0 %v2039
    %2733 = vmatpush1.msra.mxu0 %v2038
    %2734 = vmatprep.subr.mxu0 %v2043
    %2735 = vmatpush1.msra.mxu0 %v2042
    %2736 = vmatprep.subr.mxu0 %v2047
    %2737 = vmatpush1.msra.mxu0 %v2046
    %2738 = vmatprep.subr.mxu0 %v2051
    %2739 = vmatpush1.msra.mxu0 %v2050
    %2740 = vmatprep.subr.mxu0 %v2055
    %2741 = vmatpush1.msra.mxu0 %v2054
    %2742 = vmatprep.subr.mxu0 %v2059
    %2743 = vmatpush1.msra.mxu0 %v2058
    %2744 = vmatprep.subr.mxu0 %v2063
    %2745 = vmatpush1.msra.mxu0 %v2062
    %2746 = vmatprep.subr.mxu0 %v2067
    %2747 = vmatpush1.msra.mxu0 %v2066
    %2748 = vmatprep.subr.mxu0 %v2071
    %2749 = vmatpush1.msra.mxu0 %v2070
    %2750 = vmatprep.subr.mxu0 %v2075
    %2751 = vmatpush1.msra.mxu0 %v2074
    %2752 = vmatprep.subr.mxu0 %v2079
    %2753 = vmatpush1.msra.mxu0 %v2078
    %2754 = vmatprep.mubr.f32.mxu0 %v1533
    %2755 = vmatmul.mubr.f32.gmra.mrb[0].mxu0 %v1532
    %v2756 = vpop.f32.mrb[0].mxu0
    %v2757 = vadd.f32 %v2470, %v2756
    %v2758 = vpop.f32.mrb[0].mxu0
    %v2759 = vadd.f32 %v2472, %v2758
    %2760 = vmatprep.mubr.f32.mxu0 %v1541
    %2761 = vmatmul.mubr.f32.gmra.mrb[0].mxu0 %v1540
    %v2762 = vpop.f32.mrb[0].mxu0
    %v2763 = vadd.f32 %v2476, %v2762
    %v2764 = vpop.f32.mrb[0].mxu0
    %v2765 = vadd.f32 %v2478, %v2764
    %2766 = vmatprep.mubr.f32.mxu0 %v1549
    %2767 = vmatmul.mubr.f32.gmra.mrb[0].mxu0 %v1548
    %v2768 = vpop.f32.mrb[0].mxu0
    %v2769 = vadd.f32 %v2482, %v2768
    %v2770 = vpop.f32.mrb[0].mxu0
    %v2771 = vadd.f32 %v2484, %v2770
    %2772 = vmatprep.mubr.f32.mxu0 %v1557
    %2773 = vmatmul.mubr.f32.gmra.mrb[0].mxu0 %v1556
    %v2774 = vpop.f32.mrb[0].mxu0
    %v2775 = vadd.f32 %v2488, %v2774
    %v2776 = vpop.f32.mrb[0].mxu0
    %v2777 = vadd.f32 %v2490, %v2776
    %2778 = vmatprep.mubr.f32.mxu0 %v1565
    %2779 = vmatmul.mubr.f32.gmra.mrb[0].mxu0 %v1564
    %v2780 = vpop.f32.mrb[0].mxu0
    %v2781 = vadd.f32 %v2494, %v2780
    %v2782 = vpop.f32.mrb[0].mxu0
    %v2783 = vadd.f32 %v2496, %v2782
    %2784 = vmatprep.mubr.f32.mxu0 %v1573
    %2785 = vmatmul.mubr.f32.gmra.mrb[0].mxu0 %v1572
    %v2786 = vpop.f32.mrb[0].mxu0
    %v2787 = vadd.f32 %v2500, %v2786
    %v2788 = vpop.f32.mrb[0].mxu0
    %v2789 = vadd.f32 %v2502, %v2788
    %2790 = vmatprep.mubr.f32.mxu0 %v1581
    %2791 = vmatmul.mubr.f32.gmra.mrb[0].mxu0 %v1580
    %v2792 = vpop.f32.mrb[0].mxu0
    %v2793 = vadd.f32 %v2506, %v2792
    %v2794 = vpop.f32.mrb[0].mxu0
    %v2795 = vadd.f32 %v2508, %v2794
    %2796 = vmatprep.mubr.f32.mxu0 %v1589
    %2797 = vmatmul.mubr.f32.gmra.mrb[0].mxu0 %v1588
    %v2798 = vpop.f32.mrb[0].mxu0
    %v2799 = vadd.f32 %v2512, %v2798
    %v2800 = vpop.f32.mrb[0].mxu0
    %v2801 = vadd.f32 %v2514, %v2800
    %2802 = vmatprep.mubr.f32.mxu0 %v1597
    %2803 = vmatmul.mubr.f32.gmra.mrb[0].mxu0 %v1596
    %v2804 = vpop.f32.mrb[0].mxu0
    %v2805 = vadd.f32 %v2518, %v2804
    %v2806 = vpop.f32.mrb[0].mxu0
    %v2807 = vadd.f32 %v2520, %v2806
    %2808 = vmatprep.mubr.f32.mxu0 %v1605
    %2809 = vmatmul.mubr.f32.gmra.mrb[0].mxu0 %v1604
    %v2810 = vpop.f32.mrb[0].mxu0
    %v2811 = vadd.f32 %v2524, %v2810
    %v2812 = vpop.f32.mrb[0].mxu0
    %v2813 = vadd.f32 %v2526, %v2812
    %2814 = vmatprep.mubr.f32.mxu0 %v1613
    %2815 = vmatmul.mubr.f32.gmra.mrb[0].mxu0 %v1612
    %v2816 = vpop.f32.mrb[0].mxu0
    %v2817 = vadd.f32 %v2530, %v2816
    %v2818 = vpop.f32.mrb[0].mxu0
    %v2819 = vadd.f32 %v2532, %v2818
    %2820 = vmatprep.mubr.f32.mxu0 %v1621
    %2821 = vmatmul.mubr.f32.gmra.mrb[0].mxu0 %v1620
    %v2822 = vpop.f32.mrb[0].mxu0
    %v2823 = vadd.f32 %v2536, %v2822
    %v2824 = vpop.f32.mrb[0].mxu0
    %v2825 = vadd.f32 %v2538, %v2824
    %2826 = vmatprep.mubr.f32.mxu0 %v1629
    %2827 = vmatmul.mubr.f32.gmra.mrb[0].mxu0 %v1628
    %v2828 = vpop.f32.mrb[0].mxu0
    %v2829 = vadd.f32 %v2542, %v2828
    %v2830 = vpop.f32.mrb[0].mxu0
    %v2831 = vadd.f32 %v2544, %v2830
    %2832 = vmatprep.mubr.f32.mxu0 %v1637
    %2833 = vmatmul.mubr.f32.gmra.mrb[0].mxu0 %v1636
    %v2834 = vpop.f32.mrb[0].mxu0
    %v2835 = vadd.f32 %v2548, %v2834
    %v2836 = vpop.f32.mrb[0].mxu0
    %v2837 = vadd.f32 %v2550, %v2836
    %2838 = vmatprep.mubr.f32.mxu0 %v1645
    %2839 = vmatmul.mubr.f32.gmra.mrb[0].mxu0 %v1644
    %v2840 = vpop.f32.mrb[0].mxu0
    %v2841 = vadd.f32 %v2554, %v2840
    %v2842 = vpop.f32.mrb[0].mxu0
    %v2843 = vadd.f32 %v2556, %v2842
    %2844 = vmatprep.mubr.f32.mxu0 %v1653
    %2845 = vmatmul.mubr.f32.gmra.mrb[0].mxu0 %v1652
    %v2846 = vpop.f32.mrb[0].mxu0
    %v2847 = vadd.f32 %v2560, %v2846
    %v2848 = vpop.f32.mrb[0].mxu0
    %v2849 = vadd.f32 %v2562, %v2848
    %2850 = vmatprep.mubr.f32.mxu0 %v1661
    %2851 = vmatmul.mubr.f32.gmra.mrb[0].mxu0 %v1660
    %v2852 = vpop.f32.mrb[0].mxu0
    %v2853 = vadd.f32 %v2566, %v2852
    %v2854 = vpop.f32.mrb[0].mxu0
    %v2855 = vadd.f32 %v2568, %v2854
    %2856 = vmatprep.mubr.f32.mxu0 %v1669
    %2857 = vmatmul.mubr.f32.gmra.mrb[0].mxu0 %v1668
    %v2858 = vpop.f32.mrb[0].mxu0
    %v2859 = vadd.f32 %v2572, %v2858
    %v2860 = vpop.f32.mrb[0].mxu0
    %v2861 = vadd.f32 %v2574, %v2860
    %2862 = vmatprep.mubr.f32.mxu0 %v1677
    %2863 = vmatmul.mubr.f32.gmra.mrb[0].mxu0 %v1676
    %v2864 = vpop.f32.mrb[0].mxu0
    %v2865 = vadd.f32 %v2578, %v2864
    %v2866 = vpop.f32.mrb[0].mxu0
    %v2867 = vadd.f32 %v2580, %v2866
    %2868 = vmatprep.mubr.f32.mxu0 %v1685
    %2869 = vmatmul.mubr.f32.gmra.mrb[0].mxu0 %v1684
    %v2870 = vpop.f32.mrb[0].mxu0
    %v2871 = vadd.f32 %v2584, %v2870
    %v2872 = vpop.f32.mrb[0].mxu0
    %v2873 = vadd.f32 %v2586, %v2872
    %2874 = vmatprep.mubr.f32.mxu0 %v1693
    %2875 = vmatmul.mubr.f32.gmra.mrb[0].mxu0 %v1692
    %v2876 = vpop.f32.mrb[0].mxu0
    %v2877 = vadd.f32 %v2590, %v2876
    %v2878 = vpop.f32.mrb[0].mxu0
    %v2879 = vadd.f32 %v2592, %v2878
    %2880 = vmatprep.mubr.f32.mxu0 %v1701
    %2881 = vmatmul.mubr.f32.gmra.mrb[0].mxu0 %v1700
    %v2882 = vpop.f32.mrb[0].mxu0
    %v2883 = vadd.f32 %v2596, %v2882
    %v2884 = vpop.f32.mrb[0].mxu0
    %v2885 = vadd.f32 %v2598, %v2884
    %2886 = vmatprep.mubr.f32.mxu0 %v1709
    %2887 = vmatmul.mubr.f32.gmra.mrb[0].mxu0 %v1708
    %v2888 = vpop.f32.mrb[0].mxu0
    %v2889 = vadd.f32 %v2602, %v2888
    %v2890 = vpop.f32.mrb[0].mxu0
    %v2891 = vadd.f32 %v2604, %v2890
    %2892 = vmatprep.mubr.f32.mxu0 %v1717
    %2893 = vmatmul.mubr.f32.gmra.mrb[0].mxu0 %v1716
    %v2894 = vpop.f32.mrb[0].mxu0
    %v2895 = vadd.f32 %v2608, %v2894
    %v2896 = vpop.f32.mrb[0].mxu0
    %v2897 = vadd.f32 %v2610, %v2896
    %2898 = vmatprep.mubr.f32.mxu0 %v1725
    %2899 = vmatmul.mubr.f32.gmra.mrb[0].mxu0 %v1724
    %v2900 = vpop.f32.mrb[0].mxu0
    %v2901 = vadd.f32 %v2614, %v2900
    %v2902 = vpop.f32.mrb[0].mxu0
    %v2903 = vadd.f32 %v2616, %v2902
    %2904 = vmatprep.mubr.f32.mxu0 %v1733
    %2905 = vmatmul.mubr.f32.gmra.mrb[0].mxu0 %v1732
    %v2906 = vpop.f32.mrb[0].mxu0
    %v2907 = vadd.f32 %v2620, %v2906
    %v2908 = vpop.f32.mrb[0].mxu0
    %v2909 = vadd.f32 %v2622, %v2908
    %2910 = vmatprep.mubr.f32.mxu0 %v1741
    %2911 = vmatmul.mubr.f32.gmra.mrb[0].mxu0 %v1740
    %v2912 = vpop.f32.mrb[0].mxu0
    %v2913 = vadd.f32 %v2626, %v2912
    %v2914 = vpop.f32.mrb[0].mxu0
    %v2915 = vadd.f32 %v2628, %v2914
    %2916 = vmatprep.mubr.f32.mxu0 %v1749
    %2917 = vmatmul.mubr.f32.gmra.mrb[0].mxu0 %v1748
    %v2918 = vpop.f32.mrb[0].mxu0
    %v2919 = vadd.f32 %v2632, %v2918
    %v2920 = vpop.f32.mrb[0].mxu0
    %v2921 = vadd.f32 %v2634, %v2920
    %2922 = vmatprep.mubr.f32.mxu0 %v1757
    %2923 = vmatmul.mubr.f32.gmra.mrb[0].mxu0 %v1756
    %v2924 = vpop.f32.mrb[0].mxu0
    %v2925 = vadd.f32 %v2638, %v2924
    %v2926 = vpop.f32.mrb[0].mxu0
    %v2927 = vadd.f32 %v2640, %v2926
    %2928 = vmatprep.mubr.f32.mxu0 %v1765
    %2929 = vmatmul.mubr.f32.gmra.mrb[0].mxu0 %v1764
    %v2930 = vpop.f32.mrb[0].mxu0
    %v2931 = vadd.f32 %v2644, %v2930
    %v2932 = vpop.f32.mrb[0].mxu0
    %v2933 = vadd.f32 %v2646, %v2932
    %2934 = vmatprep.mubr.f32.mxu0 %v1773
    %2935 = vmatmul.mubr.f32.gmra.mrb[0].mxu0 %v1772
    %v2936 = vpop.f32.mrb[0].mxu0
    %v2937 = vadd.f32 %v2650, %v2936
    %v2938 = vpop.f32.mrb[0].mxu0
    %v2939 = vadd.f32 %v2652, %v2938
    %2940 = vmatprep.mubr.f32.mxu0 %v1781
    %2941 = vmatmul.mubr.f32.gmra.mrb[0].mxu0 %v1780
    %v2942 = vpop.f32.mrb[0].mxu0
    %v2943 = vadd.f32 %v2656, %v2942
    %v2944 = vpop.f32.mrb[0].mxu0
    %v2945 = vadd.f32 %v2658, %v2944
    %2946 = vmatprep.mubr.f32.mxu0 %v1789
    %2947 = vmatmul.mubr.f32.gmra.mrb[0].mxu0 %v1788
    %v2948 = vpop.f32.mrb[0].mxu0
    %v2949 = vadd.f32 %v2662, %v2948
    %v2950 = vpop.f32.mrb[0].mxu0
    %v2951 = vadd.f32 %v2664, %v2950
    %2952 = vmatprep.mubr.f32.mxu0 %v1797
    %2953 = vmatmul.mubr.f32.gmra.mrb[0].mxu0 %v1796
    %v2954 = vpop.f32.mrb[0].mxu0
    %v2955 = vadd.f32 %v2668, %v2954
    %v2956 = vpop.f32.mrb[0].mxu0
    %v2957 = vadd.f32 %v2670, %v2956
    %2958 = vmatprep.mubr.f32.mxu0 %v1805
    %2959 = vmatmul.mubr.f32.gmra.mrb[0].mxu0 %v1804
    %v2960 = vpop.f32.mrb[0].mxu0
    %v2961 = vadd.f32 %v2674, %v2960
    %v2962 = vpop.f32.mrb[0].mxu0
    %v2963 = vadd.f32 %v2676, %v2962
    %2964 = vmatprep.mubr.f32.mxu0 %v1813
    %2965 = vmatmul.mubr.f32.gmra.mrb[0].mxu0 %v1812
    %v2966 = vpop.f32.mrb[0].mxu0
    %v2967 = vadd.f32 %v2680, %v2966
    %v2968 = vpop.f32.mrb[0].mxu0
    %v2969 = vadd.f32 %v2682, %v2968
    %2970 = vmatprep.mubr.f32.mxu0 %v1821
    %2971 = vmatmul.mubr.f32.gmra.mrb[0].mxu0 %v1820
    %v2972 = vpop.f32.mrb[0].mxu0
    %v2973 = vadd.f32 %v2686, %v2972
    %v2974 = vpop.f32.mrb[0].mxu0
    %v2975 = vadd.f32 %v2688, %v2974
    %2976 = vdwg.mxu0
    %2977 = vmatprep.subr.mxu0 %v2083
    %2978 = vmatpush1.msra.mxu0 %v2082
    %2979 = vmatprep.subr.mxu0 %v2087
    %2980 = vmatpush1.msra.mxu0 %v2086
    %2981 = vmatprep.subr.mxu0 %v2091
    %2982 = vmatpush1.msra.mxu0 %v2090
    %2983 = vmatprep.subr.mxu0 %v2095
    %2984 = vmatpush1.msra.mxu0 %v2094
    %2985 = vmatprep.subr.mxu0 %v2099
    %2986 = vmatpush1.msra.mxu0 %v2098
    %2987 = vmatprep.subr.mxu0 %v2103
    %2988 = vmatpush1.msra.mxu0 %v2102
    %2989 = vmatprep.subr.mxu0 %v2107
    %2990 = vmatpush1.msra.mxu0 %v2106
    %2991 = vmatprep.subr.mxu0 %v2111
    %2992 = vmatpush1.msra.mxu0 %v2110
    %2993 = vmatprep.subr.mxu0 %v2115
    %2994 = vmatpush1.msra.mxu0 %v2114
    %2995 = vmatprep.subr.mxu0 %v2119
    %2996 = vmatpush1.msra.mxu0 %v2118
    %2997 = vmatprep.subr.mxu0 %v2123
    %2998 = vmatpush1.msra.mxu0 %v2122
    %2999 = vmatprep.subr.mxu0 %v2127
    %3000 = vmatpush1.msra.mxu0 %v2126
    %3001 = vmatprep.subr.mxu0 %v2131
    %3002 = vmatpush1.msra.mxu0 %v2130
    %3003 = vmatprep.subr.mxu0 %v2135
    %3004 = vmatpush1.msra.mxu0 %v2134
    %3005 = vmatprep.subr.mxu0 %v2139
    %3006 = vmatpush1.msra.mxu0 %v2138
    %3007 = vmatprep.subr.mxu0 %v2143
    %3008 = vmatpush1.msra.mxu0 %v2142
    %3009 = vmatprep.subr.mxu0 %v2147
    %3010 = vmatpush1.msra.mxu0 %v2146
    %3011 = vmatprep.subr.mxu0 %v2151
    %3012 = vmatpush1.msra.mxu0 %v2150
    %3013 = vmatprep.subr.mxu0 %v2155
    %3014 = vmatpush1.msra.mxu0 %v2154
    %3015 = vmatprep.subr.mxu0 %v2159
    %3016 = vmatpush1.msra.mxu0 %v2158
    %3017 = vmatprep.subr.mxu0 %v2163
    %3018 = vmatpush1.msra.mxu0 %v2162
    %3019 = vmatprep.subr.mxu0 %v2167
    %3020 = vmatpush1.msra.mxu0 %v2166
    %3021 = vmatprep.subr.mxu0 %v2171
    %3022 = vmatpush1.msra.mxu0 %v2170
    %3023 = vmatprep.subr.mxu0 %v2175
    %3024 = vmatpush1.msra.mxu0 %v2174
    %3025 = vmatprep.subr.mxu0 %v2179
    %3026 = vmatpush1.msra.mxu0 %v2178
    %3027 = vmatprep.subr.mxu0 %v2183
    %3028 = vmatpush1.msra.mxu0 %v2182
    %3029 = vmatprep.subr.mxu0 %v2187
    %3030 = vmatpush1.msra.mxu0 %v2186
    %3031 = vmatprep.subr.mxu0 %v2191
    %3032 = vmatpush1.msra.mxu0 %v2190
    %3033 = vmatprep.subr.mxu0 %v2195
    %3034 = vmatpush1.msra.mxu0 %v2194
    %3035 = vmatprep.subr.mxu0 %v2199
    %3036 = vmatpush1.msra.mxu0 %v2198
    %3037 = vmatprep.subr.mxu0 %v2203
    %3038 = vmatpush1.msra.mxu0 %v2202
    %3039 = vmatprep.subr.mxu0 %v2207
    %3040 = vmatpush1.msra.mxu0 %v2206
    %3041 = vmatprep.mubr.f32.mxu0 %v1535
    %3042 = vmatmul.mubr.f32.gmra.mrb[0].mxu0 %v1534
    %v3043 = vpop.f32.mrb[0].mxu0
    %v3044 = vadd.f32 %v2757, %v3043
    %v3045 = vpop.f32.mrb[0].mxu0
    %v3046 = vadd.f32 %v2759, %v3045
    %3047 = vmatprep.mubr.f32.mxu0 %v1543
    %3048 = vmatmul.mubr.f32.gmra.mrb[0].mxu0 %v1542
    %v3049 = vpop.f32.mrb[0].mxu0
    %v3050 = vadd.f32 %v2763, %v3049
    %v3051 = vpop.f32.mrb[0].mxu0
    %v3052 = vadd.f32 %v2765, %v3051
    %3053 = vmatprep.mubr.f32.mxu0 %v1551
    %3054 = vmatmul.mubr.f32.gmra.mrb[0].mxu0 %v1550
    %v3055 = vpop.f32.mrb[0].mxu0
    %v3056 = vadd.f32 %v2769, %v3055
    %v3057 = vpop.f32.mrb[0].mxu0
    %v3058 = vadd.f32 %v2771, %v3057
    %3059 = vmatprep.mubr.f32.mxu0 %v1559
    %3060 = vmatmul.mubr.f32.gmra.mrb[0].mxu0 %v1558
    %v3061 = vpop.f32.mrb[0].mxu0
    %v3062 = vadd.f32 %v2775, %v3061
    %v3063 = vpop.f32.mrb[0].mxu0
    %v3064 = vadd.f32 %v2777, %v3063
    %3065 = vmatprep.mubr.f32.mxu0 %v1567
    %3066 = vmatmul.mubr.f32.gmra.mrb[0].mxu0 %v1566
    %v3067 = vpop.f32.mrb[0].mxu0
    %v3068 = vadd.f32 %v2781, %v3067
    %v3069 = vpop.f32.mrb[0].mxu0
    %v3070 = vadd.f32 %v2783, %v3069
    %3071 = vmatprep.mubr.f32.mxu0 %v1575
    %3072 = vmatmul.mubr.f32.gmra.mrb[0].mxu0 %v1574
    %v3073 = vpop.f32.mrb[0].mxu0
    %v3074 = vadd.f32 %v2787, %v3073
    %v3075 = vpop.f32.mrb[0].mxu0
    %v3076 = vadd.f32 %v2789, %v3075
    %3077 = vmatprep.mubr.f32.mxu0 %v1583
    %3078 = vmatmul.mubr.f32.gmra.mrb[0].mxu0 %v1582
    %v3079 = vpop.f32.mrb[0].mxu0
    %v3080 = vadd.f32 %v2793, %v3079
    %v3081 = vpop.f32.mrb[0].mxu0
    %v3082 = vadd.f32 %v2795, %v3081
    %3083 = vmatprep.mubr.f32.mxu0 %v1591
    %3084 = vmatmul.mubr.f32.gmra.mrb[0].mxu0 %v1590
    %v3085 = vpop.f32.mrb[0].mxu0
    %v3086 = vadd.f32 %v2799, %v3085
    %v3087 = vpop.f32.mrb[0].mxu0
    %v3088 = vadd.f32 %v2801, %v3087
    %3089 = vmatprep.mubr.f32.mxu0 %v1599
    %3090 = vmatmul.mubr.f32.gmra.mrb[0].mxu0 %v1598
    %v3091 = vpop.f32.mrb[0].mxu0
    %v3092 = vadd.f32 %v2805, %v3091
    %v3093 = vpop.f32.mrb[0].mxu0
    %v3094 = vadd.f32 %v2807, %v3093
    %3095 = vmatprep.mubr.f32.mxu0 %v1607
    %3096 = vmatmul.mubr.f32.gmra.mrb[0].mxu0 %v1606
    %v3097 = vpop.f32.mrb[0].mxu0
    %v3098 = vadd.f32 %v2811, %v3097
    %v3099 = vpop.f32.mrb[0].mxu0
    %v3100 = vadd.f32 %v2813, %v3099
    %3101 = vmatprep.mubr.f32.mxu0 %v1615
    %3102 = vmatmul.mubr.f32.gmra.mrb[0].mxu0 %v1614
    %v3103 = vpop.f32.mrb[0].mxu0
    %v3104 = vadd.f32 %v2817, %v3103
    %v3105 = vpop.f32.mrb[0].mxu0
    %v3106 = vadd.f32 %v2819, %v3105
    %3107 = vmatprep.mubr.f32.mxu0 %v1623
    %3108 = vmatmul.mubr.f32.gmra.mrb[0].mxu0 %v1622
    %v3109 = vpop.f32.mrb[0].mxu0
    %v3110 = vadd.f32 %v2823, %v3109
    %v3111 = vpop.f32.mrb[0].mxu0
    %v3112 = vadd.f32 %v2825, %v3111
    %3113 = vmatprep.mubr.f32.mxu0 %v1631
    %3114 = vmatmul.mubr.f32.gmra.mrb[0].mxu0 %v1630
    %v3115 = vpop.f32.mrb[0].mxu0
    %v3116 = vadd.f32 %v2829, %v3115
    %v3117 = vpop.f32.mrb[0].mxu0
    %v3118 = vadd.f32 %v2831, %v3117
    %3119 = vmatprep.mubr.f32.mxu0 %v1639
    %3120 = vmatmul.mubr.f32.gmra.mrb[0].mxu0 %v1638
    %v3121 = vpop.f32.mrb[0].mxu0
    %v3122 = vadd.f32 %v2835, %v3121
    %v3123 = vpop.f32.mrb[0].mxu0
    %v3124 = vadd.f32 %v2837, %v3123
    %3125 = vmatprep.mubr.f32.mxu0 %v1647
    %3126 = vmatmul.mubr.f32.gmra.mrb[0].mxu0 %v1646
    %v3127 = vpop.f32.mrb[0].mxu0
    %v3128 = vadd.f32 %v2841, %v3127
    %v3129 = vpop.f32.mrb[0].mxu0
    %v3130 = vadd.f32 %v2843, %v3129
    %3131 = vmatprep.mubr.f32.mxu0 %v1655
    %3132 = vmatmul.mubr.f32.gmra.mrb[0].mxu0 %v1654
    %v3133 = vpop.f32.mrb[0].mxu0
    %v3134 = vadd.f32 %v2847, %v3133
    %v3135 = vpop.f32.mrb[0].mxu0
    %v3136 = vadd.f32 %v2849, %v3135
    %3137 = vmatprep.mubr.f32.mxu0 %v1663
    %3138 = vmatmul.mubr.f32.gmra.mrb[0].mxu0 %v1662
    %v3139 = vpop.f32.mrb[0].mxu0
    %v3140 = vadd.f32 %v2853, %v3139
    %v3141 = vpop.f32.mrb[0].mxu0
    %v3142 = vadd.f32 %v2855, %v3141
    %3143 = vmatprep.mubr.f32.mxu0 %v1671
    %3144 = vmatmul.mubr.f32.gmra.mrb[0].mxu0 %v1670
    %v3145 = vpop.f32.mrb[0].mxu0
    %v3146 = vadd.f32 %v2859, %v3145
    %v3147 = vpop.f32.mrb[0].mxu0
    %v3148 = vadd.f32 %v2861, %v3147
    %3149 = vmatprep.mubr.f32.mxu0 %v1679
    %3150 = vmatmul.mubr.f32.gmra.mrb[0].mxu0 %v1678
    %v3151 = vpop.f32.mrb[0].mxu0
    %v3152 = vadd.f32 %v2865, %v3151
    %v3153 = vpop.f32.mrb[0].mxu0
    %v3154 = vadd.f32 %v2867, %v3153
    %3155 = vmatprep.mubr.f32.mxu0 %v1687
    %3156 = vmatmul.mubr.f32.gmra.mrb[0].mxu0 %v1686
    %v3157 = vpop.f32.mrb[0].mxu0
    %v3158 = vadd.f32 %v2871, %v3157
    %v3159 = vpop.f32.mrb[0].mxu0
    %v3160 = vadd.f32 %v2873, %v3159
    %3161 = vmatprep.mubr.f32.mxu0 %v1695
    %3162 = vmatmul.mubr.f32.gmra.mrb[0].mxu0 %v1694
    %v3163 = vpop.f32.mrb[0].mxu0
    %v3164 = vadd.f32 %v2877, %v3163
    %v3165 = vpop.f32.mrb[0].mxu0
    %v3166 = vadd.f32 %v2879, %v3165
    %3167 = vmatprep.mubr.f32.mxu0 %v1703
    %3168 = vmatmul.mubr.f32.gmra.mrb[0].mxu0 %v1702
    %v3169 = vpop.f32.mrb[0].mxu0
    %v3170 = vadd.f32 %v2883, %v3169
    %v3171 = vpop.f32.mrb[0].mxu0
    %v3172 = vadd.f32 %v2885, %v3171
    %3173 = vmatprep.mubr.f32.mxu0 %v1711
    %3174 = vmatmul.mubr.f32.gmra.mrb[0].mxu0 %v1710
    %v3175 = vpop.f32.mrb[0].mxu0
    %v3176 = vadd.f32 %v2889, %v3175
    %v3177 = vpop.f32.mrb[0].mxu0
    %v3178 = vadd.f32 %v2891, %v3177
    %3179 = vmatprep.mubr.f32.mxu0 %v1719
    %3180 = vmatmul.mubr.f32.gmra.mrb[0].mxu0 %v1718
    %v3181 = vpop.f32.mrb[0].mxu0
    %v3182 = vadd.f32 %v2895, %v3181
    %v3183 = vpop.f32.mrb[0].mxu0
    %v3184 = vadd.f32 %v2897, %v3183
    %3185 = vmatprep.mubr.f32.mxu0 %v1727
    %3186 = vmatmul.mubr.f32.gmra.mrb[0].mxu0 %v1726
    %v3187 = vpop.f32.mrb[0].mxu0
    %v3188 = vadd.f32 %v2901, %v3187
    %v3189 = vpop.f32.mrb[0].mxu0
    %v3190 = vadd.f32 %v2903, %v3189
    %3191 = vmatprep.mubr.f32.mxu0 %v1735
    %3192 = vmatmul.mubr.f32.gmra.mrb[0].mxu0 %v1734
    %v3193 = vpop.f32.mrb[0].mxu0
    %v3194 = vadd.f32 %v2907, %v3193
    %v3195 = vpop.f32.mrb[0].mxu0
    %v3196 = vadd.f32 %v2909, %v3195
    %3197 = vmatprep.mubr.f32.mxu0 %v1743
    %3198 = vmatmul.mubr.f32.gmra.mrb[0].mxu0 %v1742
    %v3199 = vpop.f32.mrb[0].mxu0
    %v3200 = vadd.f32 %v2913, %v3199
    %v3201 = vpop.f32.mrb[0].mxu0
    %v3202 = vadd.f32 %v2915, %v3201
    %3203 = vmatprep.mubr.f32.mxu0 %v1751
    %3204 = vmatmul.mubr.f32.gmra.mrb[0].mxu0 %v1750
    %v3205 = vpop.f32.mrb[0].mxu0
    %v3206 = vadd.f32 %v2919, %v3205
    %v3207 = vpop.f32.mrb[0].mxu0
    %v3208 = vadd.f32 %v2921, %v3207
    %3209 = vmatprep.mubr.f32.mxu0 %v1759
    %3210 = vmatmul.mubr.f32.gmra.mrb[0].mxu0 %v1758
    %v3211 = vpop.f32.mrb[0].mxu0
    %v3212 = vadd.f32 %v2925, %v3211
    %v3213 = vpop.f32.mrb[0].mxu0
    %v3214 = vadd.f32 %v2927, %v3213
    %3215 = vmatprep.mubr.f32.mxu0 %v1767
    %3216 = vmatmul.mubr.f32.gmra.mrb[0].mxu0 %v1766
    %v3217 = vpop.f32.mrb[0].mxu0
    %v3218 = vadd.f32 %v2931, %v3217
    %v3219 = vpop.f32.mrb[0].mxu0
    %v3220 = vadd.f32 %v2933, %v3219
    %3221 = vmatprep.mubr.f32.mxu0 %v1775
    %3222 = vmatmul.mubr.f32.gmra.mrb[0].mxu0 %v1774
    %v3223 = vpop.f32.mrb[0].mxu0
    %v3224 = vadd.f32 %v2937, %v3223
    %v3225 = vpop.f32.mrb[0].mxu0
    %v3226 = vadd.f32 %v2939, %v3225
    %3227 = vmatprep.mubr.f32.mxu0 %v1783
    %3228 = vmatmul.mubr.f32.gmra.mrb[0].mxu0 %v1782
    %v3229 = vpop.f32.mrb[0].mxu0
    %v3230 = vadd.f32 %v2943, %v3229
    %v3231 = vpop.f32.mrb[0].mxu0
    %v3232 = vadd.f32 %v2945, %v3231
    %3233 = vmatprep.mubr.f32.mxu0 %v1791
    %3234 = vmatmul.mubr.f32.gmra.mrb[0].mxu0 %v1790
    %v3235 = vpop.f32.mrb[0].mxu0
    %v3236 = vadd.f32 %v2949, %v3235
    %v3237 = vpop.f32.mrb[0].mxu0
    %v3238 = vadd.f32 %v2951, %v3237
    %3239 = vmatprep.mubr.f32.mxu0 %v1799
    %3240 = vmatmul.mubr.f32.gmra.mrb[0].mxu0 %v1798
    %v3241 = vpop.f32.mrb[0].mxu0
    %v3242 = vadd.f32 %v2955, %v3241
    %v3243 = vpop.f32.mrb[0].mxu0
    %v3244 = vadd.f32 %v2957, %v3243
    %3245 = vmatprep.mubr.f32.mxu0 %v1807
    %3246 = vmatmul.mubr.f32.gmra.mrb[0].mxu0 %v1806
    %v3247 = vpop.f32.mrb[0].mxu0
    %v3248 = vadd.f32 %v2961, %v3247
    %v3249 = vpop.f32.mrb[0].mxu0
    %v3250 = vadd.f32 %v2963, %v3249
    %3251 = vmatprep.mubr.f32.mxu0 %v1815
    %3252 = vmatmul.mubr.f32.gmra.mrb[0].mxu0 %v1814
    %v3253 = vpop.f32.mrb[0].mxu0
    %v3254 = vadd.f32 %v2967, %v3253
    %v3255 = vpop.f32.mrb[0].mxu0
    %v3256 = vadd.f32 %v2969, %v3255
    %3257 = vmatprep.mubr.f32.mxu0 %v1823
    %3258 = vmatmul.mubr.f32.gmra.mrb[0].mxu0 %v1822
    %v3259 = vpop.f32.mrb[0].mxu0
    %v3260 = vadd.f32 %v2973, %v3259
    %v3261 = vpop.f32.mrb[0].mxu0
    %v3262 = vadd.f32 %v2975, %v3261
    %3263 = vdwg.mxu0
    %3264 = vmatprep.subr.mxu0 %v2211
    %3265 = vmatpush1.msra.mxu0 %v2210
    %3266 = vmatprep.subr.mxu0 %v2215
    %3267 = vmatpush1.msra.mxu0 %v2214
    %3268 = vmatprep.subr.mxu0 %v2219
    %3269 = vmatpush1.msra.mxu0 %v2218
    %3270 = vmatprep.subr.mxu0 %v2223
    %3271 = vmatpush1.msra.mxu0 %v2222
    %3272 = vmatprep.subr.mxu0 %v2227
    %3273 = vmatpush1.msra.mxu0 %v2226
    %3274 = vmatprep.subr.mxu0 %v2231
    %3275 = vmatpush1.msra.mxu0 %v2230
    %3276 = vmatprep.subr.mxu0 %v2235
    %3277 = vmatpush1.msra.mxu0 %v2234
    %3278 = vmatprep.subr.mxu0 %v2239
    %3279 = vmatpush1.msra.mxu0 %v2238
    %3280 = vmatprep.subr.mxu0 %v2243
    %3281 = vmatpush1.msra.mxu0 %v2242
    %3282 = vmatprep.subr.mxu0 %v2247
    %3283 = vmatpush1.msra.mxu0 %v2246
    %3284 = vmatprep.subr.mxu0 %v2251
    %3285 = vmatpush1.msra.mxu0 %v2250
    %3286 = vmatprep.subr.mxu0 %v2255
    %3287 = vmatpush1.msra.mxu0 %v2254
    %3288 = vmatprep.subr.mxu0 %v2259
    %3289 = vmatpush1.msra.mxu0 %v2258
    %3290 = vmatprep.subr.mxu0 %v2263
    %3291 = vmatpush1.msra.mxu0 %v2262
    %3292 = vmatprep.subr.mxu0 %v2267
    %3293 = vmatpush1.msra.mxu0 %v2266
    %3294 = vmatprep.subr.mxu0 %v2271
    %3295 = vmatpush1.msra.mxu0 %v2270
    %3296 = vmatprep.subr.mxu0 %v2395
    %3297 = vmatpush1.msra.mxu0 %v2392
    %3298 = vmatprep.subr.mxu0 0.0
    %3299 = vmatpush1.msra.mxu0 0.0
    %3300 = vmatprep.subr.mxu0 0.0
    %3301 = vmatpush1.msra.mxu0 0.0
    %3302 = vmatprep.subr.mxu0 0.0
    %3303 = vmatpush1.msra.mxu0 0.0
    %3304 = vmatprep.subr.mxu0 0.0
    %3305 = vmatpush1.msra.mxu0 0.0
    %3306 = vmatprep.subr.mxu0 0.0
    %3307 = vmatpush1.msra.mxu0 0.0
    %3308 = vmatprep.subr.mxu0 0.0
    %3309 = vmatpush1.msra.mxu0 0.0
    %3310 = vmatprep.subr.mxu0 0.0
    %3311 = vmatpush1.msra.mxu0 0.0
    %3312 = vmatprep.subr.mxu0 0.0
    %3313 = vmatpush1.msra.mxu0 0.0
    %3314 = vmatprep.subr.mxu0 0.0
    %3315 = vmatpush1.msra.mxu0 0.0
    %3316 = vmatprep.subr.mxu0 0.0
    %3317 = vmatpush1.msra.mxu0 0.0
    %3318 = vmatprep.subr.mxu0 0.0
    %3319 = vmatpush1.msra.mxu0 0.0
    %3320 = vmatprep.subr.mxu0 0.0
    %3321 = vmatpush1.msra.mxu0 0.0
    %3322 = vmatprep.subr.mxu0 0.0
    %3323 = vmatpush1.msra.mxu0 0.0
    %3324 = vmatprep.subr.mxu0 0.0
    %3325 = vmatpush1.msra.mxu0 0.0
    %3326 = vmatprep.subr.mxu0 0.0
    %3327 = vmatpush1.msra.mxu0 0.0
    %3328 = vmatprep.mubr.f32.mxu0 %v2280
    %3329 = vmatmul.mubr.f32.gmra.mrb[0].mxu0 %v1536
    %v3330 = vpop.f32.mrb[0].mxu0
    %v3331 = vadd.f32 %v3044, %v3330
    %v3332 = vpop.f32.mrb[0].mxu0
    %v3333 = vadd.f32 %v3046, %v3332
    %3334 = vmatprep.mubr.f32.mxu0 %v2283
    %3335 = vmatmul.mubr.f32.gmra.mrb[0].mxu0 %v1544
    %v3336 = vpop.f32.mrb[0].mxu0
    %v3337 = vadd.f32 %v3050, %v3336
    %v3338 = vpop.f32.mrb[0].mxu0
    %v3339 = vadd.f32 %v3052, %v3338
    %3340 = vmatprep.mubr.f32.mxu0 %v2286
    %3341 = vmatmul.mubr.f32.gmra.mrb[0].mxu0 %v1552
    %v3342 = vpop.f32.mrb[0].mxu0
    %v3343 = vadd.f32 %v3056, %v3342
    %v3344 = vpop.f32.mrb[0].mxu0
    %v3345 = vadd.f32 %v3058, %v3344
    %3346 = vmatprep.mubr.f32.mxu0 %v2289
    %3347 = vmatmul.mubr.f32.gmra.mrb[0].mxu0 %v1560
    %v3348 = vpop.f32.mrb[0].mxu0
    %v3349 = vadd.f32 %v3062, %v3348
    %v3350 = vpop.f32.mrb[0].mxu0
    %v3351 = vadd.f32 %v3064, %v3350
    %3352 = vmatprep.mubr.f32.mxu0 %v2292
    %3353 = vmatmul.mubr.f32.gmra.mrb[0].mxu0 %v1568
    %v3354 = vpop.f32.mrb[0].mxu0
    %v3355 = vadd.f32 %v3068, %v3354
    %v3356 = vpop.f32.mrb[0].mxu0
    %v3357 = vadd.f32 %v3070, %v3356
    %3358 = vmatprep.mubr.f32.mxu0 %v2295
    %3359 = vmatmul.mubr.f32.gmra.mrb[0].mxu0 %v1576
    %v3360 = vpop.f32.mrb[0].mxu0
    %v3361 = vadd.f32 %v3074, %v3360
    %v3362 = vpop.f32.mrb[0].mxu0
    %v3363 = vadd.f32 %v3076, %v3362
    %3364 = vmatprep.mubr.f32.mxu0 %v2298
    %3365 = vmatmul.mubr.f32.gmra.mrb[0].mxu0 %v1584
    %v3366 = vpop.f32.mrb[0].mxu0
    %v3367 = vadd.f32 %v3080, %v3366
    %v3368 = vpop.f32.mrb[0].mxu0
    %v3369 = vadd.f32 %v3082, %v3368
    %3370 = vmatprep.mubr.f32.mxu0 %v2301
    %3371 = vmatmul.mubr.f32.gmra.mrb[0].mxu0 %v1592
    %v3372 = vpop.f32.mrb[0].mxu0
    %v3373 = vadd.f32 %v3086, %v3372
    %v3374 = vpop.f32.mrb[0].mxu0
    %v3375 = vadd.f32 %v3088, %v3374
    %3376 = vmatprep.mubr.f32.mxu0 %v2304
    %3377 = vmatmul.mubr.f32.gmra.mrb[0].mxu0 %v1600
    %v3378 = vpop.f32.mrb[0].mxu0
    %v3379 = vadd.f32 %v3092, %v3378
    %v3380 = vpop.f32.mrb[0].mxu0
    %v3381 = vadd.f32 %v3094, %v3380
    %3382 = vmatprep.mubr.f32.mxu0 %v2307
    %3383 = vmatmul.mubr.f32.gmra.mrb[0].mxu0 %v1608
    %v3384 = vpop.f32.mrb[0].mxu0
    %v3385 = vadd.f32 %v3098, %v3384
    %v3386 = vpop.f32.mrb[0].mxu0
    %v3387 = vadd.f32 %v3100, %v3386
    %3388 = vmatprep.mubr.f32.mxu0 %v2310
    %3389 = vmatmul.mubr.f32.gmra.mrb[0].mxu0 %v1616
    %v3390 = vpop.f32.mrb[0].mxu0
    %v3391 = vadd.f32 %v3104, %v3390
    %v3392 = vpop.f32.mrb[0].mxu0
    %v3393 = vadd.f32 %v3106, %v3392
    %3394 = vmatprep.mubr.f32.mxu0 %v2313
    %3395 = vmatmul.mubr.f32.gmra.mrb[0].mxu0 %v1624
    %v3396 = vpop.f32.mrb[0].mxu0
    %v3397 = vadd.f32 %v3110, %v3396
    %v3398 = vpop.f32.mrb[0].mxu0
    %v3399 = vadd.f32 %v3112, %v3398
    %3400 = vmatprep.mubr.f32.mxu0 %v2316
    %3401 = vmatmul.mubr.f32.gmra.mrb[0].mxu0 %v1632
    %v3402 = vpop.f32.mrb[0].mxu0
    %v3403 = vadd.f32 %v3116, %v3402
    %v3404 = vpop.f32.mrb[0].mxu0
    %v3405 = vadd.f32 %v3118, %v3404
    %3406 = vmatprep.mubr.f32.mxu0 %v2319
    %3407 = vmatmul.mubr.f32.gmra.mrb[0].mxu0 %v1640
    %v3408 = vpop.f32.mrb[0].mxu0
    %v3409 = vadd.f32 %v3122, %v3408
    %v3410 = vpop.f32.mrb[0].mxu0
    %v3411 = vadd.f32 %v3124, %v3410
    %3412 = vmatprep.mubr.f32.mxu0 %v2322
    %3413 = vmatmul.mubr.f32.gmra.mrb[0].mxu0 %v1648
    %v3414 = vpop.f32.mrb[0].mxu0
    %v3415 = vadd.f32 %v3128, %v3414
    %v3416 = vpop.f32.mrb[0].mxu0
    %v3417 = vadd.f32 %v3130, %v3416
    %3418 = vmatprep.mubr.f32.mxu0 %v2325
    %3419 = vmatmul.mubr.f32.gmra.mrb[0].mxu0 %v1656
    %v3420 = vpop.f32.mrb[0].mxu0
    %v3421 = vadd.f32 %v3134, %v3420
    %v3422 = vpop.f32.mrb[0].mxu0
    %v3423 = vadd.f32 %v3136, %v3422
    %3424 = vmatprep.mubr.f32.mxu0 %v2328
    %3425 = vmatmul.mubr.f32.gmra.mrb[0].mxu0 %v1664
    %v3426 = vpop.f32.mrb[0].mxu0
    %v3427 = vadd.f32 %v3140, %v3426
    %v3428 = vpop.f32.mrb[0].mxu0
    %v3429 = vadd.f32 %v3142, %v3428
    %3430 = vmatprep.mubr.f32.mxu0 %v2331
    %3431 = vmatmul.mubr.f32.gmra.mrb[0].mxu0 %v1672
    %v3432 = vpop.f32.mrb[0].mxu0
    %v3433 = vadd.f32 %v3146, %v3432
    %v3434 = vpop.f32.mrb[0].mxu0
    %v3435 = vadd.f32 %v3148, %v3434
    %3436 = vmatprep.mubr.f32.mxu0 %v2334
    %3437 = vmatmul.mubr.f32.gmra.mrb[0].mxu0 %v1680
    %v3438 = vpop.f32.mrb[0].mxu0
    %v3439 = vadd.f32 %v3152, %v3438
    %v3440 = vpop.f32.mrb[0].mxu0
    %v3441 = vadd.f32 %v3154, %v3440
    %3442 = vmatprep.mubr.f32.mxu0 %v2337
    %3443 = vmatmul.mubr.f32.gmra.mrb[0].mxu0 %v1688
    %v3444 = vpop.f32.mrb[0].mxu0
    %v3445 = vadd.f32 %v3158, %v3444
    %v3446 = vpop.f32.mrb[0].mxu0
    %v3447 = vadd.f32 %v3160, %v3446
    %3448 = vmatprep.mubr.f32.mxu0 %v2340
    %3449 = vmatmul.mubr.f32.gmra.mrb[0].mxu0 %v1696
    %v3450 = vpop.f32.mrb[0].mxu0
    %v3451 = vadd.f32 %v3164, %v3450
    %v3452 = vpop.f32.mrb[0].mxu0
    %v3453 = vadd.f32 %v3166, %v3452
    %3454 = vmatprep.mubr.f32.mxu0 %v2343
    %3455 = vmatmul.mubr.f32.gmra.mrb[0].mxu0 %v1704
    %v3456 = vpop.f32.mrb[0].mxu0
    %v3457 = vadd.f32 %v3170, %v3456
    %v3458 = vpop.f32.mrb[0].mxu0
    %v3459 = vadd.f32 %v3172, %v3458
    %3460 = vmatprep.mubr.f32.mxu0 %v2346
    %3461 = vmatmul.mubr.f32.gmra.mrb[0].mxu0 %v1712
    %v3462 = vpop.f32.mrb[0].mxu0
    %v3463 = vadd.f32 %v3176, %v3462
    %v3464 = vpop.f32.mrb[0].mxu0
    %v3465 = vadd.f32 %v3178, %v3464
    %3466 = vmatprep.mubr.f32.mxu0 %v2349
    %3467 = vmatmul.mubr.f32.gmra.mrb[0].mxu0 %v1720
    %v3468 = vpop.f32.mrb[0].mxu0
    %v3469 = vadd.f32 %v3182, %v3468
    %v3470 = vpop.f32.mrb[0].mxu0
    %v3471 = vadd.f32 %v3184, %v3470
    %3472 = vmatprep.mubr.f32.mxu0 %v2352
    %3473 = vmatmul.mubr.f32.gmra.mrb[0].mxu0 %v1728
    %v3474 = vpop.f32.mrb[0].mxu0
    %v3475 = vadd.f32 %v3188, %v3474
    %v3476 = vpop.f32.mrb[0].mxu0
    %v3477 = vadd.f32 %v3190, %v3476
    %3478 = vmatprep.mubr.f32.mxu0 %v2355
    %3479 = vmatmul.mubr.f32.gmra.mrb[0].mxu0 %v1736
    %v3480 = vpop.f32.mrb[0].mxu0
    %v3481 = vadd.f32 %v3194, %v3480
    %v3482 = vpop.f32.mrb[0].mxu0
    %v3483 = vadd.f32 %v3196, %v3482
    %3484 = vmatprep.mubr.f32.mxu0 %v2358
    %3485 = vmatmul.mubr.f32.gmra.mrb[0].mxu0 %v1744
    %v3486 = vpop.f32.mrb[0].mxu0
    %v3487 = vadd.f32 %v3200, %v3486
    %v3488 = vpop.f32.mrb[0].mxu0
    %v3489 = vadd.f32 %v3202, %v3488
    %3490 = vmatprep.mubr.f32.mxu0 %v2361
    %3491 = vmatmul.mubr.f32.gmra.mrb[0].mxu0 %v1752
    %v3492 = vpop.f32.mrb[0].mxu0
    %v3493 = vadd.f32 %v3206, %v3492
    %v3494 = vpop.f32.mrb[0].mxu0
    %v3495 = vadd.f32 %v3208, %v3494
    %3496 = vmatprep.mubr.f32.mxu0 %v2364
    %3497 = vmatmul.mubr.f32.gmra.mrb[0].mxu0 %v1760
    %v3498 = vpop.f32.mrb[0].mxu0
    %v3499 = vadd.f32 %v3212, %v3498
    %v3500 = vpop.f32.mrb[0].mxu0
    %v3501 = vadd.f32 %v3214, %v3500
    %3502 = vmatprep.mubr.f32.mxu0 %v2367
    %3503 = vmatmul.mubr.f32.gmra.mrb[0].mxu0 %v1768
    %v3504 = vpop.f32.mrb[0].mxu0
    %v3505 = vadd.f32 %v3218, %v3504
    %v3506 = vpop.f32.mrb[0].mxu0
    %v3507 = vadd.f32 %v3220, %v3506
    %3508 = vmatprep.mubr.f32.mxu0 %v2370
    %3509 = vmatmul.mubr.f32.gmra.mrb[0].mxu0 %v1776
    %v3510 = vpop.f32.mrb[0].mxu0
    %v3511 = vadd.f32 %v3224, %v3510
    %v3512 = vpop.f32.mrb[0].mxu0
    %v3513 = vadd.f32 %v3226, %v3512
    %3514 = vmatprep.mubr.f32.mxu0 %v2373
    %3515 = vmatmul.mubr.f32.gmra.mrb[0].mxu0 %v1784
    %v3516 = vpop.f32.mrb[0].mxu0
    %v3517 = vadd.f32 %v3230, %v3516
    %v3518 = vpop.f32.mrb[0].mxu0
    %v3519 = vadd.f32 %v3232, %v3518
    %3520 = vmatprep.mubr.f32.mxu0 %v2376
    %3521 = vmatmul.mubr.f32.gmra.mrb[0].mxu0 %v1792
    %v3522 = vpop.f32.mrb[0].mxu0
    %v3523 = vadd.f32 %v3236, %v3522
    %v3524 = vpop.f32.mrb[0].mxu0
    %v3525 = vadd.f32 %v3238, %v3524
    %3526 = vmatprep.mubr.f32.mxu0 %v2379
    %3527 = vmatmul.mubr.f32.gmra.mrb[0].mxu0 %v1800
    %v3528 = vpop.f32.mrb[0].mxu0
    %v3529 = vadd.f32 %v3242, %v3528
    %v3530 = vpop.f32.mrb[0].mxu0
    %v3531 = vadd.f32 %v3244, %v3530
    %3532 = vmatprep.mubr.f32.mxu0 %v2382
    %3533 = vmatmul.mubr.f32.gmra.mrb[0].mxu0 %v1808
    %v3534 = vpop.f32.mrb[0].mxu0
    %v3535 = vadd.f32 %v3248, %v3534
    %v3536 = vpop.f32.mrb[0].mxu0
    %v3537 = vadd.f32 %v3250, %v3536
    %3538 = vmatprep.mubr.f32.mxu0 %v2385
    %3539 = vmatmul.mubr.f32.gmra.mrb[0].mxu0 %v1816
    %v3540 = vpop.f32.mrb[0].mxu0
    %v3541 = vadd.f32 %v3254, %v3540
    %v3542 = vpop.f32.mrb[0].mxu0
    %v3543 = vadd.f32 %v3256, %v3542
    %3544 = vmatprep.mubr.f32.mxu0 %v2388
    %3545 = vmatmul.mubr.f32.gmra.mrb[0].mxu0 %v1824
    %v3546 = vpop.f32.mrb[0].mxu0
    %v3547 = vadd.f32 %v3260, %v3546
    %v3548 = vpop.f32.mrb[0].mxu0
    %v3549 = vadd.f32 %v3262, %v3548
    %3550 = vdwg.mxu0
    %3551 = vmatprep.subr.mxu0 %v1829
    %3552 = vmatpush1.msra.mxu0 %v1828
    %3553 = vmatprep.subr.mxu0 %v1833
    %3554 = vmatpush1.msra.mxu0 %v1832
    %3555 = vmatprep.subr.mxu0 %v1837
    %3556 = vmatpush1.msra.mxu0 %v1836
    %3557 = vmatprep.subr.mxu0 %v1841
    %3558 = vmatpush1.msra.mxu0 %v1840
    %3559 = vmatprep.subr.mxu0 %v1845
    %3560 = vmatpush1.msra.mxu0 %v1844
    %3561 = vmatprep.subr.mxu0 %v1849
    %3562 = vmatpush1.msra.mxu0 %v1848
    %3563 = vmatprep.subr.mxu0 %v1853
    %3564 = vmatpush1.msra.mxu0 %v1852
    %3565 = vmatprep.subr.mxu0 %v1857
    %3566 = vmatpush1.msra.mxu0 %v1856
    %3567 = vmatprep.subr.mxu0 %v1861
    %3568 = vmatpush1.msra.mxu0 %v1860
    %3569 = vmatprep.subr.mxu0 %v1865
    %3570 = vmatpush1.msra.mxu0 %v1864
    %3571 = vmatprep.subr.mxu0 %v1869
    %3572 = vmatpush1.msra.mxu0 %v1868
    %3573 = vmatprep.subr.mxu0 %v1873
    %3574 = vmatpush1.msra.mxu0 %v1872
    %3575 = vmatprep.subr.mxu0 %v1877
    %3576 = vmatpush1.msra.mxu0 %v1876
    %3577 = vmatprep.subr.mxu0 %v1881
    %3578 = vmatpush1.msra.mxu0 %v1880
    %3579 = vmatprep.subr.mxu0 %v1885
    %3580 = vmatpush1.msra.mxu0 %v1884
    %3581 = vmatprep.subr.mxu0 %v1889
    %3582 = vmatpush1.msra.mxu0 %v1888
    %3583 = vmatprep.subr.mxu0 %v1893
    %3584 = vmatpush1.msra.mxu0 %v1892
    %3585 = vmatprep.subr.mxu0 %v1897
    %3586 = vmatpush1.msra.mxu0 %v1896
    %3587 = vmatprep.subr.mxu0 %v1901
    %3588 = vmatpush1.msra.mxu0 %v1900
    %3589 = vmatprep.subr.mxu0 %v1905
    %3590 = vmatpush1.msra.mxu0 %v1904
    %3591 = vmatprep.subr.mxu0 %v1909
    %3592 = vmatpush1.msra.mxu0 %v1908
    %3593 = vmatprep.subr.mxu0 %v1913
    %3594 = vmatpush1.msra.mxu0 %v1912
    %3595 = vmatprep.subr.mxu0 %v1917
    %3596 = vmatpush1.msra.mxu0 %v1916
    %3597 = vmatprep.subr.mxu0 %v1921
    %3598 = vmatpush1.msra.mxu0 %v1920
    %3599 = vmatprep.subr.mxu0 %v1925
    %3600 = vmatpush1.msra.mxu0 %v1924
    %3601 = vmatprep.subr.mxu0 %v1929
    %3602 = vmatpush1.msra.mxu0 %v1928
    %3603 = vmatprep.subr.mxu0 %v1933
    %3604 = vmatpush1.msra.mxu0 %v1932
    %3605 = vmatprep.subr.mxu0 %v1937
    %3606 = vmatpush1.msra.mxu0 %v1936
    %3607 = vmatprep.subr.mxu0 %v1941
    %3608 = vmatpush1.msra.mxu0 %v1940
    %3609 = vmatprep.subr.mxu0 %v1945
    %3610 = vmatpush1.msra.mxu0 %v1944
    %3611 = vmatprep.subr.mxu0 %v1949
    %3612 = vmatpush1.msra.mxu0 %v1948
    %3613 = vmatprep.subr.mxu0 %v1953
    %3614 = vmatpush1.msra.mxu0 %v1952
    %3615 = vmatprep.mubr.f32.mxu0 %v1531
    %3616 = vmatmul.mubr.f32.gmra.mrb[0].mxu0 %v1530
    %v3617 = vpop.f32.mrb[0].mxu0
    %v3618 = vadd.f32 0.0, %v3617
    %v3619 = vpop.f32.mrb[0].mxu0
    %v3620 = vadd.f32 0.0, %v3619
    %3621 = vmatprep.mubr.f32.mxu0 %v1539
    %3622 = vmatmul.mubr.f32.gmra.mrb[0].mxu0 %v1538
    %v3623 = vpop.f32.mrb[0].mxu0
    %v3624 = vadd.f32 0.0, %v3623
    %v3625 = vpop.f32.mrb[0].mxu0
    %v3626 = vadd.f32 0.0, %v3625
    %3627 = vmatprep.mubr.f32.mxu0 %v1547
    %3628 = vmatmul.mubr.f32.gmra.mrb[0].mxu0 %v1546
    %v3629 = vpop.f32.mrb[0].mxu0
    %v3630 = vadd.f32 0.0, %v3629
    %v3631 = vpop.f32.mrb[0].mxu0
    %v3632 = vadd.f32 0.0, %v3631
    %3633 = vmatprep.mubr.f32.mxu0 %v1555
    %3634 = vmatmul.mubr.f32.gmra.mrb[0].mxu0 %v1554
    %v3635 = vpop.f32.mrb[0].mxu0
    %v3636 = vadd.f32 0.0, %v3635
    %v3637 = vpop.f32.mrb[0].mxu0
    %v3638 = vadd.f32 0.0, %v3637
    %3639 = vmatprep.mubr.f32.mxu0 %v1563
    %3640 = vmatmul.mubr.f32.gmra.mrb[0].mxu0 %v1562
    %v3641 = vpop.f32.mrb[0].mxu0
    %v3642 = vadd.f32 0.0, %v3641
    %v3643 = vpop.f32.mrb[0].mxu0
    %v3644 = vadd.f32 0.0, %v3643
    %3645 = vmatprep.mubr.f32.mxu0 %v1571
    %3646 = vmatmul.mubr.f32.gmra.mrb[0].mxu0 %v1570
    %v3647 = vpop.f32.mrb[0].mxu0
    %v3648 = vadd.f32 0.0, %v3647
    %v3649 = vpop.f32.mrb[0].mxu0
    %v3650 = vadd.f32 0.0, %v3649
    %3651 = vmatprep.mubr.f32.mxu0 %v1579
    %3652 = vmatmul.mubr.f32.gmra.mrb[0].mxu0 %v1578
    %v3653 = vpop.f32.mrb[0].mxu0
    %v3654 = vadd.f32 0.0, %v3653
    %v3655 = vpop.f32.mrb[0].mxu0
    %v3656 = vadd.f32 0.0, %v3655
    %3657 = vmatprep.mubr.f32.mxu0 %v1587
    %3658 = vmatmul.mubr.f32.gmra.mrb[0].mxu0 %v1586
    %v3659 = vpop.f32.mrb[0].mxu0
    %v3660 = vadd.f32 0.0, %v3659
    %v3661 = vpop.f32.mrb[0].mxu0
    %v3662 = vadd.f32 0.0, %v3661
    %3663 = vmatprep.mubr.f32.mxu0 %v1595
    %3664 = vmatmul.mubr.f32.gmra.mrb[0].mxu0 %v1594
    %v3665 = vpop.f32.mrb[0].mxu0
    %v3666 = vadd.f32 0.0, %v3665
    %v3667 = vpop.f32.mrb[0].mxu0
    %v3668 = vadd.f32 0.0, %v3667
    %3669 = vmatprep.mubr.f32.mxu0 %v1603
    %3670 = vmatmul.mubr.f32.gmra.mrb[0].mxu0 %v1602
    %v3671 = vpop.f32.mrb[0].mxu0
    %v3672 = vadd.f32 0.0, %v3671
    %v3673 = vpop.f32.mrb[0].mxu0
    %v3674 = vadd.f32 0.0, %v3673
    %3675 = vmatprep.mubr.f32.mxu0 %v1611
    %3676 = vmatmul.mubr.f32.gmra.mrb[0].mxu0 %v1610
    %v3677 = vpop.f32.mrb[0].mxu0
    %v3678 = vadd.f32 0.0, %v3677
    %v3679 = vpop.f32.mrb[0].mxu0
    %v3680 = vadd.f32 0.0, %v3679
    %3681 = vmatprep.mubr.f32.mxu0 %v1619
    %3682 = vmatmul.mubr.f32.gmra.mrb[0].mxu0 %v1618
    %v3683 = vpop.f32.mrb[0].mxu0
    %v3684 = vadd.f32 0.0, %v3683
    %v3685 = vpop.f32.mrb[0].mxu0
    %v3686 = vadd.f32 0.0, %v3685
    %3687 = vmatprep.mubr.f32.mxu0 %v1627
    %3688 = vmatmul.mubr.f32.gmra.mrb[0].mxu0 %v1626
    %v3689 = vpop.f32.mrb[0].mxu0
    %v3690 = vadd.f32 0.0, %v3689
    %v3691 = vpop.f32.mrb[0].mxu0
    %v3692 = vadd.f32 0.0, %v3691
    %3693 = vmatprep.mubr.f32.mxu0 %v1635
    %3694 = vmatmul.mubr.f32.gmra.mrb[0].mxu0 %v1634
    %v3695 = vpop.f32.mrb[0].mxu0
    %v3696 = vadd.f32 0.0, %v3695
    %v3697 = vpop.f32.mrb[0].mxu0
    %v3698 = vadd.f32 0.0, %v3697
    %3699 = vmatprep.mubr.f32.mxu0 %v1643
    %3700 = vmatmul.mubr.f32.gmra.mrb[0].mxu0 %v1642
    %v3701 = vpop.f32.mrb[0].mxu0
    %v3702 = vadd.f32 0.0, %v3701
    %v3703 = vpop.f32.mrb[0].mxu0
    %v3704 = vadd.f32 0.0, %v3703
    %3705 = vmatprep.mubr.f32.mxu0 %v1651
    %3706 = vmatmul.mubr.f32.gmra.mrb[0].mxu0 %v1650
    %v3707 = vpop.f32.mrb[0].mxu0
    %v3708 = vadd.f32 0.0, %v3707
    %v3709 = vpop.f32.mrb[0].mxu0
    %v3710 = vadd.f32 0.0, %v3709
    %3711 = vmatprep.mubr.f32.mxu0 %v1659
    %3712 = vmatmul.mubr.f32.gmra.mrb[0].mxu0 %v1658
    %v3713 = vpop.f32.mrb[0].mxu0
    %v3714 = vadd.f32 0.0, %v3713
    %v3715 = vpop.f32.mrb[0].mxu0
    %v3716 = vadd.f32 0.0, %v3715
    %3717 = vmatprep.mubr.f32.mxu0 %v1667
    %3718 = vmatmul.mubr.f32.gmra.mrb[0].mxu0 %v1666
    %v3719 = vpop.f32.mrb[0].mxu0
    %v3720 = vadd.f32 0.0, %v3719
    %v3721 = vpop.f32.mrb[0].mxu0
    %v3722 = vadd.f32 0.0, %v3721
    %3723 = vmatprep.mubr.f32.mxu0 %v1675
    %3724 = vmatmul.mubr.f32.gmra.mrb[0].mxu0 %v1674
    %v3725 = vpop.f32.mrb[0].mxu0
    %v3726 = vadd.f32 0.0, %v3725
    %v3727 = vpop.f32.mrb[0].mxu0
    %v3728 = vadd.f32 0.0, %v3727
    %3729 = vmatprep.mubr.f32.mxu0 %v1683
    %3730 = vmatmul.mubr.f32.gmra.mrb[0].mxu0 %v1682
    %v3731 = vpop.f32.mrb[0].mxu0
    %v3732 = vadd.f32 0.0, %v3731
    %v3733 = vpop.f32.mrb[0].mxu0
    %v3734 = vadd.f32 0.0, %v3733
    %3735 = vmatprep.mubr.f32.mxu0 %v1691
    %3736 = vmatmul.mubr.f32.gmra.mrb[0].mxu0 %v1690
    %v3737 = vpop.f32.mrb[0].mxu0
    %v3738 = vadd.f32 0.0, %v3737
    %v3739 = vpop.f32.mrb[0].mxu0
    %v3740 = vadd.f32 0.0, %v3739
    %3741 = vmatprep.mubr.f32.mxu0 %v1699
    %3742 = vmatmul.mubr.f32.gmra.mrb[0].mxu0 %v1698
    %v3743 = vpop.f32.mrb[0].mxu0
    %v3744 = vadd.f32 0.0, %v3743
    %v3745 = vpop.f32.mrb[0].mxu0
    %v3746 = vadd.f32 0.0, %v3745
    %3747 = vmatprep.mubr.f32.mxu0 %v1707
    %3748 = vmatmul.mubr.f32.gmra.mrb[0].mxu0 %v1706
    %v3749 = vpop.f32.mrb[0].mxu0
    %v3750 = vadd.f32 0.0, %v3749
    %v3751 = vpop.f32.mrb[0].mxu0
    %v3752 = vadd.f32 0.0, %v3751
    %3753 = vmatprep.mubr.f32.mxu0 %v1715
    %3754 = vmatmul.mubr.f32.gmra.mrb[0].mxu0 %v1714
    %v3755 = vpop.f32.mrb[0].mxu0
    %v3756 = vadd.f32 0.0, %v3755
    %v3757 = vpop.f32.mrb[0].mxu0
    %v3758 = vadd.f32 0.0, %v3757
    %3759 = vmatprep.mubr.f32.mxu0 %v1723
    %3760 = vmatmul.mubr.f32.gmra.mrb[0].mxu0 %v1722
    %v3761 = vpop.f32.mrb[0].mxu0
    %v3762 = vadd.f32 0.0, %v3761
    %v3763 = vpop.f32.mrb[0].mxu0
    %v3764 = vadd.f32 0.0, %v3763
    %3765 = vmatprep.mubr.f32.mxu0 %v1731
    %3766 = vmatmul.mubr.f32.gmra.mrb[0].mxu0 %v1730
    %v3767 = vpop.f32.mrb[0].mxu0
    %v3768 = vadd.f32 0.0, %v3767
    %v3769 = vpop.f32.mrb[0].mxu0
    %v3770 = vadd.f32 0.0, %v3769
    %3771 = vmatprep.mubr.f32.mxu0 %v1739
    %3772 = vmatmul.mubr.f32.gmra.mrb[0].mxu0 %v1738
    %v3773 = vpop.f32.mrb[0].mxu0
    %v3774 = vadd.f32 0.0, %v3773
    %v3775 = vpop.f32.mrb[0].mxu0
    %v3776 = vadd.f32 0.0, %v3775
    %3777 = vmatprep.mubr.f32.mxu0 %v1747
    %3778 = vmatmul.mubr.f32.gmra.mrb[0].mxu0 %v1746
    %v3779 = vpop.f32.mrb[0].mxu0
    %v3780 = vadd.f32 0.0, %v3779
    %v3781 = vpop.f32.mrb[0].mxu0
    %v3782 = vadd.f32 0.0, %v3781
    %3783 = vmatprep.mubr.f32.mxu0 %v1755
    %3784 = vmatmul.mubr.f32.gmra.mrb[0].mxu0 %v1754
    %v3785 = vpop.f32.mrb[0].mxu0
    %v3786 = vadd.f32 0.0, %v3785
    %v3787 = vpop.f32.mrb[0].mxu0
    %v3788 = vadd.f32 0.0, %v3787
    %3789 = vmatprep.mubr.f32.mxu0 %v1763
    %3790 = vmatmul.mubr.f32.gmra.mrb[0].mxu0 %v1762
    %v3791 = vpop.f32.mrb[0].mxu0
    %v3792 = vadd.f32 0.0, %v3791
    %v3793 = vpop.f32.mrb[0].mxu0
    %v3794 = vadd.f32 0.0, %v3793
    %3795 = vmatprep.mubr.f32.mxu0 %v1771
    %3796 = vmatmul.mubr.f32.gmra.mrb[0].mxu0 %v1770
    %v3797 = vpop.f32.mrb[0].mxu0
    %v3798 = vadd.f32 0.0, %v3797
    %v3799 = vpop.f32.mrb[0].mxu0
    %v3800 = vadd.f32 0.0, %v3799
    %3801 = vmatprep.mubr.f32.mxu0 %v1779
    %3802 = vmatmul.mubr.f32.gmra.mrb[0].mxu0 %v1778
    %v3803 = vpop.f32.mrb[0].mxu0
    %v3804 = vadd.f32 0.0, %v3803
    %v3805 = vpop.f32.mrb[0].mxu0
    %v3806 = vadd.f32 0.0, %v3805
    %3807 = vmatprep.mubr.f32.mxu0 %v1787
    %3808 = vmatmul.mubr.f32.gmra.mrb[0].mxu0 %v1786
    %v3809 = vpop.f32.mrb[0].mxu0
    %v3810 = vadd.f32 0.0, %v3809
    %v3811 = vpop.f32.mrb[0].mxu0
    %v3812 = vadd.f32 0.0, %v3811
    %3813 = vmatprep.mubr.f32.mxu0 %v1795
    %3814 = vmatmul.mubr.f32.gmra.mrb[0].mxu0 %v1794
    %v3815 = vpop.f32.mrb[0].mxu0
    %v3816 = vadd.f32 0.0, %v3815
    %v3817 = vpop.f32.mrb[0].mxu0
    %v3818 = vadd.f32 0.0, %v3817
    %3819 = vmatprep.mubr.f32.mxu0 %v1803
    %3820 = vmatmul.mubr.f32.gmra.mrb[0].mxu0 %v1802
    %v3821 = vpop.f32.mrb[0].mxu0
    %v3822 = vadd.f32 0.0, %v3821
    %v3823 = vpop.f32.mrb[0].mxu0
    %v3824 = vadd.f32 0.0, %v3823
    %3825 = vmatprep.mubr.f32.mxu0 %v1811
    %3826 = vmatmul.mubr.f32.gmra.mrb[0].mxu0 %v1810
    %v3827 = vpop.f32.mrb[0].mxu0
    %v3828 = vadd.f32 0.0, %v3827
    %v3829 = vpop.f32.mrb[0].mxu0
    %v3830 = vadd.f32 0.0, %v3829
    %3831 = vmatprep.mubr.f32.mxu0 %v1819
    %3832 = vmatmul.mubr.f32.gmra.mrb[0].mxu0 %v1818
    %v3833 = vpop.f32.mrb[0].mxu0
    %v3834 = vadd.f32 0.0, %v3833
    %v3835 = vpop.f32.mrb[0].mxu0
    %v3836 = vadd.f32 0.0, %v3835
    %3837 = vdwg.mxu0
    %3838 = vmatprep.subr.mxu0 %v1957
    %3839 = vmatpush1.msra.mxu0 %v1956
    %3840 = vmatprep.subr.mxu0 %v1961
    %3841 = vmatpush1.msra.mxu0 %v1960
    %3842 = vmatprep.subr.mxu0 %v1965
    %3843 = vmatpush1.msra.mxu0 %v1964
    %3844 = vmatprep.subr.mxu0 %v1969
    %3845 = vmatpush1.msra.mxu0 %v1968
    %3846 = vmatprep.subr.mxu0 %v1973
    %3847 = vmatpush1.msra.mxu0 %v1972
    %3848 = vmatprep.subr.mxu0 %v1977
    %3849 = vmatpush1.msra.mxu0 %v1976
    %3850 = vmatprep.subr.mxu0 %v1981
    %3851 = vmatpush1.msra.mxu0 %v1980
    %3852 = vmatprep.subr.mxu0 %v1985
    %3853 = vmatpush1.msra.mxu0 %v1984
    %3854 = vmatprep.subr.mxu0 %v1989
    %3855 = vmatpush1.msra.mxu0 %v1988
    %3856 = vmatprep.subr.mxu0 %v1993
    %3857 = vmatpush1.msra.mxu0 %v1992
    %3858 = vmatprep.subr.mxu0 %v1997
    %3859 = vmatpush1.msra.mxu0 %v1996
    %3860 = vmatprep.subr.mxu0 %v2001
    %3861 = vmatpush1.msra.mxu0 %v2000
    %3862 = vmatprep.subr.mxu0 %v2005
    %3863 = vmatpush1.msra.mxu0 %v2004
    %3864 = vmatprep.subr.mxu0 %v2009
    %3865 = vmatpush1.msra.mxu0 %v2008
    %3866 = vmatprep.subr.mxu0 %v2013
    %3867 = vmatpush1.msra.mxu0 %v2012
    %3868 = vmatprep.subr.mxu0 %v2017
    %3869 = vmatpush1.msra.mxu0 %v2016
    %3870 = vmatprep.subr.mxu0 %v2021
    %3871 = vmatpush1.msra.mxu0 %v2020
    %3872 = vmatprep.subr.mxu0 %v2025
    %3873 = vmatpush1.msra.mxu0 %v2024
    %3874 = vmatprep.subr.mxu0 %v2029
    %3875 = vmatpush1.msra.mxu0 %v2028
    %3876 = vmatprep.subr.mxu0 %v2033
    %3877 = vmatpush1.msra.mxu0 %v2032
    %3878 = vmatprep.subr.mxu0 %v2037
    %3879 = vmatpush1.msra.mxu0 %v2036
    %3880 = vmatprep.subr.mxu0 %v2041
    %3881 = vmatpush1.msra.mxu0 %v2040
    %3882 = vmatprep.subr.mxu0 %v2045
    %3883 = vmatpush1.msra.mxu0 %v2044
    %3884 = vmatprep.subr.mxu0 %v2049
    %3885 = vmatpush1.msra.mxu0 %v2048
    %3886 = vmatprep.subr.mxu0 %v2053
    %3887 = vmatpush1.msra.mxu0 %v2052
    %3888 = vmatprep.subr.mxu0 %v2057
    %3889 = vmatpush1.msra.mxu0 %v2056
    %3890 = vmatprep.subr.mxu0 %v2061
    %3891 = vmatpush1.msra.mxu0 %v2060
    %3892 = vmatprep.subr.mxu0 %v2065
    %3893 = vmatpush1.msra.mxu0 %v2064
    %3894 = vmatprep.subr.mxu0 %v2069
    %3895 = vmatpush1.msra.mxu0 %v2068
    %3896 = vmatprep.subr.mxu0 %v2073
    %3897 = vmatpush1.msra.mxu0 %v2072
    %3898 = vmatprep.subr.mxu0 %v2077
    %3899 = vmatpush1.msra.mxu0 %v2076
    %3900 = vmatprep.subr.mxu0 %v2081
    %3901 = vmatpush1.msra.mxu0 %v2080
    %3902 = vmatprep.mubr.f32.mxu0 %v1533
    %3903 = vmatmul.mubr.f32.gmra.mrb[0].mxu0 %v1532
    %v3904 = vpop.f32.mrb[0].mxu0
    %v3905 = vadd.f32 %v3618, %v3904
    %v3906 = vpop.f32.mrb[0].mxu0
    %v3907 = vadd.f32 %v3620, %v3906
    %3908 = vmatprep.mubr.f32.mxu0 %v1541
    %3909 = vmatmul.mubr.f32.gmra.mrb[0].mxu0 %v1540
    %v3910 = vpop.f32.mrb[0].mxu0
    %v3911 = vadd.f32 %v3624, %v3910
    %v3912 = vpop.f32.mrb[0].mxu0
    %v3913 = vadd.f32 %v3626, %v3912
    %3914 = vmatprep.mubr.f32.mxu0 %v1549
    %3915 = vmatmul.mubr.f32.gmra.mrb[0].mxu0 %v1548
    %v3916 = vpop.f32.mrb[0].mxu0
    %v3917 = vadd.f32 %v3630, %v3916
    %v3918 = vpop.f32.mrb[0].mxu0
    %v3919 = vadd.f32 %v3632, %v3918
    %3920 = vmatprep.mubr.f32.mxu0 %v1557
    %3921 = vmatmul.mubr.f32.gmra.mrb[0].mxu0 %v1556
    %v3922 = vpop.f32.mrb[0].mxu0
    %v3923 = vadd.f32 %v3636, %v3922
    %v3924 = vpop.f32.mrb[0].mxu0
    %v3925 = vadd.f32 %v3638, %v3924
    %3926 = vmatprep.mubr.f32.mxu0 %v1565
    %3927 = vmatmul.mubr.f32.gmra.mrb[0].mxu0 %v1564
    %v3928 = vpop.f32.mrb[0].mxu0
    %v3929 = vadd.f32 %v3642, %v3928
    %v3930 = vpop.f32.mrb[0].mxu0
    %v3931 = vadd.f32 %v3644, %v3930
    %3932 = vmatprep.mubr.f32.mxu0 %v1573
    %3933 = vmatmul.mubr.f32.gmra.mrb[0].mxu0 %v1572
    %v3934 = vpop.f32.mrb[0].mxu0
    %v3935 = vadd.f32 %v3648, %v3934
    %v3936 = vpop.f32.mrb[0].mxu0
    %v3937 = vadd.f32 %v3650, %v3936
    %3938 = vmatprep.mubr.f32.mxu0 %v1581
    %3939 = vmatmul.mubr.f32.gmra.mrb[0].mxu0 %v1580
    %v3940 = vpop.f32.mrb[0].mxu0
    %v3941 = vadd.f32 %v3654, %v3940
    %v3942 = vpop.f32.mrb[0].mxu0
    %v3943 = vadd.f32 %v3656, %v3942
    %3944 = vmatprep.mubr.f32.mxu0 %v1589
    %3945 = vmatmul.mubr.f32.gmra.mrb[0].mxu0 %v1588
    %v3946 = vpop.f32.mrb[0].mxu0
    %v3947 = vadd.f32 %v3660, %v3946
    %v3948 = vpop.f32.mrb[0].mxu0
    %v3949 = vadd.f32 %v3662, %v3948
    %3950 = vmatprep.mubr.f32.mxu0 %v1597
    %3951 = vmatmul.mubr.f32.gmra.mrb[0].mxu0 %v1596
    %v3952 = vpop.f32.mrb[0].mxu0
    %v3953 = vadd.f32 %v3666, %v3952
    %v3954 = vpop.f32.mrb[0].mxu0
    %v3955 = vadd.f32 %v3668, %v3954
    %3956 = vmatprep.mubr.f32.mxu0 %v1605
    %3957 = vmatmul.mubr.f32.gmra.mrb[0].mxu0 %v1604
    %v3958 = vpop.f32.mrb[0].mxu0
    %v3959 = vadd.f32 %v3672, %v3958
    %v3960 = vpop.f32.mrb[0].mxu0
    %v3961 = vadd.f32 %v3674, %v3960
    %3962 = vmatprep.mubr.f32.mxu0 %v1613
    %3963 = vmatmul.mubr.f32.gmra.mrb[0].mxu0 %v1612
    %v3964 = vpop.f32.mrb[0].mxu0
    %v3965 = vadd.f32 %v3678, %v3964
    %v3966 = vpop.f32.mrb[0].mxu0
    %v3967 = vadd.f32 %v3680, %v3966
    %3968 = vmatprep.mubr.f32.mxu0 %v1621
    %3969 = vmatmul.mubr.f32.gmra.mrb[0].mxu0 %v1620
    %v3970 = vpop.f32.mrb[0].mxu0
    %v3971 = vadd.f32 %v3684, %v3970
    %v3972 = vpop.f32.mrb[0].mxu0
    %v3973 = vadd.f32 %v3686, %v3972
    %3974 = vmatprep.mubr.f32.mxu0 %v1629
    %3975 = vmatmul.mubr.f32.gmra.mrb[0].mxu0 %v1628
    %v3976 = vpop.f32.mrb[0].mxu0
    %v3977 = vadd.f32 %v3690, %v3976
    %v3978 = vpop.f32.mrb[0].mxu0
    %v3979 = vadd.f32 %v3692, %v3978
    %3980 = vmatprep.mubr.f32.mxu0 %v1637
    %3981 = vmatmul.mubr.f32.gmra.mrb[0].mxu0 %v1636
    %v3982 = vpop.f32.mrb[0].mxu0
    %v3983 = vadd.f32 %v3696, %v3982
    %v3984 = vpop.f32.mrb[0].mxu0
    %v3985 = vadd.f32 %v3698, %v3984
    %3986 = vmatprep.mubr.f32.mxu0 %v1645
    %3987 = vmatmul.mubr.f32.gmra.mrb[0].mxu0 %v1644
    %v3988 = vpop.f32.mrb[0].mxu0
    %v3989 = vadd.f32 %v3702, %v3988
    %v3990 = vpop.f32.mrb[0].mxu0
    %v3991 = vadd.f32 %v3704, %v3990
    %3992 = vmatprep.mubr.f32.mxu0 %v1653
    %3993 = vmatmul.mubr.f32.gmra.mrb[0].mxu0 %v1652
    %v3994 = vpop.f32.mrb[0].mxu0
    %v3995 = vadd.f32 %v3708, %v3994
    %v3996 = vpop.f32.mrb[0].mxu0
    %v3997 = vadd.f32 %v3710, %v3996
    %3998 = vmatprep.mubr.f32.mxu0 %v1661
    %3999 = vmatmul.mubr.f32.gmra.mrb[0].mxu0 %v1660
    %v4000 = vpop.f32.mrb[0].mxu0
    %v4001 = vadd.f32 %v3714, %v4000
    %v4002 = vpop.f32.mrb[0].mxu0
    %v4003 = vadd.f32 %v3716, %v4002
    %4004 = vmatprep.mubr.f32.mxu0 %v1669
    %4005 = vmatmul.mubr.f32.gmra.mrb[0].mxu0 %v1668
    %v4006 = vpop.f32.mrb[0].mxu0
    %v4007 = vadd.f32 %v3720, %v4006
    %v4008 = vpop.f32.mrb[0].mxu0
    %v4009 = vadd.f32 %v3722, %v4008
    %4010 = vmatprep.mubr.f32.mxu0 %v1677
    %4011 = vmatmul.mubr.f32.gmra.mrb[0].mxu0 %v1676
    %v4012 = vpop.f32.mrb[0].mxu0
    %v4013 = vadd.f32 %v3726, %v4012
    %v4014 = vpop.f32.mrb[0].mxu0
    %v4015 = vadd.f32 %v3728, %v4014
    %4016 = vmatprep.mubr.f32.mxu0 %v1685
    %4017 = vmatmul.mubr.f32.gmra.mrb[0].mxu0 %v1684
    %v4018 = vpop.f32.mrb[0].mxu0
    %v4019 = vadd.f32 %v3732, %v4018
    %v4020 = vpop.f32.mrb[0].mxu0
    %v4021 = vadd.f32 %v3734, %v4020
    %4022 = vmatprep.mubr.f32.mxu0 %v1693
    %4023 = vmatmul.mubr.f32.gmra.mrb[0].mxu0 %v1692
    %v4024 = vpop.f32.mrb[0].mxu0
    %v4025 = vadd.f32 %v3738, %v4024
    %v4026 = vpop.f32.mrb[0].mxu0
    %v4027 = vadd.f32 %v3740, %v4026
    %4028 = vmatprep.mubr.f32.mxu0 %v1701
    %4029 = vmatmul.mubr.f32.gmra.mrb[0].mxu0 %v1700
    %v4030 = vpop.f32.mrb[0].mxu0
    %v4031 = vadd.f32 %v3744, %v4030
    %v4032 = vpop.f32.mrb[0].mxu0
    %v4033 = vadd.f32 %v3746, %v4032
    %4034 = vmatprep.mubr.f32.mxu0 %v1709
    %4035 = vmatmul.mubr.f32.gmra.mrb[0].mxu0 %v1708
    %v4036 = vpop.f32.mrb[0].mxu0
    %v4037 = vadd.f32 %v3750, %v4036
    %v4038 = vpop.f32.mrb[0].mxu0
    %v4039 = vadd.f32 %v3752, %v4038
    %4040 = vmatprep.mubr.f32.mxu0 %v1717
    %4041 = vmatmul.mubr.f32.gmra.mrb[0].mxu0 %v1716
    %v4042 = vpop.f32.mrb[0].mxu0
    %v4043 = vadd.f32 %v3756, %v4042
    %v4044 = vpop.f32.mrb[0].mxu0
    %v4045 = vadd.f32 %v3758, %v4044
    %4046 = vmatprep.mubr.f32.mxu0 %v1725
    %4047 = vmatmul.mubr.f32.gmra.mrb[0].mxu0 %v1724
    %v4048 = vpop.f32.mrb[0].mxu0
    %v4049 = vadd.f32 %v3762, %v4048
    %v4050 = vpop.f32.mrb[0].mxu0
    %v4051 = vadd.f32 %v3764, %v4050
    %4052 = vmatprep.mubr.f32.mxu0 %v1733
    %4053 = vmatmul.mubr.f32.gmra.mrb[0].mxu0 %v1732
    %v4054 = vpop.f32.mrb[0].mxu0
    %v4055 = vadd.f32 %v3768, %v4054
    %v4056 = vpop.f32.mrb[0].mxu0
    %v4057 = vadd.f32 %v3770, %v4056
    %4058 = vmatprep.mubr.f32.mxu0 %v1741
    %4059 = vmatmul.mubr.f32.gmra.mrb[0].mxu0 %v1740
    %v4060 = vpop.f32.mrb[0].mxu0
    %v4061 = vadd.f32 %v3774, %v4060
    %v4062 = vpop.f32.mrb[0].mxu0
    %v4063 = vadd.f32 %v3776, %v4062
    %4064 = vmatprep.mubr.f32.mxu0 %v1749
    %4065 = vmatmul.mubr.f32.gmra.mrb[0].mxu0 %v1748
    %v4066 = vpop.f32.mrb[0].mxu0
    %v4067 = vadd.f32 %v3780, %v4066
    %v4068 = vpop.f32.mrb[0].mxu0
    %v4069 = vadd.f32 %v3782, %v4068
    %4070 = vmatprep.mubr.f32.mxu0 %v1757
    %4071 = vmatmul.mubr.f32.gmra.mrb[0].mxu0 %v1756
    %v4072 = vpop.f32.mrb[0].mxu0
    %v4073 = vadd.f32 %v3786, %v4072
    %v4074 = vpop.f32.mrb[0].mxu0
    %v4075 = vadd.f32 %v3788, %v4074
    %4076 = vmatprep.mubr.f32.mxu0 %v1765
    %4077 = vmatmul.mubr.f32.gmra.mrb[0].mxu0 %v1764
    %v4078 = vpop.f32.mrb[0].mxu0
    %v4079 = vadd.f32 %v3792, %v4078
    %v4080 = vpop.f32.mrb[0].mxu0
    %v4081 = vadd.f32 %v3794, %v4080
    %4082 = vmatprep.mubr.f32.mxu0 %v1773
    %4083 = vmatmul.mubr.f32.gmra.mrb[0].mxu0 %v1772
    %v4084 = vpop.f32.mrb[0].mxu0
    %v4085 = vadd.f32 %v3798, %v4084
    %v4086 = vpop.f32.mrb[0].mxu0
    %v4087 = vadd.f32 %v3800, %v4086
    %4088 = vmatprep.mubr.f32.mxu0 %v1781
    %4089 = vmatmul.mubr.f32.gmra.mrb[0].mxu0 %v1780
    %v4090 = vpop.f32.mrb[0].mxu0
    %v4091 = vadd.f32 %v3804, %v4090
    %v4092 = vpop.f32.mrb[0].mxu0
    %v4093 = vadd.f32 %v3806, %v4092
    %4094 = vmatprep.mubr.f32.mxu0 %v1789
    %4095 = vmatmul.mubr.f32.gmra.mrb[0].mxu0 %v1788
    %v4096 = vpop.f32.mrb[0].mxu0
    %v4097 = vadd.f32 %v3810, %v4096
    %v4098 = vpop.f32.mrb[0].mxu0
    %v4099 = vadd.f32 %v3812, %v4098
    %4100 = vmatprep.mubr.f32.mxu0 %v1797
    %4101 = vmatmul.mubr.f32.gmra.mrb[0].mxu0 %v1796
    %v4102 = vpop.f32.mrb[0].mxu0
    %v4103 = vadd.f32 %v3816, %v4102
    %v4104 = vpop.f32.mrb[0].mxu0
    %v4105 = vadd.f32 %v3818, %v4104
    %4106 = vmatprep.mubr.f32.mxu0 %v1805
    %4107 = vmatmul.mubr.f32.gmra.mrb[0].mxu0 %v1804
    %v4108 = vpop.f32.mrb[0].mxu0
    %v4109 = vadd.f32 %v3822, %v4108
    %v4110 = vpop.f32.mrb[0].mxu0
    %v4111 = vadd.f32 %v3824, %v4110
    %4112 = vmatprep.mubr.f32.mxu0 %v1813
    %4113 = vmatmul.mubr.f32.gmra.mrb[0].mxu0 %v1812
    %v4114 = vpop.f32.mrb[0].mxu0
    %v4115 = vadd.f32 %v3828, %v4114
    %v4116 = vpop.f32.mrb[0].mxu0
    %v4117 = vadd.f32 %v3830, %v4116
    %4118 = vmatprep.mubr.f32.mxu0 %v1821
    %4119 = vmatmul.mubr.f32.gmra.mrb[0].mxu0 %v1820
    %v4120 = vpop.f32.mrb[0].mxu0
    %v4121 = vadd.f32 %v3834, %v4120
    %v4122 = vpop.f32.mrb[0].mxu0
    %v4123 = vadd.f32 %v3836, %v4122
    %4124 = vdwg.mxu0
    %4125 = vmatprep.subr.mxu0 %v2085
    %4126 = vmatpush1.msra.mxu0 %v2084
    %4127 = vmatprep.subr.mxu0 %v2089
    %4128 = vmatpush1.msra.mxu0 %v2088
    %4129 = vmatprep.subr.mxu0 %v2093
    %4130 = vmatpush1.msra.mxu0 %v2092
    %4131 = vmatprep.subr.mxu0 %v2097
    %4132 = vmatpush1.msra.mxu0 %v2096
    %4133 = vmatprep.subr.mxu0 %v2101
    %4134 = vmatpush1.msra.mxu0 %v2100
    %4135 = vmatprep.subr.mxu0 %v2105
    %4136 = vmatpush1.msra.mxu0 %v2104
    %4137 = vmatprep.subr.mxu0 %v2109
    %4138 = vmatpush1.msra.mxu0 %v2108
    %4139 = vmatprep.subr.mxu0 %v2113
    %4140 = vmatpush1.msra.mxu0 %v2112
    %4141 = vmatprep.subr.mxu0 %v2117
    %4142 = vmatpush1.msra.mxu0 %v2116
    %4143 = vmatprep.subr.mxu0 %v2121
    %4144 = vmatpush1.msra.mxu0 %v2120
    %4145 = vmatprep.subr.mxu0 %v2125
    %4146 = vmatpush1.msra.mxu0 %v2124
    %4147 = vmatprep.subr.mxu0 %v2129
    %4148 = vmatpush1.msra.mxu0 %v2128
    %4149 = vmatprep.subr.mxu0 %v2133
    %4150 = vmatpush1.msra.mxu0 %v2132
    %4151 = vmatprep.subr.mxu0 %v2137
    %4152 = vmatpush1.msra.mxu0 %v2136
    %4153 = vmatprep.subr.mxu0 %v2141
    %4154 = vmatpush1.msra.mxu0 %v2140
    %4155 = vmatprep.subr.mxu0 %v2145
    %4156 = vmatpush1.msra.mxu0 %v2144
    %4157 = vmatprep.subr.mxu0 %v2149
    %4158 = vmatpush1.msra.mxu0 %v2148
    %4159 = vmatprep.subr.mxu0 %v2153
    %4160 = vmatpush1.msra.mxu0 %v2152
    %4161 = vmatprep.subr.mxu0 %v2157
    %4162 = vmatpush1.msra.mxu0 %v2156
    %4163 = vmatprep.subr.mxu0 %v2161
    %4164 = vmatpush1.msra.mxu0 %v2160
    %4165 = vmatprep.subr.mxu0 %v2165
    %4166 = vmatpush1.msra.mxu0 %v2164
    %4167 = vmatprep.subr.mxu0 %v2169
    %4168 = vmatpush1.msra.mxu0 %v2168
    %4169 = vmatprep.subr.mxu0 %v2173
    %4170 = vmatpush1.msra.mxu0 %v2172
    %4171 = vmatprep.subr.mxu0 %v2177
    %4172 = vmatpush1.msra.mxu0 %v2176
    %4173 = vmatprep.subr.mxu0 %v2181
    %4174 = vmatpush1.msra.mxu0 %v2180
    %4175 = vmatprep.subr.mxu0 %v2185
    %4176 = vmatpush1.msra.mxu0 %v2184
    %4177 = vmatprep.subr.mxu0 %v2189
    %4178 = vmatpush1.msra.mxu0 %v2188
    %4179 = vmatprep.subr.mxu0 %v2193
    %4180 = vmatpush1.msra.mxu0 %v2192
    %4181 = vmatprep.subr.mxu0 %v2197
    %4182 = vmatpush1.msra.mxu0 %v2196
    %4183 = vmatprep.subr.mxu0 %v2201
    %4184 = vmatpush1.msra.mxu0 %v2200
    %4185 = vmatprep.subr.mxu0 %v2205
    %4186 = vmatpush1.msra.mxu0 %v2204
    %4187 = vmatprep.subr.mxu0 %v2209
    %4188 = vmatpush1.msra.mxu0 %v2208
    %4189 = vmatprep.mubr.f32.mxu0 %v1535
    %4190 = vmatmul.mubr.f32.gmra.mrb[0].mxu0 %v1534
    %v4191 = vpop.f32.mrb[0].mxu0
    %v4192 = vadd.f32 %v3905, %v4191
    %v4193 = vpop.f32.mrb[0].mxu0
    %v4194 = vadd.f32 %v3907, %v4193
    %4195 = vmatprep.mubr.f32.mxu0 %v1543
    %4196 = vmatmul.mubr.f32.gmra.mrb[0].mxu0 %v1542
    %v4197 = vpop.f32.mrb[0].mxu0
    %v4198 = vadd.f32 %v3911, %v4197
    %v4199 = vpop.f32.mrb[0].mxu0
    %v4200 = vadd.f32 %v3913, %v4199
    %4201 = vmatprep.mubr.f32.mxu0 %v1551
    %4202 = vmatmul.mubr.f32.gmra.mrb[0].mxu0 %v1550
    %v4203 = vpop.f32.mrb[0].mxu0
    %v4204 = vadd.f32 %v3917, %v4203
    %v4205 = vpop.f32.mrb[0].mxu0
    %v4206 = vadd.f32 %v3919, %v4205
    %4207 = vmatprep.mubr.f32.mxu0 %v1559
    %4208 = vmatmul.mubr.f32.gmra.mrb[0].mxu0 %v1558
    %v4209 = vpop.f32.mrb[0].mxu0
    %v4210 = vadd.f32 %v3923, %v4209
    %v4211 = vpop.f32.mrb[0].mxu0
    %v4212 = vadd.f32 %v3925, %v4211
    %4213 = vmatprep.mubr.f32.mxu0 %v1567
    %4214 = vmatmul.mubr.f32.gmra.mrb[0].mxu0 %v1566
    %v4215 = vpop.f32.mrb[0].mxu0
    %v4216 = vadd.f32 %v3929, %v4215
    %v4217 = vpop.f32.mrb[0].mxu0
    %v4218 = vadd.f32 %v3931, %v4217
    %4219 = vmatprep.mubr.f32.mxu0 %v1575
    %4220 = vmatmul.mubr.f32.gmra.mrb[0].mxu0 %v1574
    %v4221 = vpop.f32.mrb[0].mxu0
    %v4222 = vadd.f32 %v3935, %v4221
    %v4223 = vpop.f32.mrb[0].mxu0
    %v4224 = vadd.f32 %v3937, %v4223
    %4225 = vmatprep.mubr.f32.mxu0 %v1583
    %4226 = vmatmul.mubr.f32.gmra.mrb[0].mxu0 %v1582
    %v4227 = vpop.f32.mrb[0].mxu0
    %v4228 = vadd.f32 %v3941, %v4227
    %v4229 = vpop.f32.mrb[0].mxu0
    %v4230 = vadd.f32 %v3943, %v4229
    %4231 = vmatprep.mubr.f32.mxu0 %v1591
    %4232 = vmatmul.mubr.f32.gmra.mrb[0].mxu0 %v1590
    %v4233 = vpop.f32.mrb[0].mxu0
    %v4234 = vadd.f32 %v3947, %v4233
    %v4235 = vpop.f32.mrb[0].mxu0
    %v4236 = vadd.f32 %v3949, %v4235
    %4237 = vmatprep.mubr.f32.mxu0 %v1599
    %4238 = vmatmul.mubr.f32.gmra.mrb[0].mxu0 %v1598
    %v4239 = vpop.f32.mrb[0].mxu0
    %v4240 = vadd.f32 %v3953, %v4239
    %v4241 = vpop.f32.mrb[0].mxu0
    %v4242 = vadd.f32 %v3955, %v4241
    %4243 = vmatprep.mubr.f32.mxu0 %v1607
    %4244 = vmatmul.mubr.f32.gmra.mrb[0].mxu0 %v1606
    %v4245 = vpop.f32.mrb[0].mxu0
    %v4246 = vadd.f32 %v3959, %v4245
    %v4247 = vpop.f32.mrb[0].mxu0
    %v4248 = vadd.f32 %v3961, %v4247
    %4249 = vmatprep.mubr.f32.mxu0 %v1615
    %4250 = vmatmul.mubr.f32.gmra.mrb[0].mxu0 %v1614
    %v4251 = vpop.f32.mrb[0].mxu0
    %v4252 = vadd.f32 %v3965, %v4251
    %v4253 = vpop.f32.mrb[0].mxu0
    %v4254 = vadd.f32 %v3967, %v4253
    %4255 = vmatprep.mubr.f32.mxu0 %v1623
    %4256 = vmatmul.mubr.f32.gmra.mrb[0].mxu0 %v1622
    %v4257 = vpop.f32.mrb[0].mxu0
    %v4258 = vadd.f32 %v3971, %v4257
    %v4259 = vpop.f32.mrb[0].mxu0
    %v4260 = vadd.f32 %v3973, %v4259
    %4261 = vmatprep.mubr.f32.mxu0 %v1631
    %4262 = vmatmul.mubr.f32.gmra.mrb[0].mxu0 %v1630
    %v4263 = vpop.f32.mrb[0].mxu0
    %v4264 = vadd.f32 %v3977, %v4263
    %v4265 = vpop.f32.mrb[0].mxu0
    %v4266 = vadd.f32 %v3979, %v4265
    %4267 = vmatprep.mubr.f32.mxu0 %v1639
    %4268 = vmatmul.mubr.f32.gmra.mrb[0].mxu0 %v1638
    %v4269 = vpop.f32.mrb[0].mxu0
    %v4270 = vadd.f32 %v3983, %v4269
    %v4271 = vpop.f32.mrb[0].mxu0
    %v4272 = vadd.f32 %v3985, %v4271
    %4273 = vmatprep.mubr.f32.mxu0 %v1647
    %4274 = vmatmul.mubr.f32.gmra.mrb[0].mxu0 %v1646
    %v4275 = vpop.f32.mrb[0].mxu0
    %v4276 = vadd.f32 %v3989, %v4275
    %v4277 = vpop.f32.mrb[0].mxu0
    %v4278 = vadd.f32 %v3991, %v4277
    %4279 = vmatprep.mubr.f32.mxu0 %v1655
    %4280 = vmatmul.mubr.f32.gmra.mrb[0].mxu0 %v1654
    %v4281 = vpop.f32.mrb[0].mxu0
    %v4282 = vadd.f32 %v3995, %v4281
    %v4283 = vpop.f32.mrb[0].mxu0
    %v4284 = vadd.f32 %v3997, %v4283
    %4285 = vmatprep.mubr.f32.mxu0 %v1663
    %4286 = vmatmul.mubr.f32.gmra.mrb[0].mxu0 %v1662
    %v4287 = vpop.f32.mrb[0].mxu0
    %v4288 = vadd.f32 %v4001, %v4287
    %v4289 = vpop.f32.mrb[0].mxu0
    %v4290 = vadd.f32 %v4003, %v4289
    %4291 = vmatprep.mubr.f32.mxu0 %v1671
    %4292 = vmatmul.mubr.f32.gmra.mrb[0].mxu0 %v1670
    %v4293 = vpop.f32.mrb[0].mxu0
    %v4294 = vadd.f32 %v4007, %v4293
    %v4295 = vpop.f32.mrb[0].mxu0
    %v4296 = vadd.f32 %v4009, %v4295
    %4297 = vmatprep.mubr.f32.mxu0 %v1679
    %4298 = vmatmul.mubr.f32.gmra.mrb[0].mxu0 %v1678
    %v4299 = vpop.f32.mrb[0].mxu0
    %v4300 = vadd.f32 %v4013, %v4299
    %v4301 = vpop.f32.mrb[0].mxu0
    %v4302 = vadd.f32 %v4015, %v4301
    %4303 = vmatprep.mubr.f32.mxu0 %v1687
    %4304 = vmatmul.mubr.f32.gmra.mrb[0].mxu0 %v1686
    %v4305 = vpop.f32.mrb[0].mxu0
    %v4306 = vadd.f32 %v4019, %v4305
    %v4307 = vpop.f32.mrb[0].mxu0
    %v4308 = vadd.f32 %v4021, %v4307
    %4309 = vmatprep.mubr.f32.mxu0 %v1695
    %4310 = vmatmul.mubr.f32.gmra.mrb[0].mxu0 %v1694
    %v4311 = vpop.f32.mrb[0].mxu0
    %v4312 = vadd.f32 %v4025, %v4311
    %v4313 = vpop.f32.mrb[0].mxu0
    %v4314 = vadd.f32 %v4027, %v4313
    %4315 = vmatprep.mubr.f32.mxu0 %v1703
    %4316 = vmatmul.mubr.f32.gmra.mrb[0].mxu0 %v1702
    %v4317 = vpop.f32.mrb[0].mxu0
    %v4318 = vadd.f32 %v4031, %v4317
    %v4319 = vpop.f32.mrb[0].mxu0
    %v4320 = vadd.f32 %v4033, %v4319
    %4321 = vmatprep.mubr.f32.mxu0 %v1711
    %4322 = vmatmul.mubr.f32.gmra.mrb[0].mxu0 %v1710
    %v4323 = vpop.f32.mrb[0].mxu0
    %v4324 = vadd.f32 %v4037, %v4323
    %v4325 = vpop.f32.mrb[0].mxu0
    %v4326 = vadd.f32 %v4039, %v4325
    %4327 = vmatprep.mubr.f32.mxu0 %v1719
    %4328 = vmatmul.mubr.f32.gmra.mrb[0].mxu0 %v1718
    %v4329 = vpop.f32.mrb[0].mxu0
    %v4330 = vadd.f32 %v4043, %v4329
    %v4331 = vpop.f32.mrb[0].mxu0
    %v4332 = vadd.f32 %v4045, %v4331
    %4333 = vmatprep.mubr.f32.mxu0 %v1727
    %4334 = vmatmul.mubr.f32.gmra.mrb[0].mxu0 %v1726
    %v4335 = vpop.f32.mrb[0].mxu0
    %v4336 = vadd.f32 %v4049, %v4335
    %v4337 = vpop.f32.mrb[0].mxu0
    %v4338 = vadd.f32 %v4051, %v4337
    %4339 = vmatprep.mubr.f32.mxu0 %v1735
    %4340 = vmatmul.mubr.f32.gmra.mrb[0].mxu0 %v1734
    %v4341 = vpop.f32.mrb[0].mxu0
    %v4342 = vadd.f32 %v4055, %v4341
    %v4343 = vpop.f32.mrb[0].mxu0
    %v4344 = vadd.f32 %v4057, %v4343
    %4345 = vmatprep.mubr.f32.mxu0 %v1743
    %4346 = vmatmul.mubr.f32.gmra.mrb[0].mxu0 %v1742
    %v4347 = vpop.f32.mrb[0].mxu0
    %v4348 = vadd.f32 %v4061, %v4347
    %v4349 = vpop.f32.mrb[0].mxu0
    %v4350 = vadd.f32 %v4063, %v4349
    %4351 = vmatprep.mubr.f32.mxu0 %v1751
    %4352 = vmatmul.mubr.f32.gmra.mrb[0].mxu0 %v1750
    %v4353 = vpop.f32.mrb[0].mxu0
    %v4354 = vadd.f32 %v4067, %v4353
    %v4355 = vpop.f32.mrb[0].mxu0
    %v4356 = vadd.f32 %v4069, %v4355
    %4357 = vmatprep.mubr.f32.mxu0 %v1759
    %4358 = vmatmul.mubr.f32.gmra.mrb[0].mxu0 %v1758
    %v4359 = vpop.f32.mrb[0].mxu0
    %v4360 = vadd.f32 %v4073, %v4359
    %v4361 = vpop.f32.mrb[0].mxu0
    %v4362 = vadd.f32 %v4075, %v4361
    %4363 = vmatprep.mubr.f32.mxu0 %v1767
    %4364 = vmatmul.mubr.f32.gmra.mrb[0].mxu0 %v1766
    %v4365 = vpop.f32.mrb[0].mxu0
    %v4366 = vadd.f32 %v4079, %v4365
    %v4367 = vpop.f32.mrb[0].mxu0
    %v4368 = vadd.f32 %v4081, %v4367
    %4369 = vmatprep.mubr.f32.mxu0 %v1775
    %4370 = vmatmul.mubr.f32.gmra.mrb[0].mxu0 %v1774
    %v4371 = vpop.f32.mrb[0].mxu0
    %v4372 = vadd.f32 %v4085, %v4371
    %v4373 = vpop.f32.mrb[0].mxu0
    %v4374 = vadd.f32 %v4087, %v4373
    %4375 = vmatprep.mubr.f32.mxu0 %v1783
    %4376 = vmatmul.mubr.f32.gmra.mrb[0].mxu0 %v1782
    %v4377 = vpop.f32.mrb[0].mxu0
    %v4378 = vadd.f32 %v4091, %v4377
    %v4379 = vpop.f32.mrb[0].mxu0
    %v4380 = vadd.f32 %v4093, %v4379
    %4381 = vmatprep.mubr.f32.mxu0 %v1791
    %4382 = vmatmul.mubr.f32.gmra.mrb[0].mxu0 %v1790
    %v4383 = vpop.f32.mrb[0].mxu0
    %v4384 = vadd.f32 %v4097, %v4383
    %v4385 = vpop.f32.mrb[0].mxu0
    %v4386 = vadd.f32 %v4099, %v4385
    %4387 = vmatprep.mubr.f32.mxu0 %v1799
    %4388 = vmatmul.mubr.f32.gmra.mrb[0].mxu0 %v1798
    %v4389 = vpop.f32.mrb[0].mxu0
    %v4390 = vadd.f32 %v4103, %v4389
    %v4391 = vpop.f32.mrb[0].mxu0
    %v4392 = vadd.f32 %v4105, %v4391
    %4393 = vmatprep.mubr.f32.mxu0 %v1807
    %4394 = vmatmul.mubr.f32.gmra.mrb[0].mxu0 %v1806
    %v4395 = vpop.f32.mrb[0].mxu0
    %v4396 = vadd.f32 %v4109, %v4395
    %v4397 = vpop.f32.mrb[0].mxu0
    %v4398 = vadd.f32 %v4111, %v4397
    %4399 = vmatprep.mubr.f32.mxu0 %v1815
    %4400 = vmatmul.mubr.f32.gmra.mrb[0].mxu0 %v1814
    %v4401 = vpop.f32.mrb[0].mxu0
    %v4402 = vadd.f32 %v4115, %v4401
    %v4403 = vpop.f32.mrb[0].mxu0
    %v4404 = vadd.f32 %v4117, %v4403
    %4405 = vmatprep.mubr.f32.mxu0 %v1823
    %4406 = vmatmul.mubr.f32.gmra.mrb[0].mxu0 %v1822
    %v4407 = vpop.f32.mrb[0].mxu0
    %v4408 = vadd.f32 %v4121, %v4407
    %v4409 = vpop.f32.mrb[0].mxu0
    %v4410 = vadd.f32 %v4123, %v4409
    %4411 = vdwg.mxu0
    %4412 = vmatprep.subr.mxu0 %v2213
    %4413 = vmatpush1.msra.mxu0 %v2212
    %4414 = vmatprep.subr.mxu0 %v2217
    %4415 = vmatpush1.msra.mxu0 %v2216
    %4416 = vmatprep.subr.mxu0 %v2221
    %4417 = vmatpush1.msra.mxu0 %v2220
    %4418 = vmatprep.subr.mxu0 %v2225
    %4419 = vmatpush1.msra.mxu0 %v2224
    %4420 = vmatprep.subr.mxu0 %v2229
    %4421 = vmatpush1.msra.mxu0 %v2228
    %4422 = vmatprep.subr.mxu0 %v2233
    %4423 = vmatpush1.msra.mxu0 %v2232
    %4424 = vmatprep.subr.mxu0 %v2237
    %4425 = vmatpush1.msra.mxu0 %v2236
    %4426 = vmatprep.subr.mxu0 %v2241
    %4427 = vmatpush1.msra.mxu0 %v2240
    %4428 = vmatprep.subr.mxu0 %v2245
    %4429 = vmatpush1.msra.mxu0 %v2244
    %4430 = vmatprep.subr.mxu0 %v2249
    %4431 = vmatpush1.msra.mxu0 %v2248
    %4432 = vmatprep.subr.mxu0 %v2253
    %4433 = vmatpush1.msra.mxu0 %v2252
    %4434 = vmatprep.subr.mxu0 %v2257
    %4435 = vmatpush1.msra.mxu0 %v2256
    %4436 = vmatprep.subr.mxu0 %v2261
    %4437 = vmatpush1.msra.mxu0 %v2260
    %4438 = vmatprep.subr.mxu0 %v2265
    %4439 = vmatpush1.msra.mxu0 %v2264
    %4440 = vmatprep.subr.mxu0 %v2269
    %4441 = vmatpush1.msra.mxu0 %v2268
    %4442 = vmatprep.subr.mxu0 %v2273
    %4443 = vmatpush1.msra.mxu0 %v2272
    %4444 = vmatprep.subr.mxu0 %v2401
    %4445 = vmatpush1.msra.mxu0 %v2398
    %4446 = vmatprep.subr.mxu0 0.0
    %4447 = vmatpush1.msra.mxu0 0.0
    %4448 = vmatprep.subr.mxu0 0.0
    %4449 = vmatpush1.msra.mxu0 0.0
    %4450 = vmatprep.subr.mxu0 0.0
    %4451 = vmatpush1.msra.mxu0 0.0
    %4452 = vmatprep.subr.mxu0 0.0
    %4453 = vmatpush1.msra.mxu0 0.0
    %4454 = vmatprep.subr.mxu0 0.0
    %4455 = vmatpush1.msra.mxu0 0.0
    %4456 = vmatprep.subr.mxu0 0.0
    %4457 = vmatpush1.msra.mxu0 0.0
    %4458 = vmatprep.subr.mxu0 0.0
    %4459 = vmatpush1.msra.mxu0 0.0
    %4460 = vmatprep.subr.mxu0 0.0
    %4461 = vmatpush1.msra.mxu0 0.0
    %4462 = vmatprep.subr.mxu0 0.0
    %4463 = vmatpush1.msra.mxu0 0.0
    %4464 = vmatprep.subr.mxu0 0.0
    %4465 = vmatpush1.msra.mxu0 0.0
    %4466 = vmatprep.subr.mxu0 0.0
    %4467 = vmatpush1.msra.mxu0 0.0
    %4468 = vmatprep.subr.mxu0 0.0
    %4469 = vmatpush1.msra.mxu0 0.0
    %4470 = vmatprep.subr.mxu0 0.0
    %4471 = vmatpush1.msra.mxu0 0.0
    %4472 = vmatprep.subr.mxu0 0.0
    %4473 = vmatpush1.msra.mxu0 0.0
    %4474 = vmatprep.subr.mxu0 0.0
    %4475 = vmatpush1.msra.mxu0 0.0
    %4476 = vmatprep.mubr.f32.mxu0 %v2280
    %4477 = vmatmul.mubr.f32.gmra.mrb[0].mxu0 %v1536
    %v4478 = vpop.f32.mrb[0].mxu0
    %v4479 = vadd.f32 %v4192, %v4478
    %v4480 = vpop.f32.mrb[0].mxu0
    %v4481 = vadd.f32 %v4194, %v4480
    %4482 = vmatprep.mubr.f32.mxu0 %v2283
    %4483 = vmatmul.mubr.f32.gmra.mrb[0].mxu0 %v1544
    %v4484 = vpop.f32.mrb[0].mxu0
    %v4485 = vadd.f32 %v4198, %v4484
    %v4486 = vpop.f32.mrb[0].mxu0
    %v4487 = vadd.f32 %v4200, %v4486
    %4488 = vmatprep.mubr.f32.mxu0 %v2286
    %4489 = vmatmul.mubr.f32.gmra.mrb[0].mxu0 %v1552
    %v4490 = vpop.f32.mrb[0].mxu0
    %v4491 = vadd.f32 %v4204, %v4490
    %v4492 = vpop.f32.mrb[0].mxu0
    %v4493 = vadd.f32 %v4206, %v4492
    %4494 = vmatprep.mubr.f32.mxu0 %v2289
    %4495 = vmatmul.mubr.f32.gmra.mrb[0].mxu0 %v1560
    %v4496 = vpop.f32.mrb[0].mxu0
    %v4497 = vadd.f32 %v4210, %v4496
    %v4498 = vpop.f32.mrb[0].mxu0
    %v4499 = vadd.f32 %v4212, %v4498
    %4500 = vmatprep.mubr.f32.mxu0 %v2292
    %4501 = vmatmul.mubr.f32.gmra.mrb[0].mxu0 %v1568
    %v4502 = vpop.f32.mrb[0].mxu0
    %v4503 = vadd.f32 %v4216, %v4502
    %v4504 = vpop.f32.mrb[0].mxu0
    %v4505 = vadd.f32 %v4218, %v4504
    %4506 = vmatprep.mubr.f32.mxu0 %v2295
    %4507 = vmatmul.mubr.f32.gmra.mrb[0].mxu0 %v1576
    %v4508 = vpop.f32.mrb[0].mxu0
    %v4509 = vadd.f32 %v4222, %v4508
    %v4510 = vpop.f32.mrb[0].mxu0
    %v4511 = vadd.f32 %v4224, %v4510
    %4512 = vmatprep.mubr.f32.mxu0 %v2298
    %4513 = vmatmul.mubr.f32.gmra.mrb[0].mxu0 %v1584
    %v4514 = vpop.f32.mrb[0].mxu0
    %v4515 = vadd.f32 %v4228, %v4514
    %v4516 = vpop.f32.mrb[0].mxu0
    %v4517 = vadd.f32 %v4230, %v4516
    %4518 = vmatprep.mubr.f32.mxu0 %v2301
    %4519 = vmatmul.mubr.f32.gmra.mrb[0].mxu0 %v1592
    %v4520 = vpop.f32.mrb[0].mxu0
    %v4521 = vadd.f32 %v4234, %v4520
    %v4522 = vpop.f32.mrb[0].mxu0
    %v4523 = vadd.f32 %v4236, %v4522
    %4524 = vmatprep.mubr.f32.mxu0 %v2304
    %4525 = vmatmul.mubr.f32.gmra.mrb[0].mxu0 %v1600
    %v4526 = vpop.f32.mrb[0].mxu0
    %v4527 = vadd.f32 %v4240, %v4526
    %v4528 = vpop.f32.mrb[0].mxu0
    %v4529 = vadd.f32 %v4242, %v4528
    %4530 = vmatprep.mubr.f32.mxu0 %v2307
    %4531 = vmatmul.mubr.f32.gmra.mrb[0].mxu0 %v1608
    %v4532 = vpop.f32.mrb[0].mxu0
    %v4533 = vadd.f32 %v4246, %v4532
    %v4534 = vpop.f32.mrb[0].mxu0
    %v4535 = vadd.f32 %v4248, %v4534
    %4536 = vmatprep.mubr.f32.mxu0 %v2310
    %4537 = vmatmul.mubr.f32.gmra.mrb[0].mxu0 %v1616
    %v4538 = vpop.f32.mrb[0].mxu0
    %v4539 = vadd.f32 %v4252, %v4538
    %v4540 = vpop.f32.mrb[0].mxu0
    %v4541 = vadd.f32 %v4254, %v4540
    %4542 = vmatprep.mubr.f32.mxu0 %v2313
    %4543 = vmatmul.mubr.f32.gmra.mrb[0].mxu0 %v1624
    %v4544 = vpop.f32.mrb[0].mxu0
    %v4545 = vadd.f32 %v4258, %v4544
    %v4546 = vpop.f32.mrb[0].mxu0
    %v4547 = vadd.f32 %v4260, %v4546
    %4548 = vmatprep.mubr.f32.mxu0 %v2316
    %4549 = vmatmul.mubr.f32.gmra.mrb[0].mxu0 %v1632
    %v4550 = vpop.f32.mrb[0].mxu0
    %v4551 = vadd.f32 %v4264, %v4550
    %v4552 = vpop.f32.mrb[0].mxu0
    %v4553 = vadd.f32 %v4266, %v4552
    %4554 = vmatprep.mubr.f32.mxu0 %v2319
    %4555 = vmatmul.mubr.f32.gmra.mrb[0].mxu0 %v1640
    %v4556 = vpop.f32.mrb[0].mxu0
    %v4557 = vadd.f32 %v4270, %v4556
    %v4558 = vpop.f32.mrb[0].mxu0
    %v4559 = vadd.f32 %v4272, %v4558
    %4560 = vmatprep.mubr.f32.mxu0 %v2322
    %4561 = vmatmul.mubr.f32.gmra.mrb[0].mxu0 %v1648
    %v4562 = vpop.f32.mrb[0].mxu0
    %v4563 = vadd.f32 %v4276, %v4562
    %v4564 = vpop.f32.mrb[0].mxu0
    %v4565 = vadd.f32 %v4278, %v4564
    %4566 = vmatprep.mubr.f32.mxu0 %v2325
    %4567 = vmatmul.mubr.f32.gmra.mrb[0].mxu0 %v1656
    %v4568 = vpop.f32.mrb[0].mxu0
    %v4569 = vadd.f32 %v4282, %v4568
    %v4570 = vpop.f32.mrb[0].mxu0
    %v4571 = vadd.f32 %v4284, %v4570
    %4572 = vmatprep.mubr.f32.mxu0 %v2328
    %4573 = vmatmul.mubr.f32.gmra.mrb[0].mxu0 %v1664
    %v4574 = vpop.f32.mrb[0].mxu0
    %v4575 = vadd.f32 %v4288, %v4574
    %v4576 = vpop.f32.mrb[0].mxu0
    %v4577 = vadd.f32 %v4290, %v4576
    %4578 = vmatprep.mubr.f32.mxu0 %v2331
    %4579 = vmatmul.mubr.f32.gmra.mrb[0].mxu0 %v1672
    %v4580 = vpop.f32.mrb[0].mxu0
    %v4581 = vadd.f32 %v4294, %v4580
    %v4582 = vpop.f32.mrb[0].mxu0
    %v4583 = vadd.f32 %v4296, %v4582
    %4584 = vmatprep.mubr.f32.mxu0 %v2334
    %4585 = vmatmul.mubr.f32.gmra.mrb[0].mxu0 %v1680
    %v4586 = vpop.f32.mrb[0].mxu0
    %v4587 = vadd.f32 %v4300, %v4586
    %v4588 = vpop.f32.mrb[0].mxu0
    %v4589 = vadd.f32 %v4302, %v4588
    %4590 = vmatprep.mubr.f32.mxu0 %v2337
    %4591 = vmatmul.mubr.f32.gmra.mrb[0].mxu0 %v1688
    %v4592 = vpop.f32.mrb[0].mxu0
    %v4593 = vadd.f32 %v4306, %v4592
    %v4594 = vpop.f32.mrb[0].mxu0
    %v4595 = vadd.f32 %v4308, %v4594
    %4596 = vmatprep.mubr.f32.mxu0 %v2340
    %4597 = vmatmul.mubr.f32.gmra.mrb[0].mxu0 %v1696
    %v4598 = vpop.f32.mrb[0].mxu0
    %v4599 = vadd.f32 %v4312, %v4598
    %v4600 = vpop.f32.mrb[0].mxu0
    %v4601 = vadd.f32 %v4314, %v4600
    %4602 = vmatprep.mubr.f32.mxu0 %v2343
    %4603 = vmatmul.mubr.f32.gmra.mrb[0].mxu0 %v1704
    %v4604 = vpop.f32.mrb[0].mxu0
    %v4605 = vadd.f32 %v4318, %v4604
    %v4606 = vpop.f32.mrb[0].mxu0
    %v4607 = vadd.f32 %v4320, %v4606
    %4608 = vmatprep.mubr.f32.mxu0 %v2346
    %4609 = vmatmul.mubr.f32.gmra.mrb[0].mxu0 %v1712
    %v4610 = vpop.f32.mrb[0].mxu0
    %v4611 = vadd.f32 %v4324, %v4610
    %v4612 = vpop.f32.mrb[0].mxu0
    %v4613 = vadd.f32 %v4326, %v4612
    %4614 = vmatprep.mubr.f32.mxu0 %v2349
    %4615 = vmatmul.mubr.f32.gmra.mrb[0].mxu0 %v1720
    %v4616 = vpop.f32.mrb[0].mxu0
    %v4617 = vadd.f32 %v4330, %v4616
    %v4618 = vpop.f32.mrb[0].mxu0
    %v4619 = vadd.f32 %v4332, %v4618
    %4620 = vmatprep.mubr.f32.mxu0 %v2352
    %4621 = vmatmul.mubr.f32.gmra.mrb[0].mxu0 %v1728
    %v4622 = vpop.f32.mrb[0].mxu0
    %v4623 = vadd.f32 %v4336, %v4622
    %v4624 = vpop.f32.mrb[0].mxu0
    %v4625 = vadd.f32 %v4338, %v4624
    %4626 = vmatprep.mubr.f32.mxu0 %v2355
    %4627 = vmatmul.mubr.f32.gmra.mrb[0].mxu0 %v1736
    %v4628 = vpop.f32.mrb[0].mxu0
    %v4629 = vadd.f32 %v4342, %v4628
    %v4630 = vpop.f32.mrb[0].mxu0
    %v4631 = vadd.f32 %v4344, %v4630
    %4632 = vmatprep.mubr.f32.mxu0 %v2358
    %4633 = vmatmul.mubr.f32.gmra.mrb[0].mxu0 %v1744
    %v4634 = vpop.f32.mrb[0].mxu0
    %v4635 = vadd.f32 %v4348, %v4634
    %v4636 = vpop.f32.mrb[0].mxu0
    %v4637 = vadd.f32 %v4350, %v4636
    %4638 = vmatprep.mubr.f32.mxu0 %v2361
    %4639 = vmatmul.mubr.f32.gmra.mrb[0].mxu0 %v1752
    %v4640 = vpop.f32.mrb[0].mxu0
    %v4641 = vadd.f32 %v4354, %v4640
    %v4642 = vpop.f32.mrb[0].mxu0
    %v4643 = vadd.f32 %v4356, %v4642
    %4644 = vmatprep.mubr.f32.mxu0 %v2364
    %4645 = vmatmul.mubr.f32.gmra.mrb[0].mxu0 %v1760
    %v4646 = vpop.f32.mrb[0].mxu0
    %v4647 = vadd.f32 %v4360, %v4646
    %v4648 = vpop.f32.mrb[0].mxu0
    %v4649 = vadd.f32 %v4362, %v4648
    %4650 = vmatprep.mubr.f32.mxu0 %v2367
    %4651 = vmatmul.mubr.f32.gmra.mrb[0].mxu0 %v1768
    %v4652 = vpop.f32.mrb[0].mxu0
    %v4653 = vadd.f32 %v4366, %v4652
    %v4654 = vpop.f32.mrb[0].mxu0
    %v4655 = vadd.f32 %v4368, %v4654
    %4656 = vmatprep.mubr.f32.mxu0 %v2370
    %4657 = vmatmul.mubr.f32.gmra.mrb[0].mxu0 %v1776
    %v4658 = vpop.f32.mrb[0].mxu0
    %v4659 = vadd.f32 %v4372, %v4658
    %v4660 = vpop.f32.mrb[0].mxu0
    %v4661 = vadd.f32 %v4374, %v4660
    %4662 = vmatprep.mubr.f32.mxu0 %v2373
    %4663 = vmatmul.mubr.f32.gmra.mrb[0].mxu0 %v1784
    %v4664 = vpop.f32.mrb[0].mxu0
    %v4665 = vadd.f32 %v4378, %v4664
    %v4666 = vpop.f32.mrb[0].mxu0
    %v4667 = vadd.f32 %v4380, %v4666
    %4668 = vmatprep.mubr.f32.mxu0 %v2376
    %4669 = vmatmul.mubr.f32.gmra.mrb[0].mxu0 %v1792
    %v4670 = vpop.f32.mrb[0].mxu0
    %v4671 = vadd.f32 %v4384, %v4670
    %v4672 = vpop.f32.mrb[0].mxu0
    %v4673 = vadd.f32 %v4386, %v4672
    %4674 = vmatprep.mubr.f32.mxu0 %v2379
    %4675 = vmatmul.mubr.f32.gmra.mrb[0].mxu0 %v1800
    %v4676 = vpop.f32.mrb[0].mxu0
    %v4677 = vadd.f32 %v4390, %v4676
    %v4678 = vpop.f32.mrb[0].mxu0
    %v4679 = vadd.f32 %v4392, %v4678
    %4680 = vmatprep.mubr.f32.mxu0 %v2382
    %4681 = vmatmul.mubr.f32.gmra.mrb[0].mxu0 %v1808
    %v4682 = vpop.f32.mrb[0].mxu0
    %v4683 = vadd.f32 %v4396, %v4682
    %v4684 = vpop.f32.mrb[0].mxu0
    %v4685 = vadd.f32 %v4398, %v4684
    %4686 = vmatprep.mubr.f32.mxu0 %v2385
    %4687 = vmatmul.mubr.f32.gmra.mrb[0].mxu0 %v1816
    %v4688 = vpop.f32.mrb[0].mxu0
    %v4689 = vadd.f32 %v4402, %v4688
    %v4690 = vpop.f32.mrb[0].mxu0
    %v4691 = vadd.f32 %v4404, %v4690
    %4692 = vmatprep.mubr.f32.mxu0 %v2388
    %4693 = vmatmul.mubr.f32.gmra.mrb[0].mxu0 %v1824
    %v4694 = vpop.f32.mrb[0].mxu0
    %v4695 = vadd.f32 %v4408, %v4694
    %v4696 = vpop.f32.mrb[0].mxu0
    %v4697 = vadd.f32 %v4410, %v4696
    %4698 = vdwg.mxu0
    %v4699 = vmax.f32 %v3331, %v3333
    %v4700 = vmax.f32 %v3337, %v3339
    %v4701 = vmax.f32 %v3343, %v3345
    %v4702 = vmax.f32 %v3349, %v3351
    %v4703 = vmax.f32 %v3355, %v3357
    %v4704 = vmax.f32 %v3361, %v3363
    %v4705 = vmax.f32 %v3367, %v3369
    %v4706 = vmax.f32 %v3373, %v3375
    %v4707 = vmax.f32 %v3379, %v3381
    %v4708 = vmax.f32 %v3385, %v3387
    %v4709 = vmax.f32 %v3391, %v3393
    %v4710 = vmax.f32 %v3397, %v3399
    %v4711 = vmax.f32 %v3403, %v3405
    %v4712 = vmax.f32 %v3409, %v3411
    %v4713 = vmax.f32 %v3415, %v3417
    %v4714 = vmax.f32 %v3421, %v3423
    %v4715 = vmax.f32 %v3427, %v3429
    %v4716 = vmax.f32 %v3433, %v3435
    %v4717 = vmax.f32 %v3439, %v3441
    %v4718 = vmax.f32 %v3445, %v3447
    %v4719 = vmax.f32 %v3451, %v3453
    %v4720 = vmax.f32 %v3457, %v3459
    %v4721 = vmax.f32 %v3463, %v3465
    %v4722 = vmax.f32 %v3469, %v3471
    %v4723 = vmax.f32 %v3475, %v3477
    %v4724 = vmax.f32 %v3481, %v3483
    %v4725 = vmax.f32 %v3487, %v3489
    %v4726 = vmax.f32 %v3493, %v3495
    %v4727 = vmax.f32 %v3499, %v3501
    %v4728 = vmax.f32 %v3505, %v3507
    %v4729 = vmax.f32 %v3511, %v3513
    %v4730 = vmax.f32 %v3517, %v3519
    %v4731 = vmax.f32 %v3523, %v3525
    %v4732 = vmax.f32 %v3529, %v3531
    %v4733 = vmax.f32 %v3535, %v3537
    %v4734 = vmax.f32 %v3541, %v3543
    %v4735 = vmax.f32 %v3547, %v3549
    %v4736 = vmax.f32 %v4479, %v4481
    %v4737 = vmax.f32 %v4485, %v4487
    %v4738 = vmax.f32 %v4491, %v4493
    %v4739 = vmax.f32 %v4497, %v4499
    %v4740 = vmax.f32 %v4503, %v4505
    %v4741 = vmax.f32 %v4509, %v4511
    %v4742 = vmax.f32 %v4515, %v4517
    %v4743 = vmax.f32 %v4521, %v4523
    %v4744 = vmax.f32 %v4527, %v4529
    %v4745 = vmax.f32 %v4533, %v4535
    %v4746 = vmax.f32 %v4539, %v4541
    %v4747 = vmax.f32 %v4545, %v4547
    %v4748 = vmax.f32 %v4551, %v4553
    %v4749 = vmax.f32 %v4557, %v4559
    %v4750 = vmax.f32 %v4563, %v4565
    %v4751 = vmax.f32 %v4569, %v4571
    %v4752 = vmax.f32 %v4575, %v4577
    %v4753 = vmax.f32 %v4581, %v4583
    %v4754 = vmax.f32 %v4587, %v4589
    %v4755 = vmax.f32 %v4593, %v4595
    %v4756 = vmax.f32 %v4599, %v4601
    %v4757 = vmax.f32 %v4605, %v4607
    %v4758 = vmax.f32 %v4611, %v4613
    %v4759 = vmax.f32 %v4617, %v4619
    %v4760 = vmax.f32 %v4623, %v4625
    %v4761 = vmax.f32 %v4629, %v4631
    %v4762 = vmax.f32 %v4635, %v4637
    %v4763 = vmax.f32 %v4641, %v4643
    %v4764 = vmax.f32 %v4647, %v4649
    %v4765 = vmax.f32 %v4653, %v4655
    %v4766 = vmax.f32 %v4659, %v4661
    %v4767 = vmax.f32 %v4665, %v4667
    %v4768 = vmax.f32 %v4671, %v4673
    %v4769 = vmax.f32 %v4677, %v4679
    %v4770 = vmax.f32 %v4683, %v4685
    %v4771 = vmax.f32 %v4689, %v4691
    %v4772 = vmax.f32 %v4695, %v4697
    %v4773 = vmax.f32 %v4699, %v4736
    %v4774 = vmax.f32 %v4700, %v4737
    %v4775 = vmax.f32 %v4701, %v4738
    %v4776 = vmax.f32 %v4702, %v4739
    %v4777 = vmax.f32 %v4703, %v4740
    %v4778 = vmax.f32 %v4704, %v4741
    %v4779 = vmax.f32 %v4705, %v4742
    %v4780 = vmax.f32 %v4706, %v4743
    %v4781 = vmax.f32 %v4707, %v4744
    %v4782 = vmax.f32 %v4708, %v4745
    %v4783 = vmax.f32 %v4709, %v4746
    %v4784 = vmax.f32 %v4710, %v4747
    %v4785 = vmax.f32 %v4711, %v4748
    %v4786 = vmax.f32 %v4712, %v4749
    %v4787 = vmax.f32 %v4713, %v4750
    %v4788 = vmax.f32 %v4714, %v4751
    %v4789 = vmax.f32 %v4715, %v4752
    %v4790 = vmax.f32 %v4716, %v4753
    %v4791 = vmax.f32 %v4717, %v4754
    %v4792 = vmax.f32 %v4718, %v4755
    %v4793 = vmax.f32 %v4719, %v4756
    %v4794 = vmax.f32 %v4720, %v4757
    %v4795 = vmax.f32 %v4721, %v4758
    %v4796 = vmax.f32 %v4722, %v4759
    %v4797 = vmax.f32 %v4723, %v4760
    %v4798 = vmax.f32 %v4724, %v4761
    %v4799 = vmax.f32 %v4725, %v4762
    %v4800 = vmax.f32 %v4726, %v4763
    %v4801 = vmax.f32 %v4727, %v4764
    %v4802 = vmax.f32 %v4728, %v4765
    %v4803 = vmax.f32 %v4729, %v4766
    %v4804 = vmax.f32 %v4730, %v4767
    %v4805 = vmax.f32 %v4731, %v4768
    %v4806 = vmax.f32 %v4732, %v4769
    %v4807 = vmax.f32 %v4733, %v4770
    %v4808 = vmax.f32 %v4734, %v4771
    %v4809 = vmax.f32 %v4735, %v4772
    %v4810 = vld [vmem:[%s2] sm:$0x1]
    %v4812 = vlaneseq
    %v4813 = vshrl.u32 %v4812, 7
    %v4814 = vsub.s32 0, %v4813
    %v4815 = vrot.slane %v4810, %v4814
    %v4817 = vadd.f32 %v4773, %v4815
    %v4818 = vadd.f32 %v4774, %v4815
    %v4819 = vadd.f32 %v4775, %v4815
    %v4820 = vadd.f32 %v4776, %v4815
    %v4821 = vadd.f32 %v4777, %v4815
    %v4822 = vadd.f32 %v4778, %v4815
    %v4823 = vadd.f32 %v4779, %v4815
    %v4824 = vadd.f32 %v4780, %v4815
    %v4825 = vadd.f32 %v4781, %v4815
    %v4826 = vadd.f32 %v4782, %v4815
    %v4827 = vadd.f32 %v4783, %v4815
    %v4828 = vadd.f32 %v4784, %v4815
    %v4829 = vadd.f32 %v4785, %v4815
    %v4830 = vadd.f32 %v4786, %v4815
    %v4831 = vadd.f32 %v4787, %v4815
    %v4832 = vadd.f32 %v4788, %v4815
    %v4833 = vadd.f32 %v4789, %v4815
    %v4834 = vadd.f32 %v4790, %v4815
    %v4835 = vadd.f32 %v4791, %v4815
    %v4836 = vadd.f32 %v4792, %v4815
    %v4837 = vadd.f32 %v4793, %v4815
    %v4838 = vadd.f32 %v4794, %v4815
    %v4839 = vadd.f32 %v4795, %v4815
    %v4840 = vadd.f32 %v4796, %v4815
    %v4841 = vadd.f32 %v4797, %v4815
    %v4842 = vadd.f32 %v4798, %v4815
    %v4843 = vadd.f32 %v4799, %v4815
    %v4844 = vadd.f32 %v4800, %v4815
    %v4845 = vadd.f32 %v4801, %v4815
    %v4846 = vadd.f32 %v4802, %v4815
    %v4847 = vadd.f32 %v4803, %v4815
    %v4848 = vadd.f32 %v4804, %v4815
    %v4849 = vadd.f32 %v4805, %v4815
    %v4850 = vadd.f32 %v4806, %v4815
    %v4851 = vadd.f32 %v4807, %v4815
    %v4852 = vadd.f32 %v4808, %v4815
    %v4853 = vadd.f32 %v4809, %v4815
    %s4854 = smul.u32 8, 96
    %s4855 = smul.u32 %s4854, 2
    %s4856 = sshll.u32 %s4855, 4
    %4857 = dma.done [#allocation4], %s4856
    %v4858 = vld [vmem:[#allocation2] sm:$0xff]
    %v4859 = vld [vmem:[#allocation2 + $0x8] sm:$0xff]
    %v4860 = vld [vmem:[#allocation2 + $0x10] sm:$0xff]
    %v4861 = vld [vmem:[#allocation2 + $0x18] sm:$0xff]
    %v4862 = vld [vmem:[#allocation2 + $0x20] sm:$0xff]
    %v4863 = vld [vmem:[#allocation2 + $0x28] sm:$0xff]
    %v4864 = vld [vmem:[#allocation2 + $0x30] sm:$0xff]
    %v4865 = vld [vmem:[#allocation2 + $0x38] sm:$0xff]
    %v4866 = vld [vmem:[#allocation2 + $0x40] sm:$0xff]
    %v4867 = vld [vmem:[#allocation2 + $0x48] sm:$0xff]
    %v4868 = vld [vmem:[#allocation2 + $0x50] sm:$0xff]
    %v4869 = vld [vmem:[#allocation2 + $0x58] sm:$0xff]
    %v4870 = vld [vmem:[#allocation2 + $0x60] sm:$0xff]
    %v4871 = vld [vmem:[#allocation2 + $0x68] sm:$0xff]
    %v4872 = vld [vmem:[#allocation2 + $0x70] sm:$0xff]
    %v4873 = vld [vmem:[#allocation2 + $0x78] sm:$0xff]
    %v4874 = vld [vmem:[#allocation2 + $0x80] sm:$0xff]
    %v4875 = vld [vmem:[#allocation2 + $0x88] sm:$0xff]
    %v4876 = vld [vmem:[#allocation2 + $0x90] sm:$0xff]
    %v4877 = vld [vmem:[#allocation2 + $0x98] sm:$0xff]
    %v4878 = vld [vmem:[#allocation2 + $0xa0] sm:$0xff]
    %v4879 = vld [vmem:[#allocation2 + $0xa8] sm:$0xff]
    %v4880 = vld [vmem:[#allocation2 + $0xb0] sm:$0xff]
    %v4881 = vld [vmem:[#allocation2 + $0xb8] sm:$0xff]
    %v4882 = vld [vmem:[#allocation2 + $0xc0] sm:$0xff]
    %v4883 = vld [vmem:[#allocation2 + $0xc8] sm:$0xff]
    %v4884 = vld [vmem:[#allocation2 + $0xd0] sm:$0xff]
    %v4885 = vld [vmem:[#allocation2 + $0xd8] sm:$0xff]
    %v4886 = vld [vmem:[#allocation2 + $0xe0] sm:$0xff]
    %v4887 = vld [vmem:[#allocation2 + $0xe8] sm:$0xff]
    %v4888 = vld [vmem:[#allocation2 + $0xf0] sm:$0xff]
    %v4889 = vld [vmem:[#allocation2 + $0xf8] sm:$0xff]
    %v4890 = vld [vmem:[#allocation2 + $0x100] sm:$0xff]
    %v4891 = vld [vmem:[#allocation2 + $0x108] sm:$0xff]
    %v4892 = vld [vmem:[#allocation2 + $0x110] sm:$0xff]
    %v4893 = vld [vmem:[#allocation2 + $0x118] sm:$0xff]
    %v4894 = vld [vmem:[#allocation2 + $0x120] sm:$0xff]
    %v4895 = vld [vmem:[#allocation2 + $0x128] sm:$0xff]
    %v4896 = vld [vmem:[#allocation2 + $0x130] sm:$0xff]
    %v4897 = vld [vmem:[#allocation2 + $0x138] sm:$0xff]
    %v4898 = vld [vmem:[#allocation2 + $0x140] sm:$0xff]
    %v4899 = vld [vmem:[#allocation2 + $0x148] sm:$0xff]
    %v4900 = vld [vmem:[#allocation2 + $0x150] sm:$0xff]
    %v4901 = vld [vmem:[#allocation2 + $0x158] sm:$0xff]
    %v4902 = vld [vmem:[#allocation2 + $0x160] sm:$0xff]
    %v4903 = vld [vmem:[#allocation2 + $0x168] sm:$0xff]
    %v4904 = vld [vmem:[#allocation2 + $0x170] sm:$0xff]
    %v4905 = vld [vmem:[#allocation2 + $0x178] sm:$0xff]
    %v4906 = vld [vmem:[#allocation2 + $0x180] sm:$0xff]
    %v4907 = vld [vmem:[#allocation2 + $0x188] sm:$0xff]
    %v4908 = vld [vmem:[#allocation2 + $0x190] sm:$0xff]
    %v4909 = vld [vmem:[#allocation2 + $0x198] sm:$0xff]
    %v4910 = vld [vmem:[#allocation2 + $0x1a0] sm:$0xff]
    %v4911 = vld [vmem:[#allocation2 + $0x1a8] sm:$0xff]
    %v4912 = vld [vmem:[#allocation2 + $0x1b0] sm:$0xff]
    %v4913 = vld [vmem:[#allocation2 + $0x1b8] sm:$0xff]
    %v4914 = vld [vmem:[#allocation2 + $0x1c0] sm:$0xff]
    %v4915 = vld [vmem:[#allocation2 + $0x1c8] sm:$0xff]
    %v4916 = vld [vmem:[#allocation2 + $0x1d0] sm:$0xff]
    %v4917 = vld [vmem:[#allocation2 + $0x1d8] sm:$0xff]
    %v4918 = vld [vmem:[#allocation2 + $0x1e0] sm:$0xff]
    %v4919 = vld [vmem:[#allocation2 + $0x1e8] sm:$0xff]
    %v4920 = vld [vmem:[#allocation2 + $0x1f0] sm:$0xff]
    %v4921 = vld [vmem:[#allocation2 + $0x1f8] sm:$0xff]
    %v4922 = vld [vmem:[#allocation2 + $0x200] sm:$0xff]
    %v4923 = vld [vmem:[#allocation2 + $0x208] sm:$0xff]
    %v4924 = vld [vmem:[#allocation2 + $0x210] sm:$0xff]
    %v4925 = vld [vmem:[#allocation2 + $0x218] sm:$0xff]
    %v4926 = vld [vmem:[#allocation2 + $0x220] sm:$0xff]
    %v4927 = vld [vmem:[#allocation2 + $0x228] sm:$0xff]
    %v4928 = vld [vmem:[#allocation2 + $0x230] sm:$0xff]
    %v4929 = vld [vmem:[#allocation2 + $0x238] sm:$0xff]
    %v4930 = vld [vmem:[#allocation2 + $0x240] sm:$0xff]
    %v4931 = vld [vmem:[#allocation2 + $0x248] sm:$0xff]
    %v4932 = vld [vmem:[#allocation2 + $0x250] sm:$0xff]
    %v4933 = vld [vmem:[#allocation2 + $0x258] sm:$0xff]
    %v4934 = vld [vmem:[#allocation2 + $0x260] sm:$0xff]
    %v4935 = vld [vmem:[#allocation2 + $0x268] sm:$0xff]
    %v4936 = vld [vmem:[#allocation2 + $0x270] sm:$0xff]
    %v4937 = vld [vmem:[#allocation2 + $0x278] sm:$0xff]
    %v4938 = vld [vmem:[#allocation2 + $0x280] sm:$0xff]
    %v4939 = vld [vmem:[#allocation2 + $0x288] sm:$0xff]
    %v4940 = vld [vmem:[#allocation2 + $0x290] sm:$0xff]
    %v4941 = vld [vmem:[#allocation2 + $0x298] sm:$0xff]
    %v4942 = vld [vmem:[#allocation2 + $0x2a0] sm:$0xff]
    %v4943 = vld [vmem:[#allocation2 + $0x2a8] sm:$0xff]
    %v4944 = vld [vmem:[#allocation2 + $0x2b0] sm:$0xff]
    %v4945 = vld [vmem:[#allocation2 + $0x2b8] sm:$0xff]
    %v4946 = vld [vmem:[#allocation2 + $0x2c0] sm:$0xff]
    %v4947 = vld [vmem:[#allocation2 + $0x2c8] sm:$0xff]
    %v4948 = vld [vmem:[#allocation2 + $0x2d0] sm:$0xff]
    %v4949 = vld [vmem:[#allocation2 + $0x2d8] sm:$0xff]
    %v4950 = vld [vmem:[#allocation2 + $0x2e0] sm:$0xff]
    %v4951 = vld [vmem:[#allocation2 + $0x2e8] sm:$0xff]
    %v4952 = vld [vmem:[#allocation2 + $0x2f0] sm:$0xff]
    %v4953 = vld [vmem:[#allocation2 + $0x2f8] sm:$0xff]
    %v4954 = vld [vmem:[#allocation2 + $0x300] sm:$0xff]
    %v4955 = vld [vmem:[#allocation2 + $0x308] sm:$0xff]
    %v4956 = vld [vmem:[#allocation2 + $0x310] sm:$0xff]
    %v4957 = vld [vmem:[#allocation2 + $0x318] sm:$0xff]
    %v4958 = vld [vmem:[#allocation2 + $0x320] sm:$0xff]
    %v4959 = vld [vmem:[#allocation2 + $0x328] sm:$0xff]
    %v4960 = vld [vmem:[#allocation2 + $0x330] sm:$0xff]
    %v4961 = vld [vmem:[#allocation2 + $0x338] sm:$0xff]
    %v4962 = vld [vmem:[#allocation2 + $0x340] sm:$0xff]
    %v4963 = vld [vmem:[#allocation2 + $0x348] sm:$0xff]
    %v4964 = vld [vmem:[#allocation2 + $0x350] sm:$0xff]
    %v4965 = vld [vmem:[#allocation2 + $0x358] sm:$0xff]
    %v4966 = vld [vmem:[#allocation2 + $0x360] sm:$0xff]
    %v4967 = vld [vmem:[#allocation2 + $0x368] sm:$0xff]
    %v4968 = vld [vmem:[#allocation2 + $0x370] sm:$0xff]
    %v4969 = vld [vmem:[#allocation2 + $0x378] sm:$0xff]
    %v4970 = vld [vmem:[#allocation2 + $0x380] sm:$0xff]
    %v4971 = vld [vmem:[#allocation2 + $0x388] sm:$0xff]
    %v4972 = vld [vmem:[#allocation2 + $0x390] sm:$0xff]
    %v4973 = vld [vmem:[#allocation2 + $0x398] sm:$0xff]
    %v4974 = vld [vmem:[#allocation2 + $0x3a0] sm:$0xff]
    %v4975 = vld [vmem:[#allocation2 + $0x3a8] sm:$0xff]
    %v4976 = vld [vmem:[#allocation2 + $0x3b0] sm:$0xff]
    %v4977 = vld [vmem:[#allocation2 + $0x3b8] sm:$0xff]
    %v4978 = vld [vmem:[#allocation2 + $0x3c0] sm:$0xff]
    %v4979 = vld [vmem:[#allocation2 + $0x3c8] sm:$0xff]
    %v4980 = vld [vmem:[#allocation2 + $0x3d0] sm:$0xff]
    %v4981 = vld [vmem:[#allocation2 + $0x3d8] sm:$0xff]
    %v4982 = vld [vmem:[#allocation2 + $0x3e0] sm:$0xff]
    %v4983 = vld [vmem:[#allocation2 + $0x3e8] sm:$0xff]
    %v4984 = vld [vmem:[#allocation2 + $0x3f0] sm:$0xff]
    %v4985 = vld [vmem:[#allocation2 + $0x3f8] sm:$0xff]
    %v4986 = vld [vmem:[#allocation2 + $0x400] sm:$0xff]
    %v4987 = vld [vmem:[#allocation2 + $0x408] sm:$0xff]
    %v4988 = vld [vmem:[#allocation2 + $0x410] sm:$0xff]
    %v4989 = vld [vmem:[#allocation2 + $0x418] sm:$0xff]
    %v4990 = vld [vmem:[#allocation2 + $0x420] sm:$0xff]
    %v4991 = vld [vmem:[#allocation2 + $0x428] sm:$0xff]
    %v4992 = vld [vmem:[#allocation2 + $0x430] sm:$0xff]
    %v4993 = vld [vmem:[#allocation2 + $0x438] sm:$0xff]
    %v4994 = vld [vmem:[#allocation2 + $0x440] sm:$0xff]
    %v4995 = vld [vmem:[#allocation2 + $0x448] sm:$0xff]
    %v4996 = vld [vmem:[#allocation2 + $0x450] sm:$0xff]
    %v4997 = vld [vmem:[#allocation2 + $0x458] sm:$0xff]
    %v4998 = vld [vmem:[#allocation2 + $0x460] sm:$0xff]
    %v4999 = vld [vmem:[#allocation2 + $0x468] sm:$0xff]
    %v5000 = vld [vmem:[#allocation2 + $0x470] sm:$0xff]
    %v5001 = vld [vmem:[#allocation2 + $0x478] sm:$0xff]
    %v5002 = vld [vmem:[#allocation2 + $0x480] sm:$0xff]
    %v5003 = vld [vmem:[#allocation2 + $0x488] sm:$0xff]
    %v5004 = vld [vmem:[#allocation2 + $0x490] sm:$0xff]
    %v5005 = vld [vmem:[#allocation2 + $0x498] sm:$0xff]
    %v5006 = vld [vmem:[#allocation2 + $0x4a0] sm:$0xff]
    %v5007 = vld [vmem:[#allocation2 + $0x4a8] sm:$0xff]
    %v5008 = vld [vmem:[#allocation2 + $0x4b0] sm:$0xff]
    %v5009 = vld [vmem:[#allocation2 + $0x4b8] sm:$0xff]
    %v5010 = vld [vmem:[#allocation2 + $0x4c0] sm:$0xff]
    %v5011 = vld [vmem:[#allocation2 + $0x4c8] sm:$0xff]
    %v5012 = vld [vmem:[#allocation2 + $0x4d0] sm:$0xff]
    %v5013 = vld [vmem:[#allocation2 + $0x4d8] sm:$0xff]
    %v5014 = vld [vmem:[#allocation2 + $0x4e0] sm:$0xff]
    %v5015 = vld [vmem:[#allocation2 + $0x4e8] sm:$0xff]
    %v5016 = vld [vmem:[#allocation2 + $0x4f0] sm:$0xff]
    %v5017 = vld [vmem:[#allocation2 + $0x4f8] sm:$0xff]
    %v5018 = vld [vmem:[#allocation2 + $0x500] sm:$0xff]
    %v5019 = vld [vmem:[#allocation2 + $0x508] sm:$0xff]
    %v5020 = vld [vmem:[#allocation2 + $0x510] sm:$0xff]
    %v5021 = vld [vmem:[#allocation2 + $0x518] sm:$0xff]
    %v5022 = vld [vmem:[#allocation2 + $0x520] sm:$0xff]
    %v5023 = vld [vmem:[#allocation2 + $0x528] sm:$0xff]
    %v5024 = vld [vmem:[#allocation2 + $0x530] sm:$0xff]
    %v5025 = vld [vmem:[#allocation2 + $0x538] sm:$0xff]
    %v5026 = vld [vmem:[#allocation2 + $0x540] sm:$0xff]
    %v5027 = vld [vmem:[#allocation2 + $0x548] sm:$0xff]
    %v5028 = vld [vmem:[#allocation2 + $0x550] sm:$0xff]
    %v5029 = vld [vmem:[#allocation2 + $0x558] sm:$0xff]
    %v5030 = vld [vmem:[#allocation2 + $0x560] sm:$0xff]
    %v5031 = vld [vmem:[#allocation2 + $0x568] sm:$0xff]
    %v5032 = vld [vmem:[#allocation2 + $0x570] sm:$0xff]
    %v5033 = vld [vmem:[#allocation2 + $0x578] sm:$0xff]
    %v5034 = vld [vmem:[#allocation2 + $0x580] sm:$0xff]
    %v5035 = vld [vmem:[#allocation2 + $0x588] sm:$0xff]
    %v5036 = vld [vmem:[#allocation2 + $0x590] sm:$0xff]
    %v5037 = vld [vmem:[#allocation2 + $0x598] sm:$0xff]
    %v5038 = vld [vmem:[#allocation2 + $0x5a0] sm:$0xff]
    %v5039 = vld [vmem:[#allocation2 + $0x5a8] sm:$0xff]
    %v5040 = vld [vmem:[#allocation2 + $0x5b0] sm:$0xff]
    %v5041 = vld [vmem:[#allocation2 + $0x5b8] sm:$0xff]
    %v5042 = vld [vmem:[#allocation2 + $0x5c0] sm:$0xff]
    %v5043 = vld [vmem:[#allocation2 + $0x5c8] sm:$0xff]
    %v5044 = vld [vmem:[#allocation2 + $0x5d0] sm:$0xff]
    %v5045 = vld [vmem:[#allocation2 + $0x5d8] sm:$0xff]
    %v5046 = vld [vmem:[#allocation2 + $0x5e0] sm:$0xff]
    %v5047 = vld [vmem:[#allocation2 + $0x5e8] sm:$0xff]
    %v5048 = vld [vmem:[#allocation2 + $0x5f0] sm:$0xff]
    %v5049 = vld [vmem:[#allocation2 + $0x5f8] sm:$0xff]
    %5050 = vmatprep.subr.mxu0 %v4859
    %5051 = vmatpush1.msra.mxu0 %v4858
    %5052 = vmatprep.subr.mxu0 %v4861
    %5053 = vmatpush1.msra.mxu0 %v4860
    %5054 = vmatprep.subr.mxu0 %v4863
    %5055 = vmatpush1.msra.mxu0 %v4862
    %5056 = vmatprep.subr.mxu0 %v4865
    %5057 = vmatpush1.msra.mxu0 %v4864
    %5058 = vmatprep.subr.mxu0 %v4867
    %5059 = vmatpush1.msra.mxu0 %v4866
    %5060 = vmatprep.subr.mxu0 %v4869
    %5061 = vmatpush1.msra.mxu0 %v4868
    %5062 = vmatprep.subr.mxu0 %v4871
    %5063 = vmatpush1.msra.mxu0 %v4870
    %5064 = vmatprep.subr.mxu0 %v4873
    %5065 = vmatpush1.msra.mxu0 %v4872
    %5066 = vmatprep.subr.mxu0 %v4875
    %5067 = vmatpush1.msra.mxu0 %v4874
    %5068 = vmatprep.subr.mxu0 %v4877
    %5069 = vmatpush1.msra.mxu0 %v4876
    %5070 = vmatprep.subr.mxu0 %v4879
    %5071 = vmatpush1.msra.mxu0 %v4878
    %5072 = vmatprep.subr.mxu0 %v4881
    %5073 = vmatpush1.msra.mxu0 %v4880
    %5074 = vmatprep.subr.mxu0 %v4883
    %5075 = vmatpush1.msra.mxu0 %v4882
    %5076 = vmatprep.subr.mxu0 %v4885
    %5077 = vmatpush1.msra.mxu0 %v4884
    %5078 = vmatprep.subr.mxu0 %v4887
    %5079 = vmatpush1.msra.mxu0 %v4886
    %5080 = vmatprep.subr.mxu0 %v4889
    %5081 = vmatpush1.msra.mxu0 %v4888
    %5082 = vmatprep.subr.mxu0 %v4891
    %5083 = vmatpush1.msra.mxu0 %v4890
    %5084 = vmatprep.subr.mxu0 %v4893
    %5085 = vmatpush1.msra.mxu0 %v4892
    %5086 = vmatprep.subr.mxu0 %v4895
    %5087 = vmatpush1.msra.mxu0 %v4894
    %5088 = vmatprep.subr.mxu0 %v4897
    %5089 = vmatpush1.msra.mxu0 %v4896
    %5090 = vmatprep.subr.mxu0 %v4899
    %5091 = vmatpush1.msra.mxu0 %v4898
    %5092 = vmatprep.subr.mxu0 %v4901
    %5093 = vmatpush1.msra.mxu0 %v4900
    %5094 = vmatprep.subr.mxu0 %v4903
    %5095 = vmatpush1.msra.mxu0 %v4902
    %5096 = vmatprep.subr.mxu0 %v4905
    %5097 = vmatpush1.msra.mxu0 %v4904
    %5098 = vmatprep.subr.mxu0 %v4907
    %5099 = vmatpush1.msra.mxu0 %v4906
    %5100 = vmatprep.subr.mxu0 %v4909
    %5101 = vmatpush1.msra.mxu0 %v4908
    %5102 = vmatprep.subr.mxu0 %v4911
    %5103 = vmatpush1.msra.mxu0 %v4910
    %5104 = vmatprep.subr.mxu0 %v4913
    %5105 = vmatpush1.msra.mxu0 %v4912
    %5106 = vmatprep.subr.mxu0 %v4915
    %5107 = vmatpush1.msra.mxu0 %v4914
    %5108 = vmatprep.subr.mxu0 %v4917
    %5109 = vmatpush1.msra.mxu0 %v4916
    %5110 = vmatprep.subr.mxu0 %v4919
    %5111 = vmatpush1.msra.mxu0 %v4918
    %5112 = vmatprep.subr.mxu0 %v4921
    %5113 = vmatpush1.msra.mxu0 %v4920
    %5114 = vmatprep.mubr.f32.mxu0 %v4836
    %5115 = vmatmul.mubr.f32.gmra.mrb[0].mxu0 %v4817
    %v5116 = vpop.f32.mrb[0].mxu0
    %v5117 = vadd.f32 0.0, %v5116
    %v5118 = vpop.f32.mrb[0].mxu0
    %v5119 = vadd.f32 0.0, %v5118
    %5120 = vmatprep.mubr.f32.mxu0 %v4837
    %5121 = vmatmul.mubr.f32.gmra.mrb[0].mxu0 %v4818
    %v5122 = vpop.f32.mrb[0].mxu0
    %v5123 = vadd.f32 0.0, %v5122
    %v5124 = vpop.f32.mrb[0].mxu0
    %v5125 = vadd.f32 0.0, %v5124
    %5126 = vmatprep.mubr.f32.mxu0 %v4838
    %5127 = vmatmul.mubr.f32.gmra.mrb[0].mxu0 %v4819
    %v5128 = vpop.f32.mrb[0].mxu0
    %v5129 = vadd.f32 0.0, %v5128
    %v5130 = vpop.f32.mrb[0].mxu0
    %v5131 = vadd.f32 0.0, %v5130
    %5132 = vmatprep.mubr.f32.mxu0 %v4839
    %5133 = vmatmul.mubr.f32.gmra.mrb[0].mxu0 %v4820
    %v5134 = vpop.f32.mrb[0].mxu0
    %v5135 = vadd.f32 0.0, %v5134
    %v5136 = vpop.f32.mrb[0].mxu0
    %v5137 = vadd.f32 0.0, %v5136
    %5138 = vmatprep.mubr.f32.mxu0 %v4840
    %5139 = vmatmul.mubr.f32.gmra.mrb[0].mxu0 %v4821
    %v5140 = vpop.f32.mrb[0].mxu0
    %v5141 = vadd.f32 0.0, %v5140
    %v5142 = vpop.f32.mrb[0].mxu0
    %v5143 = vadd.f32 0.0, %v5142
    %5144 = vmatprep.mubr.f32.mxu0 %v4841
    %5145 = vmatmul.mubr.f32.gmra.mrb[0].mxu0 %v4822
    %v5146 = vpop.f32.mrb[0].mxu0
    %v5147 = vadd.f32 0.0, %v5146
    %v5148 = vpop.f32.mrb[0].mxu0
    %v5149 = vadd.f32 0.0, %v5148
    %5150 = vmatprep.mubr.f32.mxu0 %v4842
    %5151 = vmatmul.mubr.f32.gmra.mrb[0].mxu0 %v4823
    %v5152 = vpop.f32.mrb[0].mxu0
    %v5153 = vadd.f32 0.0, %v5152
    %v5154 = vpop.f32.mrb[0].mxu0
    %v5155 = vadd.f32 0.0, %v5154
    %5156 = vmatprep.mubr.f32.mxu0 %v4843
    %5157 = vmatmul.mubr.f32.gmra.mrb[0].mxu0 %v4824
    %v5158 = vpop.f32.mrb[0].mxu0
    %v5159 = vadd.f32 0.0, %v5158
    %v5160 = vpop.f32.mrb[0].mxu0
    %v5161 = vadd.f32 0.0, %v5160
    %5162 = vmatprep.mubr.f32.mxu0 %v4844
    %5163 = vmatmul.mubr.f32.gmra.mrb[0].mxu0 %v4825
    %v5164 = vpop.f32.mrb[0].mxu0
    %v5165 = vadd.f32 0.0, %v5164
    %v5166 = vpop.f32.mrb[0].mxu0
    %v5167 = vadd.f32 0.0, %v5166
    %5168 = vmatprep.mubr.f32.mxu0 %v4845
    %5169 = vmatmul.mubr.f32.gmra.mrb[0].mxu0 %v4826
    %v5170 = vpop.f32.mrb[0].mxu0
    %v5171 = vadd.f32 0.0, %v5170
    %v5172 = vpop.f32.mrb[0].mxu0
    %v5173 = vadd.f32 0.0, %v5172
    %5174 = vmatprep.mubr.f32.mxu0 %v4846
    %5175 = vmatmul.mubr.f32.gmra.mrb[0].mxu0 %v4827
    %v5176 = vpop.f32.mrb[0].mxu0
    %v5177 = vadd.f32 0.0, %v5176
    %v5178 = vpop.f32.mrb[0].mxu0
    %v5179 = vadd.f32 0.0, %v5178
    %5180 = vmatprep.mubr.f32.mxu0 %v4847
    %5181 = vmatmul.mubr.f32.gmra.mrb[0].mxu0 %v4828
    %v5182 = vpop.f32.mrb[0].mxu0
    %v5183 = vadd.f32 0.0, %v5182
    %v5184 = vpop.f32.mrb[0].mxu0
    %v5185 = vadd.f32 0.0, %v5184
    %5186 = vmatprep.mubr.f32.mxu0 %v4848
    %5187 = vmatmul.mubr.f32.gmra.mrb[0].mxu0 %v4829
    %v5188 = vpop.f32.mrb[0].mxu0
    %v5189 = vadd.f32 0.0, %v5188
    %v5190 = vpop.f32.mrb[0].mxu0
    %v5191 = vadd.f32 0.0, %v5190
    %5192 = vmatprep.mubr.f32.mxu0 %v4849
    %5193 = vmatmul.mubr.f32.gmra.mrb[0].mxu0 %v4830
    %v5194 = vpop.f32.mrb[0].mxu0
    %v5195 = vadd.f32 0.0, %v5194
    %v5196 = vpop.f32.mrb[0].mxu0
    %v5197 = vadd.f32 0.0, %v5196
    %5198 = vmatprep.mubr.f32.mxu0 %v4850
    %5199 = vmatmul.mubr.f32.gmra.mrb[0].mxu0 %v4831
    %v5200 = vpop.f32.mrb[0].mxu0
    %v5201 = vadd.f32 0.0, %v5200
    %v5202 = vpop.f32.mrb[0].mxu0
    %v5203 = vadd.f32 0.0, %v5202
    %5204 = vmatprep.mubr.f32.mxu0 %v4851
    %5205 = vmatmul.mubr.f32.gmra.mrb[0].mxu0 %v4832
    %v5206 = vpop.f32.mrb[0].mxu0
    %v5207 = vadd.f32 0.0, %v5206
    %v5208 = vpop.f32.mrb[0].mxu0
    %v5209 = vadd.f32 0.0, %v5208
    %5210 = vmatprep.mubr.f32.mxu0 %v4818
    %5211 = vmatmul.mubr.f32.gmra.mrb[0].mxu0 %v4836
    %v5212 = vpop.f32.mrb[0].mxu0
    %v5213 = vadd.f32 0.0, %v5212
    %v5214 = vpop.f32.mrb[0].mxu0
    %v5215 = vadd.f32 0.0, %v5214
    %5216 = vmatprep.mubr.f32.mxu0 %v4819
    %5217 = vmatmul.mubr.f32.gmra.mrb[0].mxu0 %v4837
    %v5218 = vpop.f32.mrb[0].mxu0
    %v5219 = vadd.f32 0.0, %v5218
    %v5220 = vpop.f32.mrb[0].mxu0
    %v5221 = vadd.f32 0.0, %v5220
    %5222 = vmatprep.mubr.f32.mxu0 %v4820
    %5223 = vmatmul.mubr.f32.gmra.mrb[0].mxu0 %v4838
    %v5224 = vpop.f32.mrb[0].mxu0
    %v5225 = vadd.f32 0.0, %v5224
    %v5226 = vpop.f32.mrb[0].mxu0
    %v5227 = vadd.f32 0.0, %v5226
    %5228 = vmatprep.mubr.f32.mxu0 %v4821
    %5229 = vmatmul.mubr.f32.gmra.mrb[0].mxu0 %v4839
    %v5230 = vpop.f32.mrb[0].mxu0
    %v5231 = vadd.f32 0.0, %v5230
    %v5232 = vpop.f32.mrb[0].mxu0
    %v5233 = vadd.f32 0.0, %v5232
    %5234 = vmatprep.mubr.f32.mxu0 %v4822
    %5235 = vmatmul.mubr.f32.gmra.mrb[0].mxu0 %v4840
    %v5236 = vpop.f32.mrb[0].mxu0
    %v5237 = vadd.f32 0.0, %v5236
    %v5238 = vpop.f32.mrb[0].mxu0
    %v5239 = vadd.f32 0.0, %v5238
    %5240 = vmatprep.mubr.f32.mxu0 %v4823
    %5241 = vmatmul.mubr.f32.gmra.mrb[0].mxu0 %v4841
    %v5242 = vpop.f32.mrb[0].mxu0
    %v5243 = vadd.f32 0.0, %v5242
    %v5244 = vpop.f32.mrb[0].mxu0
    %v5245 = vadd.f32 0.0, %v5244
    %5246 = vmatprep.mubr.f32.mxu0 %v4824
    %5247 = vmatmul.mubr.f32.gmra.mrb[0].mxu0 %v4842
    %v5248 = vpop.f32.mrb[0].mxu0
    %v5249 = vadd.f32 0.0, %v5248
    %v5250 = vpop.f32.mrb[0].mxu0
    %v5251 = vadd.f32 0.0, %v5250
    %5252 = vmatprep.mubr.f32.mxu0 %v4825
    %5253 = vmatmul.mubr.f32.gmra.mrb[0].mxu0 %v4843
    %v5254 = vpop.f32.mrb[0].mxu0
    %v5255 = vadd.f32 0.0, %v5254
    %v5256 = vpop.f32.mrb[0].mxu0
    %v5257 = vadd.f32 0.0, %v5256
    %5258 = vmatprep.mubr.f32.mxu0 %v4826
    %5259 = vmatmul.mubr.f32.gmra.mrb[0].mxu0 %v4844
    %v5260 = vpop.f32.mrb[0].mxu0
    %v5261 = vadd.f32 0.0, %v5260
    %v5262 = vpop.f32.mrb[0].mxu0
    %v5263 = vadd.f32 0.0, %v5262
    %5264 = vmatprep.mubr.f32.mxu0 %v4827
    %5265 = vmatmul.mubr.f32.gmra.mrb[0].mxu0 %v4845
    %v5266 = vpop.f32.mrb[0].mxu0
    %v5267 = vadd.f32 0.0, %v5266
    %v5268 = vpop.f32.mrb[0].mxu0
    %v5269 = vadd.f32 0.0, %v5268
    %5270 = vmatprep.mubr.f32.mxu0 %v4828
    %5271 = vmatmul.mubr.f32.gmra.mrb[0].mxu0 %v4846
    %v5272 = vpop.f32.mrb[0].mxu0
    %v5273 = vadd.f32 0.0, %v5272
    %v5274 = vpop.f32.mrb[0].mxu0
    %v5275 = vadd.f32 0.0, %v5274
    %5276 = vmatprep.mubr.f32.mxu0 %v4829
    %5277 = vmatmul.mubr.f32.gmra.mrb[0].mxu0 %v4847
    %v5278 = vpop.f32.mrb[0].mxu0
    %v5279 = vadd.f32 0.0, %v5278
    %v5280 = vpop.f32.mrb[0].mxu0
    %v5281 = vadd.f32 0.0, %v5280
    %5282 = vmatprep.mubr.f32.mxu0 %v4830
    %5283 = vmatmul.mubr.f32.gmra.mrb[0].mxu0 %v4848
    %v5284 = vpop.f32.mrb[0].mxu0
    %v5285 = vadd.f32 0.0, %v5284
    %v5286 = vpop.f32.mrb[0].mxu0
    %v5287 = vadd.f32 0.0, %v5286
    %5288 = vmatprep.mubr.f32.mxu0 %v4831
    %5289 = vmatmul.mubr.f32.gmra.mrb[0].mxu0 %v4849
    %v5290 = vpop.f32.mrb[0].mxu0
    %v5291 = vadd.f32 0.0, %v5290
    %v5292 = vpop.f32.mrb[0].mxu0
    %v5293 = vadd.f32 0.0, %v5292
    %5294 = vmatprep.mubr.f32.mxu0 %v4832
    %5295 = vmatmul.mubr.f32.gmra.mrb[0].mxu0 %v4850
    %v5296 = vpop.f32.mrb[0].mxu0
    %v5297 = vadd.f32 0.0, %v5296
    %v5298 = vpop.f32.mrb[0].mxu0
    %v5299 = vadd.f32 0.0, %v5298
    %5300 = vmatprep.mubr.f32.mxu0 %v4833
    %5301 = vmatmul.mubr.f32.gmra.mrb[0].mxu0 %v4851
    %v5302 = vpop.f32.mrb[0].mxu0
    %v5303 = vadd.f32 0.0, %v5302
    %v5304 = vpop.f32.mrb[0].mxu0
    %v5305 = vadd.f32 0.0, %v5304
    %5306 = vdwg.mxu0
    %5307 = vmatprep.subr.mxu0 %v4923
    %5308 = vmatpush1.msra.mxu0 %v4922
    %5309 = vmatprep.subr.mxu0 %v4925
    %5310 = vmatpush1.msra.mxu0 %v4924
    %5311 = vmatprep.subr.mxu0 %v4927
    %5312 = vmatpush1.msra.mxu0 %v4926
    %5313 = vmatprep.subr.mxu0 %v4929
    %5314 = vmatpush1.msra.mxu0 %v4928
    %5315 = vmatprep.subr.mxu0 %v4931
    %5316 = vmatpush1.msra.mxu0 %v4930
    %5317 = vmatprep.subr.mxu0 %v4933
    %5318 = vmatpush1.msra.mxu0 %v4932
    %5319 = vmatprep.subr.mxu0 %v4935
    %5320 = vmatpush1.msra.mxu0 %v4934
    %5321 = vmatprep.subr.mxu0 %v4937
    %5322 = vmatpush1.msra.mxu0 %v4936
    %5323 = vmatprep.subr.mxu0 %v4939
    %5324 = vmatpush1.msra.mxu0 %v4938
    %5325 = vmatprep.subr.mxu0 %v4941
    %5326 = vmatpush1.msra.mxu0 %v4940
    %5327 = vmatprep.subr.mxu0 %v4943
    %5328 = vmatpush1.msra.mxu0 %v4942
    %5329 = vmatprep.subr.mxu0 %v4945
    %5330 = vmatpush1.msra.mxu0 %v4944
    %5331 = vmatprep.subr.mxu0 %v4947
    %5332 = vmatpush1.msra.mxu0 %v4946
    %5333 = vmatprep.subr.mxu0 %v4949
    %5334 = vmatpush1.msra.mxu0 %v4948
    %5335 = vmatprep.subr.mxu0 %v4951
    %5336 = vmatpush1.msra.mxu0 %v4950
    %5337 = vmatprep.subr.mxu0 %v4953
    %5338 = vmatpush1.msra.mxu0 %v4952
    %5339 = vmatprep.subr.mxu0 %v4955
    %5340 = vmatpush1.msra.mxu0 %v4954
    %5341 = vmatprep.subr.mxu0 %v4957
    %5342 = vmatpush1.msra.mxu0 %v4956
    %5343 = vmatprep.subr.mxu0 %v4959
    %5344 = vmatpush1.msra.mxu0 %v4958
    %5345 = vmatprep.subr.mxu0 %v4961
    %5346 = vmatpush1.msra.mxu0 %v4960
    %5347 = vmatprep.subr.mxu0 %v4963
    %5348 = vmatpush1.msra.mxu0 %v4962
    %5349 = vmatprep.subr.mxu0 %v4965
    %5350 = vmatpush1.msra.mxu0 %v4964
    %5351 = vmatprep.subr.mxu0 %v4967
    %5352 = vmatpush1.msra.mxu0 %v4966
    %5353 = vmatprep.subr.mxu0 %v4969
    %5354 = vmatpush1.msra.mxu0 %v4968
    %5355 = vmatprep.subr.mxu0 %v4971
    %5356 = vmatpush1.msra.mxu0 %v4970
    %5357 = vmatprep.subr.mxu0 %v4973
    %5358 = vmatpush1.msra.mxu0 %v4972
    %5359 = vmatprep.subr.mxu0 %v4975
    %5360 = vmatpush1.msra.mxu0 %v4974
    %5361 = vmatprep.subr.mxu0 %v4977
    %5362 = vmatpush1.msra.mxu0 %v4976
    %5363 = vmatprep.subr.mxu0 %v4979
    %5364 = vmatpush1.msra.mxu0 %v4978
    %5365 = vmatprep.subr.mxu0 %v4981
    %5366 = vmatpush1.msra.mxu0 %v4980
    %5367 = vmatprep.subr.mxu0 %v4983
    %5368 = vmatpush1.msra.mxu0 %v4982
    %5369 = vmatprep.subr.mxu0 %v4985
    %5370 = vmatpush1.msra.mxu0 %v4984
    %5371 = vmatprep.mubr.f32.mxu0 %v4837
    %5372 = vmatmul.mubr.f32.gmra.mrb[0].mxu0 %v4818
    %v5373 = vpop.f32.mrb[0].mxu0
    %v5374 = vadd.f32 %v5117, %v5373
    %v5375 = vpop.f32.mrb[0].mxu0
    %v5376 = vadd.f32 %v5119, %v5375
    %5377 = vmatprep.mubr.f32.mxu0 %v4838
    %5378 = vmatmul.mubr.f32.gmra.mrb[0].mxu0 %v4819
    %v5379 = vpop.f32.mrb[0].mxu0
    %v5380 = vadd.f32 %v5123, %v5379
    %v5381 = vpop.f32.mrb[0].mxu0
    %v5382 = vadd.f32 %v5125, %v5381
    %5383 = vmatprep.mubr.f32.mxu0 %v4839
    %5384 = vmatmul.mubr.f32.gmra.mrb[0].mxu0 %v4820
    %v5385 = vpop.f32.mrb[0].mxu0
    %v5386 = vadd.f32 %v5129, %v5385
    %v5387 = vpop.f32.mrb[0].mxu0
    %v5388 = vadd.f32 %v5131, %v5387
    %5389 = vmatprep.mubr.f32.mxu0 %v4840
    %5390 = vmatmul.mubr.f32.gmra.mrb[0].mxu0 %v4821
    %v5391 = vpop.f32.mrb[0].mxu0
    %v5392 = vadd.f32 %v5135, %v5391
    %v5393 = vpop.f32.mrb[0].mxu0
    %v5394 = vadd.f32 %v5137, %v5393
    %5395 = vmatprep.mubr.f32.mxu0 %v4841
    %5396 = vmatmul.mubr.f32.gmra.mrb[0].mxu0 %v4822
    %v5397 = vpop.f32.mrb[0].mxu0
    %v5398 = vadd.f32 %v5141, %v5397
    %v5399 = vpop.f32.mrb[0].mxu0
    %v5400 = vadd.f32 %v5143, %v5399
    %5401 = vmatprep.mubr.f32.mxu0 %v4842
    %5402 = vmatmul.mubr.f32.gmra.mrb[0].mxu0 %v4823
    %v5403 = vpop.f32.mrb[0].mxu0
    %v5404 = vadd.f32 %v5147, %v5403
    %v5405 = vpop.f32.mrb[0].mxu0
    %v5406 = vadd.f32 %v5149, %v5405
    %5407 = vmatprep.mubr.f32.mxu0 %v4843
    %5408 = vmatmul.mubr.f32.gmra.mrb[0].mxu0 %v4824
    %v5409 = vpop.f32.mrb[0].mxu0
    %v5410 = vadd.f32 %v5153, %v5409
    %v5411 = vpop.f32.mrb[0].mxu0
    %v5412 = vadd.f32 %v5155, %v5411
    %5413 = vmatprep.mubr.f32.mxu0 %v4844
    %5414 = vmatmul.mubr.f32.gmra.mrb[0].mxu0 %v4825
    %v5415 = vpop.f32.mrb[0].mxu0
    %v5416 = vadd.f32 %v5159, %v5415
    %v5417 = vpop.f32.mrb[0].mxu0
    %v5418 = vadd.f32 %v5161, %v5417
    %5419 = vmatprep.mubr.f32.mxu0 %v4845
    %5420 = vmatmul.mubr.f32.gmra.mrb[0].mxu0 %v4826
    %v5421 = vpop.f32.mrb[0].mxu0
    %v5422 = vadd.f32 %v5165, %v5421
    %v5423 = vpop.f32.mrb[0].mxu0
    %v5424 = vadd.f32 %v5167, %v5423
    %5425 = vmatprep.mubr.f32.mxu0 %v4846
    %5426 = vmatmul.mubr.f32.gmra.mrb[0].mxu0 %v4827
    %v5427 = vpop.f32.mrb[0].mxu0
    %v5428 = vadd.f32 %v5171, %v5427
    %v5429 = vpop.f32.mrb[0].mxu0
    %v5430 = vadd.f32 %v5173, %v5429
    %5431 = vmatprep.mubr.f32.mxu0 %v4847
    %5432 = vmatmul.mubr.f32.gmra.mrb[0].mxu0 %v4828
    %v5433 = vpop.f32.mrb[0].mxu0
    %v5434 = vadd.f32 %v5177, %v5433
    %v5435 = vpop.f32.mrb[0].mxu0
    %v5436 = vadd.f32 %v5179, %v5435
    %5437 = vmatprep.mubr.f32.mxu0 %v4848
    %5438 = vmatmul.mubr.f32.gmra.mrb[0].mxu0 %v4829
    %v5439 = vpop.f32.mrb[0].mxu0
    %v5440 = vadd.f32 %v5183, %v5439
    %v5441 = vpop.f32.mrb[0].mxu0
    %v5442 = vadd.f32 %v5185, %v5441
    %5443 = vmatprep.mubr.f32.mxu0 %v4849
    %5444 = vmatmul.mubr.f32.gmra.mrb[0].mxu0 %v4830
    %v5445 = vpop.f32.mrb[0].mxu0
    %v5446 = vadd.f32 %v5189, %v5445
    %v5447 = vpop.f32.mrb[0].mxu0
    %v5448 = vadd.f32 %v5191, %v5447
    %5449 = vmatprep.mubr.f32.mxu0 %v4850
    %5450 = vmatmul.mubr.f32.gmra.mrb[0].mxu0 %v4831
    %v5451 = vpop.f32.mrb[0].mxu0
    %v5452 = vadd.f32 %v5195, %v5451
    %v5453 = vpop.f32.mrb[0].mxu0
    %v5454 = vadd.f32 %v5197, %v5453
    %5455 = vmatprep.mubr.f32.mxu0 %v4851
    %5456 = vmatmul.mubr.f32.gmra.mrb[0].mxu0 %v4832
    %v5457 = vpop.f32.mrb[0].mxu0
    %v5458 = vadd.f32 %v5201, %v5457
    %v5459 = vpop.f32.mrb[0].mxu0
    %v5460 = vadd.f32 %v5203, %v5459
    %5461 = vmatprep.mubr.f32.mxu0 %v4852
    %5462 = vmatmul.mubr.f32.gmra.mrb[0].mxu0 %v4833
    %v5463 = vpop.f32.mrb[0].mxu0
    %v5464 = vadd.f32 %v5207, %v5463
    %v5465 = vpop.f32.mrb[0].mxu0
    %v5466 = vadd.f32 %v5209, %v5465
    %5467 = vmatprep.mubr.f32.mxu0 %v4819
    %5468 = vmatmul.mubr.f32.gmra.mrb[0].mxu0 %v4837
    %v5469 = vpop.f32.mrb[0].mxu0
    %v5470 = vadd.f32 %v5213, %v5469
    %v5471 = vpop.f32.mrb[0].mxu0
    %v5472 = vadd.f32 %v5215, %v5471
    %5473 = vmatprep.mubr.f32.mxu0 %v4820
    %5474 = vmatmul.mubr.f32.gmra.mrb[0].mxu0 %v4838
    %v5475 = vpop.f32.mrb[0].mxu0
    %v5476 = vadd.f32 %v5219, %v5475
    %v5477 = vpop.f32.mrb[0].mxu0
    %v5478 = vadd.f32 %v5221, %v5477
    %5479 = vmatprep.mubr.f32.mxu0 %v4821
    %5480 = vmatmul.mubr.f32.gmra.mrb[0].mxu0 %v4839
    %v5481 = vpop.f32.mrb[0].mxu0
    %v5482 = vadd.f32 %v5225, %v5481
    %v5483 = vpop.f32.mrb[0].mxu0
    %v5484 = vadd.f32 %v5227, %v5483
    %5485 = vmatprep.mubr.f32.mxu0 %v4822
    %5486 = vmatmul.mubr.f32.gmra.mrb[0].mxu0 %v4840
    %v5487 = vpop.f32.mrb[0].mxu0
    %v5488 = vadd.f32 %v5231, %v5487
    %v5489 = vpop.f32.mrb[0].mxu0
    %v5490 = vadd.f32 %v5233, %v5489
    %5491 = vmatprep.mubr.f32.mxu0 %v4823
    %5492 = vmatmul.mubr.f32.gmra.mrb[0].mxu0 %v4841
    %v5493 = vpop.f32.mrb[0].mxu0
    %v5494 = vadd.f32 %v5237, %v5493
    %v5495 = vpop.f32.mrb[0].mxu0
    %v5496 = vadd.f32 %v5239, %v5495
    %5497 = vmatprep.mubr.f32.mxu0 %v4824
    %5498 = vmatmul.mubr.f32.gmra.mrb[0].mxu0 %v4842
    %v5499 = vpop.f32.mrb[0].mxu0
    %v5500 = vadd.f32 %v5243, %v5499
    %v5501 = vpop.f32.mrb[0].mxu0
    %v5502 = vadd.f32 %v5245, %v5501
    %5503 = vmatprep.mubr.f32.mxu0 %v4825
    %5504 = vmatmul.mubr.f32.gmra.mrb[0].mxu0 %v4843
    %v5505 = vpop.f32.mrb[0].mxu0
    %v5506 = vadd.f32 %v5249, %v5505
    %v5507 = vpop.f32.mrb[0].mxu0
    %v5508 = vadd.f32 %v5251, %v5507
    %5509 = vmatprep.mubr.f32.mxu0 %v4826
    %5510 = vmatmul.mubr.f32.gmra.mrb[0].mxu0 %v4844
    %v5511 = vpop.f32.mrb[0].mxu0
    %v5512 = vadd.f32 %v5255, %v5511
    %v5513 = vpop.f32.mrb[0].mxu0
    %v5514 = vadd.f32 %v5257, %v5513
    %5515 = vmatprep.mubr.f32.mxu0 %v4827
    %5516 = vmatmul.mubr.f32.gmra.mrb[0].mxu0 %v4845
    %v5517 = vpop.f32.mrb[0].mxu0
    %v5518 = vadd.f32 %v5261, %v5517
    %v5519 = vpop.f32.mrb[0].mxu0
    %v5520 = vadd.f32 %v5263, %v5519
    %5521 = vmatprep.mubr.f32.mxu0 %v4828
    %5522 = vmatmul.mubr.f32.gmra.mrb[0].mxu0 %v4846
    %v5523 = vpop.f32.mrb[0].mxu0
    %v5524 = vadd.f32 %v5267, %v5523
    %v5525 = vpop.f32.mrb[0].mxu0
    %v5526 = vadd.f32 %v5269, %v5525
    %5527 = vmatprep.mubr.f32.mxu0 %v4829
    %5528 = vmatmul.mubr.f32.gmra.mrb[0].mxu0 %v4847
    %v5529 = vpop.f32.mrb[0].mxu0
    %v5530 = vadd.f32 %v5273, %v5529
    %v5531 = vpop.f32.mrb[0].mxu0
    %v5532 = vadd.f32 %v5275, %v5531
    %5533 = vmatprep.mubr.f32.mxu0 %v4830
    %5534 = vmatmul.mubr.f32.gmra.mrb[0].mxu0 %v4848
    %v5535 = vpop.f32.mrb[0].mxu0
    %v5536 = vadd.f32 %v5279, %v5535
    %v5537 = vpop.f32.mrb[0].mxu0
    %v5538 = vadd.f32 %v5281, %v5537
    %5539 = vmatprep.mubr.f32.mxu0 %v4831
    %5540 = vmatmul.mubr.f32.gmra.mrb[0].mxu0 %v4849
    %v5541 = vpop.f32.mrb[0].mxu0
    %v5542 = vadd.f32 %v5285, %v5541
    %v5543 = vpop.f32.mrb[0].mxu0
    %v5544 = vadd.f32 %v5287, %v5543
    %5545 = vmatprep.mubr.f32.mxu0 %v4832
    %5546 = vmatmul.mubr.f32.gmra.mrb[0].mxu0 %v4850
    %v5547 = vpop.f32.mrb[0].mxu0
    %v5548 = vadd.f32 %v5291, %v5547
    %v5549 = vpop.f32.mrb[0].mxu0
    %v5550 = vadd.f32 %v5293, %v5549
    %5551 = vmatprep.mubr.f32.mxu0 %v4833
    %5552 = vmatmul.mubr.f32.gmra.mrb[0].mxu0 %v4851
    %v5553 = vpop.f32.mrb[0].mxu0
    %v5554 = vadd.f32 %v5297, %v5553
    %v5555 = vpop.f32.mrb[0].mxu0
    %v5556 = vadd.f32 %v5299, %v5555
    %5557 = vmatprep.mubr.f32.mxu0 %v4834
    %5558 = vmatmul.mubr.f32.gmra.mrb[0].mxu0 %v4852
    %v5559 = vpop.f32.mrb[0].mxu0
    %v5560 = vadd.f32 %v5303, %v5559
    %v5561 = vpop.f32.mrb[0].mxu0
    %v5562 = vadd.f32 %v5305, %v5561
    %5563 = vdwg.mxu0
    %5564 = vmatprep.subr.mxu0 %v4987
    %5565 = vmatpush1.msra.mxu0 %v4986
    %5566 = vmatprep.subr.mxu0 %v4989
    %5567 = vmatpush1.msra.mxu0 %v4988
    %5568 = vmatprep.subr.mxu0 %v4991
    %5569 = vmatpush1.msra.mxu0 %v4990
    %5570 = vmatprep.subr.mxu0 %v4993
    %5571 = vmatpush1.msra.mxu0 %v4992
    %5572 = vmatprep.subr.mxu0 %v4995
    %5573 = vmatpush1.msra.mxu0 %v4994
    %5574 = vmatprep.subr.mxu0 %v4997
    %5575 = vmatpush1.msra.mxu0 %v4996
    %5576 = vmatprep.subr.mxu0 %v4999
    %5577 = vmatpush1.msra.mxu0 %v4998
    %5578 = vmatprep.subr.mxu0 %v5001
    %5579 = vmatpush1.msra.mxu0 %v5000
    %5580 = vmatprep.subr.mxu0 %v5003
    %5581 = vmatpush1.msra.mxu0 %v5002
    %5582 = vmatprep.subr.mxu0 %v5005
    %5583 = vmatpush1.msra.mxu0 %v5004
    %5584 = vmatprep.subr.mxu0 %v5007
    %5585 = vmatpush1.msra.mxu0 %v5006
    %5586 = vmatprep.subr.mxu0 %v5009
    %5587 = vmatpush1.msra.mxu0 %v5008
    %5588 = vmatprep.subr.mxu0 %v5011
    %5589 = vmatpush1.msra.mxu0 %v5010
    %5590 = vmatprep.subr.mxu0 %v5013
    %5591 = vmatpush1.msra.mxu0 %v5012
    %5592 = vmatprep.subr.mxu0 %v5015
    %5593 = vmatpush1.msra.mxu0 %v5014
    %5594 = vmatprep.subr.mxu0 %v5017
    %5595 = vmatpush1.msra.mxu0 %v5016
    %5596 = vmatprep.subr.mxu0 %v5019
    %5597 = vmatpush1.msra.mxu0 %v5018
    %5598 = vmatprep.subr.mxu0 %v5021
    %5599 = vmatpush1.msra.mxu0 %v5020
    %5600 = vmatprep.subr.mxu0 %v5023
    %5601 = vmatpush1.msra.mxu0 %v5022
    %5602 = vmatprep.subr.mxu0 %v5025
    %5603 = vmatpush1.msra.mxu0 %v5024
    %5604 = vmatprep.subr.mxu0 %v5027
    %5605 = vmatpush1.msra.mxu0 %v5026
    %5606 = vmatprep.subr.mxu0 %v5029
    %5607 = vmatpush1.msra.mxu0 %v5028
    %5608 = vmatprep.subr.mxu0 %v5031
    %5609 = vmatpush1.msra.mxu0 %v5030
    %5610 = vmatprep.subr.mxu0 %v5033
    %5611 = vmatpush1.msra.mxu0 %v5032
    %5612 = vmatprep.subr.mxu0 %v5035
    %5613 = vmatpush1.msra.mxu0 %v5034
    %5614 = vmatprep.subr.mxu0 %v5037
    %5615 = vmatpush1.msra.mxu0 %v5036
    %5616 = vmatprep.subr.mxu0 %v5039
    %5617 = vmatpush1.msra.mxu0 %v5038
    %5618 = vmatprep.subr.mxu0 %v5041
    %5619 = vmatpush1.msra.mxu0 %v5040
    %5620 = vmatprep.subr.mxu0 %v5043
    %5621 = vmatpush1.msra.mxu0 %v5042
    %5622 = vmatprep.subr.mxu0 %v5045
    %5623 = vmatpush1.msra.mxu0 %v5044
    %5624 = vmatprep.subr.mxu0 %v5047
    %5625 = vmatpush1.msra.mxu0 %v5046
    %5626 = vmatprep.subr.mxu0 %v5049
    %5627 = vmatpush1.msra.mxu0 %v5048
    %5628 = vmatprep.mubr.f32.mxu0 %v4838
    %5629 = vmatmul.mubr.f32.gmra.mrb[0].mxu0 %v4819
    %v5630 = vpop.f32.mrb[0].mxu0
    %v5631 = vadd.f32 %v5374, %v5630
    %v5632 = vpop.f32.mrb[0].mxu0
    %v5633 = vadd.f32 %v5376, %v5632
    %5634 = vmatprep.mubr.f32.mxu0 %v4839
    %5635 = vmatmul.mubr.f32.gmra.mrb[0].mxu0 %v4820
    %v5636 = vpop.f32.mrb[0].mxu0
    %v5637 = vadd.f32 %v5380, %v5636
    %v5638 = vpop.f32.mrb[0].mxu0
    %v5639 = vadd.f32 %v5382, %v5638
    %5640 = vmatprep.mubr.f32.mxu0 %v4840
    %5641 = vmatmul.mubr.f32.gmra.mrb[0].mxu0 %v4821
    %v5642 = vpop.f32.mrb[0].mxu0
    %v5643 = vadd.f32 %v5386, %v5642
    %v5644 = vpop.f32.mrb[0].mxu0
    %v5645 = vadd.f32 %v5388, %v5644
    %5646 = vmatprep.mubr.f32.mxu0 %v4841
    %5647 = vmatmul.mubr.f32.gmra.mrb[0].mxu0 %v4822
    %v5648 = vpop.f32.mrb[0].mxu0
    %v5649 = vadd.f32 %v5392, %v5648
    %v5650 = vpop.f32.mrb[0].mxu0
    %v5651 = vadd.f32 %v5394, %v5650
    %5652 = vmatprep.mubr.f32.mxu0 %v4842
    %5653 = vmatmul.mubr.f32.gmra.mrb[0].mxu0 %v4823
    %v5654 = vpop.f32.mrb[0].mxu0
    %v5655 = vadd.f32 %v5398, %v5654
    %v5656 = vpop.f32.mrb[0].mxu0
    %v5657 = vadd.f32 %v5400, %v5656
    %5658 = vmatprep.mubr.f32.mxu0 %v4843
    %5659 = vmatmul.mubr.f32.gmra.mrb[0].mxu0 %v4824
    %v5660 = vpop.f32.mrb[0].mxu0
    %v5661 = vadd.f32 %v5404, %v5660
    %v5662 = vpop.f32.mrb[0].mxu0
    %v5663 = vadd.f32 %v5406, %v5662
    %5664 = vmatprep.mubr.f32.mxu0 %v4844
    %5665 = vmatmul.mubr.f32.gmra.mrb[0].mxu0 %v4825
    %v5666 = vpop.f32.mrb[0].mxu0
    %v5667 = vadd.f32 %v5410, %v5666
    %v5668 = vpop.f32.mrb[0].mxu0
    %v5669 = vadd.f32 %v5412, %v5668
    %5670 = vmatprep.mubr.f32.mxu0 %v4845
    %5671 = vmatmul.mubr.f32.gmra.mrb[0].mxu0 %v4826
    %v5672 = vpop.f32.mrb[0].mxu0
    %v5673 = vadd.f32 %v5416, %v5672
    %v5674 = vpop.f32.mrb[0].mxu0
    %v5675 = vadd.f32 %v5418, %v5674
    %5676 = vmatprep.mubr.f32.mxu0 %v4846
    %5677 = vmatmul.mubr.f32.gmra.mrb[0].mxu0 %v4827
    %v5678 = vpop.f32.mrb[0].mxu0
    %v5679 = vadd.f32 %v5422, %v5678
    %v5680 = vpop.f32.mrb[0].mxu0
    %v5681 = vadd.f32 %v5424, %v5680
    %5682 = vmatprep.mubr.f32.mxu0 %v4847
    %5683 = vmatmul.mubr.f32.gmra.mrb[0].mxu0 %v4828
    %v5684 = vpop.f32.mrb[0].mxu0
    %v5685 = vadd.f32 %v5428, %v5684
    %v5686 = vpop.f32.mrb[0].mxu0
    %v5687 = vadd.f32 %v5430, %v5686
    %5688 = vmatprep.mubr.f32.mxu0 %v4848
    %5689 = vmatmul.mubr.f32.gmra.mrb[0].mxu0 %v4829
    %v5690 = vpop.f32.mrb[0].mxu0
    %v5691 = vadd.f32 %v5434, %v5690
    %v5692 = vpop.f32.mrb[0].mxu0
    %v5693 = vadd.f32 %v5436, %v5692
    %5694 = vmatprep.mubr.f32.mxu0 %v4849
    %5695 = vmatmul.mubr.f32.gmra.mrb[0].mxu0 %v4830
    %v5696 = vpop.f32.mrb[0].mxu0
    %v5697 = vadd.f32 %v5440, %v5696
    %v5698 = vpop.f32.mrb[0].mxu0
    %v5699 = vadd.f32 %v5442, %v5698
    %5700 = vmatprep.mubr.f32.mxu0 %v4850
    %5701 = vmatmul.mubr.f32.gmra.mrb[0].mxu0 %v4831
    %v5702 = vpop.f32.mrb[0].mxu0
    %v5703 = vadd.f32 %v5446, %v5702
    %v5704 = vpop.f32.mrb[0].mxu0
    %v5705 = vadd.f32 %v5448, %v5704
    %5706 = vmatprep.mubr.f32.mxu0 %v4851
    %5707 = vmatmul.mubr.f32.gmra.mrb[0].mxu0 %v4832
    %v5708 = vpop.f32.mrb[0].mxu0
    %v5709 = vadd.f32 %v5452, %v5708
    %v5710 = vpop.f32.mrb[0].mxu0
    %v5711 = vadd.f32 %v5454, %v5710
    %5712 = vmatprep.mubr.f32.mxu0 %v4852
    %5713 = vmatmul.mubr.f32.gmra.mrb[0].mxu0 %v4833
    %v5714 = vpop.f32.mrb[0].mxu0
    %v5715 = vadd.f32 %v5458, %v5714
    %v5716 = vpop.f32.mrb[0].mxu0
    %v5717 = vadd.f32 %v5460, %v5716
    %5718 = vmatprep.mubr.f32.mxu0 %v4853
    %5719 = vmatmul.mubr.f32.gmra.mrb[0].mxu0 %v4834
    %v5720 = vpop.f32.mrb[0].mxu0
    %v5721 = vadd.f32 %v5464, %v5720
    %v5722 = vpop.f32.mrb[0].mxu0
    %v5723 = vadd.f32 %v5466, %v5722
    %5724 = vmatprep.mubr.f32.mxu0 %v4820
    %5725 = vmatmul.mubr.f32.gmra.mrb[0].mxu0 %v4838
    %v5726 = vpop.f32.mrb[0].mxu0
    %v5727 = vadd.f32 %v5470, %v5726
    %v5728 = vpop.f32.mrb[0].mxu0
    %v5729 = vadd.f32 %v5472, %v5728
    %5730 = vmatprep.mubr.f32.mxu0 %v4821
    %5731 = vmatmul.mubr.f32.gmra.mrb[0].mxu0 %v4839
    %v5732 = vpop.f32.mrb[0].mxu0
    %v5733 = vadd.f32 %v5476, %v5732
    %v5734 = vpop.f32.mrb[0].mxu0
    %v5735 = vadd.f32 %v5478, %v5734
    %5736 = vmatprep.mubr.f32.mxu0 %v4822
    %5737 = vmatmul.mubr.f32.gmra.mrb[0].mxu0 %v4840
    %v5738 = vpop.f32.mrb[0].mxu0
    %v5739 = vadd.f32 %v5482, %v5738
    %v5740 = vpop.f32.mrb[0].mxu0
    %v5741 = vadd.f32 %v5484, %v5740
    %5742 = vmatprep.mubr.f32.mxu0 %v4823
    %5743 = vmatmul.mubr.f32.gmra.mrb[0].mxu0 %v4841
    %v5744 = vpop.f32.mrb[0].mxu0
    %v5745 = vadd.f32 %v5488, %v5744
    %v5746 = vpop.f32.mrb[0].mxu0
    %v5747 = vadd.f32 %v5490, %v5746
    %5748 = vmatprep.mubr.f32.mxu0 %v4824
    %5749 = vmatmul.mubr.f32.gmra.mrb[0].mxu0 %v4842
    %v5750 = vpop.f32.mrb[0].mxu0
    %v5751 = vadd.f32 %v5494, %v5750
    %v5752 = vpop.f32.mrb[0].mxu0
    %v5753 = vadd.f32 %v5496, %v5752
    %5754 = vmatprep.mubr.f32.mxu0 %v4825
    %5755 = vmatmul.mubr.f32.gmra.mrb[0].mxu0 %v4843
    %v5756 = vpop.f32.mrb[0].mxu0
    %v5757 = vadd.f32 %v5500, %v5756
    %v5758 = vpop.f32.mrb[0].mxu0
    %v5759 = vadd.f32 %v5502, %v5758
    %5760 = vmatprep.mubr.f32.mxu0 %v4826
    %5761 = vmatmul.mubr.f32.gmra.mrb[0].mxu0 %v4844
    %v5762 = vpop.f32.mrb[0].mxu0
    %v5763 = vadd.f32 %v5506, %v5762
    %v5764 = vpop.f32.mrb[0].mxu0
    %v5765 = vadd.f32 %v5508, %v5764
    %5766 = vmatprep.mubr.f32.mxu0 %v4827
    %5767 = vmatmul.mubr.f32.gmra.mrb[0].mxu0 %v4845
    %v5768 = vpop.f32.mrb[0].mxu0
    %v5769 = vadd.f32 %v5512, %v5768
    %v5770 = vpop.f32.mrb[0].mxu0
    %v5771 = vadd.f32 %v5514, %v5770
    %5772 = vmatprep.mubr.f32.mxu0 %v4828
    %5773 = vmatmul.mubr.f32.gmra.mrb[0].mxu0 %v4846
    %v5774 = vpop.f32.mrb[0].mxu0
    %v5775 = vadd.f32 %v5518, %v5774
    %v5776 = vpop.f32.mrb[0].mxu0
    %v5777 = vadd.f32 %v5520, %v5776
    %5778 = vmatprep.mubr.f32.mxu0 %v4829
    %5779 = vmatmul.mubr.f32.gmra.mrb[0].mxu0 %v4847
    %v5780 = vpop.f32.mrb[0].mxu0
    %v5781 = vadd.f32 %v5524, %v5780
    %v5782 = vpop.f32.mrb[0].mxu0
    %v5783 = vadd.f32 %v5526, %v5782
    %5784 = vmatprep.mubr.f32.mxu0 %v4830
    %5785 = vmatmul.mubr.f32.gmra.mrb[0].mxu0 %v4848
    %v5786 = vpop.f32.mrb[0].mxu0
    %v5787 = vadd.f32 %v5530, %v5786
    %v5788 = vpop.f32.mrb[0].mxu0
    %v5789 = vadd.f32 %v5532, %v5788
    %5790 = vmatprep.mubr.f32.mxu0 %v4831
    %5791 = vmatmul.mubr.f32.gmra.mrb[0].mxu0 %v4849
    %v5792 = vpop.f32.mrb[0].mxu0
    %v5793 = vadd.f32 %v5536, %v5792
    %v5794 = vpop.f32.mrb[0].mxu0
    %v5795 = vadd.f32 %v5538, %v5794
    %5796 = vmatprep.mubr.f32.mxu0 %v4832
    %5797 = vmatmul.mubr.f32.gmra.mrb[0].mxu0 %v4850
    %v5798 = vpop.f32.mrb[0].mxu0
    %v5799 = vadd.f32 %v5542, %v5798
    %v5800 = vpop.f32.mrb[0].mxu0
    %v5801 = vadd.f32 %v5544, %v5800
    %5802 = vmatprep.mubr.f32.mxu0 %v4833
    %5803 = vmatmul.mubr.f32.gmra.mrb[0].mxu0 %v4851
    %v5804 = vpop.f32.mrb[0].mxu0
    %v5805 = vadd.f32 %v5548, %v5804
    %v5806 = vpop.f32.mrb[0].mxu0
    %v5807 = vadd.f32 %v5550, %v5806
    %5808 = vmatprep.mubr.f32.mxu0 %v4834
    %5809 = vmatmul.mubr.f32.gmra.mrb[0].mxu0 %v4852
    %v5810 = vpop.f32.mrb[0].mxu0
    %v5811 = vadd.f32 %v5554, %v5810
    %v5812 = vpop.f32.mrb[0].mxu0
    %v5813 = vadd.f32 %v5556, %v5812
    %5814 = vmatprep.mubr.f32.mxu0 %v4835
    %5815 = vmatmul.mubr.f32.gmra.mrb[0].mxu0 %v4853
    %v5816 = vpop.f32.mrb[0].mxu0
    %v5817 = vadd.f32 %v5560, %v5816
    %v5818 = vpop.f32.mrb[0].mxu0
    %v5819 = vadd.f32 %v5562, %v5818
    %5820 = vdwg.mxu0
    %v5821 = vmax.f32 %v5631, %v5727
    %v5822 = vmax.f32 %v5633, %v5729
    %v5823 = vmax.f32 %v5637, %v5733
    %v5824 = vmax.f32 %v5639, %v5735
    %v5825 = vmax.f32 %v5643, %v5739
    %v5826 = vmax.f32 %v5645, %v5741
    %v5827 = vmax.f32 %v5649, %v5745
    %v5828 = vmax.f32 %v5651, %v5747
    %v5829 = vmax.f32 %v5655, %v5751
    %v5830 = vmax.f32 %v5657, %v5753
    %v5831 = vmax.f32 %v5661, %v5757
    %v5832 = vmax.f32 %v5663, %v5759
    %v5833 = vmax.f32 %v5667, %v5763
    %v5834 = vmax.f32 %v5669, %v5765
    %v5835 = vmax.f32 %v5673, %v5769
    %v5836 = vmax.f32 %v5675, %v5771
    %v5837 = vmax.f32 %v5679, %v5775
    %v5838 = vmax.f32 %v5681, %v5777
    %v5839 = vmax.f32 %v5685, %v5781
    %v5840 = vmax.f32 %v5687, %v5783
    %v5841 = vmax.f32 %v5691, %v5787
    %v5842 = vmax.f32 %v5693, %v5789
    %v5843 = vmax.f32 %v5697, %v5793
    %v5844 = vmax.f32 %v5699, %v5795
    %v5845 = vmax.f32 %v5703, %v5799
    %v5846 = vmax.f32 %v5705, %v5801
    %v5847 = vmax.f32 %v5709, %v5805
    %v5848 = vmax.f32 %v5711, %v5807
    %v5849 = vmax.f32 %v5715, %v5811
    %v5850 = vmax.f32 %v5717, %v5813
    %v5851 = vmax.f32 %v5721, %v5817
    %v5852 = vmax.f32 %v5723, %v5819
    %v5853 = vmax.f32 %v5821, %v5822
    %v5854 = vmax.f32 %v5823, %v5824
    %v5855 = vmax.f32 %v5825, %v5826
    %v5856 = vmax.f32 %v5827, %v5828
    %v5857 = vmax.f32 %v5829, %v5830
    %v5858 = vmax.f32 %v5831, %v5832
    %v5859 = vmax.f32 %v5833, %v5834
    %v5860 = vmax.f32 %v5835, %v5836
    %v5861 = vmax.f32 %v5837, %v5838
    %v5862 = vmax.f32 %v5839, %v5840
    %v5863 = vmax.f32 %v5841, %v5842
    %v5864 = vmax.f32 %v5843, %v5844
    %v5865 = vmax.f32 %v5845, %v5846
    %v5866 = vmax.f32 %v5847, %v5848
    %v5867 = vmax.f32 %v5849, %v5850
    %v5868 = vmax.f32 %v5851, %v5852
    %v5869 = vld [vmem:[%s3] sm:$0x1]
    %v5871 = vlaneseq
    %v5872 = vshrl.u32 %v5871, 7
    %v5873 = vsub.s32 0, %v5872
    %v5874 = vrot.slane %v5869, %v5873
    %v5876 = vadd.f32 %v5853, %v5874
    %v5877 = vadd.f32 %v5854, %v5874
    %v5878 = vadd.f32 %v5855, %v5874
    %v5879 = vadd.f32 %v5856, %v5874
    %v5880 = vadd.f32 %v5857, %v5874
    %v5881 = vadd.f32 %v5858, %v5874
    %v5882 = vadd.f32 %v5859, %v5874
    %v5883 = vadd.f32 %v5860, %v5874
    %v5884 = vadd.f32 %v5861, %v5874
    %v5885 = vadd.f32 %v5862, %v5874
    %v5886 = vadd.f32 %v5863, %v5874
    %v5887 = vadd.f32 %v5864, %v5874
    %v5888 = vadd.f32 %v5865, %v5874
    %v5889 = vadd.f32 %v5866, %v5874
    %v5890 = vadd.f32 %v5867, %v5874
    %v5891 = vadd.f32 %v5868, %v5874
    %s5892 = smul.u32 8, 256
    %s5893 = smul.u32 %s5892, 2
    %s5894 = sshll.u32 %s5893, 4
    %5895 = dma.done %s465, %s5894
    %v5896 = vld [vmem:[#allocation3] sm:$0xff]
    %v5897 = vld [vmem:[#allocation3 + $0x8] sm:$0xff]
    %v5898 = vld [vmem:[#allocation3 + $0x10] sm:$0xff]
    %v5899 = vld [vmem:[#allocation3 + $0x18] sm:$0xff]
    %v5900 = vld [vmem:[#allocation3 + $0x20] sm:$0xff]
    %v5901 = vld [vmem:[#allocation3 + $0x28] sm:$0xff]
    %v5902 = vld [vmem:[#allocation3 + $0x30] sm:$0xff]
    %v5903 = vld [vmem:[#allocation3 + $0x38] sm:$0xff]
    %v5904 = vld [vmem:[#allocation3 + $0x40] sm:$0xff]
    %v5905 = vld [vmem:[#allocation3 + $0x48] sm:$0xff]
    %v5906 = vld [vmem:[#allocation3 + $0x50] sm:$0xff]
    %v5907 = vld [vmem:[#allocation3 + $0x58] sm:$0xff]
    %v5908 = vld [vmem:[#allocation3 + $0x60] sm:$0xff]
    %v5909 = vld [vmem:[#allocation3 + $0x68] sm:$0xff]
    %v5910 = vld [vmem:[#allocation3 + $0x70] sm:$0xff]
    %v5911 = vld [vmem:[#allocation3 + $0x78] sm:$0xff]
    %v5912 = vld [vmem:[#allocation3 + $0x80] sm:$0xff]
    %v5913 = vld [vmem:[#allocation3 + $0x88] sm:$0xff]
    %v5914 = vld [vmem:[#allocation3 + $0x90] sm:$0xff]
    %v5915 = vld [vmem:[#allocation3 + $0x98] sm:$0xff]
    %v5916 = vld [vmem:[#allocation3 + $0xa0] sm:$0xff]
    %v5917 = vld [vmem:[#allocation3 + $0xa8] sm:$0xff]
    %v5918 = vld [vmem:[#allocation3 + $0xb0] sm:$0xff]
    %v5919 = vld [vmem:[#allocation3 + $0xb8] sm:$0xff]
    %v5920 = vld [vmem:[#allocation3 + $0xc0] sm:$0xff]
    %v5921 = vld [vmem:[#allocation3 + $0xc8] sm:$0xff]
    %v5922 = vld [vmem:[#allocation3 + $0xd0] sm:$0xff]
    %v5923 = vld [vmem:[#allocation3 + $0xd8] sm:$0xff]
    %v5924 = vld [vmem:[#allocation3 + $0xe0] sm:$0xff]
    %v5925 = vld [vmem:[#allocation3 + $0xe8] sm:$0xff]
    %v5926 = vld [vmem:[#allocation3 + $0xf0] sm:$0xff]
    %v5927 = vld [vmem:[#allocation3 + $0xf8] sm:$0xff]
    %v5928 = vld [vmem:[#allocation3 + $0x100] sm:$0xff]
    %v5929 = vld [vmem:[#allocation3 + $0x108] sm:$0xff]
    %v5930 = vld [vmem:[#allocation3 + $0x110] sm:$0xff]
    %v5931 = vld [vmem:[#allocation3 + $0x118] sm:$0xff]
    %v5932 = vld [vmem:[#allocation3 + $0x120] sm:$0xff]
    %v5933 = vld [vmem:[#allocation3 + $0x128] sm:$0xff]
    %v5934 = vld [vmem:[#allocation3 + $0x130] sm:$0xff]
    %v5935 = vld [vmem:[#allocation3 + $0x138] sm:$0xff]
    %v5936 = vld [vmem:[#allocation3 + $0x140] sm:$0xff]
    %v5937 = vld [vmem:[#allocation3 + $0x148] sm:$0xff]
    %v5938 = vld [vmem:[#allocation3 + $0x150] sm:$0xff]
    %v5939 = vld [vmem:[#allocation3 + $0x158] sm:$0xff]
    %v5940 = vld [vmem:[#allocation3 + $0x160] sm:$0xff]
    %v5941 = vld [vmem:[#allocation3 + $0x168] sm:$0xff]
    %v5942 = vld [vmem:[#allocation3 + $0x170] sm:$0xff]
    %v5943 = vld [vmem:[#allocation3 + $0x178] sm:$0xff]
    %v5944 = vld [vmem:[#allocation3 + $0x180] sm:$0xff]
    %v5945 = vld [vmem:[#allocation3 + $0x188] sm:$0xff]
    %v5946 = vld [vmem:[#allocation3 + $0x190] sm:$0xff]
    %v5947 = vld [vmem:[#allocation3 + $0x198] sm:$0xff]
    %v5948 = vld [vmem:[#allocation3 + $0x1a0] sm:$0xff]
    %v5949 = vld [vmem:[#allocation3 + $0x1a8] sm:$0xff]
    %v5950 = vld [vmem:[#allocation3 + $0x1b0] sm:$0xff]
    %v5951 = vld [vmem:[#allocation3 + $0x1b8] sm:$0xff]
    %v5952 = vld [vmem:[#allocation3 + $0x1c0] sm:$0xff]
    %v5953 = vld [vmem:[#allocation3 + $0x1c8] sm:$0xff]
    %v5954 = vld [vmem:[#allocation3 + $0x1d0] sm:$0xff]
    %v5955 = vld [vmem:[#allocation3 + $0x1d8] sm:$0xff]
    %v5956 = vld [vmem:[#allocation3 + $0x1e0] sm:$0xff]
    %v5957 = vld [vmem:[#allocation3 + $0x1e8] sm:$0xff]
    %v5958 = vld [vmem:[#allocation3 + $0x1f0] sm:$0xff]
    %v5959 = vld [vmem:[#allocation3 + $0x1f8] sm:$0xff]
    %v5960 = vld [vmem:[#allocation3 + $0x200] sm:$0xff]
    %v5961 = vld [vmem:[#allocation3 + $0x208] sm:$0xff]
    %v5962 = vld [vmem:[#allocation3 + $0x210] sm:$0xff]
    %v5963 = vld [vmem:[#allocation3 + $0x218] sm:$0xff]
    %v5964 = vld [vmem:[#allocation3 + $0x220] sm:$0xff]
    %v5965 = vld [vmem:[#allocation3 + $0x228] sm:$0xff]
    %v5966 = vld [vmem:[#allocation3 + $0x230] sm:$0xff]
    %v5967 = vld [vmem:[#allocation3 + $0x238] sm:$0xff]
    %v5968 = vld [vmem:[#allocation3 + $0x240] sm:$0xff]
    %v5969 = vld [vmem:[#allocation3 + $0x248] sm:$0xff]
    %v5970 = vld [vmem:[#allocation3 + $0x250] sm:$0xff]
    %v5971 = vld [vmem:[#allocation3 + $0x258] sm:$0xff]
    %v5972 = vld [vmem:[#allocation3 + $0x260] sm:$0xff]
    %v5973 = vld [vmem:[#allocation3 + $0x268] sm:$0xff]
    %v5974 = vld [vmem:[#allocation3 + $0x270] sm:$0xff]
    %v5975 = vld [vmem:[#allocation3 + $0x278] sm:$0xff]
    %v5976 = vld [vmem:[#allocation3 + $0x280] sm:$0xff]
    %v5977 = vld [vmem:[#allocation3 + $0x288] sm:$0xff]
    %v5978 = vld [vmem:[#allocation3 + $0x290] sm:$0xff]
    %v5979 = vld [vmem:[#allocation3 + $0x298] sm:$0xff]
    %v5980 = vld [vmem:[#allocation3 + $0x2a0] sm:$0xff]
    %v5981 = vld [vmem:[#allocation3 + $0x2a8] sm:$0xff]
    %v5982 = vld [vmem:[#allocation3 + $0x2b0] sm:$0xff]
    %v5983 = vld [vmem:[#allocation3 + $0x2b8] sm:$0xff]
    %v5984 = vld [vmem:[#allocation3 + $0x2c0] sm:$0xff]
    %v5985 = vld [vmem:[#allocation3 + $0x2c8] sm:$0xff]
    %v5986 = vld [vmem:[#allocation3 + $0x2d0] sm:$0xff]
    %v5987 = vld [vmem:[#allocation3 + $0x2d8] sm:$0xff]
    %v5988 = vld [vmem:[#allocation3 + $0x2e0] sm:$0xff]
    %v5989 = vld [vmem:[#allocation3 + $0x2e8] sm:$0xff]
    %v5990 = vld [vmem:[#allocation3 + $0x2f0] sm:$0xff]
    %v5991 = vld [vmem:[#allocation3 + $0x2f8] sm:$0xff]
    %v5992 = vld [vmem:[#allocation3 + $0x300] sm:$0xff]
    %v5993 = vld [vmem:[#allocation3 + $0x308] sm:$0xff]
    %v5994 = vld [vmem:[#allocation3 + $0x310] sm:$0xff]
    %v5995 = vld [vmem:[#allocation3 + $0x318] sm:$0xff]
    %v5996 = vld [vmem:[#allocation3 + $0x320] sm:$0xff]
    %v5997 = vld [vmem:[#allocation3 + $0x328] sm:$0xff]
    %v5998 = vld [vmem:[#allocation3 + $0x330] sm:$0xff]
    %v5999 = vld [vmem:[#allocation3 + $0x338] sm:$0xff]
    %v6000 = vld [vmem:[#allocation3 + $0x340] sm:$0xff]
    %v6001 = vld [vmem:[#allocation3 + $0x348] sm:$0xff]
    %v6002 = vld [vmem:[#allocation3 + $0x350] sm:$0xff]
    %v6003 = vld [vmem:[#allocation3 + $0x358] sm:$0xff]
    %v6004 = vld [vmem:[#allocation3 + $0x360] sm:$0xff]
    %v6005 = vld [vmem:[#allocation3 + $0x368] sm:$0xff]
    %v6006 = vld [vmem:[#allocation3 + $0x370] sm:$0xff]
    %v6007 = vld [vmem:[#allocation3 + $0x378] sm:$0xff]
    %v6008 = vld [vmem:[#allocation3 + $0x380] sm:$0xff]
    %v6009 = vld [vmem:[#allocation3 + $0x388] sm:$0xff]
    %v6010 = vld [vmem:[#allocation3 + $0x390] sm:$0xff]
    %v6011 = vld [vmem:[#allocation3 + $0x398] sm:$0xff]
    %v6012 = vld [vmem:[#allocation3 + $0x3a0] sm:$0xff]
    %v6013 = vld [vmem:[#allocation3 + $0x3a8] sm:$0xff]
    %v6014 = vld [vmem:[#allocation3 + $0x3b0] sm:$0xff]
    %v6015 = vld [vmem:[#allocation3 + $0x3b8] sm:$0xff]
    %v6016 = vld [vmem:[#allocation3 + $0x3c0] sm:$0xff]
    %v6017 = vld [vmem:[#allocation3 + $0x3c8] sm:$0xff]
    %v6018 = vld [vmem:[#allocation3 + $0x3d0] sm:$0xff]
    %v6019 = vld [vmem:[#allocation3 + $0x3d8] sm:$0xff]
    %v6020 = vld [vmem:[#allocation3 + $0x3e0] sm:$0xff]
    %v6021 = vld [vmem:[#allocation3 + $0x3e8] sm:$0xff]
    %v6022 = vld [vmem:[#allocation3 + $0x3f0] sm:$0xff]
    %v6023 = vld [vmem:[#allocation3 + $0x3f8] sm:$0xff]
    %v6024 = vld [vmem:[#allocation3 + $0x400] sm:$0xff]
    %v6025 = vld [vmem:[#allocation3 + $0x408] sm:$0xff]
    %v6026 = vld [vmem:[#allocation3 + $0x410] sm:$0xff]
    %v6027 = vld [vmem:[#allocation3 + $0x418] sm:$0xff]
    %v6028 = vld [vmem:[#allocation3 + $0x420] sm:$0xff]
    %v6029 = vld [vmem:[#allocation3 + $0x428] sm:$0xff]
    %v6030 = vld [vmem:[#allocation3 + $0x430] sm:$0xff]
    %v6031 = vld [vmem:[#allocation3 + $0x438] sm:$0xff]
    %v6032 = vld [vmem:[#allocation3 + $0x440] sm:$0xff]
    %v6033 = vld [vmem:[#allocation3 + $0x448] sm:$0xff]
    %v6034 = vld [vmem:[#allocation3 + $0x450] sm:$0xff]
    %v6035 = vld [vmem:[#allocation3 + $0x458] sm:$0xff]
    %v6036 = vld [vmem:[#allocation3 + $0x460] sm:$0xff]
    %v6037 = vld [vmem:[#allocation3 + $0x468] sm:$0xff]
    %v6038 = vld [vmem:[#allocation3 + $0x470] sm:$0xff]
    %v6039 = vld [vmem:[#allocation3 + $0x478] sm:$0xff]
    %v6040 = vld [vmem:[#allocation3 + $0x480] sm:$0xff]
    %v6041 = vld [vmem:[#allocation3 + $0x488] sm:$0xff]
    %v6042 = vld [vmem:[#allocation3 + $0x490] sm:$0xff]
    %v6043 = vld [vmem:[#allocation3 + $0x498] sm:$0xff]
    %v6044 = vld [vmem:[#allocation3 + $0x4a0] sm:$0xff]
    %v6045 = vld [vmem:[#allocation3 + $0x4a8] sm:$0xff]
    %v6046 = vld [vmem:[#allocation3 + $0x4b0] sm:$0xff]
    %v6047 = vld [vmem:[#allocation3 + $0x4b8] sm:$0xff]
    %v6048 = vld [vmem:[#allocation3 + $0x4c0] sm:$0xff]
    %v6049 = vld [vmem:[#allocation3 + $0x4c8] sm:$0xff]
    %v6050 = vld [vmem:[#allocation3 + $0x4d0] sm:$0xff]
    %v6051 = vld [vmem:[#allocation3 + $0x4d8] sm:$0xff]
    %v6052 = vld [vmem:[#allocation3 + $0x4e0] sm:$0xff]
    %v6053 = vld [vmem:[#allocation3 + $0x4e8] sm:$0xff]
    %v6054 = vld [vmem:[#allocation3 + $0x4f0] sm:$0xff]
    %v6055 = vld [vmem:[#allocation3 + $0x4f8] sm:$0xff]
    %v6056 = vld [vmem:[#allocation3 + $0x500] sm:$0xff]
    %v6057 = vld [vmem:[#allocation3 + $0x508] sm:$0xff]
    %v6058 = vld [vmem:[#allocation3 + $0x510] sm:$0xff]
    %v6059 = vld [vmem:[#allocation3 + $0x518] sm:$0xff]
    %v6060 = vld [vmem:[#allocation3 + $0x520] sm:$0xff]
    %v6061 = vld [vmem:[#allocation3 + $0x528] sm:$0xff]
    %v6062 = vld [vmem:[#allocation3 + $0x530] sm:$0xff]
    %v6063 = vld [vmem:[#allocation3 + $0x538] sm:$0xff]
    %v6064 = vld [vmem:[#allocation3 + $0x540] sm:$0xff]
    %v6065 = vld [vmem:[#allocation3 + $0x548] sm:$0xff]
    %v6066 = vld [vmem:[#allocation3 + $0x550] sm:$0xff]
    %v6067 = vld [vmem:[#allocation3 + $0x558] sm:$0xff]
    %v6068 = vld [vmem:[#allocation3 + $0x560] sm:$0xff]
    %v6069 = vld [vmem:[#allocation3 + $0x568] sm:$0xff]
    %v6070 = vld [vmem:[#allocation3 + $0x570] sm:$0xff]
    %v6071 = vld [vmem:[#allocation3 + $0x578] sm:$0xff]
    %v6072 = vld [vmem:[#allocation3 + $0x580] sm:$0xff]
    %v6073 = vld [vmem:[#allocation3 + $0x588] sm:$0xff]
    %v6074 = vld [vmem:[#allocation3 + $0x590] sm:$0xff]
    %v6075 = vld [vmem:[#allocation3 + $0x598] sm:$0xff]
    %v6076 = vld [vmem:[#allocation3 + $0x5a0] sm:$0xff]
    %v6077 = vld [vmem:[#allocation3 + $0x5a8] sm:$0xff]
    %v6078 = vld [vmem:[#allocation3 + $0x5b0] sm:$0xff]
    %v6079 = vld [vmem:[#allocation3 + $0x5b8] sm:$0xff]
    %v6080 = vld [vmem:[#allocation3 + $0x5c0] sm:$0xff]
    %v6081 = vld [vmem:[#allocation3 + $0x5c8] sm:$0xff]
    %v6082 = vld [vmem:[#allocation3 + $0x5d0] sm:$0xff]
    %v6083 = vld [vmem:[#allocation3 + $0x5d8] sm:$0xff]
    %v6084 = vld [vmem:[#allocation3 + $0x5e0] sm:$0xff]
    %v6085 = vld [vmem:[#allocation3 + $0x5e8] sm:$0xff]
    %v6086 = vld [vmem:[#allocation3 + $0x5f0] sm:$0xff]
    %v6087 = vld [vmem:[#allocation3 + $0x5f8] sm:$0xff]
    %v6088 = vld [vmem:[#allocation3 + $0x600] sm:$0xff]
    %v6089 = vld [vmem:[#allocation3 + $0x608] sm:$0xff]
    %v6090 = vld [vmem:[#allocation3 + $0x610] sm:$0xff]
    %v6091 = vld [vmem:[#allocation3 + $0x618] sm:$0xff]
    %v6092 = vld [vmem:[#allocation3 + $0x620] sm:$0xff]
    %v6093 = vld [vmem:[#allocation3 + $0x628] sm:$0xff]
    %v6094 = vld [vmem:[#allocation3 + $0x630] sm:$0xff]
    %v6095 = vld [vmem:[#allocation3 + $0x638] sm:$0xff]
    %v6096 = vld [vmem:[#allocation3 + $0x640] sm:$0xff]
    %v6097 = vld [vmem:[#allocation3 + $0x648] sm:$0xff]
    %v6098 = vld [vmem:[#allocation3 + $0x650] sm:$0xff]
    %v6099 = vld [vmem:[#allocation3 + $0x658] sm:$0xff]
    %v6100 = vld [vmem:[#allocation3 + $0x660] sm:$0xff]
    %v6101 = vld [vmem:[#allocation3 + $0x668] sm:$0xff]
    %v6102 = vld [vmem:[#allocation3 + $0x670] sm:$0xff]
    %v6103 = vld [vmem:[#allocation3 + $0x678] sm:$0xff]
    %v6104 = vld [vmem:[#allocation3 + $0x680] sm:$0xff]
    %v6105 = vld [vmem:[#allocation3 + $0x688] sm:$0xff]
    %v6106 = vld [vmem:[#allocation3 + $0x690] sm:$0xff]
    %v6107 = vld [vmem:[#allocation3 + $0x698] sm:$0xff]
    %v6108 = vld [vmem:[#allocation3 + $0x6a0] sm:$0xff]
    %v6109 = vld [vmem:[#allocation3 + $0x6a8] sm:$0xff]
    %v6110 = vld [vmem:[#allocation3 + $0x6b0] sm:$0xff]
    %v6111 = vld [vmem:[#allocation3 + $0x6b8] sm:$0xff]
    %v6112 = vld [vmem:[#allocation3 + $0x6c0] sm:$0xff]
    %v6113 = vld [vmem:[#allocation3 + $0x6c8] sm:$0xff]
    %v6114 = vld [vmem:[#allocation3 + $0x6d0] sm:$0xff]
    %v6115 = vld [vmem:[#allocation3 + $0x6d8] sm:$0xff]
    %v6116 = vld [vmem:[#allocation3 + $0x6e0] sm:$0xff]
    %v6117 = vld [vmem:[#allocation3 + $0x6e8] sm:$0xff]
    %v6118 = vld [vmem:[#allocation3 + $0x6f0] sm:$0xff]
    %v6119 = vld [vmem:[#allocation3 + $0x6f8] sm:$0xff]
    %v6120 = vld [vmem:[#allocation3 + $0x700] sm:$0xff]
    %v6121 = vld [vmem:[#allocation3 + $0x708] sm:$0xff]
    %v6122 = vld [vmem:[#allocation3 + $0x710] sm:$0xff]
    %v6123 = vld [vmem:[#allocation3 + $0x718] sm:$0xff]
    %v6124 = vld [vmem:[#allocation3 + $0x720] sm:$0xff]
    %v6125 = vld [vmem:[#allocation3 + $0x728] sm:$0xff]
    %v6126 = vld [vmem:[#allocation3 + $0x730] sm:$0xff]
    %v6127 = vld [vmem:[#allocation3 + $0x738] sm:$0xff]
    %v6128 = vld [vmem:[#allocation3 + $0x740] sm:$0xff]
    %v6129 = vld [vmem:[#allocation3 + $0x748] sm:$0xff]
    %v6130 = vld [vmem:[#allocation3 + $0x750] sm:$0xff]
    %v6131 = vld [vmem:[#allocation3 + $0x758] sm:$0xff]
    %v6132 = vld [vmem:[#allocation3 + $0x760] sm:$0xff]
    %v6133 = vld [vmem:[#allocation3 + $0x768] sm:$0xff]
    %v6134 = vld [vmem:[#allocation3 + $0x770] sm:$0xff]
    %v6135 = vld [vmem:[#allocation3 + $0x778] sm:$0xff]
    %v6136 = vld [vmem:[#allocation3 + $0x780] sm:$0xff]
    %v6137 = vld [vmem:[#allocation3 + $0x788] sm:$0xff]
    %v6138 = vld [vmem:[#allocation3 + $0x790] sm:$0xff]
    %v6139 = vld [vmem:[#allocation3 + $0x798] sm:$0xff]
    %v6140 = vld [vmem:[#allocation3 + $0x7a0] sm:$0xff]
    %v6141 = vld [vmem:[#allocation3 + $0x7a8] sm:$0xff]
    %v6142 = vld [vmem:[#allocation3 + $0x7b0] sm:$0xff]
    %v6143 = vld [vmem:[#allocation3 + $0x7b8] sm:$0xff]
    %v6144 = vld [vmem:[#allocation3 + $0x7c0] sm:$0xff]
    %v6145 = vld [vmem:[#allocation3 + $0x7c8] sm:$0xff]
    %v6146 = vld [vmem:[#allocation3 + $0x7d0] sm:$0xff]
    %v6147 = vld [vmem:[#allocation3 + $0x7d8] sm:$0xff]
    %v6148 = vld [vmem:[#allocation3 + $0x7e0] sm:$0xff]
    %v6149 = vld [vmem:[#allocation3 + $0x7e8] sm:$0xff]
    %v6150 = vld [vmem:[#allocation3 + $0x7f0] sm:$0xff]
    %v6151 = vld [vmem:[#allocation3 + $0x7f8] sm:$0xff]
    %v6152 = vld [vmem:[#allocation3 + $0x800] sm:$0xff]
    %v6153 = vld [vmem:[#allocation3 + $0x808] sm:$0xff]
    %v6154 = vld [vmem:[#allocation3 + $0x810] sm:$0xff]
    %v6155 = vld [vmem:[#allocation3 + $0x818] sm:$0xff]
    %v6156 = vld [vmem:[#allocation3 + $0x820] sm:$0xff]
    %v6157 = vld [vmem:[#allocation3 + $0x828] sm:$0xff]
    %v6158 = vld [vmem:[#allocation3 + $0x830] sm:$0xff]
    %v6159 = vld [vmem:[#allocation3 + $0x838] sm:$0xff]
    %v6160 = vld [vmem:[#allocation3 + $0x840] sm:$0xff]
    %v6161 = vld [vmem:[#allocation3 + $0x848] sm:$0xff]
    %v6162 = vld [vmem:[#allocation3 + $0x850] sm:$0xff]
    %v6163 = vld [vmem:[#allocation3 + $0x858] sm:$0xff]
    %v6164 = vld [vmem:[#allocation3 + $0x860] sm:$0xff]
    %v6165 = vld [vmem:[#allocation3 + $0x868] sm:$0xff]
    %v6166 = vld [vmem:[#allocation3 + $0x870] sm:$0xff]
    %v6167 = vld [vmem:[#allocation3 + $0x878] sm:$0xff]
    %v6168 = vld [vmem:[#allocation3 + $0x880] sm:$0xff]
    %v6169 = vld [vmem:[#allocation3 + $0x888] sm:$0xff]
    %v6170 = vld [vmem:[#allocation3 + $0x890] sm:$0xff]
    %v6171 = vld [vmem:[#allocation3 + $0x898] sm:$0xff]
    %v6172 = vld [vmem:[#allocation3 + $0x8a0] sm:$0xff]
    %v6173 = vld [vmem:[#allocation3 + $0x8a8] sm:$0xff]
    %v6174 = vld [vmem:[#allocation3 + $0x8b0] sm:$0xff]
    %v6175 = vld [vmem:[#allocation3 + $0x8b8] sm:$0xff]
    %v6176 = vld [vmem:[#allocation3 + $0x8c0] sm:$0xff]
    %v6177 = vld [vmem:[#allocation3 + $0x8c8] sm:$0xff]
    %v6178 = vld [vmem:[#allocation3 + $0x8d0] sm:$0xff]
    %v6179 = vld [vmem:[#allocation3 + $0x8d8] sm:$0xff]
    %v6180 = vld [vmem:[#allocation3 + $0x8e0] sm:$0xff]
    %v6181 = vld [vmem:[#allocation3 + $0x8e8] sm:$0xff]
    %v6182 = vld [vmem:[#allocation3 + $0x8f0] sm:$0xff]
    %v6183 = vld [vmem:[#allocation3 + $0x8f8] sm:$0xff]
    %v6184 = vld [vmem:[#allocation3 + $0x900] sm:$0xff]
    %v6185 = vld [vmem:[#allocation3 + $0x908] sm:$0xff]
    %v6186 = vld [vmem:[#allocation3 + $0x910] sm:$0xff]
    %v6187 = vld [vmem:[#allocation3 + $0x918] sm:$0xff]
    %v6188 = vld [vmem:[#allocation3 + $0x920] sm:$0xff]
    %v6189 = vld [vmem:[#allocation3 + $0x928] sm:$0xff]
    %v6190 = vld [vmem:[#allocation3 + $0x930] sm:$0xff]
    %v6191 = vld [vmem:[#allocation3 + $0x938] sm:$0xff]
    %v6192 = vld [vmem:[#allocation3 + $0x940] sm:$0xff]
    %v6193 = vld [vmem:[#allocation3 + $0x948] sm:$0xff]
    %v6194 = vld [vmem:[#allocation3 + $0x950] sm:$0xff]
    %v6195 = vld [vmem:[#allocation3 + $0x958] sm:$0xff]
    %v6196 = vld [vmem:[#allocation3 + $0x960] sm:$0xff]
    %v6197 = vld [vmem:[#allocation3 + $0x968] sm:$0xff]
    %v6198 = vld [vmem:[#allocation3 + $0x970] sm:$0xff]
    %v6199 = vld [vmem:[#allocation3 + $0x978] sm:$0xff]
    %v6200 = vld [vmem:[#allocation3 + $0x980] sm:$0xff]
    %v6201 = vld [vmem:[#allocation3 + $0x988] sm:$0xff]
    %v6202 = vld [vmem:[#allocation3 + $0x990] sm:$0xff]
    %v6203 = vld [vmem:[#allocation3 + $0x998] sm:$0xff]
    %v6204 = vld [vmem:[#allocation3 + $0x9a0] sm:$0xff]
    %v6205 = vld [vmem:[#allocation3 + $0x9a8] sm:$0xff]
    %v6206 = vld [vmem:[#allocation3 + $0x9b0] sm:$0xff]
    %v6207 = vld [vmem:[#allocation3 + $0x9b8] sm:$0xff]
    %v6208 = vld [vmem:[#allocation3 + $0x9c0] sm:$0xff]
    %v6209 = vld [vmem:[#allocation3 + $0x9c8] sm:$0xff]
    %v6210 = vld [vmem:[#allocation3 + $0x9d0] sm:$0xff]
    %v6211 = vld [vmem:[#allocation3 + $0x9d8] sm:$0xff]
    %v6212 = vld [vmem:[#allocation3 + $0x9e0] sm:$0xff]
    %v6213 = vld [vmem:[#allocation3 + $0x9e8] sm:$0xff]
    %v6214 = vld [vmem:[#allocation3 + $0x9f0] sm:$0xff]
    %v6215 = vld [vmem:[#allocation3 + $0x9f8] sm:$0xff]
    %v6216 = vld [vmem:[#allocation3 + $0xa00] sm:$0xff]
    %v6217 = vld [vmem:[#allocation3 + $0xa08] sm:$0xff]
    %v6218 = vld [vmem:[#allocation3 + $0xa10] sm:$0xff]
    %v6219 = vld [vmem:[#allocation3 + $0xa18] sm:$0xff]
    %v6220 = vld [vmem:[#allocation3 + $0xa20] sm:$0xff]
    %v6221 = vld [vmem:[#allocation3 + $0xa28] sm:$0xff]
    %v6222 = vld [vmem:[#allocation3 + $0xa30] sm:$0xff]
    %v6223 = vld [vmem:[#allocation3 + $0xa38] sm:$0xff]
    %v6224 = vld [vmem:[#allocation3 + $0xa40] sm:$0xff]
    %v6225 = vld [vmem:[#allocation3 + $0xa48] sm:$0xff]
    %v6226 = vld [vmem:[#allocation3 + $0xa50] sm:$0xff]
    %v6227 = vld [vmem:[#allocation3 + $0xa58] sm:$0xff]
    %v6228 = vld [vmem:[#allocation3 + $0xa60] sm:$0xff]
    %v6229 = vld [vmem:[#allocation3 + $0xa68] sm:$0xff]
    %v6230 = vld [vmem:[#allocation3 + $0xa70] sm:$0xff]
    %v6231 = vld [vmem:[#allocation3 + $0xa78] sm:$0xff]
    %v6232 = vld [vmem:[#allocation3 + $0xa80] sm:$0xff]
    %v6233 = vld [vmem:[#allocation3 + $0xa88] sm:$0xff]
    %v6234 = vld [vmem:[#allocation3 + $0xa90] sm:$0xff]
    %v6235 = vld [vmem:[#allocation3 + $0xa98] sm:$0xff]
    %v6236 = vld [vmem:[#allocation3 + $0xaa0] sm:$0xff]
    %v6237 = vld [vmem:[#allocation3 + $0xaa8] sm:$0xff]
    %v6238 = vld [vmem:[#allocation3 + $0xab0] sm:$0xff]
    %v6239 = vld [vmem:[#allocation3 + $0xab8] sm:$0xff]
    %v6240 = vld [vmem:[#allocation3 + $0xac0] sm:$0xff]
    %v6241 = vld [vmem:[#allocation3 + $0xac8] sm:$0xff]
    %v6242 = vld [vmem:[#allocation3 + $0xad0] sm:$0xff]
    %v6243 = vld [vmem:[#allocation3 + $0xad8] sm:$0xff]
    %v6244 = vld [vmem:[#allocation3 + $0xae0] sm:$0xff]
    %v6245 = vld [vmem:[#allocation3 + $0xae8] sm:$0xff]
    %v6246 = vld [vmem:[#allocation3 + $0xaf0] sm:$0xff]
    %v6247 = vld [vmem:[#allocation3 + $0xaf8] sm:$0xff]
    %v6248 = vld [vmem:[#allocation3 + $0xb00] sm:$0xff]
    %v6249 = vld [vmem:[#allocation3 + $0xb08] sm:$0xff]
    %v6250 = vld [vmem:[#allocation3 + $0xb10] sm:$0xff]
    %v6251 = vld [vmem:[#allocation3 + $0xb18] sm:$0xff]
    %v6252 = vld [vmem:[#allocation3 + $0xb20] sm:$0xff]
    %v6253 = vld [vmem:[#allocation3 + $0xb28] sm:$0xff]
    %v6254 = vld [vmem:[#allocation3 + $0xb30] sm:$0xff]
    %v6255 = vld [vmem:[#allocation3 + $0xb38] sm:$0xff]
    %v6256 = vld [vmem:[#allocation3 + $0xb40] sm:$0xff]
    %v6257 = vld [vmem:[#allocation3 + $0xb48] sm:$0xff]
    %v6258 = vld [vmem:[#allocation3 + $0xb50] sm:$0xff]
    %v6259 = vld [vmem:[#allocation3 + $0xb58] sm:$0xff]
    %v6260 = vld [vmem:[#allocation3 + $0xb60] sm:$0xff]
    %v6261 = vld [vmem:[#allocation3 + $0xb68] sm:$0xff]
    %v6262 = vld [vmem:[#allocation3 + $0xb70] sm:$0xff]
    %v6263 = vld [vmem:[#allocation3 + $0xb78] sm:$0xff]
    %v6264 = vld [vmem:[#allocation3 + $0xb80] sm:$0xff]
    %v6265 = vld [vmem:[#allocation3 + $0xb88] sm:$0xff]
    %v6266 = vld [vmem:[#allocation3 + $0xb90] sm:$0xff]
    %v6267 = vld [vmem:[#allocation3 + $0xb98] sm:$0xff]
    %v6268 = vld [vmem:[#allocation3 + $0xba0] sm:$0xff]
    %v6269 = vld [vmem:[#allocation3 + $0xba8] sm:$0xff]
    %v6270 = vld [vmem:[#allocation3 + $0xbb0] sm:$0xff]
    %v6271 = vld [vmem:[#allocation3 + $0xbb8] sm:$0xff]
    %v6272 = vld [vmem:[#allocation3 + $0xbc0] sm:$0xff]
    %v6273 = vld [vmem:[#allocation3 + $0xbc8] sm:$0xff]
    %v6274 = vld [vmem:[#allocation3 + $0xbd0] sm:$0xff]
    %v6275 = vld [vmem:[#allocation3 + $0xbd8] sm:$0xff]
    %v6276 = vld [vmem:[#allocation3 + $0xbe0] sm:$0xff]
    %v6277 = vld [vmem:[#allocation3 + $0xbe8] sm:$0xff]
    %v6278 = vld [vmem:[#allocation3 + $0xbf0] sm:$0xff]
    %v6279 = vld [vmem:[#allocation3 + $0xbf8] sm:$0xff]
    %v6280 = vld [vmem:[#allocation3 + $0xc00] sm:$0xff]
    %v6281 = vld [vmem:[#allocation3 + $0xc08] sm:$0xff]
    %v6282 = vld [vmem:[#allocation3 + $0xc10] sm:$0xff]
    %v6283 = vld [vmem:[#allocation3 + $0xc18] sm:$0xff]
    %v6284 = vld [vmem:[#allocation3 + $0xc20] sm:$0xff]
    %v6285 = vld [vmem:[#allocation3 + $0xc28] sm:$0xff]
    %v6286 = vld [vmem:[#allocation3 + $0xc30] sm:$0xff]
    %v6287 = vld [vmem:[#allocation3 + $0xc38] sm:$0xff]
    %v6288 = vld [vmem:[#allocation3 + $0xc40] sm:$0xff]
    %v6289 = vld [vmem:[#allocation3 + $0xc48] sm:$0xff]
    %v6290 = vld [vmem:[#allocation3 + $0xc50] sm:$0xff]
    %v6291 = vld [vmem:[#allocation3 + $0xc58] sm:$0xff]
    %v6292 = vld [vmem:[#allocation3 + $0xc60] sm:$0xff]
    %v6293 = vld [vmem:[#allocation3 + $0xc68] sm:$0xff]
    %v6294 = vld [vmem:[#allocation3 + $0xc70] sm:$0xff]
    %v6295 = vld [vmem:[#allocation3 + $0xc78] sm:$0xff]
    %v6296 = vld [vmem:[#allocation3 + $0xc80] sm:$0xff]
    %v6297 = vld [vmem:[#allocation3 + $0xc88] sm:$0xff]
    %v6298 = vld [vmem:[#allocation3 + $0xc90] sm:$0xff]
    %v6299 = vld [vmem:[#allocation3 + $0xc98] sm:$0xff]
    %v6300 = vld [vmem:[#allocation3 + $0xca0] sm:$0xff]
    %v6301 = vld [vmem:[#allocation3 + $0xca8] sm:$0xff]
    %v6302 = vld [vmem:[#allocation3 + $0xcb0] sm:$0xff]
    %v6303 = vld [vmem:[#allocation3 + $0xcb8] sm:$0xff]
    %v6304 = vld [vmem:[#allocation3 + $0xcc0] sm:$0xff]
    %v6305 = vld [vmem:[#allocation3 + $0xcc8] sm:$0xff]
    %v6306 = vld [vmem:[#allocation3 + $0xcd0] sm:$0xff]
    %v6307 = vld [vmem:[#allocation3 + $0xcd8] sm:$0xff]
    %v6308 = vld [vmem:[#allocation3 + $0xce0] sm:$0xff]
    %v6309 = vld [vmem:[#allocation3 + $0xce8] sm:$0xff]
    %v6310 = vld [vmem:[#allocation3 + $0xcf0] sm:$0xff]
    %v6311 = vld [vmem:[#allocation3 + $0xcf8] sm:$0xff]
    %v6312 = vld [vmem:[#allocation3 + $0xd00] sm:$0xff]
    %v6313 = vld [vmem:[#allocation3 + $0xd08] sm:$0xff]
    %v6314 = vld [vmem:[#allocation3 + $0xd10] sm:$0xff]
    %v6315 = vld [vmem:[#allocation3 + $0xd18] sm:$0xff]
    %v6316 = vld [vmem:[#allocation3 + $0xd20] sm:$0xff]
    %v6317 = vld [vmem:[#allocation3 + $0xd28] sm:$0xff]
    %v6318 = vld [vmem:[#allocation3 + $0xd30] sm:$0xff]
    %v6319 = vld [vmem:[#allocation3 + $0xd38] sm:$0xff]
    %v6320 = vld [vmem:[#allocation3 + $0xd40] sm:$0xff]
    %v6321 = vld [vmem:[#allocation3 + $0xd48] sm:$0xff]
    %v6322 = vld [vmem:[#allocation3 + $0xd50] sm:$0xff]
    %v6323 = vld [vmem:[#allocation3 + $0xd58] sm:$0xff]
    %v6324 = vld [vmem:[#allocation3 + $0xd60] sm:$0xff]
    %v6325 = vld [vmem:[#allocation3 + $0xd68] sm:$0xff]
    %v6326 = vld [vmem:[#allocation3 + $0xd70] sm:$0xff]
    %v6327 = vld [vmem:[#allocation3 + $0xd78] sm:$0xff]
    %v6328 = vld [vmem:[#allocation3 + $0xd80] sm:$0xff]
    %v6329 = vld [vmem:[#allocation3 + $0xd88] sm:$0xff]
    %v6330 = vld [vmem:[#allocation3 + $0xd90] sm:$0xff]
    %v6331 = vld [vmem:[#allocation3 + $0xd98] sm:$0xff]
    %v6332 = vld [vmem:[#allocation3 + $0xda0] sm:$0xff]
    %v6333 = vld [vmem:[#allocation3 + $0xda8] sm:$0xff]
    %v6334 = vld [vmem:[#allocation3 + $0xdb0] sm:$0xff]
    %v6335 = vld [vmem:[#allocation3 + $0xdb8] sm:$0xff]
    %v6336 = vld [vmem:[#allocation3 + $0xdc0] sm:$0xff]
    %v6337 = vld [vmem:[#allocation3 + $0xdc8] sm:$0xff]
    %v6338 = vld [vmem:[#allocation3 + $0xdd0] sm:$0xff]
    %v6339 = vld [vmem:[#allocation3 + $0xdd8] sm:$0xff]
    %v6340 = vld [vmem:[#allocation3 + $0xde0] sm:$0xff]
    %v6341 = vld [vmem:[#allocation3 + $0xde8] sm:$0xff]
    %v6342 = vld [vmem:[#allocation3 + $0xdf0] sm:$0xff]
    %v6343 = vld [vmem:[#allocation3 + $0xdf8] sm:$0xff]
    %v6344 = vld [vmem:[#allocation3 + $0xe00] sm:$0xff]
    %v6345 = vld [vmem:[#allocation3 + $0xe08] sm:$0xff]
    %v6346 = vld [vmem:[#allocation3 + $0xe10] sm:$0xff]
    %v6347 = vld [vmem:[#allocation3 + $0xe18] sm:$0xff]
    %v6348 = vld [vmem:[#allocation3 + $0xe20] sm:$0xff]
    %v6349 = vld [vmem:[#allocation3 + $0xe28] sm:$0xff]
    %v6350 = vld [vmem:[#allocation3 + $0xe30] sm:$0xff]
    %v6351 = vld [vmem:[#allocation3 + $0xe38] sm:$0xff]
    %v6352 = vld [vmem:[#allocation3 + $0xe40] sm:$0xff]
    %v6353 = vld [vmem:[#allocation3 + $0xe48] sm:$0xff]
    %v6354 = vld [vmem:[#allocation3 + $0xe50] sm:$0xff]
    %v6355 = vld [vmem:[#allocation3 + $0xe58] sm:$0xff]
    %v6356 = vld [vmem:[#allocation3 + $0xe60] sm:$0xff]
    %v6357 = vld [vmem:[#allocation3 + $0xe68] sm:$0xff]
    %v6358 = vld [vmem:[#allocation3 + $0xe70] sm:$0xff]
    %v6359 = vld [vmem:[#allocation3 + $0xe78] sm:$0xff]
    %v6360 = vld [vmem:[#allocation3 + $0xe80] sm:$0xff]
    %v6361 = vld [vmem:[#allocation3 + $0xe88] sm:$0xff]
    %v6362 = vld [vmem:[#allocation3 + $0xe90] sm:$0xff]
    %v6363 = vld [vmem:[#allocation3 + $0xe98] sm:$0xff]
    %v6364 = vld [vmem:[#allocation3 + $0xea0] sm:$0xff]
    %v6365 = vld [vmem:[#allocation3 + $0xea8] sm:$0xff]
    %v6366 = vld [vmem:[#allocation3 + $0xeb0] sm:$0xff]
    %v6367 = vld [vmem:[#allocation3 + $0xeb8] sm:$0xff]
    %v6368 = vld [vmem:[#allocation3 + $0xec0] sm:$0xff]
    %v6369 = vld [vmem:[#allocation3 + $0xec8] sm:$0xff]
    %v6370 = vld [vmem:[#allocation3 + $0xed0] sm:$0xff]
    %v6371 = vld [vmem:[#allocation3 + $0xed8] sm:$0xff]
    %v6372 = vld [vmem:[#allocation3 + $0xee0] sm:$0xff]
    %v6373 = vld [vmem:[#allocation3 + $0xee8] sm:$0xff]
    %v6374 = vld [vmem:[#allocation3 + $0xef0] sm:$0xff]
    %v6375 = vld [vmem:[#allocation3 + $0xef8] sm:$0xff]
    %v6376 = vld [vmem:[#allocation3 + $0xf00] sm:$0xff]
    %v6377 = vld [vmem:[#allocation3 + $0xf08] sm:$0xff]
    %v6378 = vld [vmem:[#allocation3 + $0xf10] sm:$0xff]
    %v6379 = vld [vmem:[#allocation3 + $0xf18] sm:$0xff]
    %v6380 = vld [vmem:[#allocation3 + $0xf20] sm:$0xff]
    %v6381 = vld [vmem:[#allocation3 + $0xf28] sm:$0xff]
    %v6382 = vld [vmem:[#allocation3 + $0xf30] sm:$0xff]
    %v6383 = vld [vmem:[#allocation3 + $0xf38] sm:$0xff]
    %v6384 = vld [vmem:[#allocation3 + $0xf40] sm:$0xff]
    %v6385 = vld [vmem:[#allocation3 + $0xf48] sm:$0xff]
    %v6386 = vld [vmem:[#allocation3 + $0xf50] sm:$0xff]
    %v6387 = vld [vmem:[#allocation3 + $0xf58] sm:$0xff]
    %v6388 = vld [vmem:[#allocation3 + $0xf60] sm:$0xff]
    %v6389 = vld [vmem:[#allocation3 + $0xf68] sm:$0xff]
    %v6390 = vld [vmem:[#allocation3 + $0xf70] sm:$0xff]
    %v6391 = vld [vmem:[#allocation3 + $0xf78] sm:$0xff]
    %v6392 = vld [vmem:[#allocation3 + $0xf80] sm:$0xff]
    %v6393 = vld [vmem:[#allocation3 + $0xf88] sm:$0xff]
    %v6394 = vld [vmem:[#allocation3 + $0xf90] sm:$0xff]
    %v6395 = vld [vmem:[#allocation3 + $0xf98] sm:$0xff]
    %v6396 = vld [vmem:[#allocation3 + $0xfa0] sm:$0xff]
    %v6397 = vld [vmem:[#allocation3 + $0xfa8] sm:$0xff]
    %v6398 = vld [vmem:[#allocation3 + $0xfb0] sm:$0xff]
    %v6399 = vld [vmem:[#allocation3 + $0xfb8] sm:$0xff]
    %v6400 = vld [vmem:[#allocation3 + $0xfc0] sm:$0xff]
    %v6401 = vld [vmem:[#allocation3 + $0xfc8] sm:$0xff]
    %v6402 = vld [vmem:[#allocation3 + $0xfd0] sm:$0xff]
    %v6403 = vld [vmem:[#allocation3 + $0xfd8] sm:$0xff]
    %v6404 = vld [vmem:[#allocation3 + $0xfe0] sm:$0xff]
    %v6405 = vld [vmem:[#allocation3 + $0xfe8] sm:$0xff]
    %v6406 = vld [vmem:[#allocation3 + $0xff0] sm:$0xff]
    %v6407 = vld [vmem:[#allocation3 + $0xff8] sm:$0xff]
    %v6408 = vld [vmem:[%s4] sm:$0x3]
    %v6410 = vlaneseq
    %v6411 = vshrl.u32 %v6410, 7
    %v6412 = vsub.s32 0, %v6411
    %v6413 = vrot.slane %v6408, %v6412
    %v6414 = vlaneseq
    %v6415 = vshrl.u32 %v6414, 7
    %v6416 = vsub.s32 1, %v6415
    %v6417 = vrot.slane %v6408, %v6416
    %6420 = vmatprep.subr.mxu0 %v5897
    %6421 = vmatpush1.msra.mxu0 %v5896
    %6422 = vmatprep.subr.mxu0 %v5899
    %6423 = vmatpush1.msra.mxu0 %v5898
    %6424 = vmatprep.subr.mxu0 %v5901
    %6425 = vmatpush1.msra.mxu0 %v5900
    %6426 = vmatprep.subr.mxu0 %v5903
    %6427 = vmatpush1.msra.mxu0 %v5902
    %6428 = vmatprep.subr.mxu0 %v5905
    %6429 = vmatpush1.msra.mxu0 %v5904
    %6430 = vmatprep.subr.mxu0 %v5907
    %6431 = vmatpush1.msra.mxu0 %v5906
    %6432 = vmatprep.subr.mxu0 %v5909
    %6433 = vmatpush1.msra.mxu0 %v5908
    %6434 = vmatprep.subr.mxu0 %v5911
    %6435 = vmatpush1.msra.mxu0 %v5910
    %6436 = vmatprep.subr.mxu0 %v5913
    %6437 = vmatpush1.msra.mxu0 %v5912
    %6438 = vmatprep.subr.mxu0 %v5915
    %6439 = vmatpush1.msra.mxu0 %v5914
    %6440 = vmatprep.subr.mxu0 %v5917
    %6441 = vmatpush1.msra.mxu0 %v5916
    %6442 = vmatprep.subr.mxu0 %v5919
    %6443 = vmatpush1.msra.mxu0 %v5918
    %6444 = vmatprep.subr.mxu0 %v5921
    %6445 = vmatpush1.msra.mxu0 %v5920
    %6446 = vmatprep.subr.mxu0 %v5923
    %6447 = vmatpush1.msra.mxu0 %v5922
    %6448 = vmatprep.subr.mxu0 %v5925
    %6449 = vmatpush1.msra.mxu0 %v5924
    %6450 = vmatprep.subr.mxu0 %v5927
    %6451 = vmatpush1.msra.mxu0 %v5926
    %6452 = vmatprep.subr.mxu0 %v5929
    %6453 = vmatpush1.msra.mxu0 %v5928
    %6454 = vmatprep.subr.mxu0 %v5931
    %6455 = vmatpush1.msra.mxu0 %v5930
    %6456 = vmatprep.subr.mxu0 %v5933
    %6457 = vmatpush1.msra.mxu0 %v5932
    %6458 = vmatprep.subr.mxu0 %v5935
    %6459 = vmatpush1.msra.mxu0 %v5934
    %6460 = vmatprep.subr.mxu0 %v5937
    %6461 = vmatpush1.msra.mxu0 %v5936
    %6462 = vmatprep.subr.mxu0 %v5939
    %6463 = vmatpush1.msra.mxu0 %v5938
    %6464 = vmatprep.subr.mxu0 %v5941
    %6465 = vmatpush1.msra.mxu0 %v5940
    %6466 = vmatprep.subr.mxu0 %v5943
    %6467 = vmatpush1.msra.mxu0 %v5942
    %6468 = vmatprep.subr.mxu0 %v5945
    %6469 = vmatpush1.msra.mxu0 %v5944
    %6470 = vmatprep.subr.mxu0 %v5947
    %6471 = vmatpush1.msra.mxu0 %v5946
    %6472 = vmatprep.subr.mxu0 %v5949
    %6473 = vmatpush1.msra.mxu0 %v5948
    %6474 = vmatprep.subr.mxu0 %v5951
    %6475 = vmatpush1.msra.mxu0 %v5950
    %6476 = vmatprep.subr.mxu0 %v5953
    %6477 = vmatpush1.msra.mxu0 %v5952
    %6478 = vmatprep.subr.mxu0 %v5955
    %6479 = vmatpush1.msra.mxu0 %v5954
    %6480 = vmatprep.subr.mxu0 %v5957
    %6481 = vmatpush1.msra.mxu0 %v5956
    %6482 = vmatprep.subr.mxu0 %v5959
    %6483 = vmatpush1.msra.mxu0 %v5958
    %6484 = vmatprep.mubr.f32.mxu0 %v5877
    %6485 = vmatmul.mubr.f32.gmra.mrb[0].mxu0 %v5876
    %v6486 = vpop.f32.mrb[0].mxu0
    %v6487 = vadd.f32 %v6413, %v6486
    %v6488 = vpop.f32.mrb[0].mxu0
    %v6489 = vadd.f32 %v6417, %v6488
    %6490 = vdwg.mxu0
    %6491 = vmatprep.subr.mxu0 %v5961
    %6492 = vmatpush1.msra.mxu0 %v5960
    %6493 = vmatprep.subr.mxu0 %v5963
    %6494 = vmatpush1.msra.mxu0 %v5962
    %6495 = vmatprep.subr.mxu0 %v5965
    %6496 = vmatpush1.msra.mxu0 %v5964
    %6497 = vmatprep.subr.mxu0 %v5967
    %6498 = vmatpush1.msra.mxu0 %v5966
    %6499 = vmatprep.subr.mxu0 %v5969
    %6500 = vmatpush1.msra.mxu0 %v5968
    %6501 = vmatprep.subr.mxu0 %v5971
    %6502 = vmatpush1.msra.mxu0 %v5970
    %6503 = vmatprep.subr.mxu0 %v5973
    %6504 = vmatpush1.msra.mxu0 %v5972
    %6505 = vmatprep.subr.mxu0 %v5975
    %6506 = vmatpush1.msra.mxu0 %v5974
    %6507 = vmatprep.subr.mxu0 %v5977
    %6508 = vmatpush1.msra.mxu0 %v5976
    %6509 = vmatprep.subr.mxu0 %v5979
    %6510 = vmatpush1.msra.mxu0 %v5978
    %6511 = vmatprep.subr.mxu0 %v5981
    %6512 = vmatpush1.msra.mxu0 %v5980
    %6513 = vmatprep.subr.mxu0 %v5983
    %6514 = vmatpush1.msra.mxu0 %v5982
    %6515 = vmatprep.subr.mxu0 %v5985
    %6516 = vmatpush1.msra.mxu0 %v5984
    %6517 = vmatprep.subr.mxu0 %v5987
    %6518 = vmatpush1.msra.mxu0 %v5986
    %6519 = vmatprep.subr.mxu0 %v5989
    %6520 = vmatpush1.msra.mxu0 %v5988
    %6521 = vmatprep.subr.mxu0 %v5991
    %6522 = vmatpush1.msra.mxu0 %v5990
    %6523 = vmatprep.subr.mxu0 %v5993
    %6524 = vmatpush1.msra.mxu0 %v5992
    %6525 = vmatprep.subr.mxu0 %v5995
    %6526 = vmatpush1.msra.mxu0 %v5994
    %6527 = vmatprep.subr.mxu0 %v5997
    %6528 = vmatpush1.msra.mxu0 %v5996
    %6529 = vmatprep.subr.mxu0 %v5999
    %6530 = vmatpush1.msra.mxu0 %v5998
    %6531 = vmatprep.subr.mxu0 %v6001
    %6532 = vmatpush1.msra.mxu0 %v6000
    %6533 = vmatprep.subr.mxu0 %v6003
    %6534 = vmatpush1.msra.mxu0 %v6002
    %6535 = vmatprep.subr.mxu0 %v6005
    %6536 = vmatpush1.msra.mxu0 %v6004
    %6537 = vmatprep.subr.mxu0 %v6007
    %6538 = vmatpush1.msra.mxu0 %v6006
    %6539 = vmatprep.subr.mxu0 %v6009
    %6540 = vmatpush1.msra.mxu0 %v6008
    %6541 = vmatprep.subr.mxu0 %v6011
    %6542 = vmatpush1.msra.mxu0 %v6010
    %6543 = vmatprep.subr.mxu0 %v6013
    %6544 = vmatpush1.msra.mxu0 %v6012
    %6545 = vmatprep.subr.mxu0 %v6015
    %6546 = vmatpush1.msra.mxu0 %v6014
    %6547 = vmatprep.subr.mxu0 %v6017
    %6548 = vmatpush1.msra.mxu0 %v6016
    %6549 = vmatprep.subr.mxu0 %v6019
    %6550 = vmatpush1.msra.mxu0 %v6018
    %6551 = vmatprep.subr.mxu0 %v6021
    %6552 = vmatpush1.msra.mxu0 %v6020
    %6553 = vmatprep.subr.mxu0 %v6023
    %6554 = vmatpush1.msra.mxu0 %v6022
    %6555 = vmatprep.mubr.f32.mxu0 %v5879
    %6556 = vmatmul.mubr.f32.gmra.mrb[0].mxu0 %v5878
    %v6557 = vpop.f32.mrb[0].mxu0
    %v6558 = vadd.f32 %v6487, %v6557
    %v6559 = vpop.f32.mrb[0].mxu0
    %v6560 = vadd.f32 %v6489, %v6559
    %6561 = vdwg.mxu0
    %6562 = vmatprep.subr.mxu0 %v6025
    %6563 = vmatpush1.msra.mxu0 %v6024
    %6564 = vmatprep.subr.mxu0 %v6027
    %6565 = vmatpush1.msra.mxu0 %v6026
    %6566 = vmatprep.subr.mxu0 %v6029
    %6567 = vmatpush1.msra.mxu0 %v6028
    %6568 = vmatprep.subr.mxu0 %v6031
    %6569 = vmatpush1.msra.mxu0 %v6030
    %6570 = vmatprep.subr.mxu0 %v6033
    %6571 = vmatpush1.msra.mxu0 %v6032
    %6572 = vmatprep.subr.mxu0 %v6035
    %6573 = vmatpush1.msra.mxu0 %v6034
    %6574 = vmatprep.subr.mxu0 %v6037
    %6575 = vmatpush1.msra.mxu0 %v6036
    %6576 = vmatprep.subr.mxu0 %v6039
    %6577 = vmatpush1.msra.mxu0 %v6038
    %6578 = vmatprep.subr.mxu0 %v6041
    %6579 = vmatpush1.msra.mxu0 %v6040
    %6580 = vmatprep.subr.mxu0 %v6043
    %6581 = vmatpush1.msra.mxu0 %v6042
    %6582 = vmatprep.subr.mxu0 %v6045
    %6583 = vmatpush1.msra.mxu0 %v6044
    %6584 = vmatprep.subr.mxu0 %v6047
    %6585 = vmatpush1.msra.mxu0 %v6046
    %6586 = vmatprep.subr.mxu0 %v6049
    %6587 = vmatpush1.msra.mxu0 %v6048
    %6588 = vmatprep.subr.mxu0 %v6051
    %6589 = vmatpush1.msra.mxu0 %v6050
    %6590 = vmatprep.subr.mxu0 %v6053
    %6591 = vmatpush1.msra.mxu0 %v6052
    %6592 = vmatprep.subr.mxu0 %v6055
    %6593 = vmatpush1.msra.mxu0 %v6054
    %6594 = vmatprep.subr.mxu0 %v6057
    %6595 = vmatpush1.msra.mxu0 %v6056
    %6596 = vmatprep.subr.mxu0 %v6059
    %6597 = vmatpush1.msra.mxu0 %v6058
    %6598 = vmatprep.subr.mxu0 %v6061
    %6599 = vmatpush1.msra.mxu0 %v6060
    %6600 = vmatprep.subr.mxu0 %v6063
    %6601 = vmatpush1.msra.mxu0 %v6062
    %6602 = vmatprep.subr.mxu0 %v6065
    %6603 = vmatpush1.msra.mxu0 %v6064
    %6604 = vmatprep.subr.mxu0 %v6067
    %6605 = vmatpush1.msra.mxu0 %v6066
    %6606 = vmatprep.subr.mxu0 %v6069
    %6607 = vmatpush1.msra.mxu0 %v6068
    %6608 = vmatprep.subr.mxu0 %v6071
    %6609 = vmatpush1.msra.mxu0 %v6070
    %6610 = vmatprep.subr.mxu0 %v6073
    %6611 = vmatpush1.msra.mxu0 %v6072
    %6612 = vmatprep.subr.mxu0 %v6075
    %6613 = vmatpush1.msra.mxu0 %v6074
    %6614 = vmatprep.subr.mxu0 %v6077
    %6615 = vmatpush1.msra.mxu0 %v6076
    %6616 = vmatprep.subr.mxu0 %v6079
    %6617 = vmatpush1.msra.mxu0 %v6078
    %6618 = vmatprep.subr.mxu0 %v6081
    %6619 = vmatpush1.msra.mxu0 %v6080
    %6620 = vmatprep.subr.mxu0 %v6083
    %6621 = vmatpush1.msra.mxu0 %v6082
    %6622 = vmatprep.subr.mxu0 %v6085
    %6623 = vmatpush1.msra.mxu0 %v6084
    %6624 = vmatprep.subr.mxu0 %v6087
    %6625 = vmatpush1.msra.mxu0 %v6086
    %6626 = vmatprep.mubr.f32.mxu0 %v5881
    %6627 = vmatmul.mubr.f32.gmra.mrb[0].mxu0 %v5880
    %v6628 = vpop.f32.mrb[0].mxu0
    %v6629 = vadd.f32 %v6558, %v6628
    %v6630 = vpop.f32.mrb[0].mxu0
    %v6631 = vadd.f32 %v6560, %v6630
    %6632 = vdwg.mxu0
    %6633 = vmatprep.subr.mxu0 %v6089
    %6634 = vmatpush1.msra.mxu0 %v6088
    %6635 = vmatprep.subr.mxu0 %v6091
    %6636 = vmatpush1.msra.mxu0 %v6090
    %6637 = vmatprep.subr.mxu0 %v6093
    %6638 = vmatpush1.msra.mxu0 %v6092
    %6639 = vmatprep.subr.mxu0 %v6095
    %6640 = vmatpush1.msra.mxu0 %v6094
    %6641 = vmatprep.subr.mxu0 %v6097
    %6642 = vmatpush1.msra.mxu0 %v6096
    %6643 = vmatprep.subr.mxu0 %v6099
    %6644 = vmatpush1.msra.mxu0 %v6098
    %6645 = vmatprep.subr.mxu0 %v6101
    %6646 = vmatpush1.msra.mxu0 %v6100
    %6647 = vmatprep.subr.mxu0 %v6103
    %6648 = vmatpush1.msra.mxu0 %v6102
    %6649 = vmatprep.subr.mxu0 %v6105
    %6650 = vmatpush1.msra.mxu0 %v6104
    %6651 = vmatprep.subr.mxu0 %v6107
    %6652 = vmatpush1.msra.mxu0 %v6106
    %6653 = vmatprep.subr.mxu0 %v6109
    %6654 = vmatpush1.msra.mxu0 %v6108
    %6655 = vmatprep.subr.mxu0 %v6111
    %6656 = vmatpush1.msra.mxu0 %v6110
    %6657 = vmatprep.subr.mxu0 %v6113
    %6658 = vmatpush1.msra.mxu0 %v6112
    %6659 = vmatprep.subr.mxu0 %v6115
    %6660 = vmatpush1.msra.mxu0 %v6114
    %6661 = vmatprep.subr.mxu0 %v6117
    %6662 = vmatpush1.msra.mxu0 %v6116
    %6663 = vmatprep.subr.mxu0 %v6119
    %6664 = vmatpush1.msra.mxu0 %v6118
    %6665 = vmatprep.subr.mxu0 %v6121
    %6666 = vmatpush1.msra.mxu0 %v6120
    %6667 = vmatprep.subr.mxu0 %v6123
    %6668 = vmatpush1.msra.mxu0 %v6122
    %6669 = vmatprep.subr.mxu0 %v6125
    %6670 = vmatpush1.msra.mxu0 %v6124
    %6671 = vmatprep.subr.mxu0 %v6127
    %6672 = vmatpush1.msra.mxu0 %v6126
    %6673 = vmatprep.subr.mxu0 %v6129
    %6674 = vmatpush1.msra.mxu0 %v6128
    %6675 = vmatprep.subr.mxu0 %v6131
    %6676 = vmatpush1.msra.mxu0 %v6130
    %6677 = vmatprep.subr.mxu0 %v6133
    %6678 = vmatpush1.msra.mxu0 %v6132
    %6679 = vmatprep.subr.mxu0 %v6135
    %6680 = vmatpush1.msra.mxu0 %v6134
    %6681 = vmatprep.subr.mxu0 %v6137
    %6682 = vmatpush1.msra.mxu0 %v6136
    %6683 = vmatprep.subr.mxu0 %v6139
    %6684 = vmatpush1.msra.mxu0 %v6138
    %6685 = vmatprep.subr.mxu0 %v6141
    %6686 = vmatpush1.msra.mxu0 %v6140
    %6687 = vmatprep.subr.mxu0 %v6143
    %6688 = vmatpush1.msra.mxu0 %v6142
    %6689 = vmatprep.subr.mxu0 %v6145
    %6690 = vmatpush1.msra.mxu0 %v6144
    %6691 = vmatprep.subr.mxu0 %v6147
    %6692 = vmatpush1.msra.mxu0 %v6146
    %6693 = vmatprep.subr.mxu0 %v6149
    %6694 = vmatpush1.msra.mxu0 %v6148
    %6695 = vmatprep.subr.mxu0 %v6151
    %6696 = vmatpush1.msra.mxu0 %v6150
    %6697 = vmatprep.mubr.f32.mxu0 %v5883
    %6698 = vmatmul.mubr.f32.gmra.mrb[0].mxu0 %v5882
    %v6699 = vpop.f32.mrb[0].mxu0
    %v6700 = vadd.f32 %v6629, %v6699
    %v6701 = vpop.f32.mrb[0].mxu0
    %v6702 = vadd.f32 %v6631, %v6701
    %6703 = vdwg.mxu0
    %6704 = vmatprep.subr.mxu0 %v6153
    %6705 = vmatpush1.msra.mxu0 %v6152
    %6706 = vmatprep.subr.mxu0 %v6155
    %6707 = vmatpush1.msra.mxu0 %v6154
    %6708 = vmatprep.subr.mxu0 %v6157
    %6709 = vmatpush1.msra.mxu0 %v6156
    %6710 = vmatprep.subr.mxu0 %v6159
    %6711 = vmatpush1.msra.mxu0 %v6158
    %6712 = vmatprep.subr.mxu0 %v6161
    %6713 = vmatpush1.msra.mxu0 %v6160
    %6714 = vmatprep.subr.mxu0 %v6163
    %6715 = vmatpush1.msra.mxu0 %v6162
    %6716 = vmatprep.subr.mxu0 %v6165
    %6717 = vmatpush1.msra.mxu0 %v6164
    %6718 = vmatprep.subr.mxu0 %v6167
    %6719 = vmatpush1.msra.mxu0 %v6166
    %6720 = vmatprep.subr.mxu0 %v6169
    %6721 = vmatpush1.msra.mxu0 %v6168
    %6722 = vmatprep.subr.mxu0 %v6171
    %6723 = vmatpush1.msra.mxu0 %v6170
    %6724 = vmatprep.subr.mxu0 %v6173
    %6725 = vmatpush1.msra.mxu0 %v6172
    %6726 = vmatprep.subr.mxu0 %v6175
    %6727 = vmatpush1.msra.mxu0 %v6174
    %6728 = vmatprep.subr.mxu0 %v6177
    %6729 = vmatpush1.msra.mxu0 %v6176
    %6730 = vmatprep.subr.mxu0 %v6179
    %6731 = vmatpush1.msra.mxu0 %v6178
    %6732 = vmatprep.subr.mxu0 %v6181
    %6733 = vmatpush1.msra.mxu0 %v6180
    %6734 = vmatprep.subr.mxu0 %v6183
    %6735 = vmatpush1.msra.mxu0 %v6182
    %6736 = vmatprep.subr.mxu0 %v6185
    %6737 = vmatpush1.msra.mxu0 %v6184
    %6738 = vmatprep.subr.mxu0 %v6187
    %6739 = vmatpush1.msra.mxu0 %v6186
    %6740 = vmatprep.subr.mxu0 %v6189
    %6741 = vmatpush1.msra.mxu0 %v6188
    %6742 = vmatprep.subr.mxu0 %v6191
    %6743 = vmatpush1.msra.mxu0 %v6190
    %6744 = vmatprep.subr.mxu0 %v6193
    %6745 = vmatpush1.msra.mxu0 %v6192
    %6746 = vmatprep.subr.mxu0 %v6195
    %6747 = vmatpush1.msra.mxu0 %v6194
    %6748 = vmatprep.subr.mxu0 %v6197
    %6749 = vmatpush1.msra.mxu0 %v6196
    %6750 = vmatprep.subr.mxu0 %v6199
    %6751 = vmatpush1.msra.mxu0 %v6198
    %6752 = vmatprep.subr.mxu0 %v6201
    %6753 = vmatpush1.msra.mxu0 %v6200
    %6754 = vmatprep.subr.mxu0 %v6203
    %6755 = vmatpush1.msra.mxu0 %v6202
    %6756 = vmatprep.subr.mxu0 %v6205
    %6757 = vmatpush1.msra.mxu0 %v6204
    %6758 = vmatprep.subr.mxu0 %v6207
    %6759 = vmatpush1.msra.mxu0 %v6206
    %6760 = vmatprep.subr.mxu0 %v6209
    %6761 = vmatpush1.msra.mxu0 %v6208
    %6762 = vmatprep.subr.mxu0 %v6211
    %6763 = vmatpush1.msra.mxu0 %v6210
    %6764 = vmatprep.subr.mxu0 %v6213
    %6765 = vmatpush1.msra.mxu0 %v6212
    %6766 = vmatprep.subr.mxu0 %v6215
    %6767 = vmatpush1.msra.mxu0 %v6214
    %6768 = vmatprep.mubr.f32.mxu0 %v5885
    %6769 = vmatmul.mubr.f32.gmra.mrb[0].mxu0 %v5884
    %v6770 = vpop.f32.mrb[0].mxu0
    %v6771 = vadd.f32 %v6700, %v6770
    %v6772 = vpop.f32.mrb[0].mxu0
    %v6773 = vadd.f32 %v6702, %v6772
    %6774 = vdwg.mxu0
    %6775 = vmatprep.subr.mxu0 %v6217
    %6776 = vmatpush1.msra.mxu0 %v6216
    %6777 = vmatprep.subr.mxu0 %v6219
    %6778 = vmatpush1.msra.mxu0 %v6218
    %6779 = vmatprep.subr.mxu0 %v6221
    %6780 = vmatpush1.msra.mxu0 %v6220
    %6781 = vmatprep.subr.mxu0 %v6223
    %6782 = vmatpush1.msra.mxu0 %v6222
    %6783 = vmatprep.subr.mxu0 %v6225
    %6784 = vmatpush1.msra.mxu0 %v6224
    %6785 = vmatprep.subr.mxu0 %v6227
    %6786 = vmatpush1.msra.mxu0 %v6226
    %6787 = vmatprep.subr.mxu0 %v6229
    %6788 = vmatpush1.msra.mxu0 %v6228
    %6789 = vmatprep.subr.mxu0 %v6231
    %6790 = vmatpush1.msra.mxu0 %v6230
    %6791 = vmatprep.subr.mxu0 %v6233
    %6792 = vmatpush1.msra.mxu0 %v6232
    %6793 = vmatprep.subr.mxu0 %v6235
    %6794 = vmatpush1.msra.mxu0 %v6234
    %6795 = vmatprep.subr.mxu0 %v6237
    %6796 = vmatpush1.msra.mxu0 %v6236
    %6797 = vmatprep.subr.mxu0 %v6239
    %6798 = vmatpush1.msra.mxu0 %v6238
    %6799 = vmatprep.subr.mxu0 %v6241
    %6800 = vmatpush1.msra.mxu0 %v6240
    %6801 = vmatprep.subr.mxu0 %v6243
    %6802 = vmatpush1.msra.mxu0 %v6242
    %6803 = vmatprep.subr.mxu0 %v6245
    %6804 = vmatpush1.msra.mxu0 %v6244
    %6805 = vmatprep.subr.mxu0 %v6247
    %6806 = vmatpush1.msra.mxu0 %v6246
    %6807 = vmatprep.subr.mxu0 %v6249
    %6808 = vmatpush1.msra.mxu0 %v6248
    %6809 = vmatprep.subr.mxu0 %v6251
    %6810 = vmatpush1.msra.mxu0 %v6250
    %6811 = vmatprep.subr.mxu0 %v6253
    %6812 = vmatpush1.msra.mxu0 %v6252
    %6813 = vmatprep.subr.mxu0 %v6255
    %6814 = vmatpush1.msra.mxu0 %v6254
    %6815 = vmatprep.subr.mxu0 %v6257
    %6816 = vmatpush1.msra.mxu0 %v6256
    %6817 = vmatprep.subr.mxu0 %v6259
    %6818 = vmatpush1.msra.mxu0 %v6258
    %6819 = vmatprep.subr.mxu0 %v6261
    %6820 = vmatpush1.msra.mxu0 %v6260
    %6821 = vmatprep.subr.mxu0 %v6263
    %6822 = vmatpush1.msra.mxu0 %v6262
    %6823 = vmatprep.subr.mxu0 %v6265
    %6824 = vmatpush1.msra.mxu0 %v6264
    %6825 = vmatprep.subr.mxu0 %v6267
    %6826 = vmatpush1.msra.mxu0 %v6266
    %6827 = vmatprep.subr.mxu0 %v6269
    %6828 = vmatpush1.msra.mxu0 %v6268
    %6829 = vmatprep.subr.mxu0 %v6271
    %6830 = vmatpush1.msra.mxu0 %v6270
    %6831 = vmatprep.subr.mxu0 %v6273
    %6832 = vmatpush1.msra.mxu0 %v6272
    %6833 = vmatprep.subr.mxu0 %v6275
    %6834 = vmatpush1.msra.mxu0 %v6274
    %6835 = vmatprep.subr.mxu0 %v6277
    %6836 = vmatpush1.msra.mxu0 %v6276
    %6837 = vmatprep.subr.mxu0 %v6279
    %6838 = vmatpush1.msra.mxu0 %v6278
    %6839 = vmatprep.mubr.f32.mxu0 %v5887
    %6840 = vmatmul.mubr.f32.gmra.mrb[0].mxu0 %v5886
    %v6841 = vpop.f32.mrb[0].mxu0
    %v6842 = vadd.f32 %v6771, %v6841
    %v6843 = vpop.f32.mrb[0].mxu0
    %v6844 = vadd.f32 %v6773, %v6843
    %6845 = vdwg.mxu0
    %6846 = vmatprep.subr.mxu0 %v6281
    %6847 = vmatpush1.msra.mxu0 %v6280
    %6848 = vmatprep.subr.mxu0 %v6283
    %6849 = vmatpush1.msra.mxu0 %v6282
    %6850 = vmatprep.subr.mxu0 %v6285
    %6851 = vmatpush1.msra.mxu0 %v6284
    %6852 = vmatprep.subr.mxu0 %v6287
    %6853 = vmatpush1.msra.mxu0 %v6286
    %6854 = vmatprep.subr.mxu0 %v6289
    %6855 = vmatpush1.msra.mxu0 %v6288
    %6856 = vmatprep.subr.mxu0 %v6291
    %6857 = vmatpush1.msra.mxu0 %v6290
    %6858 = vmatprep.subr.mxu0 %v6293
    %6859 = vmatpush1.msra.mxu0 %v6292
    %6860 = vmatprep.subr.mxu0 %v6295
    %6861 = vmatpush1.msra.mxu0 %v6294
    %6862 = vmatprep.subr.mxu0 %v6297
    %6863 = vmatpush1.msra.mxu0 %v6296
    %6864 = vmatprep.subr.mxu0 %v6299
    %6865 = vmatpush1.msra.mxu0 %v6298
    %6866 = vmatprep.subr.mxu0 %v6301
    %6867 = vmatpush1.msra.mxu0 %v6300
    %6868 = vmatprep.subr.mxu0 %v6303
    %6869 = vmatpush1.msra.mxu0 %v6302
    %6870 = vmatprep.subr.mxu0 %v6305
    %6871 = vmatpush1.msra.mxu0 %v6304
    %6872 = vmatprep.subr.mxu0 %v6307
    %6873 = vmatpush1.msra.mxu0 %v6306
    %6874 = vmatprep.subr.mxu0 %v6309
    %6875 = vmatpush1.msra.mxu0 %v6308
    %6876 = vmatprep.subr.mxu0 %v6311
    %6877 = vmatpush1.msra.mxu0 %v6310
    %6878 = vmatprep.subr.mxu0 %v6313
    %6879 = vmatpush1.msra.mxu0 %v6312
    %6880 = vmatprep.subr.mxu0 %v6315
    %6881 = vmatpush1.msra.mxu0 %v6314
    %6882 = vmatprep.subr.mxu0 %v6317
    %6883 = vmatpush1.msra.mxu0 %v6316
    %6884 = vmatprep.subr.mxu0 %v6319
    %6885 = vmatpush1.msra.mxu0 %v6318
    %6886 = vmatprep.subr.mxu0 %v6321
    %6887 = vmatpush1.msra.mxu0 %v6320
    %6888 = vmatprep.subr.mxu0 %v6323
    %6889 = vmatpush1.msra.mxu0 %v6322
    %6890 = vmatprep.subr.mxu0 %v6325
    %6891 = vmatpush1.msra.mxu0 %v6324
    %6892 = vmatprep.subr.mxu0 %v6327
    %6893 = vmatpush1.msra.mxu0 %v6326
    %6894 = vmatprep.subr.mxu0 %v6329
    %6895 = vmatpush1.msra.mxu0 %v6328
    %6896 = vmatprep.subr.mxu0 %v6331
    %6897 = vmatpush1.msra.mxu0 %v6330
    %6898 = vmatprep.subr.mxu0 %v6333
    %6899 = vmatpush1.msra.mxu0 %v6332
    %6900 = vmatprep.subr.mxu0 %v6335
    %6901 = vmatpush1.msra.mxu0 %v6334
    %6902 = vmatprep.subr.mxu0 %v6337
    %6903 = vmatpush1.msra.mxu0 %v6336
    %6904 = vmatprep.subr.mxu0 %v6339
    %6905 = vmatpush1.msra.mxu0 %v6338
    %6906 = vmatprep.subr.mxu0 %v6341
    %6907 = vmatpush1.msra.mxu0 %v6340
    %6908 = vmatprep.subr.mxu0 %v6343
    %6909 = vmatpush1.msra.mxu0 %v6342
    %6910 = vmatprep.mubr.f32.mxu0 %v5889
    %6911 = vmatmul.mubr.f32.gmra.mrb[0].mxu0 %v5888
    %v6912 = vpop.f32.mrb[0].mxu0
    %v6913 = vadd.f32 %v6842, %v6912
    %v6914 = vpop.f32.mrb[0].mxu0
    %v6915 = vadd.f32 %v6844, %v6914
    %6916 = vdwg.mxu0
    %6917 = vmatprep.subr.mxu0 %v6345
    %6918 = vmatpush1.msra.mxu0 %v6344
    %6919 = vmatprep.subr.mxu0 %v6347
    %6920 = vmatpush1.msra.mxu0 %v6346
    %6921 = vmatprep.subr.mxu0 %v6349
    %6922 = vmatpush1.msra.mxu0 %v6348
    %6923 = vmatprep.subr.mxu0 %v6351
    %6924 = vmatpush1.msra.mxu0 %v6350
    %6925 = vmatprep.subr.mxu0 %v6353
    %6926 = vmatpush1.msra.mxu0 %v6352
    %6927 = vmatprep.subr.mxu0 %v6355
    %6928 = vmatpush1.msra.mxu0 %v6354
    %6929 = vmatprep.subr.mxu0 %v6357
    %6930 = vmatpush1.msra.mxu0 %v6356
    %6931 = vmatprep.subr.mxu0 %v6359
    %6932 = vmatpush1.msra.mxu0 %v6358
    %6933 = vmatprep.subr.mxu0 %v6361
    %6934 = vmatpush1.msra.mxu0 %v6360
    %6935 = vmatprep.subr.mxu0 %v6363
    %6936 = vmatpush1.msra.mxu0 %v6362
    %6937 = vmatprep.subr.mxu0 %v6365
    %6938 = vmatpush1.msra.mxu0 %v6364
    %6939 = vmatprep.subr.mxu0 %v6367
    %6940 = vmatpush1.msra.mxu0 %v6366
    %6941 = vmatprep.subr.mxu0 %v6369
    %6942 = vmatpush1.msra.mxu0 %v6368
    %6943 = vmatprep.subr.mxu0 %v6371
    %6944 = vmatpush1.msra.mxu0 %v6370
    %6945 = vmatprep.subr.mxu0 %v6373
    %6946 = vmatpush1.msra.mxu0 %v6372
    %6947 = vmatprep.subr.mxu0 %v6375
    %6948 = vmatpush1.msra.mxu0 %v6374
    %6949 = vmatprep.subr.mxu0 %v6377
    %6950 = vmatpush1.msra.mxu0 %v6376
    %6951 = vmatprep.subr.mxu0 %v6379
    %6952 = vmatpush1.msra.mxu0 %v6378
    %6953 = vmatprep.subr.mxu0 %v6381
    %6954 = vmatpush1.msra.mxu0 %v6380
    %6955 = vmatprep.subr.mxu0 %v6383
    %6956 = vmatpush1.msra.mxu0 %v6382
    %6957 = vmatprep.subr.mxu0 %v6385
    %6958 = vmatpush1.msra.mxu0 %v6384
    %6959 = vmatprep.subr.mxu0 %v6387
    %6960 = vmatpush1.msra.mxu0 %v6386
    %6961 = vmatprep.subr.mxu0 %v6389
    %6962 = vmatpush1.msra.mxu0 %v6388
    %6963 = vmatprep.subr.mxu0 %v6391
    %6964 = vmatpush1.msra.mxu0 %v6390
    %6965 = vmatprep.subr.mxu0 %v6393
    %6966 = vmatpush1.msra.mxu0 %v6392
    %6967 = vmatprep.subr.mxu0 %v6395
    %6968 = vmatpush1.msra.mxu0 %v6394
    %6969 = vmatprep.subr.mxu0 %v6397
    %6970 = vmatpush1.msra.mxu0 %v6396
    %6971 = vmatprep.subr.mxu0 %v6399
    %6972 = vmatpush1.msra.mxu0 %v6398
    %6973 = vmatprep.subr.mxu0 %v6401
    %6974 = vmatpush1.msra.mxu0 %v6400
    %6975 = vmatprep.subr.mxu0 %v6403
    %6976 = vmatpush1.msra.mxu0 %v6402
    %6977 = vmatprep.subr.mxu0 %v6405
    %6978 = vmatpush1.msra.mxu0 %v6404
    %6979 = vmatprep.subr.mxu0 %v6407
    %6980 = vmatpush1.msra.mxu0 %v6406
    %6981 = vmatprep.mubr.f32.mxu0 %v5891
    %6982 = vmatmul.mubr.f32.gmra.mrb[0].mxu0 %v5890
    %v6983 = vpop.f32.mrb[0].mxu0
    %v6984 = vadd.f32 %v6913, %v6983
    %v6985 = vpop.f32.mrb[0].mxu0
    %v6986 = vadd.f32 %v6915, %v6985
    %6987 = vdwg.mxu0
    %v6988 = vmax.f32 %v6984, 0.0
    %v6989 = vmax.f32 %v6986, 0.0
    %v6990 = vld [vmem:[%s5] sm:$0xff]
    %v6991 = vld [vmem:[%s5 + $0x8] sm:$0xff]
    %v6992 = vld [vmem:[%s5 + $0x10] sm:$0xff]
    %v6993 = vld [vmem:[%s5 + $0x18] sm:$0xff]
    %v6994 = vld [vmem:[%s5 + $0x20] sm:$0xff]
    %v6995 = vld [vmem:[%s5 + $0x28] sm:$0xff]
    %v6996 = vld [vmem:[%s5 + $0x30] sm:$0xff]
    %v6997 = vld [vmem:[%s5 + $0x38] sm:$0xff]
    %v6998 = vld [vmem:[%s5 + $0x40] sm:$0xff]
    %v6999 = vld [vmem:[%s5 + $0x48] sm:$0xff]
    %v7000 = vld [vmem:[%s5 + $0x50] sm:$0xff]
    %v7001 = vld [vmem:[%s5 + $0x58] sm:$0xff]
    %v7002 = vld [vmem:[%s5 + $0x60] sm:$0xff]
    %v7003 = vld [vmem:[%s5 + $0x68] sm:$0xff]
    %v7004 = vld [vmem:[%s5 + $0x70] sm:$0xff]
    %v7005 = vld [vmem:[%s5 + $0x78] sm:$0xff]
    %v7006 = vld [vmem:[%s5 + $0x80] sm:$0xff]
    %v7007 = vld [vmem:[%s5 + $0x88] sm:$0xff]
    %v7008 = vld [vmem:[%s5 + $0x90] sm:$0xff]
    %v7009 = vld [vmem:[%s5 + $0x98] sm:$0xff]
    %v7010 = vld [vmem:[%s5 + $0xa0] sm:$0xff]
    %v7011 = vld [vmem:[%s5 + $0xa8] sm:$0xff]
    %v7012 = vld [vmem:[%s5 + $0xb0] sm:$0xff]
    %v7013 = vld [vmem:[%s5 + $0xb8] sm:$0xff]
    %v7014 = vld [vmem:[%s5 + $0xc0] sm:$0xff]
    %v7015 = vld [vmem:[%s5 + $0xc8] sm:$0xff]
    %v7016 = vld [vmem:[%s5 + $0xd0] sm:$0xff]
    %v7017 = vld [vmem:[%s5 + $0xd8] sm:$0xff]
    %v7018 = vld [vmem:[%s5 + $0xe0] sm:$0xff]
    %v7019 = vld [vmem:[%s5 + $0xe8] sm:$0xff]
    %v7020 = vld [vmem:[%s5 + $0xf0] sm:$0xff]
    %v7021 = vld [vmem:[%s5 + $0xf8] sm:$0xff]
    %v7022 = vld [vmem:[%s6] sm:$0x1]
    %v7024 = vlaneseq
    %v7025 = vshrl.u32 %v7024, 7
    %v7026 = vsub.s32 0, %v7025
    %v7027 = vrot.slane %v7022, %v7026
    %7029 = vmatprep.subr.mxu0 0.0
    %7030 = vmatpush1.msra.mxu0 %v6990
    %7031 = vmatprep.subr.mxu0 0.0
    %7032 = vmatpush1.msra.mxu0 %v6991
    %7033 = vmatprep.subr.mxu0 0.0
    %7034 = vmatpush1.msra.mxu0 %v6992
    %7035 = vmatprep.subr.mxu0 0.0
    %7036 = vmatpush1.msra.mxu0 %v6993
    %7037 = vmatprep.subr.mxu0 0.0
    %7038 = vmatpush1.msra.mxu0 %v6994
    %7039 = vmatprep.subr.mxu0 0.0
    %7040 = vmatpush1.msra.mxu0 %v6995
    %7041 = vmatprep.subr.mxu0 0.0
    %7042 = vmatpush1.msra.mxu0 %v6996
    %7043 = vmatprep.subr.mxu0 0.0
    %7044 = vmatpush1.msra.mxu0 %v6997
    %7045 = vmatprep.subr.mxu0 0.0
    %7046 = vmatpush1.msra.mxu0 %v6998
    %7047 = vmatprep.subr.mxu0 0.0
    %7048 = vmatpush1.msra.mxu0 %v6999
    %7049 = vmatprep.subr.mxu0 0.0
    %7050 = vmatpush1.msra.mxu0 %v7000
    %7051 = vmatprep.subr.mxu0 0.0
    %7052 = vmatpush1.msra.mxu0 %v7001
    %7053 = vmatprep.subr.mxu0 0.0
    %7054 = vmatpush1.msra.mxu0 %v7002
    %7055 = vmatprep.subr.mxu0 0.0
    %7056 = vmatpush1.msra.mxu0 %v7003
    %7057 = vmatprep.subr.mxu0 0.0
    %7058 = vmatpush1.msra.mxu0 %v7004
    %7059 = vmatprep.subr.mxu0 0.0
    %7060 = vmatpush1.msra.mxu0 %v7005
    %7061 = vmatprep.subr.mxu0 0.0
    %7062 = vmatpush1.msra.mxu0 %v7006
    %7063 = vmatprep.subr.mxu0 0.0
    %7064 = vmatpush1.msra.mxu0 %v7007
    %7065 = vmatprep.subr.mxu0 0.0
    %7066 = vmatpush1.msra.mxu0 %v7008
    %7067 = vmatprep.subr.mxu0 0.0
    %7068 = vmatpush1.msra.mxu0 %v7009
    %7069 = vmatprep.subr.mxu0 0.0
    %7070 = vmatpush1.msra.mxu0 %v7010
    %7071 = vmatprep.subr.mxu0 0.0
    %7072 = vmatpush1.msra.mxu0 %v7011
    %7073 = vmatprep.subr.mxu0 0.0
    %7074 = vmatpush1.msra.mxu0 %v7012
    %7075 = vmatprep.subr.mxu0 0.0
    %7076 = vmatpush1.msra.mxu0 %v7013
    %7077 = vmatprep.subr.mxu0 0.0
    %7078 = vmatpush1.msra.mxu0 %v7014
    %7079 = vmatprep.subr.mxu0 0.0
    %7080 = vmatpush1.msra.mxu0 %v7015
    %7081 = vmatprep.subr.mxu0 0.0
    %7082 = vmatpush1.msra.mxu0 %v7016
    %7083 = vmatprep.subr.mxu0 0.0
    %7084 = vmatpush1.msra.mxu0 %v7017
    %7085 = vmatprep.subr.mxu0 0.0
    %7086 = vmatpush1.msra.mxu0 %v7018
    %7087 = vmatprep.subr.mxu0 0.0
    %7088 = vmatpush1.msra.mxu0 %v7019
    %7089 = vmatprep.subr.mxu0 0.0
    %7090 = vmatpush1.msra.mxu0 %v7020
    %7091 = vmatprep.subr.mxu0 0.0
    %7092 = vmatpush1.msra.mxu0 %v7021
    %7093 = vmatprep.mubr.f32.mxu0 %v6989
    %7094 = vmatmul.mubr.f32.gmra.mrb[0].mxu0 %v6988
    %v7095 = vpop.f32.mrb[0].mxu0
    %v7096 = vadd.f32 %v7027, %v7095
    %v7097 = vpop.f32.mrb[0].mxu0
    %7098 = vdwg.mxu0
    %v7099 = vmax.f32 %v7096, 0.0
    %v7100 = vld [vmem:[%s7] sm:$0xff]
    %v7101 = vld [vmem:[%s7 + $0x8] sm:$0xff]
    %v7102 = vld [vmem:[%s7 + $0x10] sm:$0xff]
    %v7103 = vld [vmem:[%s7 + $0x18] sm:$0xff]
    %v7104 = vld [vmem:[%s7 + $0x20] sm:$0xff]
    %v7105 = vld [vmem:[%s7 + $0x28] sm:$0xff]
    %v7106 = vld [vmem:[%s7 + $0x30] sm:$0xff]
    %v7107 = vld [vmem:[%s7 + $0x38] sm:$0xff]
    %v7108 = vld [vmem:[%s7 + $0x40] sm:$0xff]
    %v7109 = vld [vmem:[%s7 + $0x48] sm:$0xff]
    %v7110 = vld [vmem:[%s7 + $0x50] sm:$0xff]
    %v7111 = vld [vmem:[%s7 + $0x58] sm:$0xff]
    %v7112 = vld [vmem:[%s7 + $0x60] sm:$0xff]
    %v7113 = vld [vmem:[%s7 + $0x68] sm:$0xff]
    %v7114 = vld [vmem:[%s7 + $0x70] sm:$0xff]
    %v7115 = vld [vmem:[%s7 + $0x78] sm:$0xff]
    %v7116 = vld [vmem:[%s8] sm:$0x1]
    %v7118 = vlaneseq
    %v7119 = vshrl.u32 %v7118, 7
    %v7120 = vsub.s32 0, %v7119
    %v7121 = vrot.slane %v7116, %v7120
    %7123 = vmatprep.subr.mxu0 0.0
    %7124 = vmatpush1.msra.mxu0 %v7100
    %7125 = vmatprep.subr.mxu0 0.0
    %7126 = vmatpush1.msra.mxu0 %v7101
    %7127 = vmatprep.subr.mxu0 0.0
    %7128 = vmatpush1.msra.mxu0 %v7102
    %7129 = vmatprep.subr.mxu0 0.0
    %7130 = vmatpush1.msra.mxu0 %v7103
    %7131 = vmatprep.subr.mxu0 0.0
    %7132 = vmatpush1.msra.mxu0 %v7104
    %7133 = vmatprep.subr.mxu0 0.0
    %7134 = vmatpush1.msra.mxu0 %v7105
    %7135 = vmatprep.subr.mxu0 0.0
    %7136 = vmatpush1.msra.mxu0 %v7106
    %7137 = vmatprep.subr.mxu0 0.0
    %7138 = vmatpush1.msra.mxu0 %v7107
    %7139 = vmatprep.subr.mxu0 0.0
    %7140 = vmatpush1.msra.mxu0 %v7108
    %7141 = vmatprep.subr.mxu0 0.0
    %7142 = vmatpush1.msra.mxu0 %v7109
    %7143 = vmatprep.subr.mxu0 0.0
    %7144 = vmatpush1.msra.mxu0 %v7110
    %7145 = vmatprep.subr.mxu0 0.0
    %7146 = vmatpush1.msra.mxu0 %v7111
    %7147 = vmatprep.subr.mxu0 0.0
    %7148 = vmatpush1.msra.mxu0 %v7112
    %7149 = vmatprep.subr.mxu0 0.0
    %7150 = vmatpush1.msra.mxu0 %v7113
    %7151 = vmatprep.subr.mxu0 0.0
    %7152 = vmatpush1.msra.mxu0 %v7114
    %7153 = vmatprep.subr.mxu0 0.0
    %7154 = vmatpush1.msra.mxu0 %v7115
    %7155 = vmatprep.subr.mxu0 0.0
    %7156 = vmatpush1.msra.mxu0 0.0
    %7157 = vmatprep.subr.mxu0 0.0
    %7158 = vmatpush1.msra.mxu0 0.0
    %7159 = vmatprep.subr.mxu0 0.0
    %7160 = vmatpush1.msra.mxu0 0.0
    %7161 = vmatprep.subr.mxu0 0.0
    %7162 = vmatpush1.msra.mxu0 0.0
    %7163 = vmatprep.subr.mxu0 0.0
    %7164 = vmatpush1.msra.mxu0 0.0
    %7165 = vmatprep.subr.mxu0 0.0
    %7166 = vmatpush1.msra.mxu0 0.0
    %7167 = vmatprep.subr.mxu0 0.0
    %7168 = vmatpush1.msra.mxu0 0.0
    %7169 = vmatprep.subr.mxu0 0.0
    %7170 = vmatpush1.msra.mxu0 0.0
    %7171 = vmatprep.subr.mxu0 0.0
    %7172 = vmatpush1.msra.mxu0 0.0
    %7173 = vmatprep.subr.mxu0 0.0
    %7174 = vmatpush1.msra.mxu0 0.0
    %7175 = vmatprep.subr.mxu0 0.0
    %7176 = vmatpush1.msra.mxu0 0.0
    %7177 = vmatprep.subr.mxu0 0.0
    %7178 = vmatpush1.msra.mxu0 0.0
    %7179 = vmatprep.subr.mxu0 0.0
    %7180 = vmatpush1.msra.mxu0 0.0
    %7181 = vmatprep.subr.mxu0 0.0
    %7182 = vmatpush1.msra.mxu0 0.0
    %7183 = vmatprep.subr.mxu0 0.0
    %7184 = vmatpush1.msra.mxu0 0.0
    %7185 = vmatprep.subr.mxu0 0.0
    %7186 = vmatpush1.msra.mxu0 0.0
    %7187 = vmatprep.mubr.f32.mxu0 0.0
    %7188 = vmatmul.mubr.f32.gmra.mrb[0].mxu0 %v7099
    %v7189 = vpop.f32.mrb[0].mxu0
    %v7190 = vadd.f32 %v7121, %v7189
    %v7191 = vpop.f32.mrb[0].mxu0
    %7192 = vdwg.mxu0
    %v7193 = vmax.f32 %v7190, 0.0
    %v7194 = vld [vmem:[%s9] sm:$0xff]
    %v7195 = vld [vmem:[%s9 + $0x8] sm:$0xff]
    %v7196 = vld [vmem:[%s9 + $0x10] sm:$0xff]
    %v7197 = vld [vmem:[%s9 + $0x18] sm:$0xff]
    %v7198 = vld [vmem:[%s9 + $0x20] sm:$0xff]
    %v7199 = vld [vmem:[%s9 + $0x28] sm:$0xff]
    %v7200 = vld [vmem:[%s9 + $0x30] sm:$0xff]
    %v7201 = vld [vmem:[%s9 + $0x38] sm:$0xff]
    %v7202 = vld [vmem:[%s10] sm:$0x1]
    %v7204 = vlaneseq
    %v7205 = vshrl.u32 %v7204, 7
    %v7206 = vsub.s32 0, %v7205
    %v7207 = vrot.slane %v7202, %v7206
    %vm7209 = vcmask 523264
    %v7211 = vsel %vm7209, %v7193, 0
    %7213 = vmatprep.subr.mxu0 0.0
    %7214 = vmatpush1.msra.mxu0 %v7194
    %7215 = vmatprep.subr.mxu0 0.0
    %7216 = vmatpush1.msra.mxu0 %v7195
    %7217 = vmatprep.subr.mxu0 0.0
    %7218 = vmatpush1.msra.mxu0 %v7196
    %7219 = vmatprep.subr.mxu0 0.0
    %7220 = vmatpush1.msra.mxu0 %v7197
    %7221 = vmatprep.subr.mxu0 0.0
    %7222 = vmatpush1.msra.mxu0 %v7198
    %7223 = vmatprep.subr.mxu0 0.0
    %7224 = vmatpush1.msra.mxu0 %v7199
    %7225 = vmatprep.subr.mxu0 0.0
    %7226 = vmatpush1.msra.mxu0 %v7200
    %7227 = vmatprep.subr.mxu0 0.0
    %7228 = vmatpush1.msra.mxu0 %v7201
    %7229 = vmatprep.subr.mxu0 0.0
    %7230 = vmatpush1.msra.mxu0 0.0
    %7231 = vmatprep.subr.mxu0 0.0
    %7232 = vmatpush1.msra.mxu0 0.0
    %7233 = vmatprep.subr.mxu0 0.0
    %7234 = vmatpush1.msra.mxu0 0.0
    %7235 = vmatprep.subr.mxu0 0.0
    %7236 = vmatpush1.msra.mxu0 0.0
    %7237 = vmatprep.subr.mxu0 0.0
    %7238 = vmatpush1.msra.mxu0 0.0
    %7239 = vmatprep.subr.mxu0 0.0
    %7240 = vmatpush1.msra.mxu0 0.0
    %7241 = vmatprep.subr.mxu0 0.0
    %7242 = vmatpush1.msra.mxu0 0.0
    %7243 = vmatprep.subr.mxu0 0.0
    %7244 = vmatpush1.msra.mxu0 0.0
    %7245 = vmatprep.subr.mxu0 0.0
    %7246 = vmatpush1.msra.mxu0 0.0
    %7247 = vmatprep.subr.mxu0 0.0
    %7248 = vmatpush1.msra.mxu0 0.0
    %7249 = vmatprep.subr.mxu0 0.0
    %7250 = vmatpush1.msra.mxu0 0.0
    %7251 = vmatprep.subr.mxu0 0.0
    %7252 = vmatpush1.msra.mxu0 0.0
    %7253 = vmatprep.subr.mxu0 0.0
    %7254 = vmatpush1.msra.mxu0 0.0
    %7255 = vmatprep.subr.mxu0 0.0
    %7256 = vmatpush1.msra.mxu0 0.0
    %7257 = vmatprep.subr.mxu0 0.0
    %7258 = vmatpush1.msra.mxu0 0.0
    %7259 = vmatprep.subr.mxu0 0.0
    %7260 = vmatpush1.msra.mxu0 0.0
    %7261 = vmatprep.subr.mxu0 0.0
    %7262 = vmatpush1.msra.mxu0 0.0
    %7263 = vmatprep.subr.mxu0 0.0
    %7264 = vmatpush1.msra.mxu0 0.0
    %7265 = vmatprep.subr.mxu0 0.0
    %7266 = vmatpush1.msra.mxu0 0.0
    %7267 = vmatprep.subr.mxu0 0.0
    %7268 = vmatpush1.msra.mxu0 0.0
    %7269 = vmatprep.subr.mxu0 0.0
    %7270 = vmatpush1.msra.mxu0 0.0
    %7271 = vmatprep.subr.mxu0 0.0
    %7272 = vmatpush1.msra.mxu0 0.0
    %7273 = vmatprep.subr.mxu0 0.0
    %7274 = vmatpush1.msra.mxu0 0.0
    %7275 = vmatprep.subr.mxu0 0.0
    %7276 = vmatpush1.msra.mxu0 0.0
    %7277 = vmatprep.mubr.f32.mxu0 0.0
    %7278 = vmatmul.mubr.f32.gmra.mrb[0].mxu0 %v7211
    %v7279 = vpop.f32.mrb[0].mxu0
    %v7280 = vadd.f32 %v7207, %v7279
    %v7281 = vpop.f32.mrb[0].mxu0
    %7282 = vdwg.mxu0
    %v7283 = vtanh.pop %v7280
    %vm7284 = vcmask 25600
    %7285 = vst.msk [vmem:[#allocation5] sm:$0x3] %vm7284, %v7283
    // Predicated region
    $region114: #{actor_forward.1} parent=1 // pred_check
      _
    $region115: #{actor_forward.1} parent=1 // pred_check_branch
      %7287 = sbr.rel (0) target = $region117
    $region116: #{actor_forward.1} parent=1 // pred_region
      %s7289 = ssub.s32 32, 32
      %7290 = vsyncadd [#allocation6], %s7289
      %s7292 = sshll.u32 [#allocation5], 4
      %s7293 = int_to_ptr.vmem [resolvable:$true] %s7292
      %7295 = dma.vmem_to_hbm [thread:$0]  %s7293, 32, %s13, [#allocation6]
    $region117: #{actor_forward.1} parent=1 // pred_fallthru
      _
    // Predicated region
    $region118: #{actor_forward.1} parent=1 // pred_check
      _
    $region119: #{actor_forward.1} parent=1 // pred_check_branch
      %7297 = sbr.rel (0) target = $region121
    $region120: #{actor_forward.1} parent=1 // pred_region
      %7298 = dma.done [#allocation6], 32
    $region121: #{actor_forward.1} parent=1 // pred_fallthru
      _
    %7299 = vsyncpa [#allocation6], 1
  %7300 = vsyncmov [#allocation4]
  %s7301 = vpop.sfrf %7300
  %p7302 = scmp.eq.s32.totalorder %s7301, 0
  %p7303 = pneg %p7302
  %7305 = shalt.err (%p7303)
  %s7306 = scalar_lea.sflag [#allocation4], 1
  %7307 = vsyncmov %s7306
  %s7308 = vpop.sfrf %7307
  %p7309 = scmp.eq.s32.totalorder %s7308, 0
  %p7310 = pneg %p7309
  %7312 = shalt.err (%p7310)

</llo_original>
